<compile_context>
chip_gen: v5e
topology: v5e:2x2
jax: 0.10.0
libtpu: 0.0.40
codegen_flags: <defaults>
</compile_context>

<pallas_src>
import functools

import jax
import jax.numpy as jnp
from jax import lax
from jax.experimental import pallas as pl
from jax.experimental.pallas import tpu as pltpu

EPS = 1e-5  # nn.BatchNorm2d default eps


def _round_up(x, m):
    return ((x + m - 1) // m) * m


def _compiler_params():
    """Generation-aware compiler params (vmem cap differs v7x vs v5e/v6e)."""
    kw = dict(dimension_semantics=("parallel",))
    try:
        cap = int(pltpu.get_tpu_info().vmem_capacity_bytes)
        kw["vmem_limit_bytes"] = min(cap * 3 // 4, 100 * 1024 * 1024)
    except Exception:
        pass  # leave the backend default
    return pltpu.CompilerParams(**kw)


# --------------------------------------------------------------------------- #
# In-kernel helpers
# --------------------------------------------------------------------------- #
def _conv3x3_acc(get_rows, w_ref, H, Wpad):
    """Return (H*Wpad, Cout) f32 accumulation of the 9 conv taps.

    get_rows(dy) -> (H, Wpad, Cin) f32 slab of rows dy..dy+H of the zero-padded
    input.  dx taps are sublane rotations (pltpu.roll, XLU slot); wrap-around only
    pollutes padding columns, which are never treated as valid.  MXU operands are
    bf16, accumulation is f32 (value-based: no scratch ref, no zero-fill — the
    first tap assigns).  Casts are per-tap (VPU has slack in this mem-bound kernel;
    rolls stay on f32 to avoid packed-sublane-roll lowering risk).
    """
    acc = None
    for dy in range(3):
        rows = get_rows(dy)                                   # (H, Wpad, Cin) f32
        cin = rows.shape[-1]
        for dx in range(3):
            sh = (1 - dx) % Wpad
            shifted = rows if sh == 0 else pltpu.roll(rows, shift=sh, axis=1)
            tap = jnp.dot(
                shifted.reshape(H * Wpad, cin).astype(jnp.bfloat16),
                w_ref[3 * dy + dx],
                preferred_element_type=jnp.float32)
            acc = tap if acc is None else acc + tap
    return acc


def _masked_partial_stats(acc3, valid):
    """Per-channel [sum, sum-of-squares] over valid (non-padding) positions."""
    m = jnp.where(valid, acc3, 0.0).reshape(-1, acc3.shape[-1])   # (H*Wpad, C)
    s = jnp.sum(m, axis=0, keepdims=True)
    ss = jnp.sum(m * m, axis=0, keepdims=True)
    return jnp.concatenate([s, ss], axis=0)                       # (2, C)


# --------------------------------------------------------------------------- #
# Kernels (grid = (N,), one image per grid step)
# --------------------------------------------------------------------------- #
def _conv1_kernel(x_ref, w_ref, o_ref, st_ref, *, valid_w):
    # x_ref : (1, H+2, Wpad, Cin_p) zero-padded input, f32
    # w_ref : (9, Cin_p, Cmid_p)    bf16 taps, index = 3*dy + dx
    # o_ref : (1, H, Wpad, Cmid_p)  raw conv1 output (pre-BN), bf16
    # st_ref: (1, 2, Cmid_p)        per-image [sum, sumsq] over valid positions, f32
    Hp, Wpad = x_ref.shape[1], x_ref.shape[2]
    H = Hp - 2
    acc = _conv3x3_acc(lambda dy: x_ref[0, dy:dy + H, :, :], w_ref, H, Wpad)
    acc3 = acc.reshape(H, Wpad, acc.shape[-1])

    col = lax.broadcasted_iota(jnp.int32, acc3.shape, 1)
    valid = (col >= 1) & (col <= valid_w)
    st_ref[0] = _masked_partial_stats(acc3, valid)        # stats from f32 (exact)
    o_ref[0] = acc3.astype(o_ref.dtype)                    # bf16 to HBM


def _bn_relu_conv_kernel(y_ref, sc_ref, sh_ref, w_ref, o_ref, st_ref,
                         ypad_ref, *, valid_w):
    # y_ref : (1, H, Wpad, Cmid_p)  raw conv1 output, bf16
    # sc_ref/sh_ref: (1, Cmid_p)    fused BN1 scale/shift (global batch stats), f32
    # w_ref : (9, Cmid_p, Cout_p)   bf16 taps
    # o_ref : (1, H, Wpad, Cout_p)  raw conv2 output (pre-BN), bf16
    # st_ref: (1, 2, Cout_p)        per-image [sum, sumsq], f32
    # ypad_ref: VMEM (H+2, Wpad, Cmid_p) f32 — conv2 input with zero borders
    H, Wpad, Cmid = y_ref.shape[1], y_ref.shape[2], y_ref.shape[3]

    col = lax.broadcasted_iota(jnp.int32, (H, Wpad, Cmid), 1)
    valid_in = (col >= 1) & (col <= valid_w)
    y1 = jnp.maximum(y_ref[0].astype(jnp.float32) * sc_ref[...] + sh_ref[...], 0.0)
    # Interior rows written once; padding columns forced to zero (they hold roll
    # wrap-around garbage).  Only the two 1-row borders get a zero fill.
    ypad_ref[1:H + 1, :, :] = jnp.where(valid_in, y1, 0.0)
    zrow = jnp.zeros((1, Wpad, Cmid), jnp.float32)
    ypad_ref[0:1, :, :] = zrow
    ypad_ref[H + 1:H + 2, :, :] = zrow

    acc = _conv3x3_acc(lambda dy: ypad_ref[dy:dy + H, :, :], w_ref, H, Wpad)
    acc3 = acc.reshape(H, Wpad, acc.shape[-1])

    colo = lax.broadcasted_iota(jnp.int32, acc3.shape, 1)
    valid_out = (colo >= 1) & (colo <= valid_w)
    st_ref[0] = _masked_partial_stats(acc3, valid_out)
    o_ref[0] = acc3.astype(o_ref.dtype)                    # bf16 to HBM


def _bn_relu_crop_kernel(y_ref, sc_ref, sh_ref, o_ref, *, valid_w):
    # Elementwise epilogue: BN2 affine + ReLU, W-halo cropped in-kernel.
    # y_ref: (1, H, Wpad, Cout_p) bf16 ; o_ref: (1, H, W, Cout_p) f32
    y = y_ref[0].astype(jnp.float32)[:, 1:valid_w + 1, :]
    o_ref[0] = jnp.maximum(y * sc_ref[...] + sh_ref[...], 0.0)


# --------------------------------------------------------------------------- #
# Wrapper
# --------------------------------------------------------------------------- #
def _fused_bn_affine(stats, gamma, beta, count):
    """(N, 2, C) per-image [sum, sumsq] -> (1, C) scale/shift with batch stats."""
    s = jnp.sum(stats[:, 0, :], axis=0)
    ss = jnp.sum(stats[:, 1, :], axis=0)
    mean = s / count
    var = jnp.maximum(ss / count - mean * mean, 0.0)    # biased variance (training BN)
    scale = gamma * lax.rsqrt(var + EPS)
    shift = beta - mean * scale
    return scale[None, :], shift[None, :]


@jax.jit
def double_conv_forward(params, x_nchw):
    """DoubleConv forward.  Input/output are NCHW like PyTorch."""
    N, Cin, H, W = x_nchw.shape
    Cmid = params["w1"].shape[0]
    Cout = params["w2"].shape[0]
    Cin_p, Cmid_p, Cout_p = (_round_up(c, 128) for c in (Cin, Cmid, Cout))
    Hp = H + 2
    Wpad = _round_up(W + 2, 16)       # >= W + 2 zero columns, bf16-sublane aligned

    # NCHW -> NHWC (channels on the lane axis), zero-pad halo + channels.
    x = jnp.transpose(x_nchw, (0, 2, 3, 1)).astype(jnp.float32)
    x = jnp.pad(x, ((0, 0), (1, 1), (1, Wpad - W - 1), (0, Cin_p - Cin)))

    def prep_w(w_oihw, ci_p, co_p):   # torch (O, I, 3, 3) -> (9, I_p, O_p) bf16
        w = jnp.transpose(w_oihw, (2, 3, 1, 0)).astype(jnp.float32)
        w = jnp.pad(w, ((0, 0), (0, 0),
                        (0, ci_p - w.shape[2]), (0, co_p - w.shape[3])))
        return w.reshape(9, ci_p, co_p).astype(jnp.bfloat16)

    w1 = prep_w(params["w1"], Cin_p, Cmid_p)
    w2 = prep_w(params["w2"], Cmid_p, Cout_p)
    g1 = jnp.pad(params["g1"].astype(jnp.float32), (0, Cmid_p - Cmid))
    b1 = jnp.pad(params["b1"].astype(jnp.float32), (0, Cmid_p - Cmid))
    g2 = jnp.pad(params["g2"].astype(jnp.float32), (0, Cout_p - Cout))
    b2 = jnp.pad(params["b2"].astype(jnp.float32), (0, Cout_p - Cout))

    cparams = _compiler_params()
    count = jnp.float32(N * H * W)

    # ---- stage 1: conv1 (raw, bf16 out) + per-image BN partial sums --------- #
    conv1, st1 = pl.pallas_call(
        functools.partial(_conv1_kernel, valid_w=W),
        grid=(N,),
        in_specs=[
            pl.BlockSpec((1, Hp, Wpad, Cin_p), lambda n: (n, 0, 0, 0)),
            pl.BlockSpec((9, Cin_p, Cmid_p), lambda n: (0, 0, 0)),
        ],
        out_specs=(
            pl.BlockSpec((1, H, Wpad, Cmid_p), lambda n: (n, 0, 0, 0)),
            pl.BlockSpec((1, 2, Cmid_p), lambda n: (n, 0, 0)),
        ),
        out_shape=(
            jax.ShapeDtypeStruct((N, H, Wpad, Cmid_p), jnp.bfloat16),
            jax.ShapeDtypeStruct((N, 2, Cmid_p), jnp.float32),
        ),
        compiler_params=cparams,
    )(x, w1)
    sc1, sh1 = _fused_bn_affine(st1, g1, b1, count)

    # ---- stage 2: BN1 + ReLU + conv2 (raw, bf16 out) + BN partial sums ------ #
    conv2, st2 = pl.pallas_call(
        functools.partial(_bn_relu_conv_kernel, valid_w=W),
        grid=(N,),
        in_specs=[
            pl.BlockSpec((1, H, Wpad, Cmid_p), lambda n: (n, 0, 0, 0)),
            pl.BlockSpec((1, Cmid_p), lambda n: (0, 0)),
            pl.BlockSpec((1, Cmid_p), lambda n: (0, 0)),
            pl.BlockSpec((9, Cmid_p, Cout_p), lambda n: (0, 0, 0)),
        ],
        out_specs=(
            pl.BlockSpec((1, H, Wpad, Cout_p), lambda n: (n, 0, 0, 0)),
            pl.BlockSpec((1, 2, Cout_p), lambda n: (n, 0, 0)),
        ),
        out_shape=(
            jax.ShapeDtypeStruct((N, H, Wpad, Cout_p), jnp.bfloat16),
            jax.ShapeDtypeStruct((N, 2, Cout_p), jnp.float32),
        ),
        scratch_shapes=[pltpu.VMEM((Hp, Wpad, Cmid_p), jnp.float32)],
        compiler_params=cparams,
    )(conv1, sc1, sh1, w2)
    sc2, sh2 = _fused_bn_affine(st2, g2, b2, count)

    # ---- stage 3: BN2 + ReLU, W-halo cropped in-kernel ----------------------- #
    y = pl.pallas_call(
        functools.partial(_bn_relu_crop_kernel, valid_w=W),
        grid=(N,),
        in_specs=[
            pl.BlockSpec((1, H, Wpad, Cout_p), lambda n: (n, 0, 0, 0)),
            pl.BlockSpec((1, Cout_p), lambda n: (0, 0)),
            pl.BlockSpec((1, Cout_p), lambda n: (0, 0)),
        ],
        out_specs=pl.BlockSpec((1, H, W, Cout_p), lambda n: (n, 0, 0, 0)),
        out_shape=jax.ShapeDtypeStruct((N, H, W, Cout_p), jnp.float32),
        compiler_params=cparams,
    )(conv2, sc2, sh2)

    # Strip channel padding, back to NCHW (skip if the consumer accepts NHWC).
    return jnp.transpose(y[..., :Cout], (0, 3, 1, 2))


# --------------------------------------------------------------------------- #
# Pure-JAX reference (mirrors the kernel's bf16 quantization points:
# bf16 MXU operands + bf16 inter-stage storage, f32 BN statistics)
# --------------------------------------------------------------------------- #
def double_conv_reference(params, x_nchw):
    q32 = lambda a: a.astype(jnp.bfloat16).astype(jnp.float32)
    x = jnp.transpose(x_nchw, (0, 2, 3, 1)).astype(jnp.float32)

    def conv(v, w_oihw):
        w = jnp.transpose(w_oihw, (2, 3, 1, 0)).astype(jnp.float32)   # HWIO
        return lax.conv_general_dilated(
            q32(v), q32(w), (1, 1), "SAME",
            dimension_numbers=("NHWC", "HWIO", "NHWC"))

    def bn_relu(stats_src, apply_to, g, b):
        m = jnp.mean(stats_src, axis=(0, 1, 2))
        var = jnp.mean((stats_src - m) ** 2, axis=(0, 1, 2))
        scale = g * lax.rsqrt(var + EPS)
        return jnp.maximum(apply_to * scale + (b - m * scale), 0.0)

    c1 = conv(x, params["w1"])                                   # f32 acc of bf16 ops
    y1 = bn_relu(c1, q32(c1), params["g1"], params["b1"])        # bf16 HBM storage
    c2 = conv(y1, params["w2"])
    y2 = bn_relu(c2, q32(c2), params["g2"], params["b2"])
    return jnp.transpose(y2, (0, 3, 1, 2))


# --------------------------------------------------------------------------- #
if __name__ == "__main__":
    key = jax.random.PRNGKey(0)
    kx, kw1, kw2, kg1, kb1, kg2, kb2 = jax.random.split(key, 7)

    N, Cin, H, W = 2, 4, 16, 16
    Cout = 8                      # DoubleConv(4, 8) -> mid_channels = 8
    Cmid = Cout

    params = {
        # PyTorch layouts: Conv2d weight (O, I, 3, 3); BN gamma/beta (C,)
        "w1": 0.25 * jax.random.normal(kw1, (Cmid, Cin, 3, 3), jnp.float32),
        "w2": 0.25 * jax.random.normal(kw2, (Cout, Cmid, 3, 3), jnp.float32),
        "g1": 1.0 + 0.1 * jax.random.normal(kg1, (Cmid,), jnp.float32),
        "b1": 0.1 * jax.random.normal(kb1, (Cmid,), jnp.float32),
        "g2": 1.0 + 0.1 * jax.random.normal(kg2, (Cout,), jnp.float32),
        "b2": 0.1 * jax.random.normal(kb2, (Cout,), jnp.float32),
    }
    x = jax.random.normal(kx, (N, Cin, H, W), jnp.float32)

    out = jax.block_until_ready(double_conv_forward(params, x))
    assert out.shape == (N, Cout, H, W), out.shape

    ref = jax.block_until_ready(double_conv_reference(params, x))
    err = float(jnp.max(jnp.abs(out - ref)))
    assert err < 2e-2, f"max abs err {err}"

    print("KERNEL_OK")
</pallas_src>

<mosaic_0001>
module attributes {stable_mosaic.version = 11 : i64} {
  func.func @_conv1_kernel(%arg0: i32, %arg1: memref<1x18x32x128xf32, #tpu.memory_space<vmem>>, %arg2: memref<9x128x128xbf16, #tpu.memory_space<vmem>>, %arg3: memref<1x16x32x128xbf16, #tpu.memory_space<vmem>>, %arg4: memref<1x2x128xf32, #tpu.memory_space<vmem>>) attributes {dimension_semantics = [#tpu.dimension_semantics<parallel>], iteration_bounds = array<i64: 2>, scalar_prefetch = 0 : i64, scratch_operands = 0 : i64, tpu.core_type = #tpu.core_type<tc>, window_params = [{transform_indices = @transform_0, window_bounds = array<i64: 1, 18, 32, 128>}, {pipeline_mode = #tpu.pipeline_mode<synchronous>, transform_indices = @transform_1, window_bounds = array<i64: 9, 128, 128>}, {transform_indices = @transform_2, window_bounds = array<i64: 1, 16, 32, 128>}, {transform_indices = @transform_3, window_bounds = array<i64: 1, 2, 128>}]} {
    %c0 = arith.constant 0 : index
    %c0_0 = arith.constant 0 : index
    %c0_1 = arith.constant 0 : index
    %c0_2 = arith.constant 0 : index
    %0 = vector.load %arg1[%c0, %c0_0, %c0_1, %c0_2] : memref<1x18x32x128xf32, #tpu.memory_space<vmem>>, vector<1x16x32x128xf32>
    %1 = vector.shape_cast %0 : vector<1x16x32x128xf32> to vector<16x32x128xf32>
    %c1_i32 = arith.constant 1 : i32
    %2 = tpu.dynamic_rotate %1 by %c1_i32 dim 1 : vector<16x32x128xf32>, i32 -> vector<16x32x128xf32>
    %3 = vector.shape_cast %2 : vector<16x32x128xf32> to vector<512x128xf32>
    %4 = arith.truncf %3 : vector<512x128xf32> to vector<512x128xbf16>
    %c0_3 = arith.constant 0 : index
    %c0_4 = arith.constant 0 : index
    %c0_5 = arith.constant 0 : index
    %5 = vector.load %arg2[%c0_3, %c0_4, %c0_5] : memref<9x128x128xbf16, #tpu.memory_space<vmem>>, vector<1x128x128xbf16>
    %6 = vector.shape_cast %5 : vector<1x128x128xbf16> to vector<128x128xbf16>
    %cst = arith.constant dense<0.000000e+00> : vector<512x128xf32>
    %7 = tpu.matmul %4, %6, %cst {dimension_numbers = #tpu.dot_dimension_numbers<[1], [0], [0], [1], [0, 0, 1, 1], [], []>} : vector<512x128xbf16>, vector<128x128xbf16>, vector<512x128xf32> -> vector<512x128xf32>
    %8 = vector.shape_cast %1 : vector<16x32x128xf32> to vector<512x128xf32>
    %9 = arith.truncf %8 : vector<512x128xf32> to vector<512x128xbf16>
    %c1 = arith.constant 1 : index
    %c0_6 = arith.constant 0 : index
    %c0_7 = arith.constant 0 : index
    %10 = vector.load %arg2[%c1, %c0_6, %c0_7] : memref<9x128x128xbf16, #tpu.memory_space<vmem>>, vector<1x128x128xbf16>
    %11 = vector.shape_cast %10 : vector<1x128x128xbf16> to vector<128x128xbf16>
    %cst_8 = arith.constant dense<0.000000e+00> : vector<512x128xf32>
    %12 = tpu.matmul %9, %11, %cst_8 {dimension_numbers = #tpu.dot_dimension_numbers<[1], [0], [0], [1], [0, 0, 1, 1], [], []>} : vector<512x128xbf16>, vector<128x128xbf16>, vector<512x128xf32> -> vector<512x128xf32>
    %13 = arith.addf %7, %12 : vector<512x128xf32>
    %c31_i32 = arith.constant 31 : i32
    %14 = tpu.dynamic_rotate %1 by %c31_i32 dim 1 : vector<16x32x128xf32>, i32 -> vector<16x32x128xf32>
    %15 = vector.shape_cast %14 : vector<16x32x128xf32> to vector<512x128xf32>
    %16 = arith.truncf %15 : vector<512x128xf32> to vector<512x128xbf16>
    %c2 = arith.constant 2 : index
    %c0_9 = arith.constant 0 : index
    %c0_10 = arith.constant 0 : index
    %17 = vector.load %arg2[%c2, %c0_9, %c0_10] : memref<9x128x128xbf16, #tpu.memory_space<vmem>>, vector<1x128x128xbf16>
    %18 = vector.shape_cast %17 : vector<1x128x128xbf16> to vector<128x128xbf16>
    %cst_11 = arith.constant dense<0.000000e+00> : vector<512x128xf32>
    %19 = tpu.matmul %16, %18, %cst_11 {dimension_numbers = #tpu.dot_dimension_numbers<[1], [0], [0], [1], [0, 0, 1, 1], [], []>} : vector<512x128xbf16>, vector<128x128xbf16>, vector<512x128xf32> -> vector<512x128xf32>
    %20 = arith.addf %13, %19 : vector<512x128xf32>
    %c0_12 = arith.constant 0 : index
    %c1_13 = arith.constant 1 : index
    %c0_14 = arith.constant 0 : index
    %c0_15 = arith.constant 0 : index
    %21 = vector.load %arg1[%c0_12, %c1_13, %c0_14, %c0_15] : memref<1x18x32x128xf32, #tpu.memory_space<vmem>>, vector<1x16x32x128xf32>
    %22 = vector.shape_cast %21 : vector<1x16x32x128xf32> to vector<16x32x128xf32>
    %c1_i32_16 = arith.constant 1 : i32
    %23 = tpu.dynamic_rotate %22 by %c1_i32_16 dim 1 : vector<16x32x128xf32>, i32 -> vector<16x32x128xf32>
    %24 = vector.shape_cast %23 : vector<16x32x128xf32> to vector<512x128xf32>
    %25 = arith.truncf %24 : vector<512x128xf32> to vector<512x128xbf16>
    %c3 = arith.constant 3 : index
    %c0_17 = arith.constant 0 : index
    %c0_18 = arith.constant 0 : index
    %26 = vector.load %arg2[%c3, %c0_17, %c0_18] : memref<9x128x128xbf16, #tpu.memory_space<vmem>>, vector<1x128x128xbf16>
    %27 = vector.shape_cast %26 : vector<1x128x128xbf16> to vector<128x128xbf16>
    %cst_19 = arith.constant dense<0.000000e+00> : vector<512x128xf32>
    %28 = tpu.matmul %25, %27, %cst_19 {dimension_numbers = #tpu.dot_dimension_numbers<[1], [0], [0], [1], [0, 0, 1, 1], [], []>} : vector<512x128xbf16>, vector<128x128xbf16>, vector<512x128xf32> -> vector<512x128xf32>
    %29 = arith.addf %20, %28 : vector<512x128xf32>
    %30 = vector.shape_cast %22 : vector<16x32x128xf32> to vector<512x128xf32>
    %31 = arith.truncf %30 : vector<512x128xf32> to vector<512x128xbf16>
    %c4 = arith.constant 4 : index
    %c0_20 = arith.constant 0 : index
    %c0_21 = arith.constant 0 : index
    %32 = vector.load %arg2[%c4, %c0_20, %c0_21] : memref<9x128x128xbf16, #tpu.memory_space<vmem>>, vector<1x128x128xbf16>
    %33 = vector.shape_cast %32 : vector<1x128x128xbf16> to vector<128x128xbf16>
    %cst_22 = arith.constant dense<0.000000e+00> : vector<512x128xf32>
    %34 = tpu.matmul %31, %33, %cst_22 {dimension_numbers = #tpu.dot_dimension_numbers<[1], [0], [0], [1], [0, 0, 1, 1], [], []>} : vector<512x128xbf16>, vector<128x128xbf16>, vector<512x128xf32> -> vector<512x128xf32>
    %35 = arith.addf %29, %34 : vector<512x128xf32>
    %c31_i32_23 = arith.constant 31 : i32
    %36 = tpu.dynamic_rotate %22 by %c31_i32_23 dim 1 : vector<16x32x128xf32>, i32 -> vector<16x32x128xf32>
    %37 = vector.shape_cast %36 : vector<16x32x128xf32> to vector<512x128xf32>
    %38 = arith.truncf %37 : vector<512x128xf32> to vector<512x128xbf16>
    %c5 = arith.constant 5 : index
    %c0_24 = arith.constant 0 : index
    %c0_25 = arith.constant 0 : index
    %39 = vector.load %arg2[%c5, %c0_24, %c0_25] : memref<9x128x128xbf16, #tpu.memory_space<vmem>>, vector<1x128x128xbf16>
    %40 = vector.shape_cast %39 : vector<1x128x128xbf16> to vector<128x128xbf16>
    %cst_26 = arith.constant dense<0.000000e+00> : vector<512x128xf32>
    %41 = tpu.matmul %38, %40, %cst_26 {dimension_numbers = #tpu.dot_dimension_numbers<[1], [0], [0], [1], [0, 0, 1, 1], [], []>} : vector<512x128xbf16>, vector<128x128xbf16>, vector<512x128xf32> -> vector<512x128xf32>
    %42 = arith.addf %35, %41 : vector<512x128xf32>
    %c0_27 = arith.constant 0 : index
    %c2_28 = arith.constant 2 : index
    %c0_29 = arith.constant 0 : index
    %c0_30 = arith.constant 0 : index
    %43 = vector.load %arg1[%c0_27, %c2_28, %c0_29, %c0_30] : memref<1x18x32x128xf32, #tpu.memory_space<vmem>>, vector<1x16x32x128xf32>
    %44 = vector.shape_cast %43 : vector<1x16x32x128xf32> to vector<16x32x128xf32>
    %c1_i32_31 = arith.constant 1 : i32
    %45 = tpu.dynamic_rotate %44 by %c1_i32_31 dim 1 : vector<16x32x128xf32>, i32 -> vector<16x32x128xf32>
    %46 = vector.shape_cast %45 : vector<16x32x128xf32> to vector<512x128xf32>
    %47 = arith.truncf %46 : vector<512x128xf32> to vector<512x128xbf16>
    %c6 = arith.constant 6 : index
    %c0_32 = arith.constant 0 : index
    %c0_33 = arith.constant 0 : index
    %48 = vector.load %arg2[%c6, %c0_32, %c0_33] : memref<9x128x128xbf16, #tpu.memory_space<vmem>>, vector<1x128x128xbf16>
    %49 = vector.shape_cast %48 : vector<1x128x128xbf16> to vector<128x128xbf16>
    %cst_34 = arith.constant dense<0.000000e+00> : vector<512x128xf32>
    %50 = tpu.matmul %47, %49, %cst_34 {dimension_numbers = #tpu.dot_dimension_numbers<[1], [0], [0], [1], [0, 0, 1, 1], [], []>} : vector<512x128xbf16>, vector<128x128xbf16>, vector<512x128xf32> -> vector<512x128xf32>
    %51 = arith.addf %42, %50 : vector<512x128xf32>
    %52 = vector.shape_cast %44 : vector<16x32x128xf32> to vector<512x128xf32>
    %53 = arith.truncf %52 : vector<512x128xf32> to vector<512x128xbf16>
    %c7 = arith.constant 7 : index
    %c0_35 = arith.constant 0 : index
    %c0_36 = arith.constant 0 : index
    %54 = vector.load %arg2[%c7, %c0_35, %c0_36] : memref<9x128x128xbf16, #tpu.memory_space<vmem>>, vector<1x128x128xbf16>
    %55 = vector.shape_cast %54 : vector<1x128x128xbf16> to vector<128x128xbf16>
    %cst_37 = arith.constant dense<0.000000e+00> : vector<512x128xf32>
    %56 = tpu.matmul %53, %55, %cst_37 {dimension_numbers = #tpu.dot_dimension_numbers<[1], [0], [0], [1], [0, 0, 1, 1], [], []>} : vector<512x128xbf16>, vector<128x128xbf16>, vector<512x128xf32> -> vector<512x128xf32>
    %57 = arith.addf %51, %56 : vector<512x128xf32>
    %c31_i32_38 = arith.constant 31 : i32
    %58 = tpu.dynamic_rotate %44 by %c31_i32_38 dim 1 : vector<16x32x128xf32>, i32 -> vector<16x32x128xf32>
    %59 = vector.shape_cast %58 : vector<16x32x128xf32> to vector<512x128xf32>
    %60 = arith.truncf %59 : vector<512x128xf32> to vector<512x128xbf16>
    %c8 = arith.constant 8 : index
    %c0_39 = arith.constant 0 : index
    %c0_40 = arith.constant 0 : index
    %61 = vector.load %arg2[%c8, %c0_39, %c0_40] : memref<9x128x128xbf16, #tpu.memory_space<vmem>>, vector<1x128x128xbf16>
    %62 = vector.shape_cast %61 : vector<1x128x128xbf16> to vector<128x128xbf16>
    %cst_41 = arith.constant dense<0.000000e+00> : vector<512x128xf32>
    %63 = tpu.matmul %60, %62, %cst_41 {dimension_numbers = #tpu.dot_dimension_numbers<[1], [0], [0], [1], [0, 0, 1, 1], [], []>} : vector<512x128xbf16>, vector<128x128xbf16>, vector<512x128xf32> -> vector<512x128xf32>
    %64 = arith.addf %57, %63 : vector<512x128xf32>
    %65 = vector.shape_cast %64 : vector<512x128xf32> to vector<16x32x128xf32>
    %66 = tpu.iota {dimensions = array<i32: 1>} : vector<16x32x128xi32>
    %c1_i32_42 = arith.constant 1 : i32
    %67 = vector.broadcast %c1_i32_42 : i32 to vector<16x32x128xi32>
    %68 = arith.cmpi sge, %66, %67 : vector<16x32x128xi32>
    %c16_i32 = arith.constant 16 : i32
    %69 = vector.broadcast %c16_i32 : i32 to vector<16x32x128xi32>
    %70 = arith.cmpi sle, %66, %69 : vector<16x32x128xi32>
    %71 = arith.andi %68, %70 : vector<16x32x128xi1>
    %cst_43 = arith.constant 0.000000e+00 : f32
    %72 = vector.broadcast %cst_43 : f32 to vector<16x32x128xf32>
    %73 = arith.select %71, %65, %72 : vector<16x32x128xi1>, vector<16x32x128xf32>
    %74 = vector.shape_cast %73 : vector<16x32x128xf32> to vector<512x128xf32>
    %cst_44 = arith.constant dense<0.000000e+00> : vector<128xf32>
    %75 = vector.multi_reduction <add>, %74, %cst_44 [0] : vector<512x128xf32> to vector<128xf32>
    %76 = vector.shape_cast %75 : vector<128xf32> to vector<1x128xf32>
    %77 = arith.mulf %74, %74 : vector<512x128xf32>
    %cst_45 = arith.constant dense<0.000000e+00> : vector<128xf32>
    %78 = vector.multi_reduction <add>, %77, %cst_45 [0] : vector<512x128xf32> to vector<128xf32>
    %79 = vector.shape_cast %78 : vector<128xf32> to vector<1x128xf32>
    %80 = tpu.concatenate %76, %79 in 0 : vector<1x128xf32>, vector<1x128xf32> -> vector<2x128xf32>
    %c0_46 = arith.constant 0 : index
    %c0_47 = arith.constant 0 : index
    %c0_48 = arith.constant 0 : index
    %81 = vector.load %arg4[%c0_46, %c0_47, %c0_48] : memref<1x2x128xf32, #tpu.memory_space<vmem>>, vector<1x2x128xf32>
    %82 = vector.shape_cast %81 : vector<1x2x128xf32> to vector<2x128xf32>
    %83 = vector.shape_cast %80 : vector<2x128xf32> to vector<1x2x128xf32>
    tpu.vector_store %arg4[%c0_46, %c0_47, %c0_48], %83 {strides = array<i32>} : memref<1x2x128xf32, #tpu.memory_space<vmem>>, vector<1x2x128xf32>,
    %84 = arith.truncf %65 : vector<16x32x128xf32> to vector<16x32x128xbf16>
    %c0_49 = arith.constant 0 : index
    %c0_50 = arith.constant 0 : index
    %c0_51 = arith.constant 0 : index
    %c0_52 = arith.constant 0 : index
    %85 = vector.load %arg3[%c0_49, %c0_50, %c0_51, %c0_52] : memref<1x16x32x128xbf16, #tpu.memory_space<vmem>>, vector<1x16x32x128xbf16>
    %86 = vector.shape_cast %85 : vector<1x16x32x128xbf16> to vector<16x32x128xbf16>
    %87 = vector.shape_cast %84 : vector<16x32x128xbf16> to vector<1x16x32x128xbf16>
    tpu.vector_store %arg3[%c0_49, %c0_50, %c0_51, %c0_52], %87 {strides = array<i32>} : memref<1x16x32x128xbf16, #tpu.memory_space<vmem>>, vector<1x16x32x128xbf16>,
    return
  }
  func.func @transform_0(%arg0: i32) -> (i32, i32, i32, i32) {
    %c0_i32 = arith.constant 0 : i32
    %c0_i32_0 = arith.constant 0 : i32
    %c0_i32_1 = arith.constant 0 : i32
    %c0_i32_2 = arith.constant 0 : i32
    return %arg0, %c0_i32, %c0_i32_0, %c0_i32_1 : i32, i32, i32, i32
  }
  func.func @transform_1(%arg0: i32) -> (i32, i32, i32) {
    %c0_i32 = arith.constant 0 : i32
    %c0_i32_0 = arith.constant 0 : i32
    %c0_i32_1 = arith.constant 0 : i32
    %c0_i32_2 = arith.constant 0 : i32
    return %c0_i32, %c0_i32_0, %c0_i32_1 : i32, i32, i32
  }
  func.func @transform_2(%arg0: i32) -> (i32, i32, i32, i32) {
    %c0_i32 = arith.constant 0 : i32
    %c0_i32_0 = arith.constant 0 : i32
    %c0_i32_1 = arith.constant 0 : i32
    %c0_i32_2 = arith.constant 0 : i32
    return %arg0, %c0_i32, %c0_i32_0, %c0_i32_1 : i32, i32, i32, i32
  }
  func.func @transform_3(%arg0: i32) -> (i32, i32, i32) {
    %c0_i32 = arith.constant 0 : i32
    %c0_i32_0 = arith.constant 0 : i32
    %c0_i32_1 = arith.constant 0 : i32
    return %arg0, %c0_i32, %c0_i32_0 : i32, i32, i32
  }
}

module attributes {stable_mosaic.version = 11 : i64} {
  func.func @_bn_relu_conv_kernel(%arg0: i32, %arg1: memref<1x16x32x128xbf16, #tpu.memory_space<vmem>>, %arg2: memref<1x128xf32, #tpu.memory_space<vmem>>, %arg3: memref<1x128xf32, #tpu.memory_space<vmem>>, %arg4: memref<9x128x128xbf16, #tpu.memory_space<vmem>>, %arg5: memref<1x16x32x128xbf16, #tpu.memory_space<vmem>>, %arg6: memref<1x2x128xf32, #tpu.memory_space<vmem>>, %arg7: memref<18x32x128xf32, #tpu.memory_space<vmem>>) attributes {dimension_semantics = [#tpu.dimension_semantics<parallel>], iteration_bounds = array<i64: 2>, scalar_prefetch = 0 : i64, scratch_operands = 1 : i64, tpu.core_type = #tpu.core_type<tc>, window_params = [{transform_indices = @transform_0, window_bounds = array<i64: 1, 16, 32, 128>}, {pipeline_mode = #tpu.pipeline_mode<synchronous>, transform_indices = @transform_1, window_bounds = array<i64: 1, 128>}, {pipeline_mode = #tpu.pipeline_mode<synchronous>, transform_indices = @transform_2, window_bounds = array<i64: 1, 128>}, {pipeline_mode = #tpu.pipeline_mode<synchronous>, transform_indices = @transform_3, window_bounds = array<i64: 9, 128, 128>}, {transform_indices = @transform_4, window_bounds = array<i64: 1, 16, 32, 128>}, {transform_indices = @transform_5, window_bounds = array<i64: 1, 2, 128>}]} {
    %0 = tpu.iota {dimensions = array<i32: 1>} : vector<16x32x128xi32>
    %c1_i32 = arith.constant 1 : i32
    %1 = vector.broadcast %c1_i32 : i32 to vector<16x32x128xi32>
    %2 = arith.cmpi sge, %0, %1 : vector<16x32x128xi32>
    %c16_i32 = arith.constant 16 : i32
    %3 = vector.broadcast %c16_i32 : i32 to vector<16x32x128xi32>
    %4 = arith.cmpi sle, %0, %3 : vector<16x32x128xi32>
    %5 = arith.andi %2, %4 : vector<16x32x128xi1>
    %c0 = arith.constant 0 : index
    %c0_0 = arith.constant 0 : index
    %c0_1 = arith.constant 0 : index
    %c0_2 = arith.constant 0 : index
    %6 = vector.load %arg1[%c0, %c0_0, %c0_1, %c0_2] : memref<1x16x32x128xbf16, #tpu.memory_space<vmem>>, vector<1x16x32x128xbf16>
    %7 = vector.shape_cast %6 : vector<1x16x32x128xbf16> to vector<16x32x128xbf16>
    %8 = arith.extf %7 : vector<16x32x128xbf16> to vector<16x32x128xf32>
    %c0_3 = arith.constant 0 : index
    %c0_4 = arith.constant 0 : index
    %9 = vector.load %arg2[%c0_3, %c0_4] : memref<1x128xf32, #tpu.memory_space<vmem>>, vector<1x128xf32>
    %10 = vector.shape_cast %9 : vector<1x128xf32> to vector<1x1x128xf32>
    %11 = vector.broadcast %10 : vector<1x1x128xf32> to vector<16x32x128xf32>
    %12 = arith.mulf %8, %11 : vector<16x32x128xf32>
    %c0_5 = arith.constant 0 : index
    %c0_6 = arith.constant 0 : index
    %13 = vector.load %arg3[%c0_5, %c0_6] : memref<1x128xf32, #tpu.memory_space<vmem>>, vector<1x128xf32>
    %14 = vector.shape_cast %13 : vector<1x128xf32> to vector<1x1x128xf32>
    %15 = vector.broadcast %14 : vector<1x1x128xf32> to vector<16x32x128xf32>
    %16 = arith.addf %12, %15 : vector<16x32x128xf32>
    %cst = arith.constant 0.000000e+00 : f32
    %17 = vector.broadcast %cst : f32 to vector<16x32x128xf32>
    %18 = arith.maximumf %16, %17 : vector<16x32x128xf32>
    %cst_7 = arith.constant 0.000000e+00 : f32
    %19 = vector.broadcast %cst_7 : f32 to vector<16x32x128xf32>
    %20 = arith.select %5, %18, %19 : vector<16x32x128xi1>, vector<16x32x128xf32>
    %c1 = arith.constant 1 : index
    %c0_8 = arith.constant 0 : index
    %c0_9 = arith.constant 0 : index
    %21 = vector.load %arg7[%c1, %c0_8, %c0_9] : memref<18x32x128xf32, #tpu.memory_space<vmem>>, vector<16x32x128xf32>
    tpu.vector_store %arg7[%c1, %c0_8, %c0_9], %20 {strides = array<i32>} : memref<18x32x128xf32, #tpu.memory_space<vmem>>, vector<16x32x128xf32>,
    %cst_10 = arith.constant 0.000000e+00 : f32
    %22 = vector.broadcast %cst_10 : f32 to vector<1x32x128xf32>
    %c0_11 = arith.constant 0 : index
    %c0_12 = arith.constant 0 : index
    %c0_13 = arith.constant 0 : index
    %23 = vector.load %arg7[%c0_11, %c0_12, %c0_13] : memref<18x32x128xf32, #tpu.memory_space<vmem>>, vector<1x32x128xf32>
    tpu.vector_store %arg7[%c0_11, %c0_12, %c0_13], %22 {strides = array<i32>} : memref<18x32x128xf32, #tpu.memory_space<vmem>>, vector<1x32x128xf32>,
    %c17 = arith.constant 17 : index
    %c0_14 = arith.constant 0 : index
    %c0_15 = arith.constant 0 : index
    %24 = vector.load %arg7[%c17, %c0_14, %c0_15] : memref<18x32x128xf32, #tpu.memory_space<vmem>>, vector<1x32x128xf32>
    tpu.vector_store %arg7[%c17, %c0_14, %c0_15], %22 {strides = array<i32>} : memref<18x32x128xf32, #tpu.memory_space<vmem>>, vector<1x32x128xf32>,
    %c0_16 = arith.constant 0 : index
    %c0_17 = arith.constant 0 : index
    %c0_18 = arith.constant 0 : index
    %25 = vector.load %arg7[%c0_16, %c0_17, %c0_18] : memref<18x32x128xf32, #tpu.memory_space<vmem>>, vector<16x32x128xf32>
    %c1_i32_19 = arith.constant 1 : i32
    %26 = tpu.dynamic_rotate %25 by %c1_i32_19 dim 1 : vector<16x32x128xf32>, i32 -> vector<16x32x128xf32>
    %27 = vector.shape_cast %26 : vector<16x32x128xf32> to vector<512x128xf32>
    %28 = arith.truncf %27 : vector<512x128xf32> to vector<512x128xbf16>
    %c0_20 = arith.constant 0 : index
    %c0_21 = arith.constant 0 : index
    %c0_22 = arith.constant 0 : index
    %29 = vector.load %arg4[%c0_20, %c0_21, %c0_22] : memref<9x128x128xbf16, #tpu.memory_space<vmem>>, vector<1x128x128xbf16>
    %30 = vector.shape_cast %29 : vector<1x128x128xbf16> to vector<128x128xbf16>
    %cst_23 = arith.constant dense<0.000000e+00> : vector<512x128xf32>
    %31 = tpu.matmul %28, %30, %cst_23 {dimension_numbers = #tpu.dot_dimension_numbers<[1], [0], [0], [1], [0, 0, 1, 1], [], []>} : vector<512x128xbf16>, vector<128x128xbf16>, vector<512x128xf32> -> vector<512x128xf32>
    %32 = vector.shape_cast %25 : vector<16x32x128xf32> to vector<512x128xf32>
    %33 = arith.truncf %32 : vector<512x128xf32> to vector<512x128xbf16>
    %c1_24 = arith.constant 1 : index
    %c0_25 = arith.constant 0 : index
    %c0_26 = arith.constant 0 : index
    %34 = vector.load %arg4[%c1_24, %c0_25, %c0_26] : memref<9x128x128xbf16, #tpu.memory_space<vmem>>, vector<1x128x128xbf16>
    %35 = vector.shape_cast %34 : vector<1x128x128xbf16> to vector<128x128xbf16>
    %cst_27 = arith.constant dense<0.000000e+00> : vector<512x128xf32>
    %36 = tpu.matmul %33, %35, %cst_27 {dimension_numbers = #tpu.dot_dimension_numbers<[1], [0], [0], [1], [0, 0, 1, 1], [], []>} : vector<512x128xbf16>, vector<128x128xbf16>, vector<512x128xf32> -> vector<512x128xf32>
    %37 = arith.addf %31, %36 : vector<512x128xf32>
    %c31_i32 = arith.constant 31 : i32
    %38 = tpu.dynamic_rotate %25 by %c31_i32 dim 1 : vector<16x32x128xf32>, i32 -> vector<16x32x128xf32>
    %39 = vector.shape_cast %38 : vector<16x32x128xf32> to vector<512x128xf32>
    %40 = arith.truncf %39 : vector<512x128xf32> to vector<512x128xbf16>
    %c2 = arith.constant 2 : index
    %c0_28 = arith.constant 0 : index
    %c0_29 = arith.constant 0 : index
    %41 = vector.load %arg4[%c2, %c0_28, %c0_29] : memref<9x128x128xbf16, #tpu.memory_space<vmem>>, vector<1x128x128xbf16>
    %42 = vector.shape_cast %41 : vector<1x128x128xbf16> to vector<128x128xbf16>
    %cst_30 = arith.constant dense<0.000000e+00> : vector<512x128xf32>
    %43 = tpu.matmul %40, %42, %cst_30 {dimension_numbers = #tpu.dot_dimension_numbers<[1], [0], [0], [1], [0, 0, 1, 1], [], []>} : vector<512x128xbf16>, vector<128x128xbf16>, vector<512x128xf32> -> vector<512x128xf32>
    %44 = arith.addf %37, %43 : vector<512x128xf32>
    %c1_31 = arith.constant 1 : index
    %c0_32 = arith.constant 0 : index
    %c0_33 = arith.constant 0 : index
    %45 = vector.load %arg7[%c1_31, %c0_32, %c0_33] : memref<18x32x128xf32, #tpu.memory_space<vmem>>, vector<16x32x128xf32>
    %c1_i32_34 = arith.constant 1 : i32
    %46 = tpu.dynamic_rotate %45 by %c1_i32_34 dim 1 : vector<16x32x128xf32>, i32 -> vector<16x32x128xf32>
    %47 = vector.shape_cast %46 : vector<16x32x128xf32> to vector<512x128xf32>
    %48 = arith.truncf %47 : vector<512x128xf32> to vector<512x128xbf16>
    %c3 = arith.constant 3 : index
    %c0_35 = arith.constant 0 : index
    %c0_36 = arith.constant 0 : index
    %49 = vector.load %arg4[%c3, %c0_35, %c0_36] : memref<9x128x128xbf16, #tpu.memory_space<vmem>>, vector<1x128x128xbf16>
    %50 = vector.shape_cast %49 : vector<1x128x128xbf16> to vector<128x128xbf16>
    %cst_37 = arith.constant dense<0.000000e+00> : vector<512x128xf32>
    %51 = tpu.matmul %48, %50, %cst_37 {dimension_numbers = #tpu.dot_dimension_numbers<[1], [0], [0], [1], [0, 0, 1, 1], [], []>} : vector<512x128xbf16>, vector<128x128xbf16>, vector<512x128xf32> -> vector<512x128xf32>
    %52 = arith.addf %44, %51 : vector<512x128xf32>
    %53 = vector.shape_cast %45 : vector<16x32x128xf32> to vector<512x128xf32>
    %54 = arith.truncf %53 : vector<512x128xf32> to vector<512x128xbf16>
    %c4 = arith.constant 4 : index
    %c0_38 = arith.constant 0 : index
    %c0_39 = arith.constant 0 : index
    %55 = vector.load %arg4[%c4, %c0_38, %c0_39] : memref<9x128x128xbf16, #tpu.memory_space<vmem>>, vector<1x128x128xbf16>
    %56 = vector.shape_cast %55 : vector<1x128x128xbf16> to vector<128x128xbf16>
    %cst_40 = arith.constant dense<0.000000e+00> : vector<512x128xf32>
    %57 = tpu.matmul %54, %56, %cst_40 {dimension_numbers = #tpu.dot_dimension_numbers<[1], [0], [0], [1], [0, 0, 1, 1], [], []>} : vector<512x128xbf16>, vector<128x128xbf16>, vector<512x128xf32> -> vector<512x128xf32>
    %58 = arith.addf %52, %57 : vector<512x128xf32>
    %c31_i32_41 = arith.constant 31 : i32
    %59 = tpu.dynamic_rotate %45 by %c31_i32_41 dim 1 : vector<16x32x128xf32>, i32 -> vector<16x32x128xf32>
    %60 = vector.shape_cast %59 : vector<16x32x128xf32> to vector<512x128xf32>
    %61 = arith.truncf %60 : vector<512x128xf32> to vector<512x128xbf16>
    %c5 = arith.constant 5 : index
    %c0_42 = arith.constant 0 : index
    %c0_43 = arith.constant 0 : index
    %62 = vector.load %arg4[%c5, %c0_42, %c0_43] : memref<9x128x128xbf16, #tpu.memory_space<vmem>>, vector<1x128x128xbf16>
    %63 = vector.shape_cast %62 : vector<1x128x128xbf16> to vector<128x128xbf16>
    %cst_44 = arith.constant dense<0.000000e+00> : vector<512x128xf32>
    %64 = tpu.matmul %61, %63, %cst_44 {dimension_numbers = #tpu.dot_dimension_numbers<[1], [0], [0], [1], [0, 0, 1, 1], [], []>} : vector<512x128xbf16>, vector<128x128xbf16>, vector<512x128xf32> -> vector<512x128xf32>
    %65 = arith.addf %58, %64 : vector<512x128xf32>
    %c2_45 = arith.constant 2 : index
    %c0_46 = arith.constant 0 : index
    %c0_47 = arith.constant 0 : index
    %66 = vector.load %arg7[%c2_45, %c0_46, %c0_47] : memref<18x32x128xf32, #tpu.memory_space<vmem>>, vector<16x32x128xf32>
    %c1_i32_48 = arith.constant 1 : i32
    %67 = tpu.dynamic_rotate %66 by %c1_i32_48 dim 1 : vector<16x32x128xf32>, i32 -> vector<16x32x128xf32>
    %68 = vector.shape_cast %67 : vector<16x32x128xf32> to vector<512x128xf32>
    %69 = arith.truncf %68 : vector<512x128xf32> to vector<512x128xbf16>
    %c6 = arith.constant 6 : index
    %c0_49 = arith.constant 0 : index
    %c0_50 = arith.constant 0 : index
    %70 = vector.load %arg4[%c6, %c0_49, %c0_50] : memref<9x128x128xbf16, #tpu.memory_space<vmem>>, vector<1x128x128xbf16>
    %71 = vector.shape_cast %70 : vector<1x128x128xbf16> to vector<128x128xbf16>
    %cst_51 = arith.constant dense<0.000000e+00> : vector<512x128xf32>
    %72 = tpu.matmul %69, %71, %cst_51 {dimension_numbers = #tpu.dot_dimension_numbers<[1], [0], [0], [1], [0, 0, 1, 1], [], []>} : vector<512x128xbf16>, vector<128x128xbf16>, vector<512x128xf32> -> vector<512x128xf32>
    %73 = arith.addf %65, %72 : vector<512x128xf32>
    %74 = vector.shape_cast %66 : vector<16x32x128xf32> to vector<512x128xf32>
    %75 = arith.truncf %74 : vector<512x128xf32> to vector<512x128xbf16>
    %c7 = arith.constant 7 : index
    %c0_52 = arith.constant 0 : index
    %c0_53 = arith.constant 0 : index
    %76 = vector.load %arg4[%c7, %c0_52, %c0_53] : memref<9x128x128xbf16, #tpu.memory_space<vmem>>, vector<1x128x128xbf16>
    %77 = vector.shape_cast %76 : vector<1x128x128xbf16> to vector<128x128xbf16>
    %cst_54 = arith.constant dense<0.000000e+00> : vector<512x128xf32>
    %78 = tpu.matmul %75, %77, %cst_54 {dimension_numbers = #tpu.dot_dimension_numbers<[1], [0], [0], [1], [0, 0, 1, 1], [], []>} : vector<512x128xbf16>, vector<128x128xbf16>, vector<512x128xf32> -> vector<512x128xf32>
    %79 = arith.addf %73, %78 : vector<512x128xf32>
    %c31_i32_55 = arith.constant 31 : i32
    %80 = tpu.dynamic_rotate %66 by %c31_i32_55 dim 1 : vector<16x32x128xf32>, i32 -> vector<16x32x128xf32>
    %81 = vector.shape_cast %80 : vector<16x32x128xf32> to vector<512x128xf32>
    %82 = arith.truncf %81 : vector<512x128xf32> to vector<512x128xbf16>
    %c8 = arith.constant 8 : index
    %c0_56 = arith.constant 0 : index
    %c0_57 = arith.constant 0 : index
    %83 = vector.load %arg4[%c8, %c0_56, %c0_57] : memref<9x128x128xbf16, #tpu.memory_space<vmem>>, vector<1x128x128xbf16>
    %84 = vector.shape_cast %83 : vector<1x128x128xbf16> to vector<128x128xbf16>
    %cst_58 = arith.constant dense<0.000000e+00> : vector<512x128xf32>
    %85 = tpu.matmul %82, %84, %cst_58 {dimension_numbers = #tpu.dot_dimension_numbers<[1], [0], [0], [1], [0, 0, 1, 1], [], []>} : vector<512x128xbf16>, vector<128x128xbf16>, vector<512x128xf32> -> vector<512x128xf32>
    %86 = arith.addf %79, %85 : vector<512x128xf32>
    %87 = vector.shape_cast %86 : vector<512x128xf32> to vector<16x32x128xf32>
    %88 = tpu.iota {dimensions = array<i32: 1>} : vector<16x32x128xi32>
    %c1_i32_59 = arith.constant 1 : i32
    %89 = vector.broadcast %c1_i32_59 : i32 to vector<16x32x128xi32>
    %90 = arith.cmpi sge, %88, %89 : vector<16x32x128xi32>
    %c16_i32_60 = arith.constant 16 : i32
    %91 = vector.broadcast %c16_i32_60 : i32 to vector<16x32x128xi32>
    %92 = arith.cmpi sle, %88, %91 : vector<16x32x128xi32>
    %93 = arith.andi %90, %92 : vector<16x32x128xi1>
    %cst_61 = arith.constant 0.000000e+00 : f32
    %94 = vector.broadcast %cst_61 : f32 to vector<16x32x128xf32>
    %95 = arith.select %93, %87, %94 : vector<16x32x128xi1>, vector<16x32x128xf32>
    %96 = vector.shape_cast %95 : vector<16x32x128xf32> to vector<512x128xf32>
    %cst_62 = arith.constant dense<0.000000e+00> : vector<128xf32>
    %97 = vector.multi_reduction <add>, %96, %cst_62 [0] : vector<512x128xf32> to vector<128xf32>
    %98 = vector.shape_cast %97 : vector<128xf32> to vector<1x128xf32>
    %99 = arith.mulf %96, %96 : vector<512x128xf32>
    %cst_63 = arith.constant dense<0.000000e+00> : vector<128xf32>
    %100 = vector.multi_reduction <add>, %99, %cst_63 [0] : vector<512x128xf32> to vector<128xf32>
    %101 = vector.shape_cast %100 : vector<128xf32> to vector<1x128xf32>
    %102 = tpu.concatenate %98, %101 in 0 : vector<1x128xf32>, vector<1x128xf32> -> vector<2x128xf32>
    %c0_64 = arith.constant 0 : index
    %c0_65 = arith.constant 0 : index
    %c0_66 = arith.constant 0 : index
    %103 = vector.load %arg6[%c0_64, %c0_65, %c0_66] : memref<1x2x128xf32, #tpu.memory_space<vmem>>, vector<1x2x128xf32>
    %104 = vector.shape_cast %103 : vector<1x2x128xf32> to vector<2x128xf32>
    %105 = vector.shape_cast %102 : vector<2x128xf32> to vector<1x2x128xf32>
    tpu.vector_store %arg6[%c0_64, %c0_65, %c0_66], %105 {strides = array<i32>} : memref<1x2x128xf32, #tpu.memory_space<vmem>>, vector<1x2x128xf32>,
    %106 = arith.truncf %87 : vector<16x32x128xf32> to vector<16x32x128xbf16>
    %c0_67 = arith.constant 0 : index
    %c0_68 = arith.constant 0 : index
    %c0_69 = arith.constant 0 : index
    %c0_70 = arith.constant 0 : index
    %107 = vector.load %arg5[%c0_67, %c0_68, %c0_69, %c0_70] : memref<1x16x32x128xbf16, #tpu.memory_space<vmem>>, vector<1x16x32x128xbf16>
    %108 = vector.shape_cast %107 : vector<1x16x32x128xbf16> to vector<16x32x128xbf16>
    %109 = vector.shape_cast %106 : vector<16x32x128xbf16> to vector<1x16x32x128xbf16>
    tpu.vector_store %arg5[%c0_67, %c0_68, %c0_69, %c0_70], %109 {strides = array<i32>} : memref<1x16x32x128xbf16, #tpu.memory_space<vmem>>, vector<1x16x32x128xbf16>,
    return
  }
  func.func @transform_0(%arg0: i32) -> (i32, i32, i32, i32) {
    %c0_i32 = arith.constant 0 : i32
    %c0_i32_0 = arith.constant 0 : i32
    %c0_i32_1 = arith.constant 0 : i32
    %c0_i32_2 = arith.constant 0 : i32
    return %arg0, %c0_i32, %c0_i32_0, %c0_i32_1 : i32, i32, i32, i32
  }
  func.func @transform_1(%arg0: i32) -> (i32, i32) {
    %c0_i32 = arith.constant 0 : i32
    %c0_i32_0 = arith.constant 0 : i32
    %c0_i32_1 = arith.constant 0 : i32
    return %c0_i32, %c0_i32_0 : i32, i32
  }
  func.func @transform_2(%arg0: i32) -> (i32, i32) {
    %c0_i32 = arith.constant 0 : i32
    %c0_i32_0 = arith.constant 0 : i32
    %c0_i32_1 = arith.constant 0 : i32
    return %c0_i32, %c0_i32_0 : i32, i32
  }
  func.func @transform_3(%arg0: i32) -> (i32, i32, i32) {
    %c0_i32 = arith.constant 0 : i32
    %c0_i32_0 = arith.constant 0 : i32
    %c0_i32_1 = arith.constant 0 : i32
    %c0_i32_2 = arith.constant 0 : i32
    return %c0_i32, %c0_i32_0, %c0_i32_1 : i32, i32, i32
  }
  func.func @transform_4(%arg0: i32) -> (i32, i32, i32, i32) {
    %c0_i32 = arith.constant 0 : i32
    %c0_i32_0 = arith.constant 0 : i32
    %c0_i32_1 = arith.constant 0 : i32
    %c0_i32_2 = arith.constant 0 : i32
    return %arg0, %c0_i32, %c0_i32_0, %c0_i32_1 : i32, i32, i32, i32
  }
  func.func @transform_5(%arg0: i32) -> (i32, i32, i32) {
    %c0_i32 = arith.constant 0 : i32
    %c0_i32_0 = arith.constant 0 : i32
    %c0_i32_1 = arith.constant 0 : i32
    return %arg0, %c0_i32, %c0_i32_0 : i32, i32, i32
  }
}

module attributes {stable_mosaic.version = 11 : i64} {
  func.func @_bn_relu_crop_kernel(%arg0: i32, %arg1: memref<1x16x32x128xbf16, #tpu.memory_space<vmem>>, %arg2: memref<1x128xf32, #tpu.memory_space<vmem>>, %arg3: memref<1x128xf32, #tpu.memory_space<vmem>>, %arg4: memref<1x16x16x128xf32, #tpu.memory_space<vmem>>) attributes {dimension_semantics = [#tpu.dimension_semantics<parallel>], iteration_bounds = array<i64: 2>, scalar_prefetch = 0 : i64, scratch_operands = 0 : i64, tpu.core_type = #tpu.core_type<tc>, window_params = [{transform_indices = @transform_0, window_bounds = array<i64: 1, 16, 32, 128>}, {pipeline_mode = #tpu.pipeline_mode<synchronous>, transform_indices = @transform_1, window_bounds = array<i64: 1, 128>}, {pipeline_mode = #tpu.pipeline_mode<synchronous>, transform_indices = @transform_2, window_bounds = array<i64: 1, 128>}, {transform_indices = @transform_3, window_bounds = array<i64: 1, 16, 16, 128>}]} {
    %c0 = arith.constant 0 : index
    %c0_0 = arith.constant 0 : index
    %c0_1 = arith.constant 0 : index
    %c0_2 = arith.constant 0 : index
    %0 = vector.load %arg1[%c0, %c0_0, %c0_1, %c0_2] : memref<1x16x32x128xbf16, #tpu.memory_space<vmem>>, vector<1x16x32x128xbf16>
    %1 = vector.shape_cast %0 : vector<1x16x32x128xbf16> to vector<16x32x128xbf16>
    %2 = arith.extf %1 : vector<16x32x128xbf16> to vector<16x32x128xf32>
    %3 = vector.extract_strided_slice %2 {offsets = [0, 1, 0], sizes = [16, 16, 128], strides = [1, 1, 1]} : vector<16x32x128xf32> to vector<16x16x128xf32>
    %c0_3 = arith.constant 0 : index
    %c0_4 = arith.constant 0 : index
    %4 = vector.load %arg2[%c0_3, %c0_4] : memref<1x128xf32, #tpu.memory_space<vmem>>, vector<1x128xf32>
    %5 = vector.shape_cast %4 : vector<1x128xf32> to vector<1x1x128xf32>
    %6 = vector.broadcast %5 : vector<1x1x128xf32> to vector<16x16x128xf32>
    %7 = arith.mulf %3, %6 : vector<16x16x128xf32>
    %c0_5 = arith.constant 0 : index
    %c0_6 = arith.constant 0 : index
    %8 = vector.load %arg3[%c0_5, %c0_6] : memref<1x128xf32, #tpu.memory_space<vmem>>, vector<1x128xf32>
    %9 = vector.shape_cast %8 : vector<1x128xf32> to vector<1x1x128xf32>
    %10 = vector.broadcast %9 : vector<1x1x128xf32> to vector<16x16x128xf32>
    %11 = arith.addf %7, %10 : vector<16x16x128xf32>
    %cst = arith.constant 0.000000e+00 : f32
    %12 = vector.broadcast %cst : f32 to vector<16x16x128xf32>
    %13 = arith.maximumf %11, %12 : vector<16x16x128xf32>
    %c0_7 = arith.constant 0 : index
    %c0_8 = arith.constant 0 : index
    %c0_9 = arith.constant 0 : index
    %c0_10 = arith.constant 0 : index
    %14 = vector.load %arg4[%c0_7, %c0_8, %c0_9, %c0_10] : memref<1x16x16x128xf32, #tpu.memory_space<vmem>>, vector<1x16x16x128xf32>
    %15 = vector.shape_cast %14 : vector<1x16x16x128xf32> to vector<16x16x128xf32>
    %16 = vector.shape_cast %13 : vector<16x16x128xf32> to vector<1x16x16x128xf32>
    tpu.vector_store %arg4[%c0_7, %c0_8, %c0_9, %c0_10], %16 {strides = array<i32>} : memref<1x16x16x128xf32, #tpu.memory_space<vmem>>, vector<1x16x16x128xf32>,
    return
  }
  func.func @transform_0(%arg0: i32) -> (i32, i32, i32, i32) {
    %c0_i32 = arith.constant 0 : i32
    %c0_i32_0 = arith.constant 0 : i32
    %c0_i32_1 = arith.constant 0 : i32
    %c0_i32_2 = arith.constant 0 : i32
    return %arg0, %c0_i32, %c0_i32_0, %c0_i32_1 : i32, i32, i32, i32
  }
  func.func @transform_1(%arg0: i32) -> (i32, i32) {
    %c0_i32 = arith.constant 0 : i32
    %c0_i32_0 = arith.constant 0 : i32
    %c0_i32_1 = arith.constant 0 : i32
    return %c0_i32, %c0_i32_0 : i32, i32
  }
  func.func @transform_2(%arg0: i32) -> (i32, i32) {
    %c0_i32 = arith.constant 0 : i32
    %c0_i32_0 = arith.constant 0 : i32
    %c0_i32_1 = arith.constant 0 : i32
    return %c0_i32, %c0_i32_0 : i32, i32
  }
  func.func @transform_3(%arg0: i32) -> (i32, i32, i32, i32) {
    %c0_i32 = arith.constant 0 : i32
    %c0_i32_0 = arith.constant 0 : i32
    %c0_i32_1 = arith.constant 0 : i32
    %c0_i32_2 = arith.constant 0 : i32
    return %arg0, %c0_i32, %c0_i32_0, %c0_i32_1 : i32, i32, i32, i32
  }
}

</mosaic_0001>

<llo_original>
// kernel: double_conv_forward.5
$region0: #{double_conv_forward.5}
  #allocation0 [shape = 'u32[]', space=smem, size = 0x4, offset = 0x4, fixed_abs, tag = 'smem constant byte address 0x4 - core index']
  #allocation1 [shape = 'u32[72,128]{1,0:T(1,128)}', space=vmem, size = 0x9000, scoped, tag = 'internal scratch']
  %s0 = inlined_call_operand.vmem [shape: bf16[2,16,32,128], index: 0, kind: input, shape index: {}]
  %s1 = inlined_call_operand.vmem [shape: f32[1,128], index: 1, kind: input, shape index: {}]
  %s2 = inlined_call_operand.vmem [shape: f32[1,128], index: 2, kind: input, shape index: {}]
  %s3 = inlined_call_operand.vmem [shape: f32[2,16,16,128], index: 3, kind: output, shape index: {}]
  %s4 = sld [smem:[#allocation0]]
  $region45: #{double_conv_forward.5} parent=0
    _
  %s6 = ssub.s32 1, %s4
  %s7 = scalar_select 0, %s6, %s4
  loop: start=0, step=1, limit=4
  $region2: #{double_conv_forward.5} parent=0 // loop_pre_header
    _
  $region3: #{double_conv_forward.5} parent=0 // loop_header
    %s9 = sphi 0, %s13
    %p10 = scmp.ge.s32.totalorder %s9, 4
    %s19 = sphi 0, %s21
    %s22 = sphi 0, %s19
    %s23 = sphi 0, %s22
    %s39 = sphi 0, %s23
    %s43 = sphi 0, %s43
    %s45 = sphi 0, %s43
    %s46 = sphi 0, %s45
    %s60 = sphi 0, %s46
    %s64 = sphi 0, %s64
    %s66 = sphi 0, %s64
    %s67 = sphi 0, %s66
    %s81 = sphi 0, %s67
    %s87 = sphi 0, %s89
    %s90 = sphi 0, %s87
    %s91 = sphi 0, %s90
    %s107 = sphi 0, %s91
  $region4: #{double_conv_forward.5} parent=0 // loop_header_branch
    %12 = sbr.rel (%p10) target = $region8
  $region5: #{double_conv_forward.5} parent=0 // loop_body
    %s14 = ssub.s32 %s9, 1
    %s15 = ssub.s32 %s9, 2
    %s16 = sadd.s32 %s9, 1
    %s17 = ssub.s32 %s9, %s16
    %p18 = scmp.eq.s32.totalorder %s17, 0
    %s20 = sadd.s32 %s19, 1
    %s21 = scalar_select %p18, %s19, %s20
    %p24 = pneg %p18
    %p25 = scmp.eq.s32.totalorder %s9, 1
    %p26 = por %p24, %p25
    %p27 = scmp.ne.s32.totalorder %s19, %s22
    %p28 = scmp.eq.s32.totalorder %s9, 0
    %p29 = por %p27, %p28
    %p30 = scmp.ne.s32.totalorder %s19, %s22
    %p31 = scmp.eq.s32.totalorder %s14, 1
    %p32 = por %p30, %p31
    %p33 = scmp.ne.s32.totalorder %s22, %s23
    %p34 = scmp.eq.s32.totalorder %s14, 0
    %p35 = por %p33, %p34
    %p36 = scmp.ne.s32.totalorder %s22, %s23
    %p37 = scmp.eq.s32.totalorder %s15, 1
    %p38 = por %p36, %p37
    %p40 = scmp.ne.s32.totalorder %s23, %s39
    %p41 = scmp.eq.s32.totalorder %s15, 0
    %p42 = por %p40, %p41
    %s44 = sadd.s32 %s43, 1
    %p47 = scmp.eq.s32.totalorder %s9, 1
    %p48 = scmp.ne.s32.totalorder %s43, %s45
    %p49 = scmp.eq.s32.totalorder %s9, 0
    %p50 = por %p48, %p49
    %p51 = scmp.ne.s32.totalorder %s43, %s45
    %p52 = scmp.eq.s32.totalorder %s14, 1
    %p53 = por %p51, %p52
    %p54 = scmp.ne.s32.totalorder %s45, %s46
    %p55 = scmp.eq.s32.totalorder %s14, 0
    %p56 = por %p54, %p55
    %p57 = scmp.ne.s32.totalorder %s45, %s46
    %p58 = scmp.eq.s32.totalorder %s15, 1
    %p59 = por %p57, %p58
    %p61 = scmp.ne.s32.totalorder %s46, %s60
    %p62 = scmp.eq.s32.totalorder %s15, 0
    %p63 = por %p61, %p62
    %s65 = sadd.s32 %s64, 1
    %p68 = scmp.eq.s32.totalorder %s9, 1
    %p69 = scmp.ne.s32.totalorder %s64, %s66
    %p70 = scmp.eq.s32.totalorder %s9, 0
    %p71 = por %p69, %p70
    %p72 = scmp.ne.s32.totalorder %s64, %s66
    %p73 = scmp.eq.s32.totalorder %s14, 1
    %p74 = por %p72, %p73
    %p75 = scmp.ne.s32.totalorder %s66, %s67
    %p76 = scmp.eq.s32.totalorder %s14, 0
    %p77 = por %p75, %p76
    %p78 = scmp.ne.s32.totalorder %s66, %s67
    %p79 = scmp.eq.s32.totalorder %s15, 1
    %p80 = por %p78, %p79
    %p82 = scmp.ne.s32.totalorder %s67, %s81
    %p83 = scmp.eq.s32.totalorder %s15, 0
    %p84 = por %p82, %p83
    %s85 = ssub.s32 %s9, %s16
    %p86 = scmp.eq.s32.totalorder %s85, 0
    %s88 = sadd.s32 %s87, 1
    %s89 = scalar_select %p86, %s87, %s88
    %p92 = pneg %p86
    %p93 = scmp.eq.s32.totalorder %s9, 1
    %p94 = por %p92, %p93
    %p95 = scmp.ne.s32.totalorder %s87, %s90
    %p96 = scmp.eq.s32.totalorder %s9, 0
    %p97 = por %p95, %p96
    %p98 = scmp.ne.s32.totalorder %s87, %s90
    %p99 = scmp.eq.s32.totalorder %s14, 1
    %p100 = por %p98, %p99
    %p101 = scmp.ne.s32.totalorder %s90, %s91
    %p102 = scmp.eq.s32.totalorder %s14, 0
    %p103 = por %p101, %p102
    %p104 = scmp.ne.s32.totalorder %s90, %s91
    %p105 = scmp.eq.s32.totalorder %s15, 1
    %p106 = por %p104, %p105
    %p108 = scmp.ne.s32.totalorder %s91, %s107
    %p109 = scmp.eq.s32.totalorder %s15, 0
    %p110 = por %p108, %p109
    %p111 = scmp.le.s32.totalorder 1, %s9
    %p112 = scmp.lt.s32.totalorder %s9, 3
    %p113 = pnand %p111, %p112
    %p114 = pneg %p113
    // Predicated region
    $region9: #{double_conv_forward.5} parent=5 // pred_check
      _
    $region10: #{double_conv_forward.5} parent=5 // pred_check_branch
      %116 = sbr.rel (%p113) target = $region12
    $region11: #{double_conv_forward.5} parent=5 // pred_region
      %s117 = ssub.s32 %s9, 1
      // Predicated region
      $region13: #{double_conv_forward.5} parent=11 // pred_check
        %p118 = pneg %p56
      $region14: #{double_conv_forward.5} parent=11 // pred_check_branch
        %120 = sbr.rel (%p118) target = $region16
      $region15: #{double_conv_forward.5} parent=11 // pred_region
        _
      $region16: #{double_conv_forward.5} parent=11 // pred_fallthru
        _
      // Predicated region
      $region17: #{double_conv_forward.5} parent=11 // pred_check
        %p121 = pneg %p77
      $region18: #{double_conv_forward.5} parent=11 // pred_check_branch
        %123 = sbr.rel (%p121) target = $region20
      $region19: #{double_conv_forward.5} parent=11 // pred_region
        _
      $region20: #{double_conv_forward.5} parent=11 // pred_fallthru
        _
    $region12: #{double_conv_forward.5} parent=5 // pred_fallthru
      _
    %p124 = scmp.lt.s32.totalorder %s9, 2
    // Predicated region
    $region21: #{double_conv_forward.5} parent=5 // pred_check
      %p125 = pneg %p124
    $region22: #{double_conv_forward.5} parent=5 // pred_check_branch
      %127 = sbr.rel (%p125) target = $region24
    $region23: #{double_conv_forward.5} parent=5 // pred_region
      // Predicated region
      $region25: #{double_conv_forward.5} parent=23 // pred_check
        %p128 = pneg %p29
      $region26: #{double_conv_forward.5} parent=23 // pred_check_branch
        %130 = sbr.rel (%p128) target = $region28
      $region27: #{double_conv_forward.5} parent=23 // pred_region
        %p131 = scmp.lt.s32.totalorder %s9, 1
        %s132 = scalar_select %p131, %s9, 1
        %s133 = smul.addr %s132, 64
        %s134 = smul.addr %s133, 4
        %s135 = scalar_lea.vmem %s0, %s134
      $region28: #{double_conv_forward.5} parent=23 // pred_fallthru
        _
    $region24: #{double_conv_forward.5} parent=5 // pred_fallthru
      _
    %p136 = scmp.le.s32.totalorder 1, %s9
    %p137 = scmp.lt.s32.totalorder %s9, 3
    %p138 = pnand %p136, %p137
    %p139 = pneg %p138
    // Predicated region
    $region29: #{double_conv_forward.5} parent=5 // pred_check
      _
    $region30: #{double_conv_forward.5} parent=5 // pred_check_branch
      %141 = sbr.rel (%p138) target = $region32
    $region31: #{double_conv_forward.5} parent=5 // pred_region
      %s142 = ssub.s32 %s9, 1
      %p143 = scmp.lt.s32.totalorder %s14, 1
      %s144 = scalar_select %p143, %s14, 1
      %s145 = smul.addr %s144, 64
      %s146 = smul.addr %s145, 4
      %s147 = scalar_lea.vmem %s0, %s146
      %p148 = pneg %p35
      %p149 = pneg %p32
      %p150 = pneg %p56
      %p151 = pneg %p53
      %p152 = pneg %p77
      %p153 = pneg %p74
      %p154 = pneg %p103
      %p155 = pneg %p100
      %p156 = scmp.lt.s32.totalorder %s14, 1
      %s157 = scalar_select %p156, %s14, 1
      %s158 = smul.addr %s157, 32
      %s159 = smul.addr %s158, 8
      %s160 = scalar_lea.vmem %s3, %s159
      %p161 = scmp.lt.s32.totalorder %s14, 1
      %s162 = scalar_select %p161, %s14, 1
      %s163 = smul.addr %s162, 64
      %s164 = smul.addr %s163, 4
      %s165 = scalar_lea.vmem %s0, %s164
      %p166 = scmp.lt.s32.totalorder %s14, 1
      %s167 = scalar_select %p166, %s14, 1
      %s168 = smul.addr %s167, 32
      %s169 = smul.addr %s168, 8
      %s170 = scalar_lea.vmem %s3, %s169
      %v171 = vld [vmem:[%s165] sm:$0xf]
      %v172 = vld [vmem:[%s165 + $0x4] sm:$0xf]
      %v173 = vld [vmem:[%s165 + $0x8] sm:$0xf]
      %v174 = vld [vmem:[%s165 + $0x10] sm:$0xf]
      %v175 = vld [vmem:[%s165 + $0x14] sm:$0xf]
      %v176 = vld [vmem:[%s165 + $0x18] sm:$0xf]
      %v177 = vld [vmem:[%s165 + $0x20] sm:$0xf]
      %v178 = vld [vmem:[%s165 + $0x24] sm:$0xf]
      %v179 = vld [vmem:[%s165 + $0x28] sm:$0xf]
      %v180 = vld [vmem:[%s165 + $0x30] sm:$0xf]
      %v181 = vld [vmem:[%s165 + $0x34] sm:$0xf]
      %v182 = vld [vmem:[%s165 + $0x38] sm:$0xf]
      %v183 = vld [vmem:[%s165 + $0x40] sm:$0xf]
      %v184 = vld [vmem:[%s165 + $0x44] sm:$0xf]
      %v185 = vld [vmem:[%s165 + $0x48] sm:$0xf]
      %v186 = vld [vmem:[%s165 + $0x50] sm:$0xf]
      %v187 = vld [vmem:[%s165 + $0x54] sm:$0xf]
      %v188 = vld [vmem:[%s165 + $0x58] sm:$0xf]
      %v189 = vld [vmem:[%s165 + $0x60] sm:$0xf]
      %v190 = vld [vmem:[%s165 + $0x64] sm:$0xf]
      %v191 = vld [vmem:[%s165 + $0x68] sm:$0xf]
      %v192 = vld [vmem:[%s165 + $0x70] sm:$0xf]
      %v193 = vld [vmem:[%s165 + $0x74] sm:$0xf]
      %v194 = vld [vmem:[%s165 + $0x78] sm:$0xf]
      %v195 = vld [vmem:[%s165 + $0x80] sm:$0xf]
      %v196 = vld [vmem:[%s165 + $0x84] sm:$0xf]
      %v197 = vld [vmem:[%s165 + $0x88] sm:$0xf]
      %v198 = vld [vmem:[%s165 + $0x90] sm:$0xf]
      %v199 = vld [vmem:[%s165 + $0x94] sm:$0xf]
      %v200 = vld [vmem:[%s165 + $0x98] sm:$0xf]
      %v201 = vld [vmem:[%s165 + $0xa0] sm:$0xf]
      %v202 = vld [vmem:[%s165 + $0xa4] sm:$0xf]
      %v203 = vld [vmem:[%s165 + $0xa8] sm:$0xf]
      %v204 = vld [vmem:[%s165 + $0xb0] sm:$0xf]
      %v205 = vld [vmem:[%s165 + $0xb4] sm:$0xf]
      %v206 = vld [vmem:[%s165 + $0xb8] sm:$0xf]
      %v207 = vld [vmem:[%s165 + $0xc0] sm:$0xf]
      %v208 = vld [vmem:[%s165 + $0xc4] sm:$0xf]
      %v209 = vld [vmem:[%s165 + $0xc8] sm:$0xf]
      %v210 = vld [vmem:[%s165 + $0xd0] sm:$0xf]
      %v211 = vld [vmem:[%s165 + $0xd4] sm:$0xf]
      %v212 = vld [vmem:[%s165 + $0xd8] sm:$0xf]
      %v213 = vld [vmem:[%s165 + $0xe0] sm:$0xf]
      %v214 = vld [vmem:[%s165 + $0xe4] sm:$0xf]
      %v215 = vld [vmem:[%s165 + $0xe8] sm:$0xf]
      %v216 = vld [vmem:[%s165 + $0xf0] sm:$0xf]
      %v217 = vld [vmem:[%s165 + $0xf4] sm:$0xf]
      %v218 = vld [vmem:[%s165 + $0xf8] sm:$0xf]
      %v219 = vunpack.c.l.bf16 %v171
      %v220 = vunpack.c.l.bf16 %v172
      %v221 = vunpack.c.l.bf16 %v173
      %v222 = vunpack.c.l.bf16 %v174
      %v223 = vunpack.c.l.bf16 %v175
      %v224 = vunpack.c.l.bf16 %v176
      %v225 = vunpack.c.l.bf16 %v177
      %v226 = vunpack.c.l.bf16 %v178
      %v227 = vunpack.c.l.bf16 %v179
      %v228 = vunpack.c.l.bf16 %v180
      %v229 = vunpack.c.l.bf16 %v181
      %v230 = vunpack.c.l.bf16 %v182
      %v231 = vunpack.c.l.bf16 %v183
      %v232 = vunpack.c.l.bf16 %v184
      %v233 = vunpack.c.l.bf16 %v185
      %v234 = vunpack.c.l.bf16 %v186
      %v235 = vunpack.c.l.bf16 %v187
      %v236 = vunpack.c.l.bf16 %v188
      %v237 = vunpack.c.l.bf16 %v189
      %v238 = vunpack.c.l.bf16 %v190
      %v239 = vunpack.c.l.bf16 %v191
      %v240 = vunpack.c.l.bf16 %v192
      %v241 = vunpack.c.l.bf16 %v193
      %v242 = vunpack.c.l.bf16 %v194
      %v243 = vunpack.c.l.bf16 %v195
      %v244 = vunpack.c.l.bf16 %v196
      %v245 = vunpack.c.l.bf16 %v197
      %v246 = vunpack.c.l.bf16 %v198
      %v247 = vunpack.c.l.bf16 %v199
      %v248 = vunpack.c.l.bf16 %v200
      %v249 = vunpack.c.l.bf16 %v201
      %v250 = vunpack.c.l.bf16 %v202
      %v251 = vunpack.c.l.bf16 %v203
      %v252 = vunpack.c.l.bf16 %v204
      %v253 = vunpack.c.l.bf16 %v205
      %v254 = vunpack.c.l.bf16 %v206
      %v255 = vunpack.c.l.bf16 %v207
      %v256 = vunpack.c.l.bf16 %v208
      %v257 = vunpack.c.l.bf16 %v209
      %v258 = vunpack.c.l.bf16 %v210
      %v259 = vunpack.c.l.bf16 %v211
      %v260 = vunpack.c.l.bf16 %v212
      %v261 = vunpack.c.l.bf16 %v213
      %v262 = vunpack.c.l.bf16 %v214
      %v263 = vunpack.c.l.bf16 %v215
      %v264 = vunpack.c.l.bf16 %v216
      %v265 = vunpack.c.l.bf16 %v217
      %v266 = vunpack.c.l.bf16 %v218
      %v267 = vld [vmem:[%s1] sm:$0x1]
      %v269 = vperm.slane %v267, 0
      %v271 = vmul.f32 %v219, %v269
      %v272 = vmul.f32 %v220, %v269
      %v273 = vmul.f32 %v221, %v269
      %v274 = vmul.f32 %v222, %v269
      %v275 = vmul.f32 %v223, %v269
      %v276 = vmul.f32 %v224, %v269
      %v277 = vmul.f32 %v225, %v269
      %v278 = vmul.f32 %v226, %v269
      %v279 = vmul.f32 %v227, %v269
      %v280 = vmul.f32 %v228, %v269
      %v281 = vmul.f32 %v229, %v269
      %v282 = vmul.f32 %v230, %v269
      %v283 = vmul.f32 %v231, %v269
      %v284 = vmul.f32 %v232, %v269
      %v285 = vmul.f32 %v233, %v269
      %v286 = vmul.f32 %v234, %v269
      %v287 = vmul.f32 %v235, %v269
      %v288 = vmul.f32 %v236, %v269
      %v289 = vmul.f32 %v237, %v269
      %v290 = vmul.f32 %v238, %v269
      %v291 = vmul.f32 %v239, %v269
      %v292 = vmul.f32 %v240, %v269
      %v293 = vmul.f32 %v241, %v269
      %v294 = vmul.f32 %v242, %v269
      %v295 = vmul.f32 %v243, %v269
      %v296 = vmul.f32 %v244, %v269
      %v297 = vmul.f32 %v245, %v269
      %v298 = vmul.f32 %v246, %v269
      %v299 = vmul.f32 %v247, %v269
      %v300 = vmul.f32 %v248, %v269
      %v301 = vmul.f32 %v249, %v269
      %v302 = vmul.f32 %v250, %v269
      %v303 = vmul.f32 %v251, %v269
      %v304 = vmul.f32 %v252, %v269
      %v305 = vmul.f32 %v253, %v269
      %v306 = vmul.f32 %v254, %v269
      %v307 = vmul.f32 %v255, %v269
      %v308 = vmul.f32 %v256, %v269
      %v309 = vmul.f32 %v257, %v269
      %v310 = vmul.f32 %v258, %v269
      %v311 = vmul.f32 %v259, %v269
      %v312 = vmul.f32 %v260, %v269
      %v313 = vmul.f32 %v261, %v269
      %v314 = vmul.f32 %v262, %v269
      %v315 = vmul.f32 %v263, %v269
      %v316 = vmul.f32 %v264, %v269
      %v317 = vmul.f32 %v265, %v269
      %v318 = vmul.f32 %v266, %v269
      %v319 = vld [vmem:[%s2] sm:$0x1]
      %v321 = vperm.slane %v319, 0
      %v323 = vadd.f32 %v271, %v321
      %v324 = vadd.f32 %v272, %v321
      %v325 = vadd.f32 %v273, %v321
      %v326 = vadd.f32 %v274, %v321
      %v327 = vadd.f32 %v275, %v321
      %v328 = vadd.f32 %v276, %v321
      %v329 = vadd.f32 %v277, %v321
      %v330 = vadd.f32 %v278, %v321
      %v331 = vadd.f32 %v279, %v321
      %v332 = vadd.f32 %v280, %v321
      %v333 = vadd.f32 %v281, %v321
      %v334 = vadd.f32 %v282, %v321
      %v335 = vadd.f32 %v283, %v321
      %v336 = vadd.f32 %v284, %v321
      %v337 = vadd.f32 %v285, %v321
      %v338 = vadd.f32 %v286, %v321
      %v339 = vadd.f32 %v287, %v321
      %v340 = vadd.f32 %v288, %v321
      %v341 = vadd.f32 %v289, %v321
      %v342 = vadd.f32 %v290, %v321
      %v343 = vadd.f32 %v291, %v321
      %v344 = vadd.f32 %v292, %v321
      %v345 = vadd.f32 %v293, %v321
      %v346 = vadd.f32 %v294, %v321
      %v347 = vadd.f32 %v295, %v321
      %v348 = vadd.f32 %v296, %v321
      %v349 = vadd.f32 %v297, %v321
      %v350 = vadd.f32 %v298, %v321
      %v351 = vadd.f32 %v299, %v321
      %v352 = vadd.f32 %v300, %v321
      %v353 = vadd.f32 %v301, %v321
      %v354 = vadd.f32 %v302, %v321
      %v355 = vadd.f32 %v303, %v321
      %v356 = vadd.f32 %v304, %v321
      %v357 = vadd.f32 %v305, %v321
      %v358 = vadd.f32 %v306, %v321
      %v359 = vadd.f32 %v307, %v321
      %v360 = vadd.f32 %v308, %v321
      %v361 = vadd.f32 %v309, %v321
      %v362 = vadd.f32 %v310, %v321
      %v363 = vadd.f32 %v311, %v321
      %v364 = vadd.f32 %v312, %v321
      %v365 = vadd.f32 %v313, %v321
      %v366 = vadd.f32 %v314, %v321
      %v367 = vadd.f32 %v315, %v321
      %v368 = vadd.f32 %v316, %v321
      %v369 = vadd.f32 %v317, %v321
      %v370 = vadd.f32 %v318, %v321
      %v371 = vmax.f32 %v323, 0.0
      %v372 = vmax.f32 %v324, 0.0
      %v373 = vmax.f32 %v325, 0.0
      %v374 = vmax.f32 %v326, 0.0
      %v375 = vmax.f32 %v327, 0.0
      %v376 = vmax.f32 %v328, 0.0
      %v377 = vmax.f32 %v329, 0.0
      %v378 = vmax.f32 %v330, 0.0
      %v379 = vmax.f32 %v331, 0.0
      %v380 = vmax.f32 %v332, 0.0
      %v381 = vmax.f32 %v333, 0.0
      %v382 = vmax.f32 %v334, 0.0
      %v383 = vmax.f32 %v335, 0.0
      %v384 = vmax.f32 %v336, 0.0
      %v385 = vmax.f32 %v337, 0.0
      %v386 = vmax.f32 %v338, 0.0
      %v387 = vmax.f32 %v339, 0.0
      %v388 = vmax.f32 %v340, 0.0
      %v389 = vmax.f32 %v341, 0.0
      %v390 = vmax.f32 %v342, 0.0
      %v391 = vmax.f32 %v343, 0.0
      %v392 = vmax.f32 %v344, 0.0
      %v393 = vmax.f32 %v345, 0.0
      %v394 = vmax.f32 %v346, 0.0
      %v395 = vmax.f32 %v347, 0.0
      %v396 = vmax.f32 %v348, 0.0
      %v397 = vmax.f32 %v349, 0.0
      %v398 = vmax.f32 %v350, 0.0
      %v399 = vmax.f32 %v351, 0.0
      %v400 = vmax.f32 %v352, 0.0
      %v401 = vmax.f32 %v353, 0.0
      %v402 = vmax.f32 %v354, 0.0
      %v403 = vmax.f32 %v355, 0.0
      %v404 = vmax.f32 %v356, 0.0
      %v405 = vmax.f32 %v357, 0.0
      %v406 = vmax.f32 %v358, 0.0
      %v407 = vmax.f32 %v359, 0.0
      %v408 = vmax.f32 %v360, 0.0
      %v409 = vmax.f32 %v361, 0.0
      %v410 = vmax.f32 %v362, 0.0
      %v411 = vmax.f32 %v363, 0.0
      %v412 = vmax.f32 %v364, 0.0
      %v413 = vmax.f32 %v365, 0.0
      %v414 = vmax.f32 %v366, 0.0
      %v415 = vmax.f32 %v367, 0.0
      %v416 = vmax.f32 %v368, 0.0
      %v417 = vmax.f32 %v369, 0.0
      %v418 = vmax.f32 %v370, 0.0
      %419 = vst [vmem:[%s170 - $0x1] sm:$0xfe] %v371
      %420 = vst [vmem:[%s170 + $0x7] sm:$0xff] %v372
      %421 = vst [vmem:[%s170 + $0xf] sm:$0x1] %v373
      %422 = vst [vmem:[%s170 + $0xf] sm:$0xfe] %v374
      %423 = vst [vmem:[%s170 + $0x17] sm:$0xff] %v375
      %424 = vst [vmem:[%s170 + $0x1f] sm:$0x1] %v376
      %425 = vst [vmem:[%s170 + $0x1f] sm:$0xfe] %v377
      %426 = vst [vmem:[%s170 + $0x27] sm:$0xff] %v378
      %427 = vst [vmem:[%s170 + $0x2f] sm:$0x1] %v379
      %428 = vst [vmem:[%s170 + $0x2f] sm:$0xfe] %v380
      %429 = vst [vmem:[%s170 + $0x37] sm:$0xff] %v381
      %430 = vst [vmem:[%s170 + $0x3f] sm:$0x1] %v382
      %431 = vst [vmem:[%s170 + $0x3f] sm:$0xfe] %v383
      %432 = vst [vmem:[%s170 + $0x47] sm:$0xff] %v384
      %433 = vst [vmem:[%s170 + $0x4f] sm:$0x1] %v385
      %434 = vst [vmem:[%s170 + $0x4f] sm:$0xfe] %v386
      %435 = vst [vmem:[%s170 + $0x57] sm:$0xff] %v387
      %436 = vst [vmem:[%s170 + $0x5f] sm:$0x1] %v388
      %437 = vst [vmem:[%s170 + $0x5f] sm:$0xfe] %v389
      %438 = vst [vmem:[%s170 + $0x67] sm:$0xff] %v390
      %439 = vst [vmem:[%s170 + $0x6f] sm:$0x1] %v391
      %440 = vst [vmem:[%s170 + $0x6f] sm:$0xfe] %v392
      %441 = vst [vmem:[%s170 + $0x77] sm:$0xff] %v393
      %442 = vst [vmem:[%s170 + $0x7f] sm:$0x1] %v394
      %443 = vst [vmem:[%s170 + $0x7f] sm:$0xfe] %v395
      %444 = vst [vmem:[%s170 + $0x87] sm:$0xff] %v396
      %445 = vst [vmem:[%s170 + $0x8f] sm:$0x1] %v397
      %446 = vst [vmem:[%s170 + $0x8f] sm:$0xfe] %v398
      %447 = vst [vmem:[%s170 + $0x97] sm:$0xff] %v399
      %448 = vst [vmem:[%s170 + $0x9f] sm:$0x1] %v400
      %449 = vst [vmem:[%s170 + $0x9f] sm:$0xfe] %v401
      %450 = vst [vmem:[%s170 + $0xa7] sm:$0xff] %v402
      %451 = vst [vmem:[%s170 + $0xaf] sm:$0x1] %v403
      %452 = vst [vmem:[%s170 + $0xaf] sm:$0xfe] %v404
      %453 = vst [vmem:[%s170 + $0xb7] sm:$0xff] %v405
      %454 = vst [vmem:[%s170 + $0xbf] sm:$0x1] %v406
      %455 = vst [vmem:[%s170 + $0xbf] sm:$0xfe] %v407
      %456 = vst [vmem:[%s170 + $0xc7] sm:$0xff] %v408
      %457 = vst [vmem:[%s170 + $0xcf] sm:$0x1] %v409
      %458 = vst [vmem:[%s170 + $0xcf] sm:$0xfe] %v410
      %459 = vst [vmem:[%s170 + $0xd7] sm:$0xff] %v411
      %460 = vst [vmem:[%s170 + $0xdf] sm:$0x1] %v412
      %461 = vst [vmem:[%s170 + $0xdf] sm:$0xfe] %v413
      %462 = vst [vmem:[%s170 + $0xe7] sm:$0xff] %v414
      %463 = vst [vmem:[%s170 + $0xef] sm:$0x1] %v415
      %464 = vst [vmem:[%s170 + $0xef] sm:$0xfe] %v416
      %465 = vst [vmem:[%s170 + $0xf7] sm:$0xff] %v417
      %466 = vst [vmem:[%s170 + $0xff] sm:$0x1] %v418
      %p467 = scmp.lt.s32.totalorder %s14, 1
      %s468 = scalar_select %p467, %s14, 1
      %s469 = smul.addr %s468, 32
      %s470 = smul.addr %s469, 8
      %s471 = scalar_lea.vmem %s3, %s470
      // Predicated region
      $region33: #{double_conv_forward.5} parent=31 // pred_check
        %p472 = pneg %p100
      $region34: #{double_conv_forward.5} parent=31 // pred_check_branch
        %474 = sbr.rel (%p472) target = $region36
      $region35: #{double_conv_forward.5} parent=31 // pred_region
        _
      $region36: #{double_conv_forward.5} parent=31 // pred_fallthru
        _
    $region32: #{double_conv_forward.5} parent=5 // pred_fallthru
      _
    %p475 = scmp.le.s32.totalorder 2, %s9
    // Predicated region
    $region37: #{double_conv_forward.5} parent=5 // pred_check
      %p476 = pneg %p475
    $region38: #{double_conv_forward.5} parent=5 // pred_check_branch
      %478 = sbr.rel (%p476) target = $region40
    $region39: #{double_conv_forward.5} parent=5 // pred_region
      %s479 = ssub.s32 %s9, 2
      // Predicated region
      $region41: #{double_conv_forward.5} parent=39 // pred_check
        %p480 = pneg %p106
      $region42: #{double_conv_forward.5} parent=39 // pred_check_branch
        %482 = sbr.rel (%p480) target = $region44
      $region43: #{double_conv_forward.5} parent=39 // pred_region
        %p483 = scmp.lt.s32.totalorder %s15, 1
        %s484 = scalar_select %p483, %s15, 1
        %s485 = smul.addr %s484, 32
        %s486 = smul.addr %s485, 8
        %s487 = scalar_lea.vmem %s3, %s486
      $region44: #{double_conv_forward.5} parent=39 // pred_fallthru
        _
    $region40: #{double_conv_forward.5} parent=5 // pred_fallthru
      _
  $region6: #{double_conv_forward.5} parent=0 // loop_footer
    %s13 = sadd.s32 1, %s9
  $region7: #{double_conv_forward.5} parent=0 // loop_footer_branch
    %8 = sbr.rel target = $region3
  $region8: #{double_conv_forward.5} parent=0 // loop_exit
    _

// kernel: double_conv_forward.3
$region0: #{double_conv_forward.3}
  #allocation0 [shape = 'u32[]', space=smem, size = 0x4, offset = 0x4, fixed_abs, tag = 'smem constant byte address 0x4 - core index']
  #allocation1 [shape = 'u32[72,128]{1,0:T(1,128)}', space=vmem, size = 0x9000, scoped, tag = 'internal scratch']
  %s0 = inlined_call_operand.vmem [shape: f32[2,18,32,128], index: 0, kind: input, shape index: {}]
  %s1 = inlined_call_operand.vmem [shape: bf16[9,128,128], index: 1, kind: input, shape index: {}]
  %s2 = inlined_call_operand.vmem [shape: bf16[2,16,32,128], index: 2, kind: output, shape index: {0}]
  %s3 = inlined_call_operand.vmem [shape: f32[2,2,128], index: 3, kind: output, shape index: {1}]
  %4 = xla_tuple %s2, %s3
  %s5 = sld [smem:[#allocation0]]
  $region49: #{double_conv_forward.3} parent=0
    _
  %s7 = ssub.s32 1, %s5
  %s8 = scalar_select 0, %s7, %s5
  loop: start=0, step=1, limit=4
  $region2: #{double_conv_forward.3} parent=0 // loop_pre_header
    _
  $region3: #{double_conv_forward.3} parent=0 // loop_header
    %s10 = sphi 0, %s14
    %p11 = scmp.ge.s32.totalorder %s10, 4
    %s20 = sphi 0, %s22
    %s23 = sphi 0, %s20
    %s24 = sphi 0, %s23
    %s40 = sphi 0, %s24
    %s44 = sphi 0, %s44
    %s46 = sphi 0, %s44
    %s47 = sphi 0, %s46
    %s61 = sphi 0, %s47
    %s67 = sphi 0, %s69
    %s70 = sphi 0, %s67
    %s71 = sphi 0, %s70
    %s87 = sphi 0, %s71
    %s93 = sphi 0, %s95
    %s96 = sphi 0, %s93
    %s97 = sphi 0, %s96
    %s113 = sphi 0, %s97
  $region4: #{double_conv_forward.3} parent=0 // loop_header_branch
    %13 = sbr.rel (%p11) target = $region8
  $region5: #{double_conv_forward.3} parent=0 // loop_body
    %s15 = ssub.s32 %s10, 1
    %s16 = ssub.s32 %s10, 2
    %s17 = sadd.s32 %s10, 1
    %s18 = ssub.s32 %s10, %s17
    %p19 = scmp.eq.s32.totalorder %s18, 0
    %s21 = sadd.s32 %s20, 1
    %s22 = scalar_select %p19, %s20, %s21
    %p25 = pneg %p19
    %p26 = scmp.eq.s32.totalorder %s10, 1
    %p27 = por %p25, %p26
    %p28 = scmp.ne.s32.totalorder %s20, %s23
    %p29 = scmp.eq.s32.totalorder %s10, 0
    %p30 = por %p28, %p29
    %p31 = scmp.ne.s32.totalorder %s20, %s23
    %p32 = scmp.eq.s32.totalorder %s15, 1
    %p33 = por %p31, %p32
    %p34 = scmp.ne.s32.totalorder %s23, %s24
    %p35 = scmp.eq.s32.totalorder %s15, 0
    %p36 = por %p34, %p35
    %p37 = scmp.ne.s32.totalorder %s23, %s24
    %p38 = scmp.eq.s32.totalorder %s16, 1
    %p39 = por %p37, %p38
    %p41 = scmp.ne.s32.totalorder %s24, %s40
    %p42 = scmp.eq.s32.totalorder %s16, 0
    %p43 = por %p41, %p42
    %s45 = sadd.s32 %s44, 1
    %p48 = scmp.eq.s32.totalorder %s10, 1
    %p49 = scmp.ne.s32.totalorder %s44, %s46
    %p50 = scmp.eq.s32.totalorder %s10, 0
    %p51 = por %p49, %p50
    %p52 = scmp.ne.s32.totalorder %s44, %s46
    %p53 = scmp.eq.s32.totalorder %s15, 1
    %p54 = por %p52, %p53
    %p55 = scmp.ne.s32.totalorder %s46, %s47
    %p56 = scmp.eq.s32.totalorder %s15, 0
    %p57 = por %p55, %p56
    %p58 = scmp.ne.s32.totalorder %s46, %s47
    %p59 = scmp.eq.s32.totalorder %s16, 1
    %p60 = por %p58, %p59
    %p62 = scmp.ne.s32.totalorder %s47, %s61
    %p63 = scmp.eq.s32.totalorder %s16, 0
    %p64 = por %p62, %p63
    %s65 = ssub.s32 %s10, %s17
    %p66 = scmp.eq.s32.totalorder %s65, 0
    %s68 = sadd.s32 %s67, 1
    %s69 = scalar_select %p66, %s67, %s68
    %p72 = pneg %p66
    %p73 = scmp.eq.s32.totalorder %s10, 1
    %p74 = por %p72, %p73
    %p75 = scmp.ne.s32.totalorder %s67, %s70
    %p76 = scmp.eq.s32.totalorder %s10, 0
    %p77 = por %p75, %p76
    %p78 = scmp.ne.s32.totalorder %s67, %s70
    %p79 = scmp.eq.s32.totalorder %s15, 1
    %p80 = por %p78, %p79
    %p81 = scmp.ne.s32.totalorder %s70, %s71
    %p82 = scmp.eq.s32.totalorder %s15, 0
    %p83 = por %p81, %p82
    %p84 = scmp.ne.s32.totalorder %s70, %s71
    %p85 = scmp.eq.s32.totalorder %s16, 1
    %p86 = por %p84, %p85
    %p88 = scmp.ne.s32.totalorder %s71, %s87
    %p89 = scmp.eq.s32.totalorder %s16, 0
    %p90 = por %p88, %p89
    %s91 = ssub.s32 %s10, %s17
    %p92 = scmp.eq.s32.totalorder %s91, 0
    %s94 = sadd.s32 %s93, 1
    %s95 = scalar_select %p92, %s93, %s94
    %p98 = pneg %p92
    %p99 = scmp.eq.s32.totalorder %s10, 1
    %p100 = por %p98, %p99
    %p101 = scmp.ne.s32.totalorder %s93, %s96
    %p102 = scmp.eq.s32.totalorder %s10, 0
    %p103 = por %p101, %p102
    %p104 = scmp.ne.s32.totalorder %s93, %s96
    %p105 = scmp.eq.s32.totalorder %s15, 1
    %p106 = por %p104, %p105
    %p107 = scmp.ne.s32.totalorder %s96, %s97
    %p108 = scmp.eq.s32.totalorder %s15, 0
    %p109 = por %p107, %p108
    %p110 = scmp.ne.s32.totalorder %s96, %s97
    %p111 = scmp.eq.s32.totalorder %s16, 1
    %p112 = por %p110, %p111
    %p114 = scmp.ne.s32.totalorder %s97, %s113
    %p115 = scmp.eq.s32.totalorder %s16, 0
    %p116 = por %p114, %p115
    %p117 = scmp.le.s32.totalorder 1, %s10
    %p118 = scmp.lt.s32.totalorder %s10, 3
    %p119 = pnand %p117, %p118
    %p120 = pneg %p119
    // Predicated region
    $region9: #{double_conv_forward.3} parent=5 // pred_check
      _
    $region10: #{double_conv_forward.3} parent=5 // pred_check_branch
      %122 = sbr.rel (%p119) target = $region12
    $region11: #{double_conv_forward.3} parent=5 // pred_region
      %s123 = ssub.s32 %s10, 1
      // Predicated region
      $region13: #{double_conv_forward.3} parent=11 // pred_check
        %p124 = pneg %p57
      $region14: #{double_conv_forward.3} parent=11 // pred_check_branch
        %126 = sbr.rel (%p124) target = $region16
      $region15: #{double_conv_forward.3} parent=11 // pred_region
        _
      $region16: #{double_conv_forward.3} parent=11 // pred_fallthru
        _
    $region12: #{double_conv_forward.3} parent=5 // pred_fallthru
      _
    %p127 = scmp.lt.s32.totalorder %s10, 2
    // Predicated region
    $region17: #{double_conv_forward.3} parent=5 // pred_check
      %p128 = pneg %p127
    $region18: #{double_conv_forward.3} parent=5 // pred_check_branch
      %130 = sbr.rel (%p128) target = $region20
    $region19: #{double_conv_forward.3} parent=5 // pred_region
      // Predicated region
      $region21: #{double_conv_forward.3} parent=19 // pred_check
        %p131 = pneg %p30
      $region22: #{double_conv_forward.3} parent=19 // pred_check_branch
        %133 = sbr.rel (%p131) target = $region24
      $region23: #{double_conv_forward.3} parent=19 // pred_region
        %p134 = scmp.lt.s32.totalorder %s10, 1
        %s135 = scalar_select %p134, %s10, 1
        %s136 = smul.addr %s135, 72
        %s137 = smul.addr %s136, 8
        %s138 = scalar_lea.vmem %s0, %s137
      $region24: #{double_conv_forward.3} parent=19 // pred_fallthru
        _
    $region20: #{double_conv_forward.3} parent=5 // pred_fallthru
      _
    %p139 = scmp.le.s32.totalorder 1, %s10
    %p140 = scmp.lt.s32.totalorder %s10, 3
    %p141 = pnand %p139, %p140
    %p142 = pneg %p141
    // Predicated region
    $region25: #{double_conv_forward.3} parent=5 // pred_check
      _
    $region26: #{double_conv_forward.3} parent=5 // pred_check_branch
      %144 = sbr.rel (%p141) target = $region28
    $region27: #{double_conv_forward.3} parent=5 // pred_region
      %s145 = ssub.s32 %s10, 1
      %p146 = scmp.lt.s32.totalorder %s15, 1
      %s147 = scalar_select %p146, %s15, 1
      %s148 = smul.addr %s147, 72
      %s149 = smul.addr %s148, 8
      %s150 = scalar_lea.vmem %s0, %s149
      %p151 = pneg %p36
      %p152 = pneg %p33
      %p153 = pneg %p57
      %p154 = pneg %p54
      %p155 = pneg %p83
      %p156 = pneg %p80
      %p157 = scmp.lt.s32.totalorder %s15, 1
      %s158 = scalar_select %p157, %s15, 1
      %s159 = smul.addr %s158, 64
      %s160 = smul.addr %s159, 4
      %s161 = scalar_lea.vmem %s2, %s160
      %p162 = pneg %p109
      %p163 = pneg %p106
      %p164 = scmp.lt.s32.totalorder %s15, 1
      %s165 = scalar_select %p164, %s15, 1
      %s166 = smul.addr %s165, 2
      %s167 = scalar_lea.vmem %s3, %s166
      %p168 = scmp.lt.s32.totalorder %s15, 1
      %s169 = scalar_select %p168, %s15, 1
      %s170 = smul.addr %s169, 72
      %s171 = smul.addr %s170, 8
      %s172 = scalar_lea.vmem %s0, %s171
      %p173 = scmp.lt.s32.totalorder %s15, 1
      %s174 = scalar_select %p173, %s15, 1
      %s175 = smul.addr %s174, 64
      %s176 = smul.addr %s175, 4
      %s177 = scalar_lea.vmem %s2, %s176
      %p178 = scmp.lt.s32.totalorder %s15, 1
      %s179 = scalar_select %p178, %s15, 1
      %s180 = smul.addr %s179, 2
      %s181 = scalar_lea.vmem %s3, %s180
      %v182 = vld [vmem:[%s172] sm:$0xff]
      %v183 = vld [vmem:[%s172 + $0x8] sm:$0xff]
      %v184 = vld [vmem:[%s172 + $0x10] sm:$0xff]
      %v185 = vld [vmem:[%s172 + $0x18] sm:$0xff]
      %v186 = vld [vmem:[%s172 + $0x20] sm:$0xff]
      %v187 = vld [vmem:[%s172 + $0x28] sm:$0xff]
      %v188 = vld [vmem:[%s172 + $0x30] sm:$0xff]
      %v189 = vld [vmem:[%s172 + $0x38] sm:$0xff]
      %v190 = vld [vmem:[%s172 + $0x40] sm:$0xff]
      %v191 = vld [vmem:[%s172 + $0x48] sm:$0xff]
      %v192 = vld [vmem:[%s172 + $0x50] sm:$0xff]
      %v193 = vld [vmem:[%s172 + $0x58] sm:$0xff]
      %v194 = vld [vmem:[%s172 + $0x60] sm:$0xff]
      %v195 = vld [vmem:[%s172 + $0x68] sm:$0xff]
      %v196 = vld [vmem:[%s172 + $0x70] sm:$0xff]
      %v197 = vld [vmem:[%s172 + $0x78] sm:$0xff]
      %v198 = vld [vmem:[%s172 + $0x80] sm:$0xff]
      %v199 = vld [vmem:[%s172 + $0x88] sm:$0xff]
      %v200 = vld [vmem:[%s172 + $0x90] sm:$0xff]
      %v201 = vld [vmem:[%s172 + $0x98] sm:$0xff]
      %v202 = vld [vmem:[%s172 + $0xa0] sm:$0xff]
      %v203 = vld [vmem:[%s172 + $0xa8] sm:$0xff]
      %v204 = vld [vmem:[%s172 + $0xb0] sm:$0xff]
      %v205 = vld [vmem:[%s172 + $0xb8] sm:$0xff]
      %v206 = vld [vmem:[%s172 + $0xc0] sm:$0xff]
      %v207 = vld [vmem:[%s172 + $0xc8] sm:$0xff]
      %v208 = vld [vmem:[%s172 + $0xd0] sm:$0xff]
      %v209 = vld [vmem:[%s172 + $0xd8] sm:$0xff]
      %v210 = vld [vmem:[%s172 + $0xe0] sm:$0xff]
      %v211 = vld [vmem:[%s172 + $0xe8] sm:$0xff]
      %v212 = vld [vmem:[%s172 + $0xf0] sm:$0xff]
      %v213 = vld [vmem:[%s172 + $0xf8] sm:$0xff]
      %v214 = vld [vmem:[%s172 + $0x100] sm:$0xff]
      %v215 = vld [vmem:[%s172 + $0x108] sm:$0xff]
      %v216 = vld [vmem:[%s172 + $0x110] sm:$0xff]
      %v217 = vld [vmem:[%s172 + $0x118] sm:$0xff]
      %v218 = vld [vmem:[%s172 + $0x120] sm:$0xff]
      %v219 = vld [vmem:[%s172 + $0x128] sm:$0xff]
      %v220 = vld [vmem:[%s172 + $0x130] sm:$0xff]
      %v221 = vld [vmem:[%s172 + $0x138] sm:$0xff]
      %v222 = vld [vmem:[%s172 + $0x140] sm:$0xff]
      %v223 = vld [vmem:[%s172 + $0x148] sm:$0xff]
      %v224 = vld [vmem:[%s172 + $0x150] sm:$0xff]
      %v225 = vld [vmem:[%s172 + $0x158] sm:$0xff]
      %v226 = vld [vmem:[%s172 + $0x160] sm:$0xff]
      %v227 = vld [vmem:[%s172 + $0x168] sm:$0xff]
      %v228 = vld [vmem:[%s172 + $0x170] sm:$0xff]
      %v229 = vld [vmem:[%s172 + $0x178] sm:$0xff]
      %v230 = vld [vmem:[%s172 + $0x180] sm:$0xff]
      %v231 = vld [vmem:[%s172 + $0x188] sm:$0xff]
      %v232 = vld [vmem:[%s172 + $0x190] sm:$0xff]
      %v233 = vld [vmem:[%s172 + $0x198] sm:$0xff]
      %v234 = vld [vmem:[%s172 + $0x1a0] sm:$0xff]
      %v235 = vld [vmem:[%s172 + $0x1a8] sm:$0xff]
      %v236 = vld [vmem:[%s172 + $0x1b0] sm:$0xff]
      %v237 = vld [vmem:[%s172 + $0x1b8] sm:$0xff]
      %v238 = vld [vmem:[%s172 + $0x1c0] sm:$0xff]
      %v239 = vld [vmem:[%s172 + $0x1c8] sm:$0xff]
      %v240 = vld [vmem:[%s172 + $0x1d0] sm:$0xff]
      %v241 = vld [vmem:[%s172 + $0x1d8] sm:$0xff]
      %v242 = vld [vmem:[%s172 + $0x1e0] sm:$0xff]
      %v243 = vld [vmem:[%s172 + $0x1e8] sm:$0xff]
      %v244 = vld [vmem:[%s172 + $0x1f0] sm:$0xff]
      %v245 = vld [vmem:[%s172 + $0x1f8] sm:$0xff]
      %v246 = vrot.slane %v182, 7
      %v247 = vrot.slane %v186, 7
      %v248 = vrot.slane %v190, 7
      %v249 = vrot.slane %v194, 7
      %v250 = vrot.slane %v198, 7
      %v251 = vrot.slane %v202, 7
      %v252 = vrot.slane %v206, 7
      %v253 = vrot.slane %v210, 7
      %v254 = vrot.slane %v214, 7
      %v255 = vrot.slane %v218, 7
      %v256 = vrot.slane %v222, 7
      %v257 = vrot.slane %v226, 7
      %v258 = vrot.slane %v230, 7
      %v259 = vrot.slane %v234, 7
      %v260 = vrot.slane %v238, 7
      %v261 = vrot.slane %v242, 7
      %v262 = vrot.slane %v183, 7
      %v263 = vrot.slane %v187, 7
      %v264 = vrot.slane %v191, 7
      %v265 = vrot.slane %v195, 7
      %v266 = vrot.slane %v199, 7
      %v267 = vrot.slane %v203, 7
      %v268 = vrot.slane %v207, 7
      %v269 = vrot.slane %v211, 7
      %v270 = vrot.slane %v215, 7
      %v271 = vrot.slane %v219, 7
      %v272 = vrot.slane %v223, 7
      %v273 = vrot.slane %v227, 7
      %v274 = vrot.slane %v231, 7
      %v275 = vrot.slane %v235, 7
      %v276 = vrot.slane %v239, 7
      %v277 = vrot.slane %v243, 7
      %v278 = vrot.slane %v184, 7
      %v279 = vrot.slane %v188, 7
      %v280 = vrot.slane %v192, 7
      %v281 = vrot.slane %v196, 7
      %v282 = vrot.slane %v200, 7
      %v283 = vrot.slane %v204, 7
      %v284 = vrot.slane %v208, 7
      %v285 = vrot.slane %v212, 7
      %v286 = vrot.slane %v216, 7
      %v287 = vrot.slane %v220, 7
      %v288 = vrot.slane %v224, 7
      %v289 = vrot.slane %v228, 7
      %v290 = vrot.slane %v232, 7
      %v291 = vrot.slane %v236, 7
      %v292 = vrot.slane %v240, 7
      %v293 = vrot.slane %v244, 7
      %v294 = vrot.slane %v185, 7
      %v295 = vrot.slane %v189, 7
      %v296 = vrot.slane %v193, 7
      %v297 = vrot.slane %v197, 7
      %v298 = vrot.slane %v201, 7
      %v299 = vrot.slane %v205, 7
      %v300 = vrot.slane %v209, 7
      %v301 = vrot.slane %v213, 7
      %v302 = vrot.slane %v217, 7
      %v303 = vrot.slane %v221, 7
      %v304 = vrot.slane %v225, 7
      %v305 = vrot.slane %v229, 7
      %v306 = vrot.slane %v233, 7
      %v307 = vrot.slane %v237, 7
      %v308 = vrot.slane %v241, 7
      %v309 = vrot.slane %v245, 7
      %v310 = vlaneseq
      %v311 = vshrl.u32 %v310, 7
      %vm312 = vcmp.lt.s32.totalorder %v311, 1
      %v313 = vsel %vm312, %v278, %v294
      %v314 = vsel %vm312, %v279, %v295
      %v315 = vsel %vm312, %v280, %v296
      %v316 = vsel %vm312, %v281, %v297
      %v317 = vsel %vm312, %v282, %v298
      %v318 = vsel %vm312, %v283, %v299
      %v319 = vsel %vm312, %v284, %v300
      %v320 = vsel %vm312, %v285, %v301
      %v321 = vsel %vm312, %v286, %v302
      %v322 = vsel %vm312, %v287, %v303
      %v323 = vsel %vm312, %v288, %v304
      %v324 = vsel %vm312, %v289, %v305
      %v325 = vsel %vm312, %v290, %v306
      %v326 = vsel %vm312, %v291, %v307
      %v327 = vsel %vm312, %v292, %v308
      %v328 = vsel %vm312, %v293, %v309
      %v329 = vsel %vm312, %v262, %v278
      %v330 = vsel %vm312, %v263, %v279
      %v331 = vsel %vm312, %v264, %v280
      %v332 = vsel %vm312, %v265, %v281
      %v333 = vsel %vm312, %v266, %v282
      %v334 = vsel %vm312, %v267, %v283
      %v335 = vsel %vm312, %v268, %v284
      %v336 = vsel %vm312, %v269, %v285
      %v337 = vsel %vm312, %v270, %v286
      %v338 = vsel %vm312, %v271, %v287
      %v339 = vsel %vm312, %v272, %v288
      %v340 = vsel %vm312, %v273, %v289
      %v341 = vsel %vm312, %v274, %v290
      %v342 = vsel %vm312, %v275, %v291
      %v343 = vsel %vm312, %v276, %v292
      %v344 = vsel %vm312, %v277, %v293
      %v345 = vsel %vm312, %v246, %v262
      %v346 = vsel %vm312, %v247, %v263
      %v347 = vsel %vm312, %v248, %v264
      %v348 = vsel %vm312, %v249, %v265
      %v349 = vsel %vm312, %v250, %v266
      %v350 = vsel %vm312, %v251, %v267
      %v351 = vsel %vm312, %v252, %v268
      %v352 = vsel %vm312, %v253, %v269
      %v353 = vsel %vm312, %v254, %v270
      %v354 = vsel %vm312, %v255, %v271
      %v355 = vsel %vm312, %v256, %v272
      %v356 = vsel %vm312, %v257, %v273
      %v357 = vsel %vm312, %v258, %v274
      %v358 = vsel %vm312, %v259, %v275
      %v359 = vsel %vm312, %v260, %v276
      %v360 = vsel %vm312, %v261, %v277
      %v361 = vsel %vm312, %v294, %v246
      %v362 = vsel %vm312, %v295, %v247
      %v363 = vsel %vm312, %v296, %v248
      %v364 = vsel %vm312, %v297, %v249
      %v365 = vsel %vm312, %v298, %v250
      %v366 = vsel %vm312, %v299, %v251
      %v367 = vsel %vm312, %v300, %v252
      %v368 = vsel %vm312, %v301, %v253
      %v369 = vsel %vm312, %v302, %v254
      %v370 = vsel %vm312, %v303, %v255
      %v371 = vsel %vm312, %v304, %v256
      %v372 = vsel %vm312, %v305, %v257
      %v373 = vsel %vm312, %v306, %v258
      %v374 = vsel %vm312, %v307, %v259
      %v375 = vsel %vm312, %v308, %v260
      %v376 = vsel %vm312, %v309, %v261
      %v377 = vpack.c.bf16 %v345, %v361
      %v378 = vpack.c.bf16 %v313, %v329
      %v379 = vpack.c.bf16 %v346, %v362
      %v380 = vpack.c.bf16 %v314, %v330
      %v381 = vpack.c.bf16 %v347, %v363
      %v382 = vpack.c.bf16 %v315, %v331
      %v383 = vpack.c.bf16 %v348, %v364
      %v384 = vpack.c.bf16 %v316, %v332
      %v385 = vpack.c.bf16 %v349, %v365
      %v386 = vpack.c.bf16 %v317, %v333
      %v387 = vpack.c.bf16 %v350, %v366
      %v388 = vpack.c.bf16 %v318, %v334
      %v389 = vpack.c.bf16 %v351, %v367
      %v390 = vpack.c.bf16 %v319, %v335
      %v391 = vpack.c.bf16 %v352, %v368
      %v392 = vpack.c.bf16 %v320, %v336
      %v393 = vpack.c.bf16 %v353, %v369
      %v394 = vpack.c.bf16 %v321, %v337
      %v395 = vpack.c.bf16 %v354, %v370
      %v396 = vpack.c.bf16 %v322, %v338
      %v397 = vpack.c.bf16 %v355, %v371
      %v398 = vpack.c.bf16 %v323, %v339
      %v399 = vpack.c.bf16 %v356, %v372
      %v400 = vpack.c.bf16 %v324, %v340
      %v401 = vpack.c.bf16 %v357, %v373
      %v402 = vpack.c.bf16 %v325, %v341
      %v403 = vpack.c.bf16 %v358, %v374
      %v404 = vpack.c.bf16 %v326, %v342
      %v405 = vpack.c.bf16 %v359, %v375
      %v406 = vpack.c.bf16 %v327, %v343
      %v407 = vpack.c.bf16 %v360, %v376
      %v408 = vpack.c.bf16 %v328, %v344
      %v409 = vld [vmem:[%s1] sm:$0xf]
      %v410 = vld [vmem:[%s1 + $0x4] sm:$0xf]
      %v411 = vld [vmem:[%s1 + $0x8] sm:$0xf]
      %v412 = vld [vmem:[%s1 + $0xc] sm:$0xf]
      %v413 = vld [vmem:[%s1 + $0x10] sm:$0xf]
      %v414 = vld [vmem:[%s1 + $0x14] sm:$0xf]
      %v415 = vld [vmem:[%s1 + $0x18] sm:$0xf]
      %v416 = vld [vmem:[%s1 + $0x1c] sm:$0xf]
      %v417 = vld [vmem:[%s1 + $0x20] sm:$0xf]
      %v418 = vld [vmem:[%s1 + $0x24] sm:$0xf]
      %v419 = vld [vmem:[%s1 + $0x28] sm:$0xf]
      %v420 = vld [vmem:[%s1 + $0x2c] sm:$0xf]
      %v421 = vld [vmem:[%s1 + $0x30] sm:$0xf]
      %v422 = vld [vmem:[%s1 + $0x34] sm:$0xf]
      %v423 = vld [vmem:[%s1 + $0x38] sm:$0xf]
      %v424 = vld [vmem:[%s1 + $0x3c] sm:$0xf]
      %v425 = vpack.c.bf16 %v183, %v182
      %v426 = vpack.c.bf16 %v185, %v184
      %v427 = vpack.c.bf16 %v187, %v186
      %v428 = vpack.c.bf16 %v189, %v188
      %v429 = vpack.c.bf16 %v191, %v190
      %v430 = vpack.c.bf16 %v193, %v192
      %v431 = vpack.c.bf16 %v195, %v194
      %v432 = vpack.c.bf16 %v197, %v196
      %v433 = vpack.c.bf16 %v199, %v198
      %v434 = vpack.c.bf16 %v201, %v200
      %v435 = vpack.c.bf16 %v203, %v202
      %v436 = vpack.c.bf16 %v205, %v204
      %v437 = vpack.c.bf16 %v207, %v206
      %v438 = vpack.c.bf16 %v209, %v208
      %v439 = vpack.c.bf16 %v211, %v210
      %v440 = vpack.c.bf16 %v213, %v212
      %v441 = vpack.c.bf16 %v215, %v214
      %v442 = vpack.c.bf16 %v217, %v216
      %v443 = vpack.c.bf16 %v219, %v218
      %v444 = vpack.c.bf16 %v221, %v220
      %v445 = vpack.c.bf16 %v223, %v222
      %v446 = vpack.c.bf16 %v225, %v224
      %v447 = vpack.c.bf16 %v227, %v226
      %v448 = vpack.c.bf16 %v229, %v228
      %v449 = vpack.c.bf16 %v231, %v230
      %v450 = vpack.c.bf16 %v233, %v232
      %v451 = vpack.c.bf16 %v235, %v234
      %v452 = vpack.c.bf16 %v237, %v236
      %v453 = vpack.c.bf16 %v239, %v238
      %v454 = vpack.c.bf16 %v241, %v240
      %v455 = vpack.c.bf16 %v243, %v242
      %v456 = vpack.c.bf16 %v245, %v244
      %s457 = scalar_lea.vmem %s1, 64
      %v458 = vld [vmem:[%s457] sm:$0xf]
      %v459 = vld [vmem:[%s457 + $0x4] sm:$0xf]
      %v460 = vld [vmem:[%s457 + $0x8] sm:$0xf]
      %v461 = vld [vmem:[%s457 + $0xc] sm:$0xf]
      %v462 = vld [vmem:[%s457 + $0x10] sm:$0xf]
      %v463 = vld [vmem:[%s457 + $0x14] sm:$0xf]
      %v464 = vld [vmem:[%s457 + $0x18] sm:$0xf]
      %v465 = vld [vmem:[%s457 + $0x1c] sm:$0xf]
      %v466 = vld [vmem:[%s457 + $0x20] sm:$0xf]
      %v467 = vld [vmem:[%s457 + $0x24] sm:$0xf]
      %v468 = vld [vmem:[%s457 + $0x28] sm:$0xf]
      %v469 = vld [vmem:[%s457 + $0x2c] sm:$0xf]
      %v470 = vld [vmem:[%s457 + $0x30] sm:$0xf]
      %v471 = vld [vmem:[%s457 + $0x34] sm:$0xf]
      %v472 = vld [vmem:[%s457 + $0x38] sm:$0xf]
      %v473 = vld [vmem:[%s457 + $0x3c] sm:$0xf]
      %v490 = vunpack.c.l.b16 %v458
      %v491 = vunpack.c.l.b16 %v459
      %v492 = vunpack.c.l.b16 %v460
      %v493 = vunpack.c.l.b16 %v461
      %v494 = vunpack.c.l.b16 %v462
      %v495 = vunpack.c.l.b16 %v463
      %v496 = vunpack.c.l.b16 %v464
      %v497 = vunpack.c.l.b16 %v465
      %v498 = vunpack.c.l.b16 %v466
      %v499 = vunpack.c.l.b16 %v467
      %v500 = vunpack.c.l.b16 %v468
      %v501 = vunpack.c.l.b16 %v469
      %v502 = vunpack.c.l.b16 %v470
      %v503 = vunpack.c.l.b16 %v471
      %v504 = vunpack.c.l.b16 %v472
      %v505 = vunpack.c.l.b16 %v473
      %v506 = vpack.c.b16 %v491, %v490
      %v507 = vpack.c.b16 %v493, %v492
      %v508 = vpack.c.b16 %v495, %v494
      %v509 = vpack.c.b16 %v497, %v496
      %v510 = vpack.c.b16 %v499, %v498
      %v511 = vpack.c.b16 %v501, %v500
      %v512 = vpack.c.b16 %v503, %v502
      %v513 = vpack.c.b16 %v505, %v504
      %522 = vmatpush.bf16.msra.mxu0 %v513
      %523 = vmatpush.bf16.msra.mxu0 %v512
      %524 = vmatpush.bf16.msra.mxu0 %v511
      %525 = vmatpush.bf16.msra.mxu0 %v510
      %526 = vmatpush.bf16.msra.mxu0 %v509
      %527 = vmatpush.bf16.msra.mxu0 %v508
      %528 = vmatpush.bf16.msra.mxu0 %v507
      %529 = vmatpush.bf16.msra.mxu0 %v506
      %530 = vmatmul.bf16.gmra.mxu0 %v425
      %v531 = vpop.f32.mrf.mxu0
      %v532 = vadd.f32 0.0, %v531
      %v533 = vpop.f32.mrf.mxu0
      %v534 = vadd.f32 0.0, %v533
      %535 = vmatmul.bf16.gmra.mxu0 %v426
      %v536 = vpop.f32.mrf.mxu0
      %v537 = vadd.f32 0.0, %v536
      %v538 = vpop.f32.mrf.mxu0
      %v539 = vadd.f32 0.0, %v538
      %540 = vmatmul.bf16.gmra.mxu0 %v427
      %v541 = vpop.f32.mrf.mxu0
      %v542 = vadd.f32 0.0, %v541
      %v543 = vpop.f32.mrf.mxu0
      %v544 = vadd.f32 0.0, %v543
      %545 = vmatmul.bf16.gmra.mxu0 %v428
      %v546 = vpop.f32.mrf.mxu0
      %v547 = vadd.f32 0.0, %v546
      %v548 = vpop.f32.mrf.mxu0
      %v549 = vadd.f32 0.0, %v548
      %550 = vmatmul.bf16.gmra.mxu0 %v429
      %v551 = vpop.f32.mrf.mxu0
      %v552 = vadd.f32 0.0, %v551
      %v553 = vpop.f32.mrf.mxu0
      %v554 = vadd.f32 0.0, %v553
      %555 = vmatmul.bf16.gmra.mxu0 %v430
      %v556 = vpop.f32.mrf.mxu0
      %v557 = vadd.f32 0.0, %v556
      %v558 = vpop.f32.mrf.mxu0
      %v559 = vadd.f32 0.0, %v558
      %560 = vmatmul.bf16.gmra.mxu0 %v431
      %v561 = vpop.f32.mrf.mxu0
      %v562 = vadd.f32 0.0, %v561
      %v563 = vpop.f32.mrf.mxu0
      %v564 = vadd.f32 0.0, %v563
      %565 = vmatmul.bf16.gmra.mxu0 %v432
      %v566 = vpop.f32.mrf.mxu0
      %v567 = vadd.f32 0.0, %v566
      %v568 = vpop.f32.mrf.mxu0
      %v569 = vadd.f32 0.0, %v568
      %570 = vmatmul.bf16.gmra.mxu0 %v433
      %v571 = vpop.f32.mrf.mxu0
      %v572 = vadd.f32 0.0, %v571
      %v573 = vpop.f32.mrf.mxu0
      %v574 = vadd.f32 0.0, %v573
      %575 = vmatmul.bf16.gmra.mxu0 %v434
      %v576 = vpop.f32.mrf.mxu0
      %v577 = vadd.f32 0.0, %v576
      %v578 = vpop.f32.mrf.mxu0
      %v579 = vadd.f32 0.0, %v578
      %580 = vmatmul.bf16.gmra.mxu0 %v435
      %v581 = vpop.f32.mrf.mxu0
      %v582 = vadd.f32 0.0, %v581
      %v583 = vpop.f32.mrf.mxu0
      %v584 = vadd.f32 0.0, %v583
      %585 = vmatmul.bf16.gmra.mxu0 %v436
      %v586 = vpop.f32.mrf.mxu0
      %v587 = vadd.f32 0.0, %v586
      %v588 = vpop.f32.mrf.mxu0
      %v589 = vadd.f32 0.0, %v588
      %590 = vmatmul.bf16.gmra.mxu0 %v437
      %v591 = vpop.f32.mrf.mxu0
      %v592 = vadd.f32 0.0, %v591
      %v593 = vpop.f32.mrf.mxu0
      %v594 = vadd.f32 0.0, %v593
      %595 = vmatmul.bf16.gmra.mxu0 %v438
      %v596 = vpop.f32.mrf.mxu0
      %v597 = vadd.f32 0.0, %v596
      %v598 = vpop.f32.mrf.mxu0
      %v599 = vadd.f32 0.0, %v598
      %600 = vmatmul.bf16.gmra.mxu0 %v439
      %v601 = vpop.f32.mrf.mxu0
      %v602 = vadd.f32 0.0, %v601
      %v603 = vpop.f32.mrf.mxu0
      %v604 = vadd.f32 0.0, %v603
      %605 = vmatmul.bf16.gmra.mxu0 %v440
      %v606 = vpop.f32.mrf.mxu0
      %v607 = vadd.f32 0.0, %v606
      %v608 = vpop.f32.mrf.mxu0
      %v609 = vadd.f32 0.0, %v608
      %610 = vmatmul.bf16.gmra.mxu0 %v441
      %v611 = vpop.f32.mrf.mxu0
      %v612 = vadd.f32 0.0, %v611
      %v613 = vpop.f32.mrf.mxu0
      %v614 = vadd.f32 0.0, %v613
      %615 = vmatmul.bf16.gmra.mxu0 %v442
      %v616 = vpop.f32.mrf.mxu0
      %v617 = vadd.f32 0.0, %v616
      %v618 = vpop.f32.mrf.mxu0
      %v619 = vadd.f32 0.0, %v618
      %620 = vmatmul.bf16.gmra.mxu0 %v443
      %v621 = vpop.f32.mrf.mxu0
      %v622 = vadd.f32 0.0, %v621
      %v623 = vpop.f32.mrf.mxu0
      %v624 = vadd.f32 0.0, %v623
      %625 = vmatmul.bf16.gmra.mxu0 %v444
      %v626 = vpop.f32.mrf.mxu0
      %v627 = vadd.f32 0.0, %v626
      %v628 = vpop.f32.mrf.mxu0
      %v629 = vadd.f32 0.0, %v628
      %630 = vmatmul.bf16.gmra.mxu0 %v445
      %v631 = vpop.f32.mrf.mxu0
      %v632 = vadd.f32 0.0, %v631
      %v633 = vpop.f32.mrf.mxu0
      %v634 = vadd.f32 0.0, %v633
      %635 = vmatmul.bf16.gmra.mxu0 %v446
      %v636 = vpop.f32.mrf.mxu0
      %v637 = vadd.f32 0.0, %v636
      %v638 = vpop.f32.mrf.mxu0
      %v639 = vadd.f32 0.0, %v638
      %640 = vmatmul.bf16.gmra.mxu0 %v447
      %v641 = vpop.f32.mrf.mxu0
      %v642 = vadd.f32 0.0, %v641
      %v643 = vpop.f32.mrf.mxu0
      %v644 = vadd.f32 0.0, %v643
      %645 = vmatmul.bf16.gmra.mxu0 %v448
      %v646 = vpop.f32.mrf.mxu0
      %v647 = vadd.f32 0.0, %v646
      %v648 = vpop.f32.mrf.mxu0
      %v649 = vadd.f32 0.0, %v648
      %650 = vmatmul.bf16.gmra.mxu0 %v449
      %v651 = vpop.f32.mrf.mxu0
      %v652 = vadd.f32 0.0, %v651
      %v653 = vpop.f32.mrf.mxu0
      %v654 = vadd.f32 0.0, %v653
      %655 = vmatmul.bf16.gmra.mxu0 %v450
      %v656 = vpop.f32.mrf.mxu0
      %v657 = vadd.f32 0.0, %v656
      %v658 = vpop.f32.mrf.mxu0
      %v659 = vadd.f32 0.0, %v658
      %660 = vmatmul.bf16.gmra.mxu0 %v451
      %v661 = vpop.f32.mrf.mxu0
      %v662 = vadd.f32 0.0, %v661
      %v663 = vpop.f32.mrf.mxu0
      %v664 = vadd.f32 0.0, %v663
      %665 = vmatmul.bf16.gmra.mxu0 %v452
      %v666 = vpop.f32.mrf.mxu0
      %v667 = vadd.f32 0.0, %v666
      %v668 = vpop.f32.mrf.mxu0
      %v669 = vadd.f32 0.0, %v668
      %670 = vmatmul.bf16.gmra.mxu0 %v453
      %v671 = vpop.f32.mrf.mxu0
      %v672 = vadd.f32 0.0, %v671
      %v673 = vpop.f32.mrf.mxu0
      %v674 = vadd.f32 0.0, %v673
      %675 = vmatmul.bf16.gmra.mxu0 %v454
      %v676 = vpop.f32.mrf.mxu0
      %v677 = vadd.f32 0.0, %v676
      %v678 = vpop.f32.mrf.mxu0
      %v679 = vadd.f32 0.0, %v678
      %680 = vmatmul.bf16.gmra.mxu0 %v455
      %v681 = vpop.f32.mrf.mxu0
      %v682 = vadd.f32 0.0, %v681
      %v683 = vpop.f32.mrf.mxu0
      %v684 = vadd.f32 0.0, %v683
      %685 = vmatmul.bf16.gmra.mxu0 %v456
      %v686 = vpop.f32.mrf.mxu0
      %v687 = vadd.f32 0.0, %v686
      %v688 = vpop.f32.mrf.mxu0
      %v689 = vadd.f32 0.0, %v688
      %690 = vdwg.mxu0
      %v707 = vunpack.c.l.b16 %v409
      %v708 = vunpack.c.l.b16 %v410
      %v709 = vunpack.c.l.b16 %v411
      %v710 = vunpack.c.l.b16 %v412
      %v711 = vunpack.c.l.b16 %v413
      %v712 = vunpack.c.l.b16 %v414
      %v713 = vunpack.c.l.b16 %v415
      %v714 = vunpack.c.l.b16 %v416
      %v715 = vunpack.c.l.b16 %v417
      %v716 = vunpack.c.l.b16 %v418
      %v717 = vunpack.c.l.b16 %v419
      %v718 = vunpack.c.l.b16 %v420
      %v719 = vunpack.c.l.b16 %v421
      %v720 = vunpack.c.l.b16 %v422
      %v721 = vunpack.c.l.b16 %v423
      %v722 = vunpack.c.l.b16 %v424
      %v723 = vpack.c.b16 %v708, %v707
      %v724 = vpack.c.b16 %v710, %v709
      %v725 = vpack.c.b16 %v712, %v711
      %v726 = vpack.c.b16 %v714, %v713
      %v727 = vpack.c.b16 %v716, %v715
      %v728 = vpack.c.b16 %v718, %v717
      %v729 = vpack.c.b16 %v720, %v719
      %v730 = vpack.c.b16 %v722, %v721
      %739 = vmatpush.bf16.msra.mxu0 %v730
      %740 = vmatpush.bf16.msra.mxu0 %v729
      %741 = vmatpush.bf16.msra.mxu0 %v728
      %742 = vmatpush.bf16.msra.mxu0 %v727
      %743 = vmatpush.bf16.msra.mxu0 %v726
      %744 = vmatpush.bf16.msra.mxu0 %v725
      %745 = vmatpush.bf16.msra.mxu0 %v724
      %746 = vmatpush.bf16.msra.mxu0 %v723
      %747 = vmatmul.bf16.gmra.mxu0 %v377
      %v748 = vpop.f32.mrf.mxu0
      %v749 = vadd.f32 %v532, %v748
      %v750 = vpop.f32.mrf.mxu0
      %v751 = vadd.f32 %v534, %v750
      %752 = vmatmul.bf16.gmra.mxu0 %v378
      %v753 = vpop.f32.mrf.mxu0
      %v754 = vadd.f32 %v537, %v753
      %v755 = vpop.f32.mrf.mxu0
      %v756 = vadd.f32 %v539, %v755
      %757 = vmatmul.bf16.gmra.mxu0 %v379
      %v758 = vpop.f32.mrf.mxu0
      %v759 = vadd.f32 %v542, %v758
      %v760 = vpop.f32.mrf.mxu0
      %v761 = vadd.f32 %v544, %v760
      %762 = vmatmul.bf16.gmra.mxu0 %v380
      %v763 = vpop.f32.mrf.mxu0
      %v764 = vadd.f32 %v547, %v763
      %v765 = vpop.f32.mrf.mxu0
      %v766 = vadd.f32 %v549, %v765
      %767 = vmatmul.bf16.gmra.mxu0 %v381
      %v768 = vpop.f32.mrf.mxu0
      %v769 = vadd.f32 %v552, %v768
      %v770 = vpop.f32.mrf.mxu0
      %v771 = vadd.f32 %v554, %v770
      %772 = vmatmul.bf16.gmra.mxu0 %v382
      %v773 = vpop.f32.mrf.mxu0
      %v774 = vadd.f32 %v557, %v773
      %v775 = vpop.f32.mrf.mxu0
      %v776 = vadd.f32 %v559, %v775
      %777 = vmatmul.bf16.gmra.mxu0 %v383
      %v778 = vpop.f32.mrf.mxu0
      %v779 = vadd.f32 %v562, %v778
      %v780 = vpop.f32.mrf.mxu0
      %v781 = vadd.f32 %v564, %v780
      %782 = vmatmul.bf16.gmra.mxu0 %v384
      %v783 = vpop.f32.mrf.mxu0
      %v784 = vadd.f32 %v567, %v783
      %v785 = vpop.f32.mrf.mxu0
      %v786 = vadd.f32 %v569, %v785
      %787 = vmatmul.bf16.gmra.mxu0 %v385
      %v788 = vpop.f32.mrf.mxu0
      %v789 = vadd.f32 %v572, %v788
      %v790 = vpop.f32.mrf.mxu0
      %v791 = vadd.f32 %v574, %v790
      %792 = vmatmul.bf16.gmra.mxu0 %v386
      %v793 = vpop.f32.mrf.mxu0
      %v794 = vadd.f32 %v577, %v793
      %v795 = vpop.f32.mrf.mxu0
      %v796 = vadd.f32 %v579, %v795
      %797 = vmatmul.bf16.gmra.mxu0 %v387
      %v798 = vpop.f32.mrf.mxu0
      %v799 = vadd.f32 %v582, %v798
      %v800 = vpop.f32.mrf.mxu0
      %v801 = vadd.f32 %v584, %v800
      %802 = vmatmul.bf16.gmra.mxu0 %v388
      %v803 = vpop.f32.mrf.mxu0
      %v804 = vadd.f32 %v587, %v803
      %v805 = vpop.f32.mrf.mxu0
      %v806 = vadd.f32 %v589, %v805
      %807 = vmatmul.bf16.gmra.mxu0 %v389
      %v808 = vpop.f32.mrf.mxu0
      %v809 = vadd.f32 %v592, %v808
      %v810 = vpop.f32.mrf.mxu0
      %v811 = vadd.f32 %v594, %v810
      %812 = vmatmul.bf16.gmra.mxu0 %v390
      %v813 = vpop.f32.mrf.mxu0
      %v814 = vadd.f32 %v597, %v813
      %v815 = vpop.f32.mrf.mxu0
      %v816 = vadd.f32 %v599, %v815
      %817 = vmatmul.bf16.gmra.mxu0 %v391
      %v818 = vpop.f32.mrf.mxu0
      %v819 = vadd.f32 %v602, %v818
      %v820 = vpop.f32.mrf.mxu0
      %v821 = vadd.f32 %v604, %v820
      %822 = vmatmul.bf16.gmra.mxu0 %v392
      %v823 = vpop.f32.mrf.mxu0
      %v824 = vadd.f32 %v607, %v823
      %v825 = vpop.f32.mrf.mxu0
      %v826 = vadd.f32 %v609, %v825
      %827 = vmatmul.bf16.gmra.mxu0 %v393
      %v828 = vpop.f32.mrf.mxu0
      %v829 = vadd.f32 %v612, %v828
      %v830 = vpop.f32.mrf.mxu0
      %v831 = vadd.f32 %v614, %v830
      %832 = vmatmul.bf16.gmra.mxu0 %v394
      %v833 = vpop.f32.mrf.mxu0
      %v834 = vadd.f32 %v617, %v833
      %v835 = vpop.f32.mrf.mxu0
      %v836 = vadd.f32 %v619, %v835
      %837 = vmatmul.bf16.gmra.mxu0 %v395
      %v838 = vpop.f32.mrf.mxu0
      %v839 = vadd.f32 %v622, %v838
      %v840 = vpop.f32.mrf.mxu0
      %v841 = vadd.f32 %v624, %v840
      %842 = vmatmul.bf16.gmra.mxu0 %v396
      %v843 = vpop.f32.mrf.mxu0
      %v844 = vadd.f32 %v627, %v843
      %v845 = vpop.f32.mrf.mxu0
      %v846 = vadd.f32 %v629, %v845
      %847 = vmatmul.bf16.gmra.mxu0 %v397
      %v848 = vpop.f32.mrf.mxu0
      %v849 = vadd.f32 %v632, %v848
      %v850 = vpop.f32.mrf.mxu0
      %v851 = vadd.f32 %v634, %v850
      %852 = vmatmul.bf16.gmra.mxu0 %v398
      %v853 = vpop.f32.mrf.mxu0
      %v854 = vadd.f32 %v637, %v853
      %v855 = vpop.f32.mrf.mxu0
      %v856 = vadd.f32 %v639, %v855
      %857 = vmatmul.bf16.gmra.mxu0 %v399
      %v858 = vpop.f32.mrf.mxu0
      %v859 = vadd.f32 %v642, %v858
      %v860 = vpop.f32.mrf.mxu0
      %v861 = vadd.f32 %v644, %v860
      %862 = vmatmul.bf16.gmra.mxu0 %v400
      %v863 = vpop.f32.mrf.mxu0
      %v864 = vadd.f32 %v647, %v863
      %v865 = vpop.f32.mrf.mxu0
      %v866 = vadd.f32 %v649, %v865
      %867 = vmatmul.bf16.gmra.mxu0 %v401
      %v868 = vpop.f32.mrf.mxu0
      %v869 = vadd.f32 %v652, %v868
      %v870 = vpop.f32.mrf.mxu0
      %v871 = vadd.f32 %v654, %v870
      %872 = vmatmul.bf16.gmra.mxu0 %v402
      %v873 = vpop.f32.mrf.mxu0
      %v874 = vadd.f32 %v657, %v873
      %v875 = vpop.f32.mrf.mxu0
      %v876 = vadd.f32 %v659, %v875
      %877 = vmatmul.bf16.gmra.mxu0 %v403
      %v878 = vpop.f32.mrf.mxu0
      %v879 = vadd.f32 %v662, %v878
      %v880 = vpop.f32.mrf.mxu0
      %v881 = vadd.f32 %v664, %v880
      %882 = vmatmul.bf16.gmra.mxu0 %v404
      %v883 = vpop.f32.mrf.mxu0
      %v884 = vadd.f32 %v667, %v883
      %v885 = vpop.f32.mrf.mxu0
      %v886 = vadd.f32 %v669, %v885
      %887 = vmatmul.bf16.gmra.mxu0 %v405
      %v888 = vpop.f32.mrf.mxu0
      %v889 = vadd.f32 %v672, %v888
      %v890 = vpop.f32.mrf.mxu0
      %v891 = vadd.f32 %v674, %v890
      %892 = vmatmul.bf16.gmra.mxu0 %v406
      %v893 = vpop.f32.mrf.mxu0
      %v894 = vadd.f32 %v677, %v893
      %v895 = vpop.f32.mrf.mxu0
      %v896 = vadd.f32 %v679, %v895
      %897 = vmatmul.bf16.gmra.mxu0 %v407
      %v898 = vpop.f32.mrf.mxu0
      %v899 = vadd.f32 %v682, %v898
      %v900 = vpop.f32.mrf.mxu0
      %v901 = vadd.f32 %v684, %v900
      %902 = vmatmul.bf16.gmra.mxu0 %v408
      %v903 = vpop.f32.mrf.mxu0
      %v904 = vadd.f32 %v687, %v903
      %v905 = vpop.f32.mrf.mxu0
      %v906 = vadd.f32 %v689, %v905
      %907 = vdwg.mxu0
      %v908 = vrot.slane %v182, 1
      %v909 = vrot.slane %v186, 1
      %v910 = vrot.slane %v190, 1
      %v911 = vrot.slane %v194, 1
      %v912 = vrot.slane %v198, 1
      %v913 = vrot.slane %v202, 1
      %v914 = vrot.slane %v206, 1
      %v915 = vrot.slane %v210, 1
      %v916 = vrot.slane %v214, 1
      %v917 = vrot.slane %v218, 1
      %v918 = vrot.slane %v222, 1
      %v919 = vrot.slane %v226, 1
      %v920 = vrot.slane %v230, 1
      %v921 = vrot.slane %v234, 1
      %v922 = vrot.slane %v238, 1
      %v923 = vrot.slane %v242, 1
      %v924 = vrot.slane %v183, 1
      %v925 = vrot.slane %v187, 1
      %v926 = vrot.slane %v191, 1
      %v927 = vrot.slane %v195, 1
      %v928 = vrot.slane %v199, 1
      %v929 = vrot.slane %v203, 1
      %v930 = vrot.slane %v207, 1
      %v931 = vrot.slane %v211, 1
      %v932 = vrot.slane %v215, 1
      %v933 = vrot.slane %v219, 1
      %v934 = vrot.slane %v223, 1
      %v935 = vrot.slane %v227, 1
      %v936 = vrot.slane %v231, 1
      %v937 = vrot.slane %v235, 1
      %v938 = vrot.slane %v239, 1
      %v939 = vrot.slane %v243, 1
      %v940 = vrot.slane %v184, 1
      %v941 = vrot.slane %v188, 1
      %v942 = vrot.slane %v192, 1
      %v943 = vrot.slane %v196, 1
      %v944 = vrot.slane %v200, 1
      %v945 = vrot.slane %v204, 1
      %v946 = vrot.slane %v208, 1
      %v947 = vrot.slane %v212, 1
      %v948 = vrot.slane %v216, 1
      %v949 = vrot.slane %v220, 1
      %v950 = vrot.slane %v224, 1
      %v951 = vrot.slane %v228, 1
      %v952 = vrot.slane %v232, 1
      %v953 = vrot.slane %v236, 1
      %v954 = vrot.slane %v240, 1
      %v955 = vrot.slane %v244, 1
      %v956 = vrot.slane %v185, 1
      %v957 = vrot.slane %v189, 1
      %v958 = vrot.slane %v193, 1
      %v959 = vrot.slane %v197, 1
      %v960 = vrot.slane %v201, 1
      %v961 = vrot.slane %v205, 1
      %v962 = vrot.slane %v209, 1
      %v963 = vrot.slane %v213, 1
      %v964 = vrot.slane %v217, 1
      %v965 = vrot.slane %v221, 1
      %v966 = vrot.slane %v225, 1
      %v967 = vrot.slane %v229, 1
      %v968 = vrot.slane %v233, 1
      %v969 = vrot.slane %v237, 1
      %v970 = vrot.slane %v241, 1
      %v971 = vrot.slane %v245, 1
      %vm972 = vcmp.lt.s32.totalorder %v311, 7
      %v973 = vsel %vm972, %v940, %v956
      %v974 = vsel %vm972, %v941, %v957
      %v975 = vsel %vm972, %v942, %v958
      %v976 = vsel %vm972, %v943, %v959
      %v977 = vsel %vm972, %v944, %v960
      %v978 = vsel %vm972, %v945, %v961
      %v979 = vsel %vm972, %v946, %v962
      %v980 = vsel %vm972, %v947, %v963
      %v981 = vsel %vm972, %v948, %v964
      %v982 = vsel %vm972, %v949, %v965
      %v983 = vsel %vm972, %v950, %v966
      %v984 = vsel %vm972, %v951, %v967
      %v985 = vsel %vm972, %v952, %v968
      %v986 = vsel %vm972, %v953, %v969
      %v987 = vsel %vm972, %v954, %v970
      %v988 = vsel %vm972, %v955, %v971
      %v989 = vsel %vm972, %v924, %v940
      %v990 = vsel %vm972, %v925, %v941
      %v991 = vsel %vm972, %v926, %v942
      %v992 = vsel %vm972, %v927, %v943
      %v993 = vsel %vm972, %v928, %v944
      %v994 = vsel %vm972, %v929, %v945
      %v995 = vsel %vm972, %v930, %v946
      %v996 = vsel %vm972, %v931, %v947
      %v997 = vsel %vm972, %v932, %v948
      %v998 = vsel %vm972, %v933, %v949
      %v999 = vsel %vm972, %v934, %v950
      %v1000 = vsel %vm972, %v935, %v951
      %v1001 = vsel %vm972, %v936, %v952
      %v1002 = vsel %vm972, %v937, %v953
      %v1003 = vsel %vm972, %v938, %v954
      %v1004 = vsel %vm972, %v939, %v955
      %v1005 = vsel %vm972, %v908, %v924
      %v1006 = vsel %vm972, %v909, %v925
      %v1007 = vsel %vm972, %v910, %v926
      %v1008 = vsel %vm972, %v911, %v927
      %v1009 = vsel %vm972, %v912, %v928
      %v1010 = vsel %vm972, %v913, %v929
      %v1011 = vsel %vm972, %v914, %v930
      %v1012 = vsel %vm972, %v915, %v931
      %v1013 = vsel %vm972, %v916, %v932
      %v1014 = vsel %vm972, %v917, %v933
      %v1015 = vsel %vm972, %v918, %v934
      %v1016 = vsel %vm972, %v919, %v935
      %v1017 = vsel %vm972, %v920, %v936
      %v1018 = vsel %vm972, %v921, %v937
      %v1019 = vsel %vm972, %v922, %v938
      %v1020 = vsel %vm972, %v923, %v939
      %v1021 = vsel %vm972, %v956, %v908
      %v1022 = vsel %vm972, %v957, %v909
      %v1023 = vsel %vm972, %v958, %v910
      %v1024 = vsel %vm972, %v959, %v911
      %v1025 = vsel %vm972, %v960, %v912
      %v1026 = vsel %vm972, %v961, %v913
      %v1027 = vsel %vm972, %v962, %v914
      %v1028 = vsel %vm972, %v963, %v915
      %v1029 = vsel %vm972, %v964, %v916
      %v1030 = vsel %vm972, %v965, %v917
      %v1031 = vsel %vm972, %v966, %v918
      %v1032 = vsel %vm972, %v967, %v919
      %v1033 = vsel %vm972, %v968, %v920
      %v1034 = vsel %vm972, %v969, %v921
      %v1035 = vsel %vm972, %v970, %v922
      %v1036 = vsel %vm972, %v971, %v923
      %v1037 = vpack.c.bf16 %v989, %v1005
      %v1038 = vpack.c.bf16 %v1021, %v973
      %v1039 = vpack.c.bf16 %v990, %v1006
      %v1040 = vpack.c.bf16 %v1022, %v974
      %v1041 = vpack.c.bf16 %v991, %v1007
      %v1042 = vpack.c.bf16 %v1023, %v975
      %v1043 = vpack.c.bf16 %v992, %v1008
      %v1044 = vpack.c.bf16 %v1024, %v976
      %v1045 = vpack.c.bf16 %v993, %v1009
      %v1046 = vpack.c.bf16 %v1025, %v977
      %v1047 = vpack.c.bf16 %v994, %v1010
      %v1048 = vpack.c.bf16 %v1026, %v978
      %v1049 = vpack.c.bf16 %v995, %v1011
      %v1050 = vpack.c.bf16 %v1027, %v979
      %v1051 = vpack.c.bf16 %v996, %v1012
      %v1052 = vpack.c.bf16 %v1028, %v980
      %v1053 = vpack.c.bf16 %v997, %v1013
      %v1054 = vpack.c.bf16 %v1029, %v981
      %v1055 = vpack.c.bf16 %v998, %v1014
      %v1056 = vpack.c.bf16 %v1030, %v982
      %v1057 = vpack.c.bf16 %v999, %v1015
      %v1058 = vpack.c.bf16 %v1031, %v983
      %v1059 = vpack.c.bf16 %v1000, %v1016
      %v1060 = vpack.c.bf16 %v1032, %v984
      %v1061 = vpack.c.bf16 %v1001, %v1017
      %v1062 = vpack.c.bf16 %v1033, %v985
      %v1063 = vpack.c.bf16 %v1002, %v1018
      %v1064 = vpack.c.bf16 %v1034, %v986
      %v1065 = vpack.c.bf16 %v1003, %v1019
      %v1066 = vpack.c.bf16 %v1035, %v987
      %v1067 = vpack.c.bf16 %v1004, %v1020
      %v1068 = vpack.c.bf16 %v1036, %v988
      %s1069 = scalar_lea.vmem %s1, 128
      %v1070 = vld [vmem:[%s1069] sm:$0xf]
      %v1071 = vld [vmem:[%s1069 + $0x4] sm:$0xf]
      %v1072 = vld [vmem:[%s1069 + $0x8] sm:$0xf]
      %v1073 = vld [vmem:[%s1069 + $0xc] sm:$0xf]
      %v1074 = vld [vmem:[%s1069 + $0x10] sm:$0xf]
      %v1075 = vld [vmem:[%s1069 + $0x14] sm:$0xf]
      %v1076 = vld [vmem:[%s1069 + $0x18] sm:$0xf]
      %v1077 = vld [vmem:[%s1069 + $0x1c] sm:$0xf]
      %v1078 = vld [vmem:[%s1069 + $0x20] sm:$0xf]
      %v1079 = vld [vmem:[%s1069 + $0x24] sm:$0xf]
      %v1080 = vld [vmem:[%s1069 + $0x28] sm:$0xf]
      %v1081 = vld [vmem:[%s1069 + $0x2c] sm:$0xf]
      %v1082 = vld [vmem:[%s1069 + $0x30] sm:$0xf]
      %v1083 = vld [vmem:[%s1069 + $0x34] sm:$0xf]
      %v1084 = vld [vmem:[%s1069 + $0x38] sm:$0xf]
      %v1085 = vld [vmem:[%s1069 + $0x3c] sm:$0xf]
      %v1102 = vunpack.c.l.b16 %v1070
      %v1103 = vunpack.c.l.b16 %v1071
      %v1104 = vunpack.c.l.b16 %v1072
      %v1105 = vunpack.c.l.b16 %v1073
      %v1106 = vunpack.c.l.b16 %v1074
      %v1107 = vunpack.c.l.b16 %v1075
      %v1108 = vunpack.c.l.b16 %v1076
      %v1109 = vunpack.c.l.b16 %v1077
      %v1110 = vunpack.c.l.b16 %v1078
      %v1111 = vunpack.c.l.b16 %v1079
      %v1112 = vunpack.c.l.b16 %v1080
      %v1113 = vunpack.c.l.b16 %v1081
      %v1114 = vunpack.c.l.b16 %v1082
      %v1115 = vunpack.c.l.b16 %v1083
      %v1116 = vunpack.c.l.b16 %v1084
      %v1117 = vunpack.c.l.b16 %v1085
      %v1118 = vpack.c.b16 %v1103, %v1102
      %v1119 = vpack.c.b16 %v1105, %v1104
      %v1120 = vpack.c.b16 %v1107, %v1106
      %v1121 = vpack.c.b16 %v1109, %v1108
      %v1122 = vpack.c.b16 %v1111, %v1110
      %v1123 = vpack.c.b16 %v1113, %v1112
      %v1124 = vpack.c.b16 %v1115, %v1114
      %v1125 = vpack.c.b16 %v1117, %v1116
      %1134 = vmatpush.bf16.msra.mxu0 %v1125
      %1135 = vmatpush.bf16.msra.mxu0 %v1124
      %1136 = vmatpush.bf16.msra.mxu0 %v1123
      %1137 = vmatpush.bf16.msra.mxu0 %v1122
      %1138 = vmatpush.bf16.msra.mxu0 %v1121
      %1139 = vmatpush.bf16.msra.mxu0 %v1120
      %1140 = vmatpush.bf16.msra.mxu0 %v1119
      %1141 = vmatpush.bf16.msra.mxu0 %v1118
      %1142 = vmatmul.bf16.gmra.mxu0 %v1037
      %v1143 = vpop.f32.mrf.mxu0
      %v1144 = vadd.f32 0.0, %v1143
      %v1145 = vpop.f32.mrf.mxu0
      %v1146 = vadd.f32 0.0, %v1145
      %1147 = vmatmul.bf16.gmra.mxu0 %v1038
      %v1148 = vpop.f32.mrf.mxu0
      %v1149 = vadd.f32 0.0, %v1148
      %v1150 = vpop.f32.mrf.mxu0
      %v1151 = vadd.f32 0.0, %v1150
      %1152 = vmatmul.bf16.gmra.mxu0 %v1039
      %v1153 = vpop.f32.mrf.mxu0
      %v1154 = vadd.f32 0.0, %v1153
      %v1155 = vpop.f32.mrf.mxu0
      %v1156 = vadd.f32 0.0, %v1155
      %1157 = vmatmul.bf16.gmra.mxu0 %v1040
      %v1158 = vpop.f32.mrf.mxu0
      %v1159 = vadd.f32 0.0, %v1158
      %v1160 = vpop.f32.mrf.mxu0
      %v1161 = vadd.f32 0.0, %v1160
      %1162 = vmatmul.bf16.gmra.mxu0 %v1041
      %v1163 = vpop.f32.mrf.mxu0
      %v1164 = vadd.f32 0.0, %v1163
      %v1165 = vpop.f32.mrf.mxu0
      %v1166 = vadd.f32 0.0, %v1165
      %1167 = vmatmul.bf16.gmra.mxu0 %v1042
      %v1168 = vpop.f32.mrf.mxu0
      %v1169 = vadd.f32 0.0, %v1168
      %v1170 = vpop.f32.mrf.mxu0
      %v1171 = vadd.f32 0.0, %v1170
      %1172 = vmatmul.bf16.gmra.mxu0 %v1043
      %v1173 = vpop.f32.mrf.mxu0
      %v1174 = vadd.f32 0.0, %v1173
      %v1175 = vpop.f32.mrf.mxu0
      %v1176 = vadd.f32 0.0, %v1175
      %1177 = vmatmul.bf16.gmra.mxu0 %v1044
      %v1178 = vpop.f32.mrf.mxu0
      %v1179 = vadd.f32 0.0, %v1178
      %v1180 = vpop.f32.mrf.mxu0
      %v1181 = vadd.f32 0.0, %v1180
      %1182 = vmatmul.bf16.gmra.mxu0 %v1045
      %v1183 = vpop.f32.mrf.mxu0
      %v1184 = vadd.f32 0.0, %v1183
      %v1185 = vpop.f32.mrf.mxu0
      %v1186 = vadd.f32 0.0, %v1185
      %1187 = vmatmul.bf16.gmra.mxu0 %v1046
      %v1188 = vpop.f32.mrf.mxu0
      %v1189 = vadd.f32 0.0, %v1188
      %v1190 = vpop.f32.mrf.mxu0
      %v1191 = vadd.f32 0.0, %v1190
      %1192 = vmatmul.bf16.gmra.mxu0 %v1047
      %v1193 = vpop.f32.mrf.mxu0
      %v1194 = vadd.f32 0.0, %v1193
      %v1195 = vpop.f32.mrf.mxu0
      %v1196 = vadd.f32 0.0, %v1195
      %1197 = vmatmul.bf16.gmra.mxu0 %v1048
      %v1198 = vpop.f32.mrf.mxu0
      %v1199 = vadd.f32 0.0, %v1198
      %v1200 = vpop.f32.mrf.mxu0
      %v1201 = vadd.f32 0.0, %v1200
      %1202 = vmatmul.bf16.gmra.mxu0 %v1049
      %v1203 = vpop.f32.mrf.mxu0
      %v1204 = vadd.f32 0.0, %v1203
      %v1205 = vpop.f32.mrf.mxu0
      %v1206 = vadd.f32 0.0, %v1205
      %1207 = vmatmul.bf16.gmra.mxu0 %v1050
      %v1208 = vpop.f32.mrf.mxu0
      %v1209 = vadd.f32 0.0, %v1208
      %v1210 = vpop.f32.mrf.mxu0
      %v1211 = vadd.f32 0.0, %v1210
      %1212 = vmatmul.bf16.gmra.mxu0 %v1051
      %v1213 = vpop.f32.mrf.mxu0
      %v1214 = vadd.f32 0.0, %v1213
      %v1215 = vpop.f32.mrf.mxu0
      %v1216 = vadd.f32 0.0, %v1215
      %1217 = vmatmul.bf16.gmra.mxu0 %v1052
      %v1218 = vpop.f32.mrf.mxu0
      %v1219 = vadd.f32 0.0, %v1218
      %v1220 = vpop.f32.mrf.mxu0
      %v1221 = vadd.f32 0.0, %v1220
      %1222 = vmatmul.bf16.gmra.mxu0 %v1053
      %v1223 = vpop.f32.mrf.mxu0
      %v1224 = vadd.f32 0.0, %v1223
      %v1225 = vpop.f32.mrf.mxu0
      %v1226 = vadd.f32 0.0, %v1225
      %1227 = vmatmul.bf16.gmra.mxu0 %v1054
      %v1228 = vpop.f32.mrf.mxu0
      %v1229 = vadd.f32 0.0, %v1228
      %v1230 = vpop.f32.mrf.mxu0
      %v1231 = vadd.f32 0.0, %v1230
      %1232 = vmatmul.bf16.gmra.mxu0 %v1055
      %v1233 = vpop.f32.mrf.mxu0
      %v1234 = vadd.f32 0.0, %v1233
      %v1235 = vpop.f32.mrf.mxu0
      %v1236 = vadd.f32 0.0, %v1235
      %1237 = vmatmul.bf16.gmra.mxu0 %v1056
      %v1238 = vpop.f32.mrf.mxu0
      %v1239 = vadd.f32 0.0, %v1238
      %v1240 = vpop.f32.mrf.mxu0
      %v1241 = vadd.f32 0.0, %v1240
      %1242 = vmatmul.bf16.gmra.mxu0 %v1057
      %v1243 = vpop.f32.mrf.mxu0
      %v1244 = vadd.f32 0.0, %v1243
      %v1245 = vpop.f32.mrf.mxu0
      %v1246 = vadd.f32 0.0, %v1245
      %1247 = vmatmul.bf16.gmra.mxu0 %v1058
      %v1248 = vpop.f32.mrf.mxu0
      %v1249 = vadd.f32 0.0, %v1248
      %v1250 = vpop.f32.mrf.mxu0
      %v1251 = vadd.f32 0.0, %v1250
      %1252 = vmatmul.bf16.gmra.mxu0 %v1059
      %v1253 = vpop.f32.mrf.mxu0
      %v1254 = vadd.f32 0.0, %v1253
      %v1255 = vpop.f32.mrf.mxu0
      %v1256 = vadd.f32 0.0, %v1255
      %1257 = vmatmul.bf16.gmra.mxu0 %v1060
      %v1258 = vpop.f32.mrf.mxu0
      %v1259 = vadd.f32 0.0, %v1258
      %v1260 = vpop.f32.mrf.mxu0
      %v1261 = vadd.f32 0.0, %v1260
      %1262 = vmatmul.bf16.gmra.mxu0 %v1061
      %v1263 = vpop.f32.mrf.mxu0
      %v1264 = vadd.f32 0.0, %v1263
      %v1265 = vpop.f32.mrf.mxu0
      %v1266 = vadd.f32 0.0, %v1265
      %1267 = vmatmul.bf16.gmra.mxu0 %v1062
      %v1268 = vpop.f32.mrf.mxu0
      %v1269 = vadd.f32 0.0, %v1268
      %v1270 = vpop.f32.mrf.mxu0
      %v1271 = vadd.f32 0.0, %v1270
      %1272 = vmatmul.bf16.gmra.mxu0 %v1063
      %v1273 = vpop.f32.mrf.mxu0
      %v1274 = vadd.f32 0.0, %v1273
      %v1275 = vpop.f32.mrf.mxu0
      %v1276 = vadd.f32 0.0, %v1275
      %1277 = vmatmul.bf16.gmra.mxu0 %v1064
      %v1278 = vpop.f32.mrf.mxu0
      %v1279 = vadd.f32 0.0, %v1278
      %v1280 = vpop.f32.mrf.mxu0
      %v1281 = vadd.f32 0.0, %v1280
      %1282 = vmatmul.bf16.gmra.mxu0 %v1065
      %v1283 = vpop.f32.mrf.mxu0
      %v1284 = vadd.f32 0.0, %v1283
      %v1285 = vpop.f32.mrf.mxu0
      %v1286 = vadd.f32 0.0, %v1285
      %1287 = vmatmul.bf16.gmra.mxu0 %v1066
      %v1288 = vpop.f32.mrf.mxu0
      %v1289 = vadd.f32 0.0, %v1288
      %v1290 = vpop.f32.mrf.mxu0
      %v1291 = vadd.f32 0.0, %v1290
      %1292 = vmatmul.bf16.gmra.mxu0 %v1067
      %v1293 = vpop.f32.mrf.mxu0
      %v1294 = vadd.f32 0.0, %v1293
      %v1295 = vpop.f32.mrf.mxu0
      %v1296 = vadd.f32 0.0, %v1295
      %1297 = vmatmul.bf16.gmra.mxu0 %v1068
      %v1298 = vpop.f32.mrf.mxu0
      %v1299 = vadd.f32 0.0, %v1298
      %v1300 = vpop.f32.mrf.mxu0
      %v1301 = vadd.f32 0.0, %v1300
      %1302 = vdwg.mxu0
      %v1303 = vadd.f32 %v749, %v1144
      %v1304 = vadd.f32 %v751, %v1146
      %v1305 = vadd.f32 %v754, %v1149
      %v1306 = vadd.f32 %v756, %v1151
      %v1307 = vadd.f32 %v759, %v1154
      %v1308 = vadd.f32 %v761, %v1156
      %v1309 = vadd.f32 %v764, %v1159
      %v1310 = vadd.f32 %v766, %v1161
      %v1311 = vadd.f32 %v769, %v1164
      %v1312 = vadd.f32 %v771, %v1166
      %v1313 = vadd.f32 %v774, %v1169
      %v1314 = vadd.f32 %v776, %v1171
      %v1315 = vadd.f32 %v779, %v1174
      %v1316 = vadd.f32 %v781, %v1176
      %v1317 = vadd.f32 %v784, %v1179
      %v1318 = vadd.f32 %v786, %v1181
      %v1319 = vadd.f32 %v789, %v1184
      %v1320 = vadd.f32 %v791, %v1186
      %v1321 = vadd.f32 %v794, %v1189
      %v1322 = vadd.f32 %v796, %v1191
      %v1323 = vadd.f32 %v799, %v1194
      %v1324 = vadd.f32 %v801, %v1196
      %v1325 = vadd.f32 %v804, %v1199
      %v1326 = vadd.f32 %v806, %v1201
      %v1327 = vadd.f32 %v809, %v1204
      %v1328 = vadd.f32 %v811, %v1206
      %v1329 = vadd.f32 %v814, %v1209
      %v1330 = vadd.f32 %v816, %v1211
      %v1331 = vadd.f32 %v819, %v1214
      %v1332 = vadd.f32 %v821, %v1216
      %v1333 = vadd.f32 %v824, %v1219
      %v1334 = vadd.f32 %v826, %v1221
      %v1335 = vadd.f32 %v829, %v1224
      %v1336 = vadd.f32 %v831, %v1226
      %v1337 = vadd.f32 %v834, %v1229
      %v1338 = vadd.f32 %v836, %v1231
      %v1339 = vadd.f32 %v839, %v1234
      %v1340 = vadd.f32 %v841, %v1236
      %v1341 = vadd.f32 %v844, %v1239
      %v1342 = vadd.f32 %v846, %v1241
      %v1343 = vadd.f32 %v849, %v1244
      %v1344 = vadd.f32 %v851, %v1246
      %v1345 = vadd.f32 %v854, %v1249
      %v1346 = vadd.f32 %v856, %v1251
      %v1347 = vadd.f32 %v859, %v1254
      %v1348 = vadd.f32 %v861, %v1256
      %v1349 = vadd.f32 %v864, %v1259
      %v1350 = vadd.f32 %v866, %v1261
      %v1351 = vadd.f32 %v869, %v1264
      %v1352 = vadd.f32 %v871, %v1266
      %v1353 = vadd.f32 %v874, %v1269
      %v1354 = vadd.f32 %v876, %v1271
      %v1355 = vadd.f32 %v879, %v1274
      %v1356 = vadd.f32 %v881, %v1276
      %v1357 = vadd.f32 %v884, %v1279
      %v1358 = vadd.f32 %v886, %v1281
      %v1359 = vadd.f32 %v889, %v1284
      %v1360 = vadd.f32 %v891, %v1286
      %v1361 = vadd.f32 %v894, %v1289
      %v1362 = vadd.f32 %v896, %v1291
      %v1363 = vadd.f32 %v899, %v1294
      %v1364 = vadd.f32 %v901, %v1296
      %v1365 = vadd.f32 %v904, %v1299
      %v1366 = vadd.f32 %v906, %v1301
      %s1367 = scalar_lea.vmem %s172, 32
      %v1368 = vld [vmem:[%s1367] sm:$0xff]
      %v1369 = vld [vmem:[%s1367 + $0x8] sm:$0xff]
      %v1370 = vld [vmem:[%s1367 + $0x10] sm:$0xff]
      %v1371 = vld [vmem:[%s1367 + $0x18] sm:$0xff]
      %v1372 = vld [vmem:[%s1367 + $0x20] sm:$0xff]
      %v1373 = vld [vmem:[%s1367 + $0x28] sm:$0xff]
      %v1374 = vld [vmem:[%s1367 + $0x30] sm:$0xff]
      %v1375 = vld [vmem:[%s1367 + $0x38] sm:$0xff]
      %v1376 = vld [vmem:[%s1367 + $0x40] sm:$0xff]
      %v1377 = vld [vmem:[%s1367 + $0x48] sm:$0xff]
      %v1378 = vld [vmem:[%s1367 + $0x50] sm:$0xff]
      %v1379 = vld [vmem:[%s1367 + $0x58] sm:$0xff]
      %v1380 = vld [vmem:[%s1367 + $0x60] sm:$0xff]
      %v1381 = vld [vmem:[%s1367 + $0x68] sm:$0xff]
      %v1382 = vld [vmem:[%s1367 + $0x70] sm:$0xff]
      %v1383 = vld [vmem:[%s1367 + $0x78] sm:$0xff]
      %v1384 = vld [vmem:[%s1367 + $0x80] sm:$0xff]
      %v1385 = vld [vmem:[%s1367 + $0x88] sm:$0xff]
      %v1386 = vld [vmem:[%s1367 + $0x90] sm:$0xff]
      %v1387 = vld [vmem:[%s1367 + $0x98] sm:$0xff]
      %v1388 = vld [vmem:[%s1367 + $0xa0] sm:$0xff]
      %v1389 = vld [vmem:[%s1367 + $0xa8] sm:$0xff]
      %v1390 = vld [vmem:[%s1367 + $0xb0] sm:$0xff]
      %v1391 = vld [vmem:[%s1367 + $0xb8] sm:$0xff]
      %v1392 = vld [vmem:[%s1367 + $0xc0] sm:$0xff]
      %v1393 = vld [vmem:[%s1367 + $0xc8] sm:$0xff]
      %v1394 = vld [vmem:[%s1367 + $0xd0] sm:$0xff]
      %v1395 = vld [vmem:[%s1367 + $0xd8] sm:$0xff]
      %v1396 = vld [vmem:[%s1367 + $0xe0] sm:$0xff]
      %v1397 = vld [vmem:[%s1367 + $0xe8] sm:$0xff]
      %v1398 = vld [vmem:[%s1367 + $0xf0] sm:$0xff]
      %v1399 = vld [vmem:[%s1367 + $0xf8] sm:$0xff]
      %v1400 = vld [vmem:[%s1367 + $0x100] sm:$0xff]
      %v1401 = vld [vmem:[%s1367 + $0x108] sm:$0xff]
      %v1402 = vld [vmem:[%s1367 + $0x110] sm:$0xff]
      %v1403 = vld [vmem:[%s1367 + $0x118] sm:$0xff]
      %v1404 = vld [vmem:[%s1367 + $0x120] sm:$0xff]
      %v1405 = vld [vmem:[%s1367 + $0x128] sm:$0xff]
      %v1406 = vld [vmem:[%s1367 + $0x130] sm:$0xff]
      %v1407 = vld [vmem:[%s1367 + $0x138] sm:$0xff]
      %v1408 = vld [vmem:[%s1367 + $0x140] sm:$0xff]
      %v1409 = vld [vmem:[%s1367 + $0x148] sm:$0xff]
      %v1410 = vld [vmem:[%s1367 + $0x150] sm:$0xff]
      %v1411 = vld [vmem:[%s1367 + $0x158] sm:$0xff]
      %v1412 = vld [vmem:[%s1367 + $0x160] sm:$0xff]
      %v1413 = vld [vmem:[%s1367 + $0x168] sm:$0xff]
      %v1414 = vld [vmem:[%s1367 + $0x170] sm:$0xff]
      %v1415 = vld [vmem:[%s1367 + $0x178] sm:$0xff]
      %v1416 = vld [vmem:[%s1367 + $0x180] sm:$0xff]
      %v1417 = vld [vmem:[%s1367 + $0x188] sm:$0xff]
      %v1418 = vld [vmem:[%s1367 + $0x190] sm:$0xff]
      %v1419 = vld [vmem:[%s1367 + $0x198] sm:$0xff]
      %v1420 = vld [vmem:[%s1367 + $0x1a0] sm:$0xff]
      %v1421 = vld [vmem:[%s1367 + $0x1a8] sm:$0xff]
      %v1422 = vld [vmem:[%s1367 + $0x1b0] sm:$0xff]
      %v1423 = vld [vmem:[%s1367 + $0x1b8] sm:$0xff]
      %v1424 = vld [vmem:[%s1367 + $0x1c0] sm:$0xff]
      %v1425 = vld [vmem:[%s1367 + $0x1c8] sm:$0xff]
      %v1426 = vld [vmem:[%s1367 + $0x1d0] sm:$0xff]
      %v1427 = vld [vmem:[%s1367 + $0x1d8] sm:$0xff]
      %v1428 = vld [vmem:[%s1367 + $0x1e0] sm:$0xff]
      %v1429 = vld [vmem:[%s1367 + $0x1e8] sm:$0xff]
      %v1430 = vld [vmem:[%s1367 + $0x1f0] sm:$0xff]
      %v1431 = vld [vmem:[%s1367 + $0x1f8] sm:$0xff]
      %v1432 = vrot.slane %v1368, 7
      %v1433 = vrot.slane %v1372, 7
      %v1434 = vrot.slane %v1376, 7
      %v1435 = vrot.slane %v1380, 7
      %v1436 = vrot.slane %v1384, 7
      %v1437 = vrot.slane %v1388, 7
      %v1438 = vrot.slane %v1392, 7
      %v1439 = vrot.slane %v1396, 7
      %v1440 = vrot.slane %v1400, 7
      %v1441 = vrot.slane %v1404, 7
      %v1442 = vrot.slane %v1408, 7
      %v1443 = vrot.slane %v1412, 7
      %v1444 = vrot.slane %v1416, 7
      %v1445 = vrot.slane %v1420, 7
      %v1446 = vrot.slane %v1424, 7
      %v1447 = vrot.slane %v1428, 7
      %v1448 = vrot.slane %v1369, 7
      %v1449 = vrot.slane %v1373, 7
      %v1450 = vrot.slane %v1377, 7
      %v1451 = vrot.slane %v1381, 7
      %v1452 = vrot.slane %v1385, 7
      %v1453 = vrot.slane %v1389, 7
      %v1454 = vrot.slane %v1393, 7
      %v1455 = vrot.slane %v1397, 7
      %v1456 = vrot.slane %v1401, 7
      %v1457 = vrot.slane %v1405, 7
      %v1458 = vrot.slane %v1409, 7
      %v1459 = vrot.slane %v1413, 7
      %v1460 = vrot.slane %v1417, 7
      %v1461 = vrot.slane %v1421, 7
      %v1462 = vrot.slane %v1425, 7
      %v1463 = vrot.slane %v1429, 7
      %v1464 = vrot.slane %v1370, 7
      %v1465 = vrot.slane %v1374, 7
      %v1466 = vrot.slane %v1378, 7
      %v1467 = vrot.slane %v1382, 7
      %v1468 = vrot.slane %v1386, 7
      %v1469 = vrot.slane %v1390, 7
      %v1470 = vrot.slane %v1394, 7
      %v1471 = vrot.slane %v1398, 7
      %v1472 = vrot.slane %v1402, 7
      %v1473 = vrot.slane %v1406, 7
      %v1474 = vrot.slane %v1410, 7
      %v1475 = vrot.slane %v1414, 7
      %v1476 = vrot.slane %v1418, 7
      %v1477 = vrot.slane %v1422, 7
      %v1478 = vrot.slane %v1426, 7
      %v1479 = vrot.slane %v1430, 7
      %v1480 = vrot.slane %v1371, 7
      %v1481 = vrot.slane %v1375, 7
      %v1482 = vrot.slane %v1379, 7
      %v1483 = vrot.slane %v1383, 7
      %v1484 = vrot.slane %v1387, 7
      %v1485 = vrot.slane %v1391, 7
      %v1486 = vrot.slane %v1395, 7
      %v1487 = vrot.slane %v1399, 7
      %v1488 = vrot.slane %v1403, 7
      %v1489 = vrot.slane %v1407, 7
      %v1490 = vrot.slane %v1411, 7
      %v1491 = vrot.slane %v1415, 7
      %v1492 = vrot.slane %v1419, 7
      %v1493 = vrot.slane %v1423, 7
      %v1494 = vrot.slane %v1427, 7
      %v1495 = vrot.slane %v1431, 7
      %v1496 = vsel %vm312, %v1464, %v1480
      %v1497 = vsel %vm312, %v1465, %v1481
      %v1498 = vsel %vm312, %v1466, %v1482
      %v1499 = vsel %vm312, %v1467, %v1483
      %v1500 = vsel %vm312, %v1468, %v1484
      %v1501 = vsel %vm312, %v1469, %v1485
      %v1502 = vsel %vm312, %v1470, %v1486
      %v1503 = vsel %vm312, %v1471, %v1487
      %v1504 = vsel %vm312, %v1472, %v1488
      %v1505 = vsel %vm312, %v1473, %v1489
      %v1506 = vsel %vm312, %v1474, %v1490
      %v1507 = vsel %vm312, %v1475, %v1491
      %v1508 = vsel %vm312, %v1476, %v1492
      %v1509 = vsel %vm312, %v1477, %v1493
      %v1510 = vsel %vm312, %v1478, %v1494
      %v1511 = vsel %vm312, %v1479, %v1495
      %v1512 = vsel %vm312, %v1448, %v1464
      %v1513 = vsel %vm312, %v1449, %v1465
      %v1514 = vsel %vm312, %v1450, %v1466
      %v1515 = vsel %vm312, %v1451, %v1467
      %v1516 = vsel %vm312, %v1452, %v1468
      %v1517 = vsel %vm312, %v1453, %v1469
      %v1518 = vsel %vm312, %v1454, %v1470
      %v1519 = vsel %vm312, %v1455, %v1471
      %v1520 = vsel %vm312, %v1456, %v1472
      %v1521 = vsel %vm312, %v1457, %v1473
      %v1522 = vsel %vm312, %v1458, %v1474
      %v1523 = vsel %vm312, %v1459, %v1475
      %v1524 = vsel %vm312, %v1460, %v1476
      %v1525 = vsel %vm312, %v1461, %v1477
      %v1526 = vsel %vm312, %v1462, %v1478
      %v1527 = vsel %vm312, %v1463, %v1479
      %v1528 = vsel %vm312, %v1432, %v1448
      %v1529 = vsel %vm312, %v1433, %v1449
      %v1530 = vsel %vm312, %v1434, %v1450
      %v1531 = vsel %vm312, %v1435, %v1451
      %v1532 = vsel %vm312, %v1436, %v1452
      %v1533 = vsel %vm312, %v1437, %v1453
      %v1534 = vsel %vm312, %v1438, %v1454
      %v1535 = vsel %vm312, %v1439, %v1455
      %v1536 = vsel %vm312, %v1440, %v1456
      %v1537 = vsel %vm312, %v1441, %v1457
      %v1538 = vsel %vm312, %v1442, %v1458
      %v1539 = vsel %vm312, %v1443, %v1459
      %v1540 = vsel %vm312, %v1444, %v1460
      %v1541 = vsel %vm312, %v1445, %v1461
      %v1542 = vsel %vm312, %v1446, %v1462
      %v1543 = vsel %vm312, %v1447, %v1463
      %v1544 = vsel %vm312, %v1480, %v1432
      %v1545 = vsel %vm312, %v1481, %v1433
      %v1546 = vsel %vm312, %v1482, %v1434
      %v1547 = vsel %vm312, %v1483, %v1435
      %v1548 = vsel %vm312, %v1484, %v1436
      %v1549 = vsel %vm312, %v1485, %v1437
      %v1550 = vsel %vm312, %v1486, %v1438
      %v1551 = vsel %vm312, %v1487, %v1439
      %v1552 = vsel %vm312, %v1488, %v1440
      %v1553 = vsel %vm312, %v1489, %v1441
      %v1554 = vsel %vm312, %v1490, %v1442
      %v1555 = vsel %vm312, %v1491, %v1443
      %v1556 = vsel %vm312, %v1492, %v1444
      %v1557 = vsel %vm312, %v1493, %v1445
      %v1558 = vsel %vm312, %v1494, %v1446
      %v1559 = vsel %vm312, %v1495, %v1447
      %v1560 = vpack.c.bf16 %v1528, %v1544
      %v1561 = vpack.c.bf16 %v1496, %v1512
      %v1562 = vpack.c.bf16 %v1529, %v1545
      %v1563 = vpack.c.bf16 %v1497, %v1513
      %v1564 = vpack.c.bf16 %v1530, %v1546
      %v1565 = vpack.c.bf16 %v1498, %v1514
      %v1566 = vpack.c.bf16 %v1531, %v1547
      %v1567 = vpack.c.bf16 %v1499, %v1515
      %v1568 = vpack.c.bf16 %v1532, %v1548
      %v1569 = vpack.c.bf16 %v1500, %v1516
      %v1570 = vpack.c.bf16 %v1533, %v1549
      %v1571 = vpack.c.bf16 %v1501, %v1517
      %v1572 = vpack.c.bf16 %v1534, %v1550
      %v1573 = vpack.c.bf16 %v1502, %v1518
      %v1574 = vpack.c.bf16 %v1535, %v1551
      %v1575 = vpack.c.bf16 %v1503, %v1519
      %v1576 = vpack.c.bf16 %v1536, %v1552
      %v1577 = vpack.c.bf16 %v1504, %v1520
      %v1578 = vpack.c.bf16 %v1537, %v1553
      %v1579 = vpack.c.bf16 %v1505, %v1521
      %v1580 = vpack.c.bf16 %v1538, %v1554
      %v1581 = vpack.c.bf16 %v1506, %v1522
      %v1582 = vpack.c.bf16 %v1539, %v1555
      %v1583 = vpack.c.bf16 %v1507, %v1523
      %v1584 = vpack.c.bf16 %v1540, %v1556
      %v1585 = vpack.c.bf16 %v1508, %v1524
      %v1586 = vpack.c.bf16 %v1541, %v1557
      %v1587 = vpack.c.bf16 %v1509, %v1525
      %v1588 = vpack.c.bf16 %v1542, %v1558
      %v1589 = vpack.c.bf16 %v1510, %v1526
      %v1590 = vpack.c.bf16 %v1543, %v1559
      %v1591 = vpack.c.bf16 %v1511, %v1527
      %s1592 = scalar_lea.vmem %s1, 192
      %v1593 = vld [vmem:[%s1592] sm:$0xf]
      %v1594 = vld [vmem:[%s1592 + $0x4] sm:$0xf]
      %v1595 = vld [vmem:[%s1592 + $0x8] sm:$0xf]
      %v1596 = vld [vmem:[%s1592 + $0xc] sm:$0xf]
      %v1597 = vld [vmem:[%s1592 + $0x10] sm:$0xf]
      %v1598 = vld [vmem:[%s1592 + $0x14] sm:$0xf]
      %v1599 = vld [vmem:[%s1592 + $0x18] sm:$0xf]
      %v1600 = vld [vmem:[%s1592 + $0x1c] sm:$0xf]
      %v1601 = vld [vmem:[%s1592 + $0x20] sm:$0xf]
      %v1602 = vld [vmem:[%s1592 + $0x24] sm:$0xf]
      %v1603 = vld [vmem:[%s1592 + $0x28] sm:$0xf]
      %v1604 = vld [vmem:[%s1592 + $0x2c] sm:$0xf]
      %v1605 = vld [vmem:[%s1592 + $0x30] sm:$0xf]
      %v1606 = vld [vmem:[%s1592 + $0x34] sm:$0xf]
      %v1607 = vld [vmem:[%s1592 + $0x38] sm:$0xf]
      %v1608 = vld [vmem:[%s1592 + $0x3c] sm:$0xf]
      %v1625 = vunpack.c.l.b16 %v1593
      %v1626 = vunpack.c.l.b16 %v1594
      %v1627 = vunpack.c.l.b16 %v1595
      %v1628 = vunpack.c.l.b16 %v1596
      %v1629 = vunpack.c.l.b16 %v1597
      %v1630 = vunpack.c.l.b16 %v1598
      %v1631 = vunpack.c.l.b16 %v1599
      %v1632 = vunpack.c.l.b16 %v1600
      %v1633 = vunpack.c.l.b16 %v1601
      %v1634 = vunpack.c.l.b16 %v1602
      %v1635 = vunpack.c.l.b16 %v1603
      %v1636 = vunpack.c.l.b16 %v1604
      %v1637 = vunpack.c.l.b16 %v1605
      %v1638 = vunpack.c.l.b16 %v1606
      %v1639 = vunpack.c.l.b16 %v1607
      %v1640 = vunpack.c.l.b16 %v1608
      %v1641 = vpack.c.b16 %v1626, %v1625
      %v1642 = vpack.c.b16 %v1628, %v1627
      %v1643 = vpack.c.b16 %v1630, %v1629
      %v1644 = vpack.c.b16 %v1632, %v1631
      %v1645 = vpack.c.b16 %v1634, %v1633
      %v1646 = vpack.c.b16 %v1636, %v1635
      %v1647 = vpack.c.b16 %v1638, %v1637
      %v1648 = vpack.c.b16 %v1640, %v1639
      %1657 = vmatpush.bf16.msra.mxu0 %v1648
      %1658 = vmatpush.bf16.msra.mxu0 %v1647
      %1659 = vmatpush.bf16.msra.mxu0 %v1646
      %1660 = vmatpush.bf16.msra.mxu0 %v1645
      %1661 = vmatpush.bf16.msra.mxu0 %v1644
      %1662 = vmatpush.bf16.msra.mxu0 %v1643
      %1663 = vmatpush.bf16.msra.mxu0 %v1642
      %1664 = vmatpush.bf16.msra.mxu0 %v1641
      %1665 = vmatmul.bf16.gmra.mxu0 %v1560
      %v1666 = vpop.f32.mrf.mxu0
      %v1667 = vadd.f32 0.0, %v1666
      %v1668 = vpop.f32.mrf.mxu0
      %v1669 = vadd.f32 0.0, %v1668
      %1670 = vmatmul.bf16.gmra.mxu0 %v1561
      %v1671 = vpop.f32.mrf.mxu0
      %v1672 = vadd.f32 0.0, %v1671
      %v1673 = vpop.f32.mrf.mxu0
      %v1674 = vadd.f32 0.0, %v1673
      %1675 = vmatmul.bf16.gmra.mxu0 %v1562
      %v1676 = vpop.f32.mrf.mxu0
      %v1677 = vadd.f32 0.0, %v1676
      %v1678 = vpop.f32.mrf.mxu0
      %v1679 = vadd.f32 0.0, %v1678
      %1680 = vmatmul.bf16.gmra.mxu0 %v1563
      %v1681 = vpop.f32.mrf.mxu0
      %v1682 = vadd.f32 0.0, %v1681
      %v1683 = vpop.f32.mrf.mxu0
      %v1684 = vadd.f32 0.0, %v1683
      %1685 = vmatmul.bf16.gmra.mxu0 %v1564
      %v1686 = vpop.f32.mrf.mxu0
      %v1687 = vadd.f32 0.0, %v1686
      %v1688 = vpop.f32.mrf.mxu0
      %v1689 = vadd.f32 0.0, %v1688
      %1690 = vmatmul.bf16.gmra.mxu0 %v1565
      %v1691 = vpop.f32.mrf.mxu0
      %v1692 = vadd.f32 0.0, %v1691
      %v1693 = vpop.f32.mrf.mxu0
      %v1694 = vadd.f32 0.0, %v1693
      %1695 = vmatmul.bf16.gmra.mxu0 %v1566
      %v1696 = vpop.f32.mrf.mxu0
      %v1697 = vadd.f32 0.0, %v1696
      %v1698 = vpop.f32.mrf.mxu0
      %v1699 = vadd.f32 0.0, %v1698
      %1700 = vmatmul.bf16.gmra.mxu0 %v1567
      %v1701 = vpop.f32.mrf.mxu0
      %v1702 = vadd.f32 0.0, %v1701
      %v1703 = vpop.f32.mrf.mxu0
      %v1704 = vadd.f32 0.0, %v1703
      %1705 = vmatmul.bf16.gmra.mxu0 %v1568
      %v1706 = vpop.f32.mrf.mxu0
      %v1707 = vadd.f32 0.0, %v1706
      %v1708 = vpop.f32.mrf.mxu0
      %v1709 = vadd.f32 0.0, %v1708
      %1710 = vmatmul.bf16.gmra.mxu0 %v1569
      %v1711 = vpop.f32.mrf.mxu0
      %v1712 = vadd.f32 0.0, %v1711
      %v1713 = vpop.f32.mrf.mxu0
      %v1714 = vadd.f32 0.0, %v1713
      %1715 = vmatmul.bf16.gmra.mxu0 %v1570
      %v1716 = vpop.f32.mrf.mxu0
      %v1717 = vadd.f32 0.0, %v1716
      %v1718 = vpop.f32.mrf.mxu0
      %v1719 = vadd.f32 0.0, %v1718
      %1720 = vmatmul.bf16.gmra.mxu0 %v1571
      %v1721 = vpop.f32.mrf.mxu0
      %v1722 = vadd.f32 0.0, %v1721
      %v1723 = vpop.f32.mrf.mxu0
      %v1724 = vadd.f32 0.0, %v1723
      %1725 = vmatmul.bf16.gmra.mxu0 %v1572
      %v1726 = vpop.f32.mrf.mxu0
      %v1727 = vadd.f32 0.0, %v1726
      %v1728 = vpop.f32.mrf.mxu0
      %v1729 = vadd.f32 0.0, %v1728
      %1730 = vmatmul.bf16.gmra.mxu0 %v1573
      %v1731 = vpop.f32.mrf.mxu0
      %v1732 = vadd.f32 0.0, %v1731
      %v1733 = vpop.f32.mrf.mxu0
      %v1734 = vadd.f32 0.0, %v1733
      %1735 = vmatmul.bf16.gmra.mxu0 %v1574
      %v1736 = vpop.f32.mrf.mxu0
      %v1737 = vadd.f32 0.0, %v1736
      %v1738 = vpop.f32.mrf.mxu0
      %v1739 = vadd.f32 0.0, %v1738
      %1740 = vmatmul.bf16.gmra.mxu0 %v1575
      %v1741 = vpop.f32.mrf.mxu0
      %v1742 = vadd.f32 0.0, %v1741
      %v1743 = vpop.f32.mrf.mxu0
      %v1744 = vadd.f32 0.0, %v1743
      %1745 = vmatmul.bf16.gmra.mxu0 %v1576
      %v1746 = vpop.f32.mrf.mxu0
      %v1747 = vadd.f32 0.0, %v1746
      %v1748 = vpop.f32.mrf.mxu0
      %v1749 = vadd.f32 0.0, %v1748
      %1750 = vmatmul.bf16.gmra.mxu0 %v1577
      %v1751 = vpop.f32.mrf.mxu0
      %v1752 = vadd.f32 0.0, %v1751
      %v1753 = vpop.f32.mrf.mxu0
      %v1754 = vadd.f32 0.0, %v1753
      %1755 = vmatmul.bf16.gmra.mxu0 %v1578
      %v1756 = vpop.f32.mrf.mxu0
      %v1757 = vadd.f32 0.0, %v1756
      %v1758 = vpop.f32.mrf.mxu0
      %v1759 = vadd.f32 0.0, %v1758
      %1760 = vmatmul.bf16.gmra.mxu0 %v1579
      %v1761 = vpop.f32.mrf.mxu0
      %v1762 = vadd.f32 0.0, %v1761
      %v1763 = vpop.f32.mrf.mxu0
      %v1764 = vadd.f32 0.0, %v1763
      %1765 = vmatmul.bf16.gmra.mxu0 %v1580
      %v1766 = vpop.f32.mrf.mxu0
      %v1767 = vadd.f32 0.0, %v1766
      %v1768 = vpop.f32.mrf.mxu0
      %v1769 = vadd.f32 0.0, %v1768
      %1770 = vmatmul.bf16.gmra.mxu0 %v1581
      %v1771 = vpop.f32.mrf.mxu0
      %v1772 = vadd.f32 0.0, %v1771
      %v1773 = vpop.f32.mrf.mxu0
      %v1774 = vadd.f32 0.0, %v1773
      %1775 = vmatmul.bf16.gmra.mxu0 %v1582
      %v1776 = vpop.f32.mrf.mxu0
      %v1777 = vadd.f32 0.0, %v1776
      %v1778 = vpop.f32.mrf.mxu0
      %v1779 = vadd.f32 0.0, %v1778
      %1780 = vmatmul.bf16.gmra.mxu0 %v1583
      %v1781 = vpop.f32.mrf.mxu0
      %v1782 = vadd.f32 0.0, %v1781
      %v1783 = vpop.f32.mrf.mxu0
      %v1784 = vadd.f32 0.0, %v1783
      %1785 = vmatmul.bf16.gmra.mxu0 %v1584
      %v1786 = vpop.f32.mrf.mxu0
      %v1787 = vadd.f32 0.0, %v1786
      %v1788 = vpop.f32.mrf.mxu0
      %v1789 = vadd.f32 0.0, %v1788
      %1790 = vmatmul.bf16.gmra.mxu0 %v1585
      %v1791 = vpop.f32.mrf.mxu0
      %v1792 = vadd.f32 0.0, %v1791
      %v1793 = vpop.f32.mrf.mxu0
      %v1794 = vadd.f32 0.0, %v1793
      %1795 = vmatmul.bf16.gmra.mxu0 %v1586
      %v1796 = vpop.f32.mrf.mxu0
      %v1797 = vadd.f32 0.0, %v1796
      %v1798 = vpop.f32.mrf.mxu0
      %v1799 = vadd.f32 0.0, %v1798
      %1800 = vmatmul.bf16.gmra.mxu0 %v1587
      %v1801 = vpop.f32.mrf.mxu0
      %v1802 = vadd.f32 0.0, %v1801
      %v1803 = vpop.f32.mrf.mxu0
      %v1804 = vadd.f32 0.0, %v1803
      %1805 = vmatmul.bf16.gmra.mxu0 %v1588
      %v1806 = vpop.f32.mrf.mxu0
      %v1807 = vadd.f32 0.0, %v1806
      %v1808 = vpop.f32.mrf.mxu0
      %v1809 = vadd.f32 0.0, %v1808
      %1810 = vmatmul.bf16.gmra.mxu0 %v1589
      %v1811 = vpop.f32.mrf.mxu0
      %v1812 = vadd.f32 0.0, %v1811
      %v1813 = vpop.f32.mrf.mxu0
      %v1814 = vadd.f32 0.0, %v1813
      %1815 = vmatmul.bf16.gmra.mxu0 %v1590
      %v1816 = vpop.f32.mrf.mxu0
      %v1817 = vadd.f32 0.0, %v1816
      %v1818 = vpop.f32.mrf.mxu0
      %v1819 = vadd.f32 0.0, %v1818
      %1820 = vmatmul.bf16.gmra.mxu0 %v1591
      %v1821 = vpop.f32.mrf.mxu0
      %v1822 = vadd.f32 0.0, %v1821
      %v1823 = vpop.f32.mrf.mxu0
      %v1824 = vadd.f32 0.0, %v1823
      %1825 = vdwg.mxu0
      %v1826 = vadd.f32 %v1303, %v1667
      %v1827 = vadd.f32 %v1304, %v1669
      %v1828 = vadd.f32 %v1305, %v1672
      %v1829 = vadd.f32 %v1306, %v1674
      %v1830 = vadd.f32 %v1307, %v1677
      %v1831 = vadd.f32 %v1308, %v1679
      %v1832 = vadd.f32 %v1309, %v1682
      %v1833 = vadd.f32 %v1310, %v1684
      %v1834 = vadd.f32 %v1311, %v1687
      %v1835 = vadd.f32 %v1312, %v1689
      %v1836 = vadd.f32 %v1313, %v1692
      %v1837 = vadd.f32 %v1314, %v1694
      %v1838 = vadd.f32 %v1315, %v1697
      %v1839 = vadd.f32 %v1316, %v1699
      %v1840 = vadd.f32 %v1317, %v1702
      %v1841 = vadd.f32 %v1318, %v1704
      %v1842 = vadd.f32 %v1319, %v1707
      %v1843 = vadd.f32 %v1320, %v1709
      %v1844 = vadd.f32 %v1321, %v1712
      %v1845 = vadd.f32 %v1322, %v1714
      %v1846 = vadd.f32 %v1323, %v1717
      %v1847 = vadd.f32 %v1324, %v1719
      %v1848 = vadd.f32 %v1325, %v1722
      %v1849 = vadd.f32 %v1326, %v1724
      %v1850 = vadd.f32 %v1327, %v1727
      %v1851 = vadd.f32 %v1328, %v1729
      %v1852 = vadd.f32 %v1329, %v1732
      %v1853 = vadd.f32 %v1330, %v1734
      %v1854 = vadd.f32 %v1331, %v1737
      %v1855 = vadd.f32 %v1332, %v1739
      %v1856 = vadd.f32 %v1333, %v1742
      %v1857 = vadd.f32 %v1334, %v1744
      %v1858 = vadd.f32 %v1335, %v1747
      %v1859 = vadd.f32 %v1336, %v1749
      %v1860 = vadd.f32 %v1337, %v1752
      %v1861 = vadd.f32 %v1338, %v1754
      %v1862 = vadd.f32 %v1339, %v1757
      %v1863 = vadd.f32 %v1340, %v1759
      %v1864 = vadd.f32 %v1341, %v1762
      %v1865 = vadd.f32 %v1342, %v1764
      %v1866 = vadd.f32 %v1343, %v1767
      %v1867 = vadd.f32 %v1344, %v1769
      %v1868 = vadd.f32 %v1345, %v1772
      %v1869 = vadd.f32 %v1346, %v1774
      %v1870 = vadd.f32 %v1347, %v1777
      %v1871 = vadd.f32 %v1348, %v1779
      %v1872 = vadd.f32 %v1349, %v1782
      %v1873 = vadd.f32 %v1350, %v1784
      %v1874 = vadd.f32 %v1351, %v1787
      %v1875 = vadd.f32 %v1352, %v1789
      %v1876 = vadd.f32 %v1353, %v1792
      %v1877 = vadd.f32 %v1354, %v1794
      %v1878 = vadd.f32 %v1355, %v1797
      %v1879 = vadd.f32 %v1356, %v1799
      %v1880 = vadd.f32 %v1357, %v1802
      %v1881 = vadd.f32 %v1358, %v1804
      %v1882 = vadd.f32 %v1359, %v1807
      %v1883 = vadd.f32 %v1360, %v1809
      %v1884 = vadd.f32 %v1361, %v1812
      %v1885 = vadd.f32 %v1362, %v1814
      %v1886 = vadd.f32 %v1363, %v1817
      %v1887 = vadd.f32 %v1364, %v1819
      %v1888 = vadd.f32 %v1365, %v1822
      %v1889 = vadd.f32 %v1366, %v1824
      %v1890 = vpack.c.bf16 %v1369, %v1368
      %v1891 = vpack.c.bf16 %v1371, %v1370
      %v1892 = vpack.c.bf16 %v1373, %v1372
      %v1893 = vpack.c.bf16 %v1375, %v1374
      %v1894 = vpack.c.bf16 %v1377, %v1376
      %v1895 = vpack.c.bf16 %v1379, %v1378
      %v1896 = vpack.c.bf16 %v1381, %v1380
      %v1897 = vpack.c.bf16 %v1383, %v1382
      %v1898 = vpack.c.bf16 %v1385, %v1384
      %v1899 = vpack.c.bf16 %v1387, %v1386
      %v1900 = vpack.c.bf16 %v1389, %v1388
      %v1901 = vpack.c.bf16 %v1391, %v1390
      %v1902 = vpack.c.bf16 %v1393, %v1392
      %v1903 = vpack.c.bf16 %v1395, %v1394
      %v1904 = vpack.c.bf16 %v1397, %v1396
      %v1905 = vpack.c.bf16 %v1399, %v1398
      %v1906 = vpack.c.bf16 %v1401, %v1400
      %v1907 = vpack.c.bf16 %v1403, %v1402
      %v1908 = vpack.c.bf16 %v1405, %v1404
      %v1909 = vpack.c.bf16 %v1407, %v1406
      %v1910 = vpack.c.bf16 %v1409, %v1408
      %v1911 = vpack.c.bf16 %v1411, %v1410
      %v1912 = vpack.c.bf16 %v1413, %v1412
      %v1913 = vpack.c.bf16 %v1415, %v1414
      %v1914 = vpack.c.bf16 %v1417, %v1416
      %v1915 = vpack.c.bf16 %v1419, %v1418
      %v1916 = vpack.c.bf16 %v1421, %v1420
      %v1917 = vpack.c.bf16 %v1423, %v1422
      %v1918 = vpack.c.bf16 %v1425, %v1424
      %v1919 = vpack.c.bf16 %v1427, %v1426
      %v1920 = vpack.c.bf16 %v1429, %v1428
      %v1921 = vpack.c.bf16 %v1431, %v1430
      %s1922 = scalar_lea.vmem %s1, 256
      %v1923 = vld [vmem:[%s1922] sm:$0xf]
      %v1924 = vld [vmem:[%s1922 + $0x4] sm:$0xf]
      %v1925 = vld [vmem:[%s1922 + $0x8] sm:$0xf]
      %v1926 = vld [vmem:[%s1922 + $0xc] sm:$0xf]
      %v1927 = vld [vmem:[%s1922 + $0x10] sm:$0xf]
      %v1928 = vld [vmem:[%s1922 + $0x14] sm:$0xf]
      %v1929 = vld [vmem:[%s1922 + $0x18] sm:$0xf]
      %v1930 = vld [vmem:[%s1922 + $0x1c] sm:$0xf]
      %v1931 = vld [vmem:[%s1922 + $0x20] sm:$0xf]
      %v1932 = vld [vmem:[%s1922 + $0x24] sm:$0xf]
      %v1933 = vld [vmem:[%s1922 + $0x28] sm:$0xf]
      %v1934 = vld [vmem:[%s1922 + $0x2c] sm:$0xf]
      %v1935 = vld [vmem:[%s1922 + $0x30] sm:$0xf]
      %v1936 = vld [vmem:[%s1922 + $0x34] sm:$0xf]
      %v1937 = vld [vmem:[%s1922 + $0x38] sm:$0xf]
      %v1938 = vld [vmem:[%s1922 + $0x3c] sm:$0xf]
      %v1955 = vunpack.c.l.b16 %v1923
      %v1956 = vunpack.c.l.b16 %v1924
      %v1957 = vunpack.c.l.b16 %v1925
      %v1958 = vunpack.c.l.b16 %v1926
      %v1959 = vunpack.c.l.b16 %v1927
      %v1960 = vunpack.c.l.b16 %v1928
      %v1961 = vunpack.c.l.b16 %v1929
      %v1962 = vunpack.c.l.b16 %v1930
      %v1963 = vunpack.c.l.b16 %v1931
      %v1964 = vunpack.c.l.b16 %v1932
      %v1965 = vunpack.c.l.b16 %v1933
      %v1966 = vunpack.c.l.b16 %v1934
      %v1967 = vunpack.c.l.b16 %v1935
      %v1968 = vunpack.c.l.b16 %v1936
      %v1969 = vunpack.c.l.b16 %v1937
      %v1970 = vunpack.c.l.b16 %v1938
      %v1971 = vpack.c.b16 %v1956, %v1955
      %v1972 = vpack.c.b16 %v1958, %v1957
      %v1973 = vpack.c.b16 %v1960, %v1959
      %v1974 = vpack.c.b16 %v1962, %v1961
      %v1975 = vpack.c.b16 %v1964, %v1963
      %v1976 = vpack.c.b16 %v1966, %v1965
      %v1977 = vpack.c.b16 %v1968, %v1967
      %v1978 = vpack.c.b16 %v1970, %v1969
      %1987 = vmatpush.bf16.msra.mxu0 %v1978
      %1988 = vmatpush.bf16.msra.mxu0 %v1977
      %1989 = vmatpush.bf16.msra.mxu0 %v1976
      %1990 = vmatpush.bf16.msra.mxu0 %v1975
      %1991 = vmatpush.bf16.msra.mxu0 %v1974
      %1992 = vmatpush.bf16.msra.mxu0 %v1973
      %1993 = vmatpush.bf16.msra.mxu0 %v1972
      %1994 = vmatpush.bf16.msra.mxu0 %v1971
      %1995 = vmatmul.bf16.gmra.mxu0 %v1890
      %v1996 = vpop.f32.mrf.mxu0
      %v1997 = vadd.f32 0.0, %v1996
      %v1998 = vpop.f32.mrf.mxu0
      %v1999 = vadd.f32 0.0, %v1998
      %2000 = vmatmul.bf16.gmra.mxu0 %v1891
      %v2001 = vpop.f32.mrf.mxu0
      %v2002 = vadd.f32 0.0, %v2001
      %v2003 = vpop.f32.mrf.mxu0
      %v2004 = vadd.f32 0.0, %v2003
      %2005 = vmatmul.bf16.gmra.mxu0 %v1892
      %v2006 = vpop.f32.mrf.mxu0
      %v2007 = vadd.f32 0.0, %v2006
      %v2008 = vpop.f32.mrf.mxu0
      %v2009 = vadd.f32 0.0, %v2008
      %2010 = vmatmul.bf16.gmra.mxu0 %v1893
      %v2011 = vpop.f32.mrf.mxu0
      %v2012 = vadd.f32 0.0, %v2011
      %v2013 = vpop.f32.mrf.mxu0
      %v2014 = vadd.f32 0.0, %v2013
      %2015 = vmatmul.bf16.gmra.mxu0 %v1894
      %v2016 = vpop.f32.mrf.mxu0
      %v2017 = vadd.f32 0.0, %v2016
      %v2018 = vpop.f32.mrf.mxu0
      %v2019 = vadd.f32 0.0, %v2018
      %2020 = vmatmul.bf16.gmra.mxu0 %v1895
      %v2021 = vpop.f32.mrf.mxu0
      %v2022 = vadd.f32 0.0, %v2021
      %v2023 = vpop.f32.mrf.mxu0
      %v2024 = vadd.f32 0.0, %v2023
      %2025 = vmatmul.bf16.gmra.mxu0 %v1896
      %v2026 = vpop.f32.mrf.mxu0
      %v2027 = vadd.f32 0.0, %v2026
      %v2028 = vpop.f32.mrf.mxu0
      %v2029 = vadd.f32 0.0, %v2028
      %2030 = vmatmul.bf16.gmra.mxu0 %v1897
      %v2031 = vpop.f32.mrf.mxu0
      %v2032 = vadd.f32 0.0, %v2031
      %v2033 = vpop.f32.mrf.mxu0
      %v2034 = vadd.f32 0.0, %v2033
      %2035 = vmatmul.bf16.gmra.mxu0 %v1898
      %v2036 = vpop.f32.mrf.mxu0
      %v2037 = vadd.f32 0.0, %v2036
      %v2038 = vpop.f32.mrf.mxu0
      %v2039 = vadd.f32 0.0, %v2038
      %2040 = vmatmul.bf16.gmra.mxu0 %v1899
      %v2041 = vpop.f32.mrf.mxu0
      %v2042 = vadd.f32 0.0, %v2041
      %v2043 = vpop.f32.mrf.mxu0
      %v2044 = vadd.f32 0.0, %v2043
      %2045 = vmatmul.bf16.gmra.mxu0 %v1900
      %v2046 = vpop.f32.mrf.mxu0
      %v2047 = vadd.f32 0.0, %v2046
      %v2048 = vpop.f32.mrf.mxu0
      %v2049 = vadd.f32 0.0, %v2048
      %2050 = vmatmul.bf16.gmra.mxu0 %v1901
      %v2051 = vpop.f32.mrf.mxu0
      %v2052 = vadd.f32 0.0, %v2051
      %v2053 = vpop.f32.mrf.mxu0
      %v2054 = vadd.f32 0.0, %v2053
      %2055 = vmatmul.bf16.gmra.mxu0 %v1902
      %v2056 = vpop.f32.mrf.mxu0
      %v2057 = vadd.f32 0.0, %v2056
      %v2058 = vpop.f32.mrf.mxu0
      %v2059 = vadd.f32 0.0, %v2058
      %2060 = vmatmul.bf16.gmra.mxu0 %v1903
      %v2061 = vpop.f32.mrf.mxu0
      %v2062 = vadd.f32 0.0, %v2061
      %v2063 = vpop.f32.mrf.mxu0
      %v2064 = vadd.f32 0.0, %v2063
      %2065 = vmatmul.bf16.gmra.mxu0 %v1904
      %v2066 = vpop.f32.mrf.mxu0
      %v2067 = vadd.f32 0.0, %v2066
      %v2068 = vpop.f32.mrf.mxu0
      %v2069 = vadd.f32 0.0, %v2068
      %2070 = vmatmul.bf16.gmra.mxu0 %v1905
      %v2071 = vpop.f32.mrf.mxu0
      %v2072 = vadd.f32 0.0, %v2071
      %v2073 = vpop.f32.mrf.mxu0
      %v2074 = vadd.f32 0.0, %v2073
      %2075 = vmatmul.bf16.gmra.mxu0 %v1906
      %v2076 = vpop.f32.mrf.mxu0
      %v2077 = vadd.f32 0.0, %v2076
      %v2078 = vpop.f32.mrf.mxu0
      %v2079 = vadd.f32 0.0, %v2078
      %2080 = vmatmul.bf16.gmra.mxu0 %v1907
      %v2081 = vpop.f32.mrf.mxu0
      %v2082 = vadd.f32 0.0, %v2081
      %v2083 = vpop.f32.mrf.mxu0
      %v2084 = vadd.f32 0.0, %v2083
      %2085 = vmatmul.bf16.gmra.mxu0 %v1908
      %v2086 = vpop.f32.mrf.mxu0
      %v2087 = vadd.f32 0.0, %v2086
      %v2088 = vpop.f32.mrf.mxu0
      %v2089 = vadd.f32 0.0, %v2088
      %2090 = vmatmul.bf16.gmra.mxu0 %v1909
      %v2091 = vpop.f32.mrf.mxu0
      %v2092 = vadd.f32 0.0, %v2091
      %v2093 = vpop.f32.mrf.mxu0
      %v2094 = vadd.f32 0.0, %v2093
      %2095 = vmatmul.bf16.gmra.mxu0 %v1910
      %v2096 = vpop.f32.mrf.mxu0
      %v2097 = vadd.f32 0.0, %v2096
      %v2098 = vpop.f32.mrf.mxu0
      %v2099 = vadd.f32 0.0, %v2098
      %2100 = vmatmul.bf16.gmra.mxu0 %v1911
      %v2101 = vpop.f32.mrf.mxu0
      %v2102 = vadd.f32 0.0, %v2101
      %v2103 = vpop.f32.mrf.mxu0
      %v2104 = vadd.f32 0.0, %v2103
      %2105 = vmatmul.bf16.gmra.mxu0 %v1912
      %v2106 = vpop.f32.mrf.mxu0
      %v2107 = vadd.f32 0.0, %v2106
      %v2108 = vpop.f32.mrf.mxu0
      %v2109 = vadd.f32 0.0, %v2108
      %2110 = vmatmul.bf16.gmra.mxu0 %v1913
      %v2111 = vpop.f32.mrf.mxu0
      %v2112 = vadd.f32 0.0, %v2111
      %v2113 = vpop.f32.mrf.mxu0
      %v2114 = vadd.f32 0.0, %v2113
      %2115 = vmatmul.bf16.gmra.mxu0 %v1914
      %v2116 = vpop.f32.mrf.mxu0
      %v2117 = vadd.f32 0.0, %v2116
      %v2118 = vpop.f32.mrf.mxu0
      %v2119 = vadd.f32 0.0, %v2118
      %2120 = vmatmul.bf16.gmra.mxu0 %v1915
      %v2121 = vpop.f32.mrf.mxu0
      %v2122 = vadd.f32 0.0, %v2121
      %v2123 = vpop.f32.mrf.mxu0
      %v2124 = vadd.f32 0.0, %v2123
      %2125 = vmatmul.bf16.gmra.mxu0 %v1916
      %v2126 = vpop.f32.mrf.mxu0
      %v2127 = vadd.f32 0.0, %v2126
      %v2128 = vpop.f32.mrf.mxu0
      %v2129 = vadd.f32 0.0, %v2128
      %2130 = vmatmul.bf16.gmra.mxu0 %v1917
      %v2131 = vpop.f32.mrf.mxu0
      %v2132 = vadd.f32 0.0, %v2131
      %v2133 = vpop.f32.mrf.mxu0
      %v2134 = vadd.f32 0.0, %v2133
      %2135 = vmatmul.bf16.gmra.mxu0 %v1918
      %v2136 = vpop.f32.mrf.mxu0
      %v2137 = vadd.f32 0.0, %v2136
      %v2138 = vpop.f32.mrf.mxu0
      %v2139 = vadd.f32 0.0, %v2138
      %2140 = vmatmul.bf16.gmra.mxu0 %v1919
      %v2141 = vpop.f32.mrf.mxu0
      %v2142 = vadd.f32 0.0, %v2141
      %v2143 = vpop.f32.mrf.mxu0
      %v2144 = vadd.f32 0.0, %v2143
      %2145 = vmatmul.bf16.gmra.mxu0 %v1920
      %v2146 = vpop.f32.mrf.mxu0
      %v2147 = vadd.f32 0.0, %v2146
      %v2148 = vpop.f32.mrf.mxu0
      %v2149 = vadd.f32 0.0, %v2148
      %2150 = vmatmul.bf16.gmra.mxu0 %v1921
      %v2151 = vpop.f32.mrf.mxu0
      %v2152 = vadd.f32 0.0, %v2151
      %v2153 = vpop.f32.mrf.mxu0
      %v2154 = vadd.f32 0.0, %v2153
      %2155 = vdwg.mxu0
      %v2156 = vadd.f32 %v1826, %v1997
      %v2157 = vadd.f32 %v1827, %v1999
      %v2158 = vadd.f32 %v1828, %v2002
      %v2159 = vadd.f32 %v1829, %v2004
      %v2160 = vadd.f32 %v1830, %v2007
      %v2161 = vadd.f32 %v1831, %v2009
      %v2162 = vadd.f32 %v1832, %v2012
      %v2163 = vadd.f32 %v1833, %v2014
      %v2164 = vadd.f32 %v1834, %v2017
      %v2165 = vadd.f32 %v1835, %v2019
      %v2166 = vadd.f32 %v1836, %v2022
      %v2167 = vadd.f32 %v1837, %v2024
      %v2168 = vadd.f32 %v1838, %v2027
      %v2169 = vadd.f32 %v1839, %v2029
      %v2170 = vadd.f32 %v1840, %v2032
      %v2171 = vadd.f32 %v1841, %v2034
      %v2172 = vadd.f32 %v1842, %v2037
      %v2173 = vadd.f32 %v1843, %v2039
      %v2174 = vadd.f32 %v1844, %v2042
      %v2175 = vadd.f32 %v1845, %v2044
      %v2176 = vadd.f32 %v1846, %v2047
      %v2177 = vadd.f32 %v1847, %v2049
      %v2178 = vadd.f32 %v1848, %v2052
      %v2179 = vadd.f32 %v1849, %v2054
      %v2180 = vadd.f32 %v1850, %v2057
      %v2181 = vadd.f32 %v1851, %v2059
      %v2182 = vadd.f32 %v1852, %v2062
      %v2183 = vadd.f32 %v1853, %v2064
      %v2184 = vadd.f32 %v1854, %v2067
      %v2185 = vadd.f32 %v1855, %v2069
      %v2186 = vadd.f32 %v1856, %v2072
      %v2187 = vadd.f32 %v1857, %v2074
      %v2188 = vadd.f32 %v1858, %v2077
      %v2189 = vadd.f32 %v1859, %v2079
      %v2190 = vadd.f32 %v1860, %v2082
      %v2191 = vadd.f32 %v1861, %v2084
      %v2192 = vadd.f32 %v1862, %v2087
      %v2193 = vadd.f32 %v1863, %v2089
      %v2194 = vadd.f32 %v1864, %v2092
      %v2195 = vadd.f32 %v1865, %v2094
      %v2196 = vadd.f32 %v1866, %v2097
      %v2197 = vadd.f32 %v1867, %v2099
      %v2198 = vadd.f32 %v1868, %v2102
      %v2199 = vadd.f32 %v1869, %v2104
      %v2200 = vadd.f32 %v1870, %v2107
      %v2201 = vadd.f32 %v1871, %v2109
      %v2202 = vadd.f32 %v1872, %v2112
      %v2203 = vadd.f32 %v1873, %v2114
      %v2204 = vadd.f32 %v1874, %v2117
      %v2205 = vadd.f32 %v1875, %v2119
      %v2206 = vadd.f32 %v1876, %v2122
      %v2207 = vadd.f32 %v1877, %v2124
      %v2208 = vadd.f32 %v1878, %v2127
      %v2209 = vadd.f32 %v1879, %v2129
      %v2210 = vadd.f32 %v1880, %v2132
      %v2211 = vadd.f32 %v1881, %v2134
      %v2212 = vadd.f32 %v1882, %v2137
      %v2213 = vadd.f32 %v1883, %v2139
      %v2214 = vadd.f32 %v1884, %v2142
      %v2215 = vadd.f32 %v1885, %v2144
      %v2216 = vadd.f32 %v1886, %v2147
      %v2217 = vadd.f32 %v1887, %v2149
      %v2218 = vadd.f32 %v1888, %v2152
      %v2219 = vadd.f32 %v1889, %v2154
      %v2220 = vrot.slane %v1368, 1
      %v2221 = vrot.slane %v1372, 1
      %v2222 = vrot.slane %v1376, 1
      %v2223 = vrot.slane %v1380, 1
      %v2224 = vrot.slane %v1384, 1
      %v2225 = vrot.slane %v1388, 1
      %v2226 = vrot.slane %v1392, 1
      %v2227 = vrot.slane %v1396, 1
      %v2228 = vrot.slane %v1400, 1
      %v2229 = vrot.slane %v1404, 1
      %v2230 = vrot.slane %v1408, 1
      %v2231 = vrot.slane %v1412, 1
      %v2232 = vrot.slane %v1416, 1
      %v2233 = vrot.slane %v1420, 1
      %v2234 = vrot.slane %v1424, 1
      %v2235 = vrot.slane %v1428, 1
      %v2236 = vrot.slane %v1369, 1
      %v2237 = vrot.slane %v1373, 1
      %v2238 = vrot.slane %v1377, 1
      %v2239 = vrot.slane %v1381, 1
      %v2240 = vrot.slane %v1385, 1
      %v2241 = vrot.slane %v1389, 1
      %v2242 = vrot.slane %v1393, 1
      %v2243 = vrot.slane %v1397, 1
      %v2244 = vrot.slane %v1401, 1
      %v2245 = vrot.slane %v1405, 1
      %v2246 = vrot.slane %v1409, 1
      %v2247 = vrot.slane %v1413, 1
      %v2248 = vrot.slane %v1417, 1
      %v2249 = vrot.slane %v1421, 1
      %v2250 = vrot.slane %v1425, 1
      %v2251 = vrot.slane %v1429, 1
      %v2252 = vrot.slane %v1370, 1
      %v2253 = vrot.slane %v1374, 1
      %v2254 = vrot.slane %v1378, 1
      %v2255 = vrot.slane %v1382, 1
      %v2256 = vrot.slane %v1386, 1
      %v2257 = vrot.slane %v1390, 1
      %v2258 = vrot.slane %v1394, 1
      %v2259 = vrot.slane %v1398, 1
      %v2260 = vrot.slane %v1402, 1
      %v2261 = vrot.slane %v1406, 1
      %v2262 = vrot.slane %v1410, 1
      %v2263 = vrot.slane %v1414, 1
      %v2264 = vrot.slane %v1418, 1
      %v2265 = vrot.slane %v1422, 1
      %v2266 = vrot.slane %v1426, 1
      %v2267 = vrot.slane %v1430, 1
      %v2268 = vrot.slane %v1371, 1
      %v2269 = vrot.slane %v1375, 1
      %v2270 = vrot.slane %v1379, 1
      %v2271 = vrot.slane %v1383, 1
      %v2272 = vrot.slane %v1387, 1
      %v2273 = vrot.slane %v1391, 1
      %v2274 = vrot.slane %v1395, 1
      %v2275 = vrot.slane %v1399, 1
      %v2276 = vrot.slane %v1403, 1
      %v2277 = vrot.slane %v1407, 1
      %v2278 = vrot.slane %v1411, 1
      %v2279 = vrot.slane %v1415, 1
      %v2280 = vrot.slane %v1419, 1
      %v2281 = vrot.slane %v1423, 1
      %v2282 = vrot.slane %v1427, 1
      %v2283 = vrot.slane %v1431, 1
      %v2284 = vsel %vm972, %v2252, %v2268
      %v2285 = vsel %vm972, %v2253, %v2269
      %v2286 = vsel %vm972, %v2254, %v2270
      %v2287 = vsel %vm972, %v2255, %v2271
      %v2288 = vsel %vm972, %v2256, %v2272
      %v2289 = vsel %vm972, %v2257, %v2273
      %v2290 = vsel %vm972, %v2258, %v2274
      %v2291 = vsel %vm972, %v2259, %v2275
      %v2292 = vsel %vm972, %v2260, %v2276
      %v2293 = vsel %vm972, %v2261, %v2277
      %v2294 = vsel %vm972, %v2262, %v2278
      %v2295 = vsel %vm972, %v2263, %v2279
      %v2296 = vsel %vm972, %v2264, %v2280
      %v2297 = vsel %vm972, %v2265, %v2281
      %v2298 = vsel %vm972, %v2266, %v2282
      %v2299 = vsel %vm972, %v2267, %v2283
      %v2300 = vsel %vm972, %v2236, %v2252
      %v2301 = vsel %vm972, %v2237, %v2253
      %v2302 = vsel %vm972, %v2238, %v2254
      %v2303 = vsel %vm972, %v2239, %v2255
      %v2304 = vsel %vm972, %v2240, %v2256
      %v2305 = vsel %vm972, %v2241, %v2257
      %v2306 = vsel %vm972, %v2242, %v2258
      %v2307 = vsel %vm972, %v2243, %v2259
      %v2308 = vsel %vm972, %v2244, %v2260
      %v2309 = vsel %vm972, %v2245, %v2261
      %v2310 = vsel %vm972, %v2246, %v2262
      %v2311 = vsel %vm972, %v2247, %v2263
      %v2312 = vsel %vm972, %v2248, %v2264
      %v2313 = vsel %vm972, %v2249, %v2265
      %v2314 = vsel %vm972, %v2250, %v2266
      %v2315 = vsel %vm972, %v2251, %v2267
      %v2316 = vsel %vm972, %v2220, %v2236
      %v2317 = vsel %vm972, %v2221, %v2237
      %v2318 = vsel %vm972, %v2222, %v2238
      %v2319 = vsel %vm972, %v2223, %v2239
      %v2320 = vsel %vm972, %v2224, %v2240
      %v2321 = vsel %vm972, %v2225, %v2241
      %v2322 = vsel %vm972, %v2226, %v2242
      %v2323 = vsel %vm972, %v2227, %v2243
      %v2324 = vsel %vm972, %v2228, %v2244
      %v2325 = vsel %vm972, %v2229, %v2245
      %v2326 = vsel %vm972, %v2230, %v2246
      %v2327 = vsel %vm972, %v2231, %v2247
      %v2328 = vsel %vm972, %v2232, %v2248
      %v2329 = vsel %vm972, %v2233, %v2249
      %v2330 = vsel %vm972, %v2234, %v2250
      %v2331 = vsel %vm972, %v2235, %v2251
      %v2332 = vsel %vm972, %v2268, %v2220
      %v2333 = vsel %vm972, %v2269, %v2221
      %v2334 = vsel %vm972, %v2270, %v2222
      %v2335 = vsel %vm972, %v2271, %v2223
      %v2336 = vsel %vm972, %v2272, %v2224
      %v2337 = vsel %vm972, %v2273, %v2225
      %v2338 = vsel %vm972, %v2274, %v2226
      %v2339 = vsel %vm972, %v2275, %v2227
      %v2340 = vsel %vm972, %v2276, %v2228
      %v2341 = vsel %vm972, %v2277, %v2229
      %v2342 = vsel %vm972, %v2278, %v2230
      %v2343 = vsel %vm972, %v2279, %v2231
      %v2344 = vsel %vm972, %v2280, %v2232
      %v2345 = vsel %vm972, %v2281, %v2233
      %v2346 = vsel %vm972, %v2282, %v2234
      %v2347 = vsel %vm972, %v2283, %v2235
      %v2348 = vpack.c.bf16 %v2300, %v2316
      %v2349 = vpack.c.bf16 %v2332, %v2284
      %v2350 = vpack.c.bf16 %v2301, %v2317
      %v2351 = vpack.c.bf16 %v2333, %v2285
      %v2352 = vpack.c.bf16 %v2302, %v2318
      %v2353 = vpack.c.bf16 %v2334, %v2286
      %v2354 = vpack.c.bf16 %v2303, %v2319
      %v2355 = vpack.c.bf16 %v2335, %v2287
      %v2356 = vpack.c.bf16 %v2304, %v2320
      %v2357 = vpack.c.bf16 %v2336, %v2288
      %v2358 = vpack.c.bf16 %v2305, %v2321
      %v2359 = vpack.c.bf16 %v2337, %v2289
      %v2360 = vpack.c.bf16 %v2306, %v2322
      %v2361 = vpack.c.bf16 %v2338, %v2290
      %v2362 = vpack.c.bf16 %v2307, %v2323
      %v2363 = vpack.c.bf16 %v2339, %v2291
      %v2364 = vpack.c.bf16 %v2308, %v2324
      %v2365 = vpack.c.bf16 %v2340, %v2292
      %v2366 = vpack.c.bf16 %v2309, %v2325
      %v2367 = vpack.c.bf16 %v2341, %v2293
      %v2368 = vpack.c.bf16 %v2310, %v2326
      %v2369 = vpack.c.bf16 %v2342, %v2294
      %v2370 = vpack.c.bf16 %v2311, %v2327
      %v2371 = vpack.c.bf16 %v2343, %v2295
      %v2372 = vpack.c.bf16 %v2312, %v2328
      %v2373 = vpack.c.bf16 %v2344, %v2296
      %v2374 = vpack.c.bf16 %v2313, %v2329
      %v2375 = vpack.c.bf16 %v2345, %v2297
      %v2376 = vpack.c.bf16 %v2314, %v2330
      %v2377 = vpack.c.bf16 %v2346, %v2298
      %v2378 = vpack.c.bf16 %v2315, %v2331
      %v2379 = vpack.c.bf16 %v2347, %v2299
      %s2380 = scalar_lea.vmem %s1, 320
      %v2381 = vld [vmem:[%s2380] sm:$0xf]
      %v2382 = vld [vmem:[%s2380 + $0x4] sm:$0xf]
      %v2383 = vld [vmem:[%s2380 + $0x8] sm:$0xf]
      %v2384 = vld [vmem:[%s2380 + $0xc] sm:$0xf]
      %v2385 = vld [vmem:[%s2380 + $0x10] sm:$0xf]
      %v2386 = vld [vmem:[%s2380 + $0x14] sm:$0xf]
      %v2387 = vld [vmem:[%s2380 + $0x18] sm:$0xf]
      %v2388 = vld [vmem:[%s2380 + $0x1c] sm:$0xf]
      %v2389 = vld [vmem:[%s2380 + $0x20] sm:$0xf]
      %v2390 = vld [vmem:[%s2380 + $0x24] sm:$0xf]
      %v2391 = vld [vmem:[%s2380 + $0x28] sm:$0xf]
      %v2392 = vld [vmem:[%s2380 + $0x2c] sm:$0xf]
      %v2393 = vld [vmem:[%s2380 + $0x30] sm:$0xf]
      %v2394 = vld [vmem:[%s2380 + $0x34] sm:$0xf]
      %v2395 = vld [vmem:[%s2380 + $0x38] sm:$0xf]
      %v2396 = vld [vmem:[%s2380 + $0x3c] sm:$0xf]
      %v2413 = vunpack.c.l.b16 %v2381
      %v2414 = vunpack.c.l.b16 %v2382
      %v2415 = vunpack.c.l.b16 %v2383
      %v2416 = vunpack.c.l.b16 %v2384
      %v2417 = vunpack.c.l.b16 %v2385
      %v2418 = vunpack.c.l.b16 %v2386
      %v2419 = vunpack.c.l.b16 %v2387
      %v2420 = vunpack.c.l.b16 %v2388
      %v2421 = vunpack.c.l.b16 %v2389
      %v2422 = vunpack.c.l.b16 %v2390
      %v2423 = vunpack.c.l.b16 %v2391
      %v2424 = vunpack.c.l.b16 %v2392
      %v2425 = vunpack.c.l.b16 %v2393
      %v2426 = vunpack.c.l.b16 %v2394
      %v2427 = vunpack.c.l.b16 %v2395
      %v2428 = vunpack.c.l.b16 %v2396
      %v2429 = vpack.c.b16 %v2414, %v2413
      %v2430 = vpack.c.b16 %v2416, %v2415
      %v2431 = vpack.c.b16 %v2418, %v2417
      %v2432 = vpack.c.b16 %v2420, %v2419
      %v2433 = vpack.c.b16 %v2422, %v2421
      %v2434 = vpack.c.b16 %v2424, %v2423
      %v2435 = vpack.c.b16 %v2426, %v2425
      %v2436 = vpack.c.b16 %v2428, %v2427
      %2445 = vmatpush.bf16.msra.mxu0 %v2436
      %2446 = vmatpush.bf16.msra.mxu0 %v2435
      %2447 = vmatpush.bf16.msra.mxu0 %v2434
      %2448 = vmatpush.bf16.msra.mxu0 %v2433
      %2449 = vmatpush.bf16.msra.mxu0 %v2432
      %2450 = vmatpush.bf16.msra.mxu0 %v2431
      %2451 = vmatpush.bf16.msra.mxu0 %v2430
      %2452 = vmatpush.bf16.msra.mxu0 %v2429
      %2453 = vmatmul.bf16.gmra.mxu0 %v2348
      %v2454 = vpop.f32.mrf.mxu0
      %v2455 = vadd.f32 0.0, %v2454
      %v2456 = vpop.f32.mrf.mxu0
      %v2457 = vadd.f32 0.0, %v2456
      %2458 = vmatmul.bf16.gmra.mxu0 %v2349
      %v2459 = vpop.f32.mrf.mxu0
      %v2460 = vadd.f32 0.0, %v2459
      %v2461 = vpop.f32.mrf.mxu0
      %v2462 = vadd.f32 0.0, %v2461
      %2463 = vmatmul.bf16.gmra.mxu0 %v2350
      %v2464 = vpop.f32.mrf.mxu0
      %v2465 = vadd.f32 0.0, %v2464
      %v2466 = vpop.f32.mrf.mxu0
      %v2467 = vadd.f32 0.0, %v2466
      %2468 = vmatmul.bf16.gmra.mxu0 %v2351
      %v2469 = vpop.f32.mrf.mxu0
      %v2470 = vadd.f32 0.0, %v2469
      %v2471 = vpop.f32.mrf.mxu0
      %v2472 = vadd.f32 0.0, %v2471
      %2473 = vmatmul.bf16.gmra.mxu0 %v2352
      %v2474 = vpop.f32.mrf.mxu0
      %v2475 = vadd.f32 0.0, %v2474
      %v2476 = vpop.f32.mrf.mxu0
      %v2477 = vadd.f32 0.0, %v2476
      %2478 = vmatmul.bf16.gmra.mxu0 %v2353
      %v2479 = vpop.f32.mrf.mxu0
      %v2480 = vadd.f32 0.0, %v2479
      %v2481 = vpop.f32.mrf.mxu0
      %v2482 = vadd.f32 0.0, %v2481
      %2483 = vmatmul.bf16.gmra.mxu0 %v2354
      %v2484 = vpop.f32.mrf.mxu0
      %v2485 = vadd.f32 0.0, %v2484
      %v2486 = vpop.f32.mrf.mxu0
      %v2487 = vadd.f32 0.0, %v2486
      %2488 = vmatmul.bf16.gmra.mxu0 %v2355
      %v2489 = vpop.f32.mrf.mxu0
      %v2490 = vadd.f32 0.0, %v2489
      %v2491 = vpop.f32.mrf.mxu0
      %v2492 = vadd.f32 0.0, %v2491
      %2493 = vmatmul.bf16.gmra.mxu0 %v2356
      %v2494 = vpop.f32.mrf.mxu0
      %v2495 = vadd.f32 0.0, %v2494
      %v2496 = vpop.f32.mrf.mxu0
      %v2497 = vadd.f32 0.0, %v2496
      %2498 = vmatmul.bf16.gmra.mxu0 %v2357
      %v2499 = vpop.f32.mrf.mxu0
      %v2500 = vadd.f32 0.0, %v2499
      %v2501 = vpop.f32.mrf.mxu0
      %v2502 = vadd.f32 0.0, %v2501
      %2503 = vmatmul.bf16.gmra.mxu0 %v2358
      %v2504 = vpop.f32.mrf.mxu0
      %v2505 = vadd.f32 0.0, %v2504
      %v2506 = vpop.f32.mrf.mxu0
      %v2507 = vadd.f32 0.0, %v2506
      %2508 = vmatmul.bf16.gmra.mxu0 %v2359
      %v2509 = vpop.f32.mrf.mxu0
      %v2510 = vadd.f32 0.0, %v2509
      %v2511 = vpop.f32.mrf.mxu0
      %v2512 = vadd.f32 0.0, %v2511
      %2513 = vmatmul.bf16.gmra.mxu0 %v2360
      %v2514 = vpop.f32.mrf.mxu0
      %v2515 = vadd.f32 0.0, %v2514
      %v2516 = vpop.f32.mrf.mxu0
      %v2517 = vadd.f32 0.0, %v2516
      %2518 = vmatmul.bf16.gmra.mxu0 %v2361
      %v2519 = vpop.f32.mrf.mxu0
      %v2520 = vadd.f32 0.0, %v2519
      %v2521 = vpop.f32.mrf.mxu0
      %v2522 = vadd.f32 0.0, %v2521
      %2523 = vmatmul.bf16.gmra.mxu0 %v2362
      %v2524 = vpop.f32.mrf.mxu0
      %v2525 = vadd.f32 0.0, %v2524
      %v2526 = vpop.f32.mrf.mxu0
      %v2527 = vadd.f32 0.0, %v2526
      %2528 = vmatmul.bf16.gmra.mxu0 %v2363
      %v2529 = vpop.f32.mrf.mxu0
      %v2530 = vadd.f32 0.0, %v2529
      %v2531 = vpop.f32.mrf.mxu0
      %v2532 = vadd.f32 0.0, %v2531
      %2533 = vmatmul.bf16.gmra.mxu0 %v2364
      %v2534 = vpop.f32.mrf.mxu0
      %v2535 = vadd.f32 0.0, %v2534
      %v2536 = vpop.f32.mrf.mxu0
      %v2537 = vadd.f32 0.0, %v2536
      %2538 = vmatmul.bf16.gmra.mxu0 %v2365
      %v2539 = vpop.f32.mrf.mxu0
      %v2540 = vadd.f32 0.0, %v2539
      %v2541 = vpop.f32.mrf.mxu0
      %v2542 = vadd.f32 0.0, %v2541
      %2543 = vmatmul.bf16.gmra.mxu0 %v2366
      %v2544 = vpop.f32.mrf.mxu0
      %v2545 = vadd.f32 0.0, %v2544
      %v2546 = vpop.f32.mrf.mxu0
      %v2547 = vadd.f32 0.0, %v2546
      %2548 = vmatmul.bf16.gmra.mxu0 %v2367
      %v2549 = vpop.f32.mrf.mxu0
      %v2550 = vadd.f32 0.0, %v2549
      %v2551 = vpop.f32.mrf.mxu0
      %v2552 = vadd.f32 0.0, %v2551
      %2553 = vmatmul.bf16.gmra.mxu0 %v2368
      %v2554 = vpop.f32.mrf.mxu0
      %v2555 = vadd.f32 0.0, %v2554
      %v2556 = vpop.f32.mrf.mxu0
      %v2557 = vadd.f32 0.0, %v2556
      %2558 = vmatmul.bf16.gmra.mxu0 %v2369
      %v2559 = vpop.f32.mrf.mxu0
      %v2560 = vadd.f32 0.0, %v2559
      %v2561 = vpop.f32.mrf.mxu0
      %v2562 = vadd.f32 0.0, %v2561
      %2563 = vmatmul.bf16.gmra.mxu0 %v2370
      %v2564 = vpop.f32.mrf.mxu0
      %v2565 = vadd.f32 0.0, %v2564
      %v2566 = vpop.f32.mrf.mxu0
      %v2567 = vadd.f32 0.0, %v2566
      %2568 = vmatmul.bf16.gmra.mxu0 %v2371
      %v2569 = vpop.f32.mrf.mxu0
      %v2570 = vadd.f32 0.0, %v2569
      %v2571 = vpop.f32.mrf.mxu0
      %v2572 = vadd.f32 0.0, %v2571
      %2573 = vmatmul.bf16.gmra.mxu0 %v2372
      %v2574 = vpop.f32.mrf.mxu0
      %v2575 = vadd.f32 0.0, %v2574
      %v2576 = vpop.f32.mrf.mxu0
      %v2577 = vadd.f32 0.0, %v2576
      %2578 = vmatmul.bf16.gmra.mxu0 %v2373
      %v2579 = vpop.f32.mrf.mxu0
      %v2580 = vadd.f32 0.0, %v2579
      %v2581 = vpop.f32.mrf.mxu0
      %v2582 = vadd.f32 0.0, %v2581
      %2583 = vmatmul.bf16.gmra.mxu0 %v2374
      %v2584 = vpop.f32.mrf.mxu0
      %v2585 = vadd.f32 0.0, %v2584
      %v2586 = vpop.f32.mrf.mxu0
      %v2587 = vadd.f32 0.0, %v2586
      %2588 = vmatmul.bf16.gmra.mxu0 %v2375
      %v2589 = vpop.f32.mrf.mxu0
      %v2590 = vadd.f32 0.0, %v2589
      %v2591 = vpop.f32.mrf.mxu0
      %v2592 = vadd.f32 0.0, %v2591
      %2593 = vmatmul.bf16.gmra.mxu0 %v2376
      %v2594 = vpop.f32.mrf.mxu0
      %v2595 = vadd.f32 0.0, %v2594
      %v2596 = vpop.f32.mrf.mxu0
      %v2597 = vadd.f32 0.0, %v2596
      %2598 = vmatmul.bf16.gmra.mxu0 %v2377
      %v2599 = vpop.f32.mrf.mxu0
      %v2600 = vadd.f32 0.0, %v2599
      %v2601 = vpop.f32.mrf.mxu0
      %v2602 = vadd.f32 0.0, %v2601
      %2603 = vmatmul.bf16.gmra.mxu0 %v2378
      %v2604 = vpop.f32.mrf.mxu0
      %v2605 = vadd.f32 0.0, %v2604
      %v2606 = vpop.f32.mrf.mxu0
      %v2607 = vadd.f32 0.0, %v2606
      %2608 = vmatmul.bf16.gmra.mxu0 %v2379
      %v2609 = vpop.f32.mrf.mxu0
      %v2610 = vadd.f32 0.0, %v2609
      %v2611 = vpop.f32.mrf.mxu0
      %v2612 = vadd.f32 0.0, %v2611
      %2613 = vdwg.mxu0
      %v2614 = vadd.f32 %v2156, %v2455
      %v2615 = vadd.f32 %v2157, %v2457
      %v2616 = vadd.f32 %v2158, %v2460
      %v2617 = vadd.f32 %v2159, %v2462
      %v2618 = vadd.f32 %v2160, %v2465
      %v2619 = vadd.f32 %v2161, %v2467
      %v2620 = vadd.f32 %v2162, %v2470
      %v2621 = vadd.f32 %v2163, %v2472
      %v2622 = vadd.f32 %v2164, %v2475
      %v2623 = vadd.f32 %v2165, %v2477
      %v2624 = vadd.f32 %v2166, %v2480
      %v2625 = vadd.f32 %v2167, %v2482
      %v2626 = vadd.f32 %v2168, %v2485
      %v2627 = vadd.f32 %v2169, %v2487
      %v2628 = vadd.f32 %v2170, %v2490
      %v2629 = vadd.f32 %v2171, %v2492
      %v2630 = vadd.f32 %v2172, %v2495
      %v2631 = vadd.f32 %v2173, %v2497
      %v2632 = vadd.f32 %v2174, %v2500
      %v2633 = vadd.f32 %v2175, %v2502
      %v2634 = vadd.f32 %v2176, %v2505
      %v2635 = vadd.f32 %v2177, %v2507
      %v2636 = vadd.f32 %v2178, %v2510
      %v2637 = vadd.f32 %v2179, %v2512
      %v2638 = vadd.f32 %v2180, %v2515
      %v2639 = vadd.f32 %v2181, %v2517
      %v2640 = vadd.f32 %v2182, %v2520
      %v2641 = vadd.f32 %v2183, %v2522
      %v2642 = vadd.f32 %v2184, %v2525
      %v2643 = vadd.f32 %v2185, %v2527
      %v2644 = vadd.f32 %v2186, %v2530
      %v2645 = vadd.f32 %v2187, %v2532
      %v2646 = vadd.f32 %v2188, %v2535
      %v2647 = vadd.f32 %v2189, %v2537
      %v2648 = vadd.f32 %v2190, %v2540
      %v2649 = vadd.f32 %v2191, %v2542
      %v2650 = vadd.f32 %v2192, %v2545
      %v2651 = vadd.f32 %v2193, %v2547
      %v2652 = vadd.f32 %v2194, %v2550
      %v2653 = vadd.f32 %v2195, %v2552
      %v2654 = vadd.f32 %v2196, %v2555
      %v2655 = vadd.f32 %v2197, %v2557
      %v2656 = vadd.f32 %v2198, %v2560
      %v2657 = vadd.f32 %v2199, %v2562
      %v2658 = vadd.f32 %v2200, %v2565
      %v2659 = vadd.f32 %v2201, %v2567
      %v2660 = vadd.f32 %v2202, %v2570
      %v2661 = vadd.f32 %v2203, %v2572
      %v2662 = vadd.f32 %v2204, %v2575
      %v2663 = vadd.f32 %v2205, %v2577
      %v2664 = vadd.f32 %v2206, %v2580
      %v2665 = vadd.f32 %v2207, %v2582
      %v2666 = vadd.f32 %v2208, %v2585
      %v2667 = vadd.f32 %v2209, %v2587
      %v2668 = vadd.f32 %v2210, %v2590
      %v2669 = vadd.f32 %v2211, %v2592
      %v2670 = vadd.f32 %v2212, %v2595
      %v2671 = vadd.f32 %v2213, %v2597
      %v2672 = vadd.f32 %v2214, %v2600
      %v2673 = vadd.f32 %v2215, %v2602
      %v2674 = vadd.f32 %v2216, %v2605
      %v2675 = vadd.f32 %v2217, %v2607
      %v2676 = vadd.f32 %v2218, %v2610
      %v2677 = vadd.f32 %v2219, %v2612
      %s2678 = scalar_lea.vmem %s172, 64
      %v2679 = vld [vmem:[%s2678] sm:$0xff]
      %v2680 = vld [vmem:[%s2678 + $0x8] sm:$0xff]
      %v2681 = vld [vmem:[%s2678 + $0x10] sm:$0xff]
      %v2682 = vld [vmem:[%s2678 + $0x18] sm:$0xff]
      %v2683 = vld [vmem:[%s2678 + $0x20] sm:$0xff]
      %v2684 = vld [vmem:[%s2678 + $0x28] sm:$0xff]
      %v2685 = vld [vmem:[%s2678 + $0x30] sm:$0xff]
      %v2686 = vld [vmem:[%s2678 + $0x38] sm:$0xff]
      %v2687 = vld [vmem:[%s2678 + $0x40] sm:$0xff]
      %v2688 = vld [vmem:[%s2678 + $0x48] sm:$0xff]
      %v2689 = vld [vmem:[%s2678 + $0x50] sm:$0xff]
      %v2690 = vld [vmem:[%s2678 + $0x58] sm:$0xff]
      %v2691 = vld [vmem:[%s2678 + $0x60] sm:$0xff]
      %v2692 = vld [vmem:[%s2678 + $0x68] sm:$0xff]
      %v2693 = vld [vmem:[%s2678 + $0x70] sm:$0xff]
      %v2694 = vld [vmem:[%s2678 + $0x78] sm:$0xff]
      %v2695 = vld [vmem:[%s2678 + $0x80] sm:$0xff]
      %v2696 = vld [vmem:[%s2678 + $0x88] sm:$0xff]
      %v2697 = vld [vmem:[%s2678 + $0x90] sm:$0xff]
      %v2698 = vld [vmem:[%s2678 + $0x98] sm:$0xff]
      %v2699 = vld [vmem:[%s2678 + $0xa0] sm:$0xff]
      %v2700 = vld [vmem:[%s2678 + $0xa8] sm:$0xff]
      %v2701 = vld [vmem:[%s2678 + $0xb0] sm:$0xff]
      %v2702 = vld [vmem:[%s2678 + $0xb8] sm:$0xff]
      %v2703 = vld [vmem:[%s2678 + $0xc0] sm:$0xff]
      %v2704 = vld [vmem:[%s2678 + $0xc8] sm:$0xff]
      %v2705 = vld [vmem:[%s2678 + $0xd0] sm:$0xff]
      %v2706 = vld [vmem:[%s2678 + $0xd8] sm:$0xff]
      %v2707 = vld [vmem:[%s2678 + $0xe0] sm:$0xff]
      %v2708 = vld [vmem:[%s2678 + $0xe8] sm:$0xff]
      %v2709 = vld [vmem:[%s2678 + $0xf0] sm:$0xff]
      %v2710 = vld [vmem:[%s2678 + $0xf8] sm:$0xff]
      %v2711 = vld [vmem:[%s2678 + $0x100] sm:$0xff]
      %v2712 = vld [vmem:[%s2678 + $0x108] sm:$0xff]
      %v2713 = vld [vmem:[%s2678 + $0x110] sm:$0xff]
      %v2714 = vld [vmem:[%s2678 + $0x118] sm:$0xff]
      %v2715 = vld [vmem:[%s2678 + $0x120] sm:$0xff]
      %v2716 = vld [vmem:[%s2678 + $0x128] sm:$0xff]
      %v2717 = vld [vmem:[%s2678 + $0x130] sm:$0xff]
      %v2718 = vld [vmem:[%s2678 + $0x138] sm:$0xff]
      %v2719 = vld [vmem:[%s2678 + $0x140] sm:$0xff]
      %v2720 = vld [vmem:[%s2678 + $0x148] sm:$0xff]
      %v2721 = vld [vmem:[%s2678 + $0x150] sm:$0xff]
      %v2722 = vld [vmem:[%s2678 + $0x158] sm:$0xff]
      %v2723 = vld [vmem:[%s2678 + $0x160] sm:$0xff]
      %v2724 = vld [vmem:[%s2678 + $0x168] sm:$0xff]
      %v2725 = vld [vmem:[%s2678 + $0x170] sm:$0xff]
      %v2726 = vld [vmem:[%s2678 + $0x178] sm:$0xff]
      %v2727 = vld [vmem:[%s2678 + $0x180] sm:$0xff]
      %v2728 = vld [vmem:[%s2678 + $0x188] sm:$0xff]
      %v2729 = vld [vmem:[%s2678 + $0x190] sm:$0xff]
      %v2730 = vld [vmem:[%s2678 + $0x198] sm:$0xff]
      %v2731 = vld [vmem:[%s2678 + $0x1a0] sm:$0xff]
      %v2732 = vld [vmem:[%s2678 + $0x1a8] sm:$0xff]
      %v2733 = vld [vmem:[%s2678 + $0x1b0] sm:$0xff]
      %v2734 = vld [vmem:[%s2678 + $0x1b8] sm:$0xff]
      %v2735 = vld [vmem:[%s2678 + $0x1c0] sm:$0xff]
      %v2736 = vld [vmem:[%s2678 + $0x1c8] sm:$0xff]
      %v2737 = vld [vmem:[%s2678 + $0x1d0] sm:$0xff]
      %v2738 = vld [vmem:[%s2678 + $0x1d8] sm:$0xff]
      %v2739 = vld [vmem:[%s2678 + $0x1e0] sm:$0xff]
      %v2740 = vld [vmem:[%s2678 + $0x1e8] sm:$0xff]
      %v2741 = vld [vmem:[%s2678 + $0x1f0] sm:$0xff]
      %v2742 = vld [vmem:[%s2678 + $0x1f8] sm:$0xff]
      %v2743 = vrot.slane %v2679, 7
      %v2744 = vrot.slane %v2683, 7
      %v2745 = vrot.slane %v2687, 7
      %v2746 = vrot.slane %v2691, 7
      %v2747 = vrot.slane %v2695, 7
      %v2748 = vrot.slane %v2699, 7
      %v2749 = vrot.slane %v2703, 7
      %v2750 = vrot.slane %v2707, 7
      %v2751 = vrot.slane %v2711, 7
      %v2752 = vrot.slane %v2715, 7
      %v2753 = vrot.slane %v2719, 7
      %v2754 = vrot.slane %v2723, 7
      %v2755 = vrot.slane %v2727, 7
      %v2756 = vrot.slane %v2731, 7
      %v2757 = vrot.slane %v2735, 7
      %v2758 = vrot.slane %v2739, 7
      %v2759 = vrot.slane %v2680, 7
      %v2760 = vrot.slane %v2684, 7
      %v2761 = vrot.slane %v2688, 7
      %v2762 = vrot.slane %v2692, 7
      %v2763 = vrot.slane %v2696, 7
      %v2764 = vrot.slane %v2700, 7
      %v2765 = vrot.slane %v2704, 7
      %v2766 = vrot.slane %v2708, 7
      %v2767 = vrot.slane %v2712, 7
      %v2768 = vrot.slane %v2716, 7
      %v2769 = vrot.slane %v2720, 7
      %v2770 = vrot.slane %v2724, 7
      %v2771 = vrot.slane %v2728, 7
      %v2772 = vrot.slane %v2732, 7
      %v2773 = vrot.slane %v2736, 7
      %v2774 = vrot.slane %v2740, 7
      %v2775 = vrot.slane %v2681, 7
      %v2776 = vrot.slane %v2685, 7
      %v2777 = vrot.slane %v2689, 7
      %v2778 = vrot.slane %v2693, 7
      %v2779 = vrot.slane %v2697, 7
      %v2780 = vrot.slane %v2701, 7
      %v2781 = vrot.slane %v2705, 7
      %v2782 = vrot.slane %v2709, 7
      %v2783 = vrot.slane %v2713, 7
      %v2784 = vrot.slane %v2717, 7
      %v2785 = vrot.slane %v2721, 7
      %v2786 = vrot.slane %v2725, 7
      %v2787 = vrot.slane %v2729, 7
      %v2788 = vrot.slane %v2733, 7
      %v2789 = vrot.slane %v2737, 7
      %v2790 = vrot.slane %v2741, 7
      %v2791 = vrot.slane %v2682, 7
      %v2792 = vrot.slane %v2686, 7
      %v2793 = vrot.slane %v2690, 7
      %v2794 = vrot.slane %v2694, 7
      %v2795 = vrot.slane %v2698, 7
      %v2796 = vrot.slane %v2702, 7
      %v2797 = vrot.slane %v2706, 7
      %v2798 = vrot.slane %v2710, 7
      %v2799 = vrot.slane %v2714, 7
      %v2800 = vrot.slane %v2718, 7
      %v2801 = vrot.slane %v2722, 7
      %v2802 = vrot.slane %v2726, 7
      %v2803 = vrot.slane %v2730, 7
      %v2804 = vrot.slane %v2734, 7
      %v2805 = vrot.slane %v2738, 7
      %v2806 = vrot.slane %v2742, 7
      %v2807 = vsel %vm312, %v2775, %v2791
      %v2808 = vsel %vm312, %v2776, %v2792
      %v2809 = vsel %vm312, %v2777, %v2793
      %v2810 = vsel %vm312, %v2778, %v2794
      %v2811 = vsel %vm312, %v2779, %v2795
      %v2812 = vsel %vm312, %v2780, %v2796
      %v2813 = vsel %vm312, %v2781, %v2797
      %v2814 = vsel %vm312, %v2782, %v2798
      %v2815 = vsel %vm312, %v2783, %v2799
      %v2816 = vsel %vm312, %v2784, %v2800
      %v2817 = vsel %vm312, %v2785, %v2801
      %v2818 = vsel %vm312, %v2786, %v2802
      %v2819 = vsel %vm312, %v2787, %v2803
      %v2820 = vsel %vm312, %v2788, %v2804
      %v2821 = vsel %vm312, %v2789, %v2805
      %v2822 = vsel %vm312, %v2790, %v2806
      %v2823 = vsel %vm312, %v2759, %v2775
      %v2824 = vsel %vm312, %v2760, %v2776
      %v2825 = vsel %vm312, %v2761, %v2777
      %v2826 = vsel %vm312, %v2762, %v2778
      %v2827 = vsel %vm312, %v2763, %v2779
      %v2828 = vsel %vm312, %v2764, %v2780
      %v2829 = vsel %vm312, %v2765, %v2781
      %v2830 = vsel %vm312, %v2766, %v2782
      %v2831 = vsel %vm312, %v2767, %v2783
      %v2832 = vsel %vm312, %v2768, %v2784
      %v2833 = vsel %vm312, %v2769, %v2785
      %v2834 = vsel %vm312, %v2770, %v2786
      %v2835 = vsel %vm312, %v2771, %v2787
      %v2836 = vsel %vm312, %v2772, %v2788
      %v2837 = vsel %vm312, %v2773, %v2789
      %v2838 = vsel %vm312, %v2774, %v2790
      %v2839 = vsel %vm312, %v2743, %v2759
      %v2840 = vsel %vm312, %v2744, %v2760
      %v2841 = vsel %vm312, %v2745, %v2761
      %v2842 = vsel %vm312, %v2746, %v2762
      %v2843 = vsel %vm312, %v2747, %v2763
      %v2844 = vsel %vm312, %v2748, %v2764
      %v2845 = vsel %vm312, %v2749, %v2765
      %v2846 = vsel %vm312, %v2750, %v2766
      %v2847 = vsel %vm312, %v2751, %v2767
      %v2848 = vsel %vm312, %v2752, %v2768
      %v2849 = vsel %vm312, %v2753, %v2769
      %v2850 = vsel %vm312, %v2754, %v2770
      %v2851 = vsel %vm312, %v2755, %v2771
      %v2852 = vsel %vm312, %v2756, %v2772
      %v2853 = vsel %vm312, %v2757, %v2773
      %v2854 = vsel %vm312, %v2758, %v2774
      %v2855 = vsel %vm312, %v2791, %v2743
      %v2856 = vsel %vm312, %v2792, %v2744
      %v2857 = vsel %vm312, %v2793, %v2745
      %v2858 = vsel %vm312, %v2794, %v2746
      %v2859 = vsel %vm312, %v2795, %v2747
      %v2860 = vsel %vm312, %v2796, %v2748
      %v2861 = vsel %vm312, %v2797, %v2749
      %v2862 = vsel %vm312, %v2798, %v2750
      %v2863 = vsel %vm312, %v2799, %v2751
      %v2864 = vsel %vm312, %v2800, %v2752
      %v2865 = vsel %vm312, %v2801, %v2753
      %v2866 = vsel %vm312, %v2802, %v2754
      %v2867 = vsel %vm312, %v2803, %v2755
      %v2868 = vsel %vm312, %v2804, %v2756
      %v2869 = vsel %vm312, %v2805, %v2757
      %v2870 = vsel %vm312, %v2806, %v2758
      %v2871 = vpack.c.bf16 %v2839, %v2855
      %v2872 = vpack.c.bf16 %v2807, %v2823
      %v2873 = vpack.c.bf16 %v2840, %v2856
      %v2874 = vpack.c.bf16 %v2808, %v2824
      %v2875 = vpack.c.bf16 %v2841, %v2857
      %v2876 = vpack.c.bf16 %v2809, %v2825
      %v2877 = vpack.c.bf16 %v2842, %v2858
      %v2878 = vpack.c.bf16 %v2810, %v2826
      %v2879 = vpack.c.bf16 %v2843, %v2859
      %v2880 = vpack.c.bf16 %v2811, %v2827
      %v2881 = vpack.c.bf16 %v2844, %v2860
      %v2882 = vpack.c.bf16 %v2812, %v2828
      %v2883 = vpack.c.bf16 %v2845, %v2861
      %v2884 = vpack.c.bf16 %v2813, %v2829
      %v2885 = vpack.c.bf16 %v2846, %v2862
      %v2886 = vpack.c.bf16 %v2814, %v2830
      %v2887 = vpack.c.bf16 %v2847, %v2863
      %v2888 = vpack.c.bf16 %v2815, %v2831
      %v2889 = vpack.c.bf16 %v2848, %v2864
      %v2890 = vpack.c.bf16 %v2816, %v2832
      %v2891 = vpack.c.bf16 %v2849, %v2865
      %v2892 = vpack.c.bf16 %v2817, %v2833
      %v2893 = vpack.c.bf16 %v2850, %v2866
      %v2894 = vpack.c.bf16 %v2818, %v2834
      %v2895 = vpack.c.bf16 %v2851, %v2867
      %v2896 = vpack.c.bf16 %v2819, %v2835
      %v2897 = vpack.c.bf16 %v2852, %v2868
      %v2898 = vpack.c.bf16 %v2820, %v2836
      %v2899 = vpack.c.bf16 %v2853, %v2869
      %v2900 = vpack.c.bf16 %v2821, %v2837
      %v2901 = vpack.c.bf16 %v2854, %v2870
      %v2902 = vpack.c.bf16 %v2822, %v2838
      %s2903 = scalar_lea.vmem %s1, 384
      %v2904 = vld [vmem:[%s2903] sm:$0xf]
      %v2905 = vld [vmem:[%s2903 + $0x4] sm:$0xf]
      %v2906 = vld [vmem:[%s2903 + $0x8] sm:$0xf]
      %v2907 = vld [vmem:[%s2903 + $0xc] sm:$0xf]
      %v2908 = vld [vmem:[%s2903 + $0x10] sm:$0xf]
      %v2909 = vld [vmem:[%s2903 + $0x14] sm:$0xf]
      %v2910 = vld [vmem:[%s2903 + $0x18] sm:$0xf]
      %v2911 = vld [vmem:[%s2903 + $0x1c] sm:$0xf]
      %v2912 = vld [vmem:[%s2903 + $0x20] sm:$0xf]
      %v2913 = vld [vmem:[%s2903 + $0x24] sm:$0xf]
      %v2914 = vld [vmem:[%s2903 + $0x28] sm:$0xf]
      %v2915 = vld [vmem:[%s2903 + $0x2c] sm:$0xf]
      %v2916 = vld [vmem:[%s2903 + $0x30] sm:$0xf]
      %v2917 = vld [vmem:[%s2903 + $0x34] sm:$0xf]
      %v2918 = vld [vmem:[%s2903 + $0x38] sm:$0xf]
      %v2919 = vld [vmem:[%s2903 + $0x3c] sm:$0xf]
      %v2936 = vunpack.c.l.b16 %v2904
      %v2937 = vunpack.c.l.b16 %v2905
      %v2938 = vunpack.c.l.b16 %v2906
      %v2939 = vunpack.c.l.b16 %v2907
      %v2940 = vunpack.c.l.b16 %v2908
      %v2941 = vunpack.c.l.b16 %v2909
      %v2942 = vunpack.c.l.b16 %v2910
      %v2943 = vunpack.c.l.b16 %v2911
      %v2944 = vunpack.c.l.b16 %v2912
      %v2945 = vunpack.c.l.b16 %v2913
      %v2946 = vunpack.c.l.b16 %v2914
      %v2947 = vunpack.c.l.b16 %v2915
      %v2948 = vunpack.c.l.b16 %v2916
      %v2949 = vunpack.c.l.b16 %v2917
      %v2950 = vunpack.c.l.b16 %v2918
      %v2951 = vunpack.c.l.b16 %v2919
      %v2952 = vpack.c.b16 %v2937, %v2936
      %v2953 = vpack.c.b16 %v2939, %v2938
      %v2954 = vpack.c.b16 %v2941, %v2940
      %v2955 = vpack.c.b16 %v2943, %v2942
      %v2956 = vpack.c.b16 %v2945, %v2944
      %v2957 = vpack.c.b16 %v2947, %v2946
      %v2958 = vpack.c.b16 %v2949, %v2948
      %v2959 = vpack.c.b16 %v2951, %v2950
      %2968 = vmatpush.bf16.msra.mxu0 %v2959
      %2969 = vmatpush.bf16.msra.mxu0 %v2958
      %2970 = vmatpush.bf16.msra.mxu0 %v2957
      %2971 = vmatpush.bf16.msra.mxu0 %v2956
      %2972 = vmatpush.bf16.msra.mxu0 %v2955
      %2973 = vmatpush.bf16.msra.mxu0 %v2954
      %2974 = vmatpush.bf16.msra.mxu0 %v2953
      %2975 = vmatpush.bf16.msra.mxu0 %v2952
      %2976 = vmatmul.bf16.gmra.mxu0 %v2871
      %v2977 = vpop.f32.mrf.mxu0
      %v2978 = vadd.f32 0.0, %v2977
      %v2979 = vpop.f32.mrf.mxu0
      %v2980 = vadd.f32 0.0, %v2979
      %2981 = vmatmul.bf16.gmra.mxu0 %v2872
      %v2982 = vpop.f32.mrf.mxu0
      %v2983 = vadd.f32 0.0, %v2982
      %v2984 = vpop.f32.mrf.mxu0
      %v2985 = vadd.f32 0.0, %v2984
      %2986 = vmatmul.bf16.gmra.mxu0 %v2873
      %v2987 = vpop.f32.mrf.mxu0
      %v2988 = vadd.f32 0.0, %v2987
      %v2989 = vpop.f32.mrf.mxu0
      %v2990 = vadd.f32 0.0, %v2989
      %2991 = vmatmul.bf16.gmra.mxu0 %v2874
      %v2992 = vpop.f32.mrf.mxu0
      %v2993 = vadd.f32 0.0, %v2992
      %v2994 = vpop.f32.mrf.mxu0
      %v2995 = vadd.f32 0.0, %v2994
      %2996 = vmatmul.bf16.gmra.mxu0 %v2875
      %v2997 = vpop.f32.mrf.mxu0
      %v2998 = vadd.f32 0.0, %v2997
      %v2999 = vpop.f32.mrf.mxu0
      %v3000 = vadd.f32 0.0, %v2999
      %3001 = vmatmul.bf16.gmra.mxu0 %v2876
      %v3002 = vpop.f32.mrf.mxu0
      %v3003 = vadd.f32 0.0, %v3002
      %v3004 = vpop.f32.mrf.mxu0
      %v3005 = vadd.f32 0.0, %v3004
      %3006 = vmatmul.bf16.gmra.mxu0 %v2877
      %v3007 = vpop.f32.mrf.mxu0
      %v3008 = vadd.f32 0.0, %v3007
      %v3009 = vpop.f32.mrf.mxu0
      %v3010 = vadd.f32 0.0, %v3009
      %3011 = vmatmul.bf16.gmra.mxu0 %v2878
      %v3012 = vpop.f32.mrf.mxu0
      %v3013 = vadd.f32 0.0, %v3012
      %v3014 = vpop.f32.mrf.mxu0
      %v3015 = vadd.f32 0.0, %v3014
      %3016 = vmatmul.bf16.gmra.mxu0 %v2879
      %v3017 = vpop.f32.mrf.mxu0
      %v3018 = vadd.f32 0.0, %v3017
      %v3019 = vpop.f32.mrf.mxu0
      %v3020 = vadd.f32 0.0, %v3019
      %3021 = vmatmul.bf16.gmra.mxu0 %v2880
      %v3022 = vpop.f32.mrf.mxu0
      %v3023 = vadd.f32 0.0, %v3022
      %v3024 = vpop.f32.mrf.mxu0
      %v3025 = vadd.f32 0.0, %v3024
      %3026 = vmatmul.bf16.gmra.mxu0 %v2881
      %v3027 = vpop.f32.mrf.mxu0
      %v3028 = vadd.f32 0.0, %v3027
      %v3029 = vpop.f32.mrf.mxu0
      %v3030 = vadd.f32 0.0, %v3029
      %3031 = vmatmul.bf16.gmra.mxu0 %v2882
      %v3032 = vpop.f32.mrf.mxu0
      %v3033 = vadd.f32 0.0, %v3032
      %v3034 = vpop.f32.mrf.mxu0
      %v3035 = vadd.f32 0.0, %v3034
      %3036 = vmatmul.bf16.gmra.mxu0 %v2883
      %v3037 = vpop.f32.mrf.mxu0
      %v3038 = vadd.f32 0.0, %v3037
      %v3039 = vpop.f32.mrf.mxu0
      %v3040 = vadd.f32 0.0, %v3039
      %3041 = vmatmul.bf16.gmra.mxu0 %v2884
      %v3042 = vpop.f32.mrf.mxu0
      %v3043 = vadd.f32 0.0, %v3042
      %v3044 = vpop.f32.mrf.mxu0
      %v3045 = vadd.f32 0.0, %v3044
      %3046 = vmatmul.bf16.gmra.mxu0 %v2885
      %v3047 = vpop.f32.mrf.mxu0
      %v3048 = vadd.f32 0.0, %v3047
      %v3049 = vpop.f32.mrf.mxu0
      %v3050 = vadd.f32 0.0, %v3049
      %3051 = vmatmul.bf16.gmra.mxu0 %v2886
      %v3052 = vpop.f32.mrf.mxu0
      %v3053 = vadd.f32 0.0, %v3052
      %v3054 = vpop.f32.mrf.mxu0
      %v3055 = vadd.f32 0.0, %v3054
      %3056 = vmatmul.bf16.gmra.mxu0 %v2887
      %v3057 = vpop.f32.mrf.mxu0
      %v3058 = vadd.f32 0.0, %v3057
      %v3059 = vpop.f32.mrf.mxu0
      %v3060 = vadd.f32 0.0, %v3059
      %3061 = vmatmul.bf16.gmra.mxu0 %v2888
      %v3062 = vpop.f32.mrf.mxu0
      %v3063 = vadd.f32 0.0, %v3062
      %v3064 = vpop.f32.mrf.mxu0
      %v3065 = vadd.f32 0.0, %v3064
      %3066 = vmatmul.bf16.gmra.mxu0 %v2889
      %v3067 = vpop.f32.mrf.mxu0
      %v3068 = vadd.f32 0.0, %v3067
      %v3069 = vpop.f32.mrf.mxu0
      %v3070 = vadd.f32 0.0, %v3069
      %3071 = vmatmul.bf16.gmra.mxu0 %v2890
      %v3072 = vpop.f32.mrf.mxu0
      %v3073 = vadd.f32 0.0, %v3072
      %v3074 = vpop.f32.mrf.mxu0
      %v3075 = vadd.f32 0.0, %v3074
      %3076 = vmatmul.bf16.gmra.mxu0 %v2891
      %v3077 = vpop.f32.mrf.mxu0
      %v3078 = vadd.f32 0.0, %v3077
      %v3079 = vpop.f32.mrf.mxu0
      %v3080 = vadd.f32 0.0, %v3079
      %3081 = vmatmul.bf16.gmra.mxu0 %v2892
      %v3082 = vpop.f32.mrf.mxu0
      %v3083 = vadd.f32 0.0, %v3082
      %v3084 = vpop.f32.mrf.mxu0
      %v3085 = vadd.f32 0.0, %v3084
      %3086 = vmatmul.bf16.gmra.mxu0 %v2893
      %v3087 = vpop.f32.mrf.mxu0
      %v3088 = vadd.f32 0.0, %v3087
      %v3089 = vpop.f32.mrf.mxu0
      %v3090 = vadd.f32 0.0, %v3089
      %3091 = vmatmul.bf16.gmra.mxu0 %v2894
      %v3092 = vpop.f32.mrf.mxu0
      %v3093 = vadd.f32 0.0, %v3092
      %v3094 = vpop.f32.mrf.mxu0
      %v3095 = vadd.f32 0.0, %v3094
      %3096 = vmatmul.bf16.gmra.mxu0 %v2895
      %v3097 = vpop.f32.mrf.mxu0
      %v3098 = vadd.f32 0.0, %v3097
      %v3099 = vpop.f32.mrf.mxu0
      %v3100 = vadd.f32 0.0, %v3099
      %3101 = vmatmul.bf16.gmra.mxu0 %v2896
      %v3102 = vpop.f32.mrf.mxu0
      %v3103 = vadd.f32 0.0, %v3102
      %v3104 = vpop.f32.mrf.mxu0
      %v3105 = vadd.f32 0.0, %v3104
      %3106 = vmatmul.bf16.gmra.mxu0 %v2897
      %v3107 = vpop.f32.mrf.mxu0
      %v3108 = vadd.f32 0.0, %v3107
      %v3109 = vpop.f32.mrf.mxu0
      %v3110 = vadd.f32 0.0, %v3109
      %3111 = vmatmul.bf16.gmra.mxu0 %v2898
      %v3112 = vpop.f32.mrf.mxu0
      %v3113 = vadd.f32 0.0, %v3112
      %v3114 = vpop.f32.mrf.mxu0
      %v3115 = vadd.f32 0.0, %v3114
      %3116 = vmatmul.bf16.gmra.mxu0 %v2899
      %v3117 = vpop.f32.mrf.mxu0
      %v3118 = vadd.f32 0.0, %v3117
      %v3119 = vpop.f32.mrf.mxu0
      %v3120 = vadd.f32 0.0, %v3119
      %3121 = vmatmul.bf16.gmra.mxu0 %v2900
      %v3122 = vpop.f32.mrf.mxu0
      %v3123 = vadd.f32 0.0, %v3122
      %v3124 = vpop.f32.mrf.mxu0
      %v3125 = vadd.f32 0.0, %v3124
      %3126 = vmatmul.bf16.gmra.mxu0 %v2901
      %v3127 = vpop.f32.mrf.mxu0
      %v3128 = vadd.f32 0.0, %v3127
      %v3129 = vpop.f32.mrf.mxu0
      %v3130 = vadd.f32 0.0, %v3129
      %3131 = vmatmul.bf16.gmra.mxu0 %v2902
      %v3132 = vpop.f32.mrf.mxu0
      %v3133 = vadd.f32 0.0, %v3132
      %v3134 = vpop.f32.mrf.mxu0
      %v3135 = vadd.f32 0.0, %v3134
      %3136 = vdwg.mxu0
      %v3137 = vadd.f32 %v2614, %v2978
      %v3138 = vadd.f32 %v2615, %v2980
      %v3139 = vadd.f32 %v2616, %v2983
      %v3140 = vadd.f32 %v2617, %v2985
      %v3141 = vadd.f32 %v2618, %v2988
      %v3142 = vadd.f32 %v2619, %v2990
      %v3143 = vadd.f32 %v2620, %v2993
      %v3144 = vadd.f32 %v2621, %v2995
      %v3145 = vadd.f32 %v2622, %v2998
      %v3146 = vadd.f32 %v2623, %v3000
      %v3147 = vadd.f32 %v2624, %v3003
      %v3148 = vadd.f32 %v2625, %v3005
      %v3149 = vadd.f32 %v2626, %v3008
      %v3150 = vadd.f32 %v2627, %v3010
      %v3151 = vadd.f32 %v2628, %v3013
      %v3152 = vadd.f32 %v2629, %v3015
      %v3153 = vadd.f32 %v2630, %v3018
      %v3154 = vadd.f32 %v2631, %v3020
      %v3155 = vadd.f32 %v2632, %v3023
      %v3156 = vadd.f32 %v2633, %v3025
      %v3157 = vadd.f32 %v2634, %v3028
      %v3158 = vadd.f32 %v2635, %v3030
      %v3159 = vadd.f32 %v2636, %v3033
      %v3160 = vadd.f32 %v2637, %v3035
      %v3161 = vadd.f32 %v2638, %v3038
      %v3162 = vadd.f32 %v2639, %v3040
      %v3163 = vadd.f32 %v2640, %v3043
      %v3164 = vadd.f32 %v2641, %v3045
      %v3165 = vadd.f32 %v2642, %v3048
      %v3166 = vadd.f32 %v2643, %v3050
      %v3167 = vadd.f32 %v2644, %v3053
      %v3168 = vadd.f32 %v2645, %v3055
      %v3169 = vadd.f32 %v2646, %v3058
      %v3170 = vadd.f32 %v2647, %v3060
      %v3171 = vadd.f32 %v2648, %v3063
      %v3172 = vadd.f32 %v2649, %v3065
      %v3173 = vadd.f32 %v2650, %v3068
      %v3174 = vadd.f32 %v2651, %v3070
      %v3175 = vadd.f32 %v2652, %v3073
      %v3176 = vadd.f32 %v2653, %v3075
      %v3177 = vadd.f32 %v2654, %v3078
      %v3178 = vadd.f32 %v2655, %v3080
      %v3179 = vadd.f32 %v2656, %v3083
      %v3180 = vadd.f32 %v2657, %v3085
      %v3181 = vadd.f32 %v2658, %v3088
      %v3182 = vadd.f32 %v2659, %v3090
      %v3183 = vadd.f32 %v2660, %v3093
      %v3184 = vadd.f32 %v2661, %v3095
      %v3185 = vadd.f32 %v2662, %v3098
      %v3186 = vadd.f32 %v2663, %v3100
      %v3187 = vadd.f32 %v2664, %v3103
      %v3188 = vadd.f32 %v2665, %v3105
      %v3189 = vadd.f32 %v2666, %v3108
      %v3190 = vadd.f32 %v2667, %v3110
      %v3191 = vadd.f32 %v2668, %v3113
      %v3192 = vadd.f32 %v2669, %v3115
      %v3193 = vadd.f32 %v2670, %v3118
      %v3194 = vadd.f32 %v2671, %v3120
      %v3195 = vadd.f32 %v2672, %v3123
      %v3196 = vadd.f32 %v2673, %v3125
      %v3197 = vadd.f32 %v2674, %v3128
      %v3198 = vadd.f32 %v2675, %v3130
      %v3199 = vadd.f32 %v2676, %v3133
      %v3200 = vadd.f32 %v2677, %v3135
      %v3201 = vpack.c.bf16 %v2680, %v2679
      %v3202 = vpack.c.bf16 %v2682, %v2681
      %v3203 = vpack.c.bf16 %v2684, %v2683
      %v3204 = vpack.c.bf16 %v2686, %v2685
      %v3205 = vpack.c.bf16 %v2688, %v2687
      %v3206 = vpack.c.bf16 %v2690, %v2689
      %v3207 = vpack.c.bf16 %v2692, %v2691
      %v3208 = vpack.c.bf16 %v2694, %v2693
      %v3209 = vpack.c.bf16 %v2696, %v2695
      %v3210 = vpack.c.bf16 %v2698, %v2697
      %v3211 = vpack.c.bf16 %v2700, %v2699
      %v3212 = vpack.c.bf16 %v2702, %v2701
      %v3213 = vpack.c.bf16 %v2704, %v2703
      %v3214 = vpack.c.bf16 %v2706, %v2705
      %v3215 = vpack.c.bf16 %v2708, %v2707
      %v3216 = vpack.c.bf16 %v2710, %v2709
      %v3217 = vpack.c.bf16 %v2712, %v2711
      %v3218 = vpack.c.bf16 %v2714, %v2713
      %v3219 = vpack.c.bf16 %v2716, %v2715
      %v3220 = vpack.c.bf16 %v2718, %v2717
      %v3221 = vpack.c.bf16 %v2720, %v2719
      %v3222 = vpack.c.bf16 %v2722, %v2721
      %v3223 = vpack.c.bf16 %v2724, %v2723
      %v3224 = vpack.c.bf16 %v2726, %v2725
      %v3225 = vpack.c.bf16 %v2728, %v2727
      %v3226 = vpack.c.bf16 %v2730, %v2729
      %v3227 = vpack.c.bf16 %v2732, %v2731
      %v3228 = vpack.c.bf16 %v2734, %v2733
      %v3229 = vpack.c.bf16 %v2736, %v2735
      %v3230 = vpack.c.bf16 %v2738, %v2737
      %v3231 = vpack.c.bf16 %v2740, %v2739
      %v3232 = vpack.c.bf16 %v2742, %v2741
      %s3233 = scalar_lea.vmem %s1, 448
      %v3234 = vld [vmem:[%s3233] sm:$0xf]
      %v3235 = vld [vmem:[%s3233 + $0x4] sm:$0xf]
      %v3236 = vld [vmem:[%s3233 + $0x8] sm:$0xf]
      %v3237 = vld [vmem:[%s3233 + $0xc] sm:$0xf]
      %v3238 = vld [vmem:[%s3233 + $0x10] sm:$0xf]
      %v3239 = vld [vmem:[%s3233 + $0x14] sm:$0xf]
      %v3240 = vld [vmem:[%s3233 + $0x18] sm:$0xf]
      %v3241 = vld [vmem:[%s3233 + $0x1c] sm:$0xf]
      %v3242 = vld [vmem:[%s3233 + $0x20] sm:$0xf]
      %v3243 = vld [vmem:[%s3233 + $0x24] sm:$0xf]
      %v3244 = vld [vmem:[%s3233 + $0x28] sm:$0xf]
      %v3245 = vld [vmem:[%s3233 + $0x2c] sm:$0xf]
      %v3246 = vld [vmem:[%s3233 + $0x30] sm:$0xf]
      %v3247 = vld [vmem:[%s3233 + $0x34] sm:$0xf]
      %v3248 = vld [vmem:[%s3233 + $0x38] sm:$0xf]
      %v3249 = vld [vmem:[%s3233 + $0x3c] sm:$0xf]
      %v3266 = vunpack.c.l.b16 %v3234
      %v3267 = vunpack.c.l.b16 %v3235
      %v3268 = vunpack.c.l.b16 %v3236
      %v3269 = vunpack.c.l.b16 %v3237
      %v3270 = vunpack.c.l.b16 %v3238
      %v3271 = vunpack.c.l.b16 %v3239
      %v3272 = vunpack.c.l.b16 %v3240
      %v3273 = vunpack.c.l.b16 %v3241
      %v3274 = vunpack.c.l.b16 %v3242
      %v3275 = vunpack.c.l.b16 %v3243
      %v3276 = vunpack.c.l.b16 %v3244
      %v3277 = vunpack.c.l.b16 %v3245
      %v3278 = vunpack.c.l.b16 %v3246
      %v3279 = vunpack.c.l.b16 %v3247
      %v3280 = vunpack.c.l.b16 %v3248
      %v3281 = vunpack.c.l.b16 %v3249
      %v3282 = vpack.c.b16 %v3267, %v3266
      %v3283 = vpack.c.b16 %v3269, %v3268
      %v3284 = vpack.c.b16 %v3271, %v3270
      %v3285 = vpack.c.b16 %v3273, %v3272
      %v3286 = vpack.c.b16 %v3275, %v3274
      %v3287 = vpack.c.b16 %v3277, %v3276
      %v3288 = vpack.c.b16 %v3279, %v3278
      %v3289 = vpack.c.b16 %v3281, %v3280
      %3298 = vmatpush.bf16.msra.mxu0 %v3289
      %3299 = vmatpush.bf16.msra.mxu0 %v3288
      %3300 = vmatpush.bf16.msra.mxu0 %v3287
      %3301 = vmatpush.bf16.msra.mxu0 %v3286
      %3302 = vmatpush.bf16.msra.mxu0 %v3285
      %3303 = vmatpush.bf16.msra.mxu0 %v3284
      %3304 = vmatpush.bf16.msra.mxu0 %v3283
      %3305 = vmatpush.bf16.msra.mxu0 %v3282
      %3306 = vmatmul.bf16.gmra.mxu0 %v3201
      %v3307 = vpop.f32.mrf.mxu0
      %v3308 = vadd.f32 0.0, %v3307
      %v3309 = vpop.f32.mrf.mxu0
      %v3310 = vadd.f32 0.0, %v3309
      %3311 = vmatmul.bf16.gmra.mxu0 %v3202
      %v3312 = vpop.f32.mrf.mxu0
      %v3313 = vadd.f32 0.0, %v3312
      %v3314 = vpop.f32.mrf.mxu0
      %v3315 = vadd.f32 0.0, %v3314
      %3316 = vmatmul.bf16.gmra.mxu0 %v3203
      %v3317 = vpop.f32.mrf.mxu0
      %v3318 = vadd.f32 0.0, %v3317
      %v3319 = vpop.f32.mrf.mxu0
      %v3320 = vadd.f32 0.0, %v3319
      %3321 = vmatmul.bf16.gmra.mxu0 %v3204
      %v3322 = vpop.f32.mrf.mxu0
      %v3323 = vadd.f32 0.0, %v3322
      %v3324 = vpop.f32.mrf.mxu0
      %v3325 = vadd.f32 0.0, %v3324
      %3326 = vmatmul.bf16.gmra.mxu0 %v3205
      %v3327 = vpop.f32.mrf.mxu0
      %v3328 = vadd.f32 0.0, %v3327
      %v3329 = vpop.f32.mrf.mxu0
      %v3330 = vadd.f32 0.0, %v3329
      %3331 = vmatmul.bf16.gmra.mxu0 %v3206
      %v3332 = vpop.f32.mrf.mxu0
      %v3333 = vadd.f32 0.0, %v3332
      %v3334 = vpop.f32.mrf.mxu0
      %v3335 = vadd.f32 0.0, %v3334
      %3336 = vmatmul.bf16.gmra.mxu0 %v3207
      %v3337 = vpop.f32.mrf.mxu0
      %v3338 = vadd.f32 0.0, %v3337
      %v3339 = vpop.f32.mrf.mxu0
      %v3340 = vadd.f32 0.0, %v3339
      %3341 = vmatmul.bf16.gmra.mxu0 %v3208
      %v3342 = vpop.f32.mrf.mxu0
      %v3343 = vadd.f32 0.0, %v3342
      %v3344 = vpop.f32.mrf.mxu0
      %v3345 = vadd.f32 0.0, %v3344
      %3346 = vmatmul.bf16.gmra.mxu0 %v3209
      %v3347 = vpop.f32.mrf.mxu0
      %v3348 = vadd.f32 0.0, %v3347
      %v3349 = vpop.f32.mrf.mxu0
      %v3350 = vadd.f32 0.0, %v3349
      %3351 = vmatmul.bf16.gmra.mxu0 %v3210
      %v3352 = vpop.f32.mrf.mxu0
      %v3353 = vadd.f32 0.0, %v3352
      %v3354 = vpop.f32.mrf.mxu0
      %v3355 = vadd.f32 0.0, %v3354
      %3356 = vmatmul.bf16.gmra.mxu0 %v3211
      %v3357 = vpop.f32.mrf.mxu0
      %v3358 = vadd.f32 0.0, %v3357
      %v3359 = vpop.f32.mrf.mxu0
      %v3360 = vadd.f32 0.0, %v3359
      %3361 = vmatmul.bf16.gmra.mxu0 %v3212
      %v3362 = vpop.f32.mrf.mxu0
      %v3363 = vadd.f32 0.0, %v3362
      %v3364 = vpop.f32.mrf.mxu0
      %v3365 = vadd.f32 0.0, %v3364
      %3366 = vmatmul.bf16.gmra.mxu0 %v3213
      %v3367 = vpop.f32.mrf.mxu0
      %v3368 = vadd.f32 0.0, %v3367
      %v3369 = vpop.f32.mrf.mxu0
      %v3370 = vadd.f32 0.0, %v3369
      %3371 = vmatmul.bf16.gmra.mxu0 %v3214
      %v3372 = vpop.f32.mrf.mxu0
      %v3373 = vadd.f32 0.0, %v3372
      %v3374 = vpop.f32.mrf.mxu0
      %v3375 = vadd.f32 0.0, %v3374
      %3376 = vmatmul.bf16.gmra.mxu0 %v3215
      %v3377 = vpop.f32.mrf.mxu0
      %v3378 = vadd.f32 0.0, %v3377
      %v3379 = vpop.f32.mrf.mxu0
      %v3380 = vadd.f32 0.0, %v3379
      %3381 = vmatmul.bf16.gmra.mxu0 %v3216
      %v3382 = vpop.f32.mrf.mxu0
      %v3383 = vadd.f32 0.0, %v3382
      %v3384 = vpop.f32.mrf.mxu0
      %v3385 = vadd.f32 0.0, %v3384
      %3386 = vmatmul.bf16.gmra.mxu0 %v3217
      %v3387 = vpop.f32.mrf.mxu0
      %v3388 = vadd.f32 0.0, %v3387
      %v3389 = vpop.f32.mrf.mxu0
      %v3390 = vadd.f32 0.0, %v3389
      %3391 = vmatmul.bf16.gmra.mxu0 %v3218
      %v3392 = vpop.f32.mrf.mxu0
      %v3393 = vadd.f32 0.0, %v3392
      %v3394 = vpop.f32.mrf.mxu0
      %v3395 = vadd.f32 0.0, %v3394
      %3396 = vmatmul.bf16.gmra.mxu0 %v3219
      %v3397 = vpop.f32.mrf.mxu0
      %v3398 = vadd.f32 0.0, %v3397
      %v3399 = vpop.f32.mrf.mxu0
      %v3400 = vadd.f32 0.0, %v3399
      %3401 = vmatmul.bf16.gmra.mxu0 %v3220
      %v3402 = vpop.f32.mrf.mxu0
      %v3403 = vadd.f32 0.0, %v3402
      %v3404 = vpop.f32.mrf.mxu0
      %v3405 = vadd.f32 0.0, %v3404
      %3406 = vmatmul.bf16.gmra.mxu0 %v3221
      %v3407 = vpop.f32.mrf.mxu0
      %v3408 = vadd.f32 0.0, %v3407
      %v3409 = vpop.f32.mrf.mxu0
      %v3410 = vadd.f32 0.0, %v3409
      %3411 = vmatmul.bf16.gmra.mxu0 %v3222
      %v3412 = vpop.f32.mrf.mxu0
      %v3413 = vadd.f32 0.0, %v3412
      %v3414 = vpop.f32.mrf.mxu0
      %v3415 = vadd.f32 0.0, %v3414
      %3416 = vmatmul.bf16.gmra.mxu0 %v3223
      %v3417 = vpop.f32.mrf.mxu0
      %v3418 = vadd.f32 0.0, %v3417
      %v3419 = vpop.f32.mrf.mxu0
      %v3420 = vadd.f32 0.0, %v3419
      %3421 = vmatmul.bf16.gmra.mxu0 %v3224
      %v3422 = vpop.f32.mrf.mxu0
      %v3423 = vadd.f32 0.0, %v3422
      %v3424 = vpop.f32.mrf.mxu0
      %v3425 = vadd.f32 0.0, %v3424
      %3426 = vmatmul.bf16.gmra.mxu0 %v3225
      %v3427 = vpop.f32.mrf.mxu0
      %v3428 = vadd.f32 0.0, %v3427
      %v3429 = vpop.f32.mrf.mxu0
      %v3430 = vadd.f32 0.0, %v3429
      %3431 = vmatmul.bf16.gmra.mxu0 %v3226
      %v3432 = vpop.f32.mrf.mxu0
      %v3433 = vadd.f32 0.0, %v3432
      %v3434 = vpop.f32.mrf.mxu0
      %v3435 = vadd.f32 0.0, %v3434
      %3436 = vmatmul.bf16.gmra.mxu0 %v3227
      %v3437 = vpop.f32.mrf.mxu0
      %v3438 = vadd.f32 0.0, %v3437
      %v3439 = vpop.f32.mrf.mxu0
      %v3440 = vadd.f32 0.0, %v3439
      %3441 = vmatmul.bf16.gmra.mxu0 %v3228
      %v3442 = vpop.f32.mrf.mxu0
      %v3443 = vadd.f32 0.0, %v3442
      %v3444 = vpop.f32.mrf.mxu0
      %v3445 = vadd.f32 0.0, %v3444
      %3446 = vmatmul.bf16.gmra.mxu0 %v3229
      %v3447 = vpop.f32.mrf.mxu0
      %v3448 = vadd.f32 0.0, %v3447
      %v3449 = vpop.f32.mrf.mxu0
      %v3450 = vadd.f32 0.0, %v3449
      %3451 = vmatmul.bf16.gmra.mxu0 %v3230
      %v3452 = vpop.f32.mrf.mxu0
      %v3453 = vadd.f32 0.0, %v3452
      %v3454 = vpop.f32.mrf.mxu0
      %v3455 = vadd.f32 0.0, %v3454
      %3456 = vmatmul.bf16.gmra.mxu0 %v3231
      %v3457 = vpop.f32.mrf.mxu0
      %v3458 = vadd.f32 0.0, %v3457
      %v3459 = vpop.f32.mrf.mxu0
      %v3460 = vadd.f32 0.0, %v3459
      %3461 = vmatmul.bf16.gmra.mxu0 %v3232
      %v3462 = vpop.f32.mrf.mxu0
      %v3463 = vadd.f32 0.0, %v3462
      %v3464 = vpop.f32.mrf.mxu0
      %v3465 = vadd.f32 0.0, %v3464
      %3466 = vdwg.mxu0
      %v3467 = vadd.f32 %v3137, %v3308
      %v3468 = vadd.f32 %v3138, %v3310
      %v3469 = vadd.f32 %v3139, %v3313
      %v3470 = vadd.f32 %v3140, %v3315
      %v3471 = vadd.f32 %v3141, %v3318
      %v3472 = vadd.f32 %v3142, %v3320
      %v3473 = vadd.f32 %v3143, %v3323
      %v3474 = vadd.f32 %v3144, %v3325
      %v3475 = vadd.f32 %v3145, %v3328
      %v3476 = vadd.f32 %v3146, %v3330
      %v3477 = vadd.f32 %v3147, %v3333
      %v3478 = vadd.f32 %v3148, %v3335
      %v3479 = vadd.f32 %v3149, %v3338
      %v3480 = vadd.f32 %v3150, %v3340
      %v3481 = vadd.f32 %v3151, %v3343
      %v3482 = vadd.f32 %v3152, %v3345
      %v3483 = vadd.f32 %v3153, %v3348
      %v3484 = vadd.f32 %v3154, %v3350
      %v3485 = vadd.f32 %v3155, %v3353
      %v3486 = vadd.f32 %v3156, %v3355
      %v3487 = vadd.f32 %v3157, %v3358
      %v3488 = vadd.f32 %v3158, %v3360
      %v3489 = vadd.f32 %v3159, %v3363
      %v3490 = vadd.f32 %v3160, %v3365
      %v3491 = vadd.f32 %v3161, %v3368
      %v3492 = vadd.f32 %v3162, %v3370
      %v3493 = vadd.f32 %v3163, %v3373
      %v3494 = vadd.f32 %v3164, %v3375
      %v3495 = vadd.f32 %v3165, %v3378
      %v3496 = vadd.f32 %v3166, %v3380
      %v3497 = vadd.f32 %v3167, %v3383
      %v3498 = vadd.f32 %v3168, %v3385
      %v3499 = vadd.f32 %v3169, %v3388
      %v3500 = vadd.f32 %v3170, %v3390
      %v3501 = vadd.f32 %v3171, %v3393
      %v3502 = vadd.f32 %v3172, %v3395
      %v3503 = vadd.f32 %v3173, %v3398
      %v3504 = vadd.f32 %v3174, %v3400
      %v3505 = vadd.f32 %v3175, %v3403
      %v3506 = vadd.f32 %v3176, %v3405
      %v3507 = vadd.f32 %v3177, %v3408
      %v3508 = vadd.f32 %v3178, %v3410
      %v3509 = vadd.f32 %v3179, %v3413
      %v3510 = vadd.f32 %v3180, %v3415
      %v3511 = vadd.f32 %v3181, %v3418
      %v3512 = vadd.f32 %v3182, %v3420
      %v3513 = vadd.f32 %v3183, %v3423
      %v3514 = vadd.f32 %v3184, %v3425
      %v3515 = vadd.f32 %v3185, %v3428
      %v3516 = vadd.f32 %v3186, %v3430
      %v3517 = vadd.f32 %v3187, %v3433
      %v3518 = vadd.f32 %v3188, %v3435
      %v3519 = vadd.f32 %v3189, %v3438
      %v3520 = vadd.f32 %v3190, %v3440
      %v3521 = vadd.f32 %v3191, %v3443
      %v3522 = vadd.f32 %v3192, %v3445
      %v3523 = vadd.f32 %v3193, %v3448
      %v3524 = vadd.f32 %v3194, %v3450
      %v3525 = vadd.f32 %v3195, %v3453
      %v3526 = vadd.f32 %v3196, %v3455
      %v3527 = vadd.f32 %v3197, %v3458
      %v3528 = vadd.f32 %v3198, %v3460
      %v3529 = vadd.f32 %v3199, %v3463
      %v3530 = vadd.f32 %v3200, %v3465
      %v3531 = vrot.slane %v2679, 1
      %v3532 = vrot.slane %v2683, 1
      %v3533 = vrot.slane %v2687, 1
      %v3534 = vrot.slane %v2691, 1
      %v3535 = vrot.slane %v2695, 1
      %v3536 = vrot.slane %v2699, 1
      %v3537 = vrot.slane %v2703, 1
      %v3538 = vrot.slane %v2707, 1
      %v3539 = vrot.slane %v2711, 1
      %v3540 = vrot.slane %v2715, 1
      %v3541 = vrot.slane %v2719, 1
      %v3542 = vrot.slane %v2723, 1
      %v3543 = vrot.slane %v2727, 1
      %v3544 = vrot.slane %v2731, 1
      %v3545 = vrot.slane %v2735, 1
      %v3546 = vrot.slane %v2739, 1
      %v3547 = vrot.slane %v2680, 1
      %v3548 = vrot.slane %v2684, 1
      %v3549 = vrot.slane %v2688, 1
      %v3550 = vrot.slane %v2692, 1
      %v3551 = vrot.slane %v2696, 1
      %v3552 = vrot.slane %v2700, 1
      %v3553 = vrot.slane %v2704, 1
      %v3554 = vrot.slane %v2708, 1
      %v3555 = vrot.slane %v2712, 1
      %v3556 = vrot.slane %v2716, 1
      %v3557 = vrot.slane %v2720, 1
      %v3558 = vrot.slane %v2724, 1
      %v3559 = vrot.slane %v2728, 1
      %v3560 = vrot.slane %v2732, 1
      %v3561 = vrot.slane %v2736, 1
      %v3562 = vrot.slane %v2740, 1
      %v3563 = vrot.slane %v2681, 1
      %v3564 = vrot.slane %v2685, 1
      %v3565 = vrot.slane %v2689, 1
      %v3566 = vrot.slane %v2693, 1
      %v3567 = vrot.slane %v2697, 1
      %v3568 = vrot.slane %v2701, 1
      %v3569 = vrot.slane %v2705, 1
      %v3570 = vrot.slane %v2709, 1
      %v3571 = vrot.slane %v2713, 1
      %v3572 = vrot.slane %v2717, 1
      %v3573 = vrot.slane %v2721, 1
      %v3574 = vrot.slane %v2725, 1
      %v3575 = vrot.slane %v2729, 1
      %v3576 = vrot.slane %v2733, 1
      %v3577 = vrot.slane %v2737, 1
      %v3578 = vrot.slane %v2741, 1
      %v3579 = vrot.slane %v2682, 1
      %v3580 = vrot.slane %v2686, 1
      %v3581 = vrot.slane %v2690, 1
      %v3582 = vrot.slane %v2694, 1
      %v3583 = vrot.slane %v2698, 1
      %v3584 = vrot.slane %v2702, 1
      %v3585 = vrot.slane %v2706, 1
      %v3586 = vrot.slane %v2710, 1
      %v3587 = vrot.slane %v2714, 1
      %v3588 = vrot.slane %v2718, 1
      %v3589 = vrot.slane %v2722, 1
      %v3590 = vrot.slane %v2726, 1
      %v3591 = vrot.slane %v2730, 1
      %v3592 = vrot.slane %v2734, 1
      %v3593 = vrot.slane %v2738, 1
      %v3594 = vrot.slane %v2742, 1
      %v3595 = vsel %vm972, %v3563, %v3579
      %v3596 = vsel %vm972, %v3564, %v3580
      %v3597 = vsel %vm972, %v3565, %v3581
      %v3598 = vsel %vm972, %v3566, %v3582
      %v3599 = vsel %vm972, %v3567, %v3583
      %v3600 = vsel %vm972, %v3568, %v3584
      %v3601 = vsel %vm972, %v3569, %v3585
      %v3602 = vsel %vm972, %v3570, %v3586
      %v3603 = vsel %vm972, %v3571, %v3587
      %v3604 = vsel %vm972, %v3572, %v3588
      %v3605 = vsel %vm972, %v3573, %v3589
      %v3606 = vsel %vm972, %v3574, %v3590
      %v3607 = vsel %vm972, %v3575, %v3591
      %v3608 = vsel %vm972, %v3576, %v3592
      %v3609 = vsel %vm972, %v3577, %v3593
      %v3610 = vsel %vm972, %v3578, %v3594
      %v3611 = vsel %vm972, %v3547, %v3563
      %v3612 = vsel %vm972, %v3548, %v3564
      %v3613 = vsel %vm972, %v3549, %v3565
      %v3614 = vsel %vm972, %v3550, %v3566
      %v3615 = vsel %vm972, %v3551, %v3567
      %v3616 = vsel %vm972, %v3552, %v3568
      %v3617 = vsel %vm972, %v3553, %v3569
      %v3618 = vsel %vm972, %v3554, %v3570
      %v3619 = vsel %vm972, %v3555, %v3571
      %v3620 = vsel %vm972, %v3556, %v3572
      %v3621 = vsel %vm972, %v3557, %v3573
      %v3622 = vsel %vm972, %v3558, %v3574
      %v3623 = vsel %vm972, %v3559, %v3575
      %v3624 = vsel %vm972, %v3560, %v3576
      %v3625 = vsel %vm972, %v3561, %v3577
      %v3626 = vsel %vm972, %v3562, %v3578
      %v3627 = vsel %vm972, %v3531, %v3547
      %v3628 = vsel %vm972, %v3532, %v3548
      %v3629 = vsel %vm972, %v3533, %v3549
      %v3630 = vsel %vm972, %v3534, %v3550
      %v3631 = vsel %vm972, %v3535, %v3551
      %v3632 = vsel %vm972, %v3536, %v3552
      %v3633 = vsel %vm972, %v3537, %v3553
      %v3634 = vsel %vm972, %v3538, %v3554
      %v3635 = vsel %vm972, %v3539, %v3555
      %v3636 = vsel %vm972, %v3540, %v3556
      %v3637 = vsel %vm972, %v3541, %v3557
      %v3638 = vsel %vm972, %v3542, %v3558
      %v3639 = vsel %vm972, %v3543, %v3559
      %v3640 = vsel %vm972, %v3544, %v3560
      %v3641 = vsel %vm972, %v3545, %v3561
      %v3642 = vsel %vm972, %v3546, %v3562
      %v3643 = vsel %vm972, %v3579, %v3531
      %v3644 = vsel %vm972, %v3580, %v3532
      %v3645 = vsel %vm972, %v3581, %v3533
      %v3646 = vsel %vm972, %v3582, %v3534
      %v3647 = vsel %vm972, %v3583, %v3535
      %v3648 = vsel %vm972, %v3584, %v3536
      %v3649 = vsel %vm972, %v3585, %v3537
      %v3650 = vsel %vm972, %v3586, %v3538
      %v3651 = vsel %vm972, %v3587, %v3539
      %v3652 = vsel %vm972, %v3588, %v3540
      %v3653 = vsel %vm972, %v3589, %v3541
      %v3654 = vsel %vm972, %v3590, %v3542
      %v3655 = vsel %vm972, %v3591, %v3543
      %v3656 = vsel %vm972, %v3592, %v3544
      %v3657 = vsel %vm972, %v3593, %v3545
      %v3658 = vsel %vm972, %v3594, %v3546
      %v3659 = vpack.c.bf16 %v3611, %v3627
      %v3660 = vpack.c.bf16 %v3643, %v3595
      %v3661 = vpack.c.bf16 %v3612, %v3628
      %v3662 = vpack.c.bf16 %v3644, %v3596
      %v3663 = vpack.c.bf16 %v3613, %v3629
      %v3664 = vpack.c.bf16 %v3645, %v3597
      %v3665 = vpack.c.bf16 %v3614, %v3630
      %v3666 = vpack.c.bf16 %v3646, %v3598
      %v3667 = vpack.c.bf16 %v3615, %v3631
      %v3668 = vpack.c.bf16 %v3647, %v3599
      %v3669 = vpack.c.bf16 %v3616, %v3632
      %v3670 = vpack.c.bf16 %v3648, %v3600
      %v3671 = vpack.c.bf16 %v3617, %v3633
      %v3672 = vpack.c.bf16 %v3649, %v3601
      %v3673 = vpack.c.bf16 %v3618, %v3634
      %v3674 = vpack.c.bf16 %v3650, %v3602
      %v3675 = vpack.c.bf16 %v3619, %v3635
      %v3676 = vpack.c.bf16 %v3651, %v3603
      %v3677 = vpack.c.bf16 %v3620, %v3636
      %v3678 = vpack.c.bf16 %v3652, %v3604
      %v3679 = vpack.c.bf16 %v3621, %v3637
      %v3680 = vpack.c.bf16 %v3653, %v3605
      %v3681 = vpack.c.bf16 %v3622, %v3638
      %v3682 = vpack.c.bf16 %v3654, %v3606
      %v3683 = vpack.c.bf16 %v3623, %v3639
      %v3684 = vpack.c.bf16 %v3655, %v3607
      %v3685 = vpack.c.bf16 %v3624, %v3640
      %v3686 = vpack.c.bf16 %v3656, %v3608
      %v3687 = vpack.c.bf16 %v3625, %v3641
      %v3688 = vpack.c.bf16 %v3657, %v3609
      %v3689 = vpack.c.bf16 %v3626, %v3642
      %v3690 = vpack.c.bf16 %v3658, %v3610
      %s3691 = scalar_lea.vmem %s1, 512
      %v3692 = vld [vmem:[%s3691] sm:$0xf]
      %v3693 = vld [vmem:[%s3691 + $0x4] sm:$0xf]
      %v3694 = vld [vmem:[%s3691 + $0x8] sm:$0xf]
      %v3695 = vld [vmem:[%s3691 + $0xc] sm:$0xf]
      %v3696 = vld [vmem:[%s3691 + $0x10] sm:$0xf]
      %v3697 = vld [vmem:[%s3691 + $0x14] sm:$0xf]
      %v3698 = vld [vmem:[%s3691 + $0x18] sm:$0xf]
      %v3699 = vld [vmem:[%s3691 + $0x1c] sm:$0xf]
      %v3700 = vld [vmem:[%s3691 + $0x20] sm:$0xf]
      %v3701 = vld [vmem:[%s3691 + $0x24] sm:$0xf]
      %v3702 = vld [vmem:[%s3691 + $0x28] sm:$0xf]
      %v3703 = vld [vmem:[%s3691 + $0x2c] sm:$0xf]
      %v3704 = vld [vmem:[%s3691 + $0x30] sm:$0xf]
      %v3705 = vld [vmem:[%s3691 + $0x34] sm:$0xf]
      %v3706 = vld [vmem:[%s3691 + $0x38] sm:$0xf]
      %v3707 = vld [vmem:[%s3691 + $0x3c] sm:$0xf]
      %v3724 = vunpack.c.l.b16 %v3692
      %v3725 = vunpack.c.l.b16 %v3693
      %v3726 = vunpack.c.l.b16 %v3694
      %v3727 = vunpack.c.l.b16 %v3695
      %v3728 = vunpack.c.l.b16 %v3696
      %v3729 = vunpack.c.l.b16 %v3697
      %v3730 = vunpack.c.l.b16 %v3698
      %v3731 = vunpack.c.l.b16 %v3699
      %v3732 = vunpack.c.l.b16 %v3700
      %v3733 = vunpack.c.l.b16 %v3701
      %v3734 = vunpack.c.l.b16 %v3702
      %v3735 = vunpack.c.l.b16 %v3703
      %v3736 = vunpack.c.l.b16 %v3704
      %v3737 = vunpack.c.l.b16 %v3705
      %v3738 = vunpack.c.l.b16 %v3706
      %v3739 = vunpack.c.l.b16 %v3707
      %v3740 = vpack.c.b16 %v3725, %v3724
      %v3741 = vpack.c.b16 %v3727, %v3726
      %v3742 = vpack.c.b16 %v3729, %v3728
      %v3743 = vpack.c.b16 %v3731, %v3730
      %v3744 = vpack.c.b16 %v3733, %v3732
      %v3745 = vpack.c.b16 %v3735, %v3734
      %v3746 = vpack.c.b16 %v3737, %v3736
      %v3747 = vpack.c.b16 %v3739, %v3738
      %3756 = vmatpush.bf16.msra.mxu0 %v3747
      %3757 = vmatpush.bf16.msra.mxu0 %v3746
      %3758 = vmatpush.bf16.msra.mxu0 %v3745
      %3759 = vmatpush.bf16.msra.mxu0 %v3744
      %3760 = vmatpush.bf16.msra.mxu0 %v3743
      %3761 = vmatpush.bf16.msra.mxu0 %v3742
      %3762 = vmatpush.bf16.msra.mxu0 %v3741
      %3763 = vmatpush.bf16.msra.mxu0 %v3740
      %3764 = vmatmul.bf16.gmra.mxu0 %v3659
      %v3765 = vpop.f32.mrf.mxu0
      %v3766 = vadd.f32 0.0, %v3765
      %v3767 = vpop.f32.mrf.mxu0
      %v3768 = vadd.f32 0.0, %v3767
      %3769 = vmatmul.bf16.gmra.mxu0 %v3660
      %v3770 = vpop.f32.mrf.mxu0
      %v3771 = vadd.f32 0.0, %v3770
      %v3772 = vpop.f32.mrf.mxu0
      %v3773 = vadd.f32 0.0, %v3772
      %3774 = vmatmul.bf16.gmra.mxu0 %v3661
      %v3775 = vpop.f32.mrf.mxu0
      %v3776 = vadd.f32 0.0, %v3775
      %v3777 = vpop.f32.mrf.mxu0
      %v3778 = vadd.f32 0.0, %v3777
      %3779 = vmatmul.bf16.gmra.mxu0 %v3662
      %v3780 = vpop.f32.mrf.mxu0
      %v3781 = vadd.f32 0.0, %v3780
      %v3782 = vpop.f32.mrf.mxu0
      %v3783 = vadd.f32 0.0, %v3782
      %3784 = vmatmul.bf16.gmra.mxu0 %v3663
      %v3785 = vpop.f32.mrf.mxu0
      %v3786 = vadd.f32 0.0, %v3785
      %v3787 = vpop.f32.mrf.mxu0
      %v3788 = vadd.f32 0.0, %v3787
      %3789 = vmatmul.bf16.gmra.mxu0 %v3664
      %v3790 = vpop.f32.mrf.mxu0
      %v3791 = vadd.f32 0.0, %v3790
      %v3792 = vpop.f32.mrf.mxu0
      %v3793 = vadd.f32 0.0, %v3792
      %3794 = vmatmul.bf16.gmra.mxu0 %v3665
      %v3795 = vpop.f32.mrf.mxu0
      %v3796 = vadd.f32 0.0, %v3795
      %v3797 = vpop.f32.mrf.mxu0
      %v3798 = vadd.f32 0.0, %v3797
      %3799 = vmatmul.bf16.gmra.mxu0 %v3666
      %v3800 = vpop.f32.mrf.mxu0
      %v3801 = vadd.f32 0.0, %v3800
      %v3802 = vpop.f32.mrf.mxu0
      %v3803 = vadd.f32 0.0, %v3802
      %3804 = vmatmul.bf16.gmra.mxu0 %v3667
      %v3805 = vpop.f32.mrf.mxu0
      %v3806 = vadd.f32 0.0, %v3805
      %v3807 = vpop.f32.mrf.mxu0
      %v3808 = vadd.f32 0.0, %v3807
      %3809 = vmatmul.bf16.gmra.mxu0 %v3668
      %v3810 = vpop.f32.mrf.mxu0
      %v3811 = vadd.f32 0.0, %v3810
      %v3812 = vpop.f32.mrf.mxu0
      %v3813 = vadd.f32 0.0, %v3812
      %3814 = vmatmul.bf16.gmra.mxu0 %v3669
      %v3815 = vpop.f32.mrf.mxu0
      %v3816 = vadd.f32 0.0, %v3815
      %v3817 = vpop.f32.mrf.mxu0
      %v3818 = vadd.f32 0.0, %v3817
      %3819 = vmatmul.bf16.gmra.mxu0 %v3670
      %v3820 = vpop.f32.mrf.mxu0
      %v3821 = vadd.f32 0.0, %v3820
      %v3822 = vpop.f32.mrf.mxu0
      %v3823 = vadd.f32 0.0, %v3822
      %3824 = vmatmul.bf16.gmra.mxu0 %v3671
      %v3825 = vpop.f32.mrf.mxu0
      %v3826 = vadd.f32 0.0, %v3825
      %v3827 = vpop.f32.mrf.mxu0
      %v3828 = vadd.f32 0.0, %v3827
      %3829 = vmatmul.bf16.gmra.mxu0 %v3672
      %v3830 = vpop.f32.mrf.mxu0
      %v3831 = vadd.f32 0.0, %v3830
      %v3832 = vpop.f32.mrf.mxu0
      %v3833 = vadd.f32 0.0, %v3832
      %3834 = vmatmul.bf16.gmra.mxu0 %v3673
      %v3835 = vpop.f32.mrf.mxu0
      %v3836 = vadd.f32 0.0, %v3835
      %v3837 = vpop.f32.mrf.mxu0
      %v3838 = vadd.f32 0.0, %v3837
      %3839 = vmatmul.bf16.gmra.mxu0 %v3674
      %v3840 = vpop.f32.mrf.mxu0
      %v3841 = vadd.f32 0.0, %v3840
      %v3842 = vpop.f32.mrf.mxu0
      %v3843 = vadd.f32 0.0, %v3842
      %3844 = vmatmul.bf16.gmra.mxu0 %v3675
      %v3845 = vpop.f32.mrf.mxu0
      %v3846 = vadd.f32 0.0, %v3845
      %v3847 = vpop.f32.mrf.mxu0
      %v3848 = vadd.f32 0.0, %v3847
      %3849 = vmatmul.bf16.gmra.mxu0 %v3676
      %v3850 = vpop.f32.mrf.mxu0
      %v3851 = vadd.f32 0.0, %v3850
      %v3852 = vpop.f32.mrf.mxu0
      %v3853 = vadd.f32 0.0, %v3852
      %3854 = vmatmul.bf16.gmra.mxu0 %v3677
      %v3855 = vpop.f32.mrf.mxu0
      %v3856 = vadd.f32 0.0, %v3855
      %v3857 = vpop.f32.mrf.mxu0
      %v3858 = vadd.f32 0.0, %v3857
      %3859 = vmatmul.bf16.gmra.mxu0 %v3678
      %v3860 = vpop.f32.mrf.mxu0
      %v3861 = vadd.f32 0.0, %v3860
      %v3862 = vpop.f32.mrf.mxu0
      %v3863 = vadd.f32 0.0, %v3862
      %3864 = vmatmul.bf16.gmra.mxu0 %v3679
      %v3865 = vpop.f32.mrf.mxu0
      %v3866 = vadd.f32 0.0, %v3865
      %v3867 = vpop.f32.mrf.mxu0
      %v3868 = vadd.f32 0.0, %v3867
      %3869 = vmatmul.bf16.gmra.mxu0 %v3680
      %v3870 = vpop.f32.mrf.mxu0
      %v3871 = vadd.f32 0.0, %v3870
      %v3872 = vpop.f32.mrf.mxu0
      %v3873 = vadd.f32 0.0, %v3872
      %3874 = vmatmul.bf16.gmra.mxu0 %v3681
      %v3875 = vpop.f32.mrf.mxu0
      %v3876 = vadd.f32 0.0, %v3875
      %v3877 = vpop.f32.mrf.mxu0
      %v3878 = vadd.f32 0.0, %v3877
      %3879 = vmatmul.bf16.gmra.mxu0 %v3682
      %v3880 = vpop.f32.mrf.mxu0
      %v3881 = vadd.f32 0.0, %v3880
      %v3882 = vpop.f32.mrf.mxu0
      %v3883 = vadd.f32 0.0, %v3882
      %3884 = vmatmul.bf16.gmra.mxu0 %v3683
      %v3885 = vpop.f32.mrf.mxu0
      %v3886 = vadd.f32 0.0, %v3885
      %v3887 = vpop.f32.mrf.mxu0
      %v3888 = vadd.f32 0.0, %v3887
      %3889 = vmatmul.bf16.gmra.mxu0 %v3684
      %v3890 = vpop.f32.mrf.mxu0
      %v3891 = vadd.f32 0.0, %v3890
      %v3892 = vpop.f32.mrf.mxu0
      %v3893 = vadd.f32 0.0, %v3892
      %3894 = vmatmul.bf16.gmra.mxu0 %v3685
      %v3895 = vpop.f32.mrf.mxu0
      %v3896 = vadd.f32 0.0, %v3895
      %v3897 = vpop.f32.mrf.mxu0
      %v3898 = vadd.f32 0.0, %v3897
      %3899 = vmatmul.bf16.gmra.mxu0 %v3686
      %v3900 = vpop.f32.mrf.mxu0
      %v3901 = vadd.f32 0.0, %v3900
      %v3902 = vpop.f32.mrf.mxu0
      %v3903 = vadd.f32 0.0, %v3902
      %3904 = vmatmul.bf16.gmra.mxu0 %v3687
      %v3905 = vpop.f32.mrf.mxu0
      %v3906 = vadd.f32 0.0, %v3905
      %v3907 = vpop.f32.mrf.mxu0
      %v3908 = vadd.f32 0.0, %v3907
      %3909 = vmatmul.bf16.gmra.mxu0 %v3688
      %v3910 = vpop.f32.mrf.mxu0
      %v3911 = vadd.f32 0.0, %v3910
      %v3912 = vpop.f32.mrf.mxu0
      %v3913 = vadd.f32 0.0, %v3912
      %3914 = vmatmul.bf16.gmra.mxu0 %v3689
      %v3915 = vpop.f32.mrf.mxu0
      %v3916 = vadd.f32 0.0, %v3915
      %v3917 = vpop.f32.mrf.mxu0
      %v3918 = vadd.f32 0.0, %v3917
      %3919 = vmatmul.bf16.gmra.mxu0 %v3690
      %v3920 = vpop.f32.mrf.mxu0
      %v3921 = vadd.f32 0.0, %v3920
      %v3922 = vpop.f32.mrf.mxu0
      %v3923 = vadd.f32 0.0, %v3922
      %3924 = vdwg.mxu0
      %v3925 = vadd.f32 %v3467, %v3766
      %v3926 = vadd.f32 %v3468, %v3768
      %v3927 = vadd.f32 %v3469, %v3771
      %v3928 = vadd.f32 %v3470, %v3773
      %v3929 = vadd.f32 %v3471, %v3776
      %v3930 = vadd.f32 %v3472, %v3778
      %v3931 = vadd.f32 %v3473, %v3781
      %v3932 = vadd.f32 %v3474, %v3783
      %v3933 = vadd.f32 %v3475, %v3786
      %v3934 = vadd.f32 %v3476, %v3788
      %v3935 = vadd.f32 %v3477, %v3791
      %v3936 = vadd.f32 %v3478, %v3793
      %v3937 = vadd.f32 %v3479, %v3796
      %v3938 = vadd.f32 %v3480, %v3798
      %v3939 = vadd.f32 %v3481, %v3801
      %v3940 = vadd.f32 %v3482, %v3803
      %v3941 = vadd.f32 %v3483, %v3806
      %v3942 = vadd.f32 %v3484, %v3808
      %v3943 = vadd.f32 %v3485, %v3811
      %v3944 = vadd.f32 %v3486, %v3813
      %v3945 = vadd.f32 %v3487, %v3816
      %v3946 = vadd.f32 %v3488, %v3818
      %v3947 = vadd.f32 %v3489, %v3821
      %v3948 = vadd.f32 %v3490, %v3823
      %v3949 = vadd.f32 %v3491, %v3826
      %v3950 = vadd.f32 %v3492, %v3828
      %v3951 = vadd.f32 %v3493, %v3831
      %v3952 = vadd.f32 %v3494, %v3833
      %v3953 = vadd.f32 %v3495, %v3836
      %v3954 = vadd.f32 %v3496, %v3838
      %v3955 = vadd.f32 %v3497, %v3841
      %v3956 = vadd.f32 %v3498, %v3843
      %v3957 = vadd.f32 %v3499, %v3846
      %v3958 = vadd.f32 %v3500, %v3848
      %v3959 = vadd.f32 %v3501, %v3851
      %v3960 = vadd.f32 %v3502, %v3853
      %v3961 = vadd.f32 %v3503, %v3856
      %v3962 = vadd.f32 %v3504, %v3858
      %v3963 = vadd.f32 %v3505, %v3861
      %v3964 = vadd.f32 %v3506, %v3863
      %v3965 = vadd.f32 %v3507, %v3866
      %v3966 = vadd.f32 %v3508, %v3868
      %v3967 = vadd.f32 %v3509, %v3871
      %v3968 = vadd.f32 %v3510, %v3873
      %v3969 = vadd.f32 %v3511, %v3876
      %v3970 = vadd.f32 %v3512, %v3878
      %v3971 = vadd.f32 %v3513, %v3881
      %v3972 = vadd.f32 %v3514, %v3883
      %v3973 = vadd.f32 %v3515, %v3886
      %v3974 = vadd.f32 %v3516, %v3888
      %v3975 = vadd.f32 %v3517, %v3891
      %v3976 = vadd.f32 %v3518, %v3893
      %v3977 = vadd.f32 %v3519, %v3896
      %v3978 = vadd.f32 %v3520, %v3898
      %v3979 = vadd.f32 %v3521, %v3901
      %v3980 = vadd.f32 %v3522, %v3903
      %v3981 = vadd.f32 %v3523, %v3906
      %v3982 = vadd.f32 %v3524, %v3908
      %v3983 = vadd.f32 %v3525, %v3911
      %v3984 = vadd.f32 %v3526, %v3913
      %v3985 = vadd.f32 %v3527, %v3916
      %v3986 = vadd.f32 %v3528, %v3918
      %v3987 = vadd.f32 %v3529, %v3921
      %v3988 = vadd.f32 %v3530, %v3923
      %v3989 = vadd.s32 %v311, 8
      %v3990 = vadd.s32 %v311, 16
      %v3991 = vadd.s32 %v311, 24
      %vm3992 = vcmp.ge.s32.totalorder %v311, 1
      %vm3993 = vcmp.ge.s32.totalorder %v3989, 1
      %vm3994 = vcmp.ge.s32.totalorder %v3990, 1
      %vm3995 = vcmp.ge.s32.totalorder %v3991, 1
      %vm3996 = vcmp.le.s32.totalorder %v311, 16
      %vm3997 = vcmp.le.s32.totalorder %v3989, 16
      %vm3998 = vcmp.le.s32.totalorder %v3990, 16
      %vm3999 = vcmp.le.s32.totalorder %v3991, 16
      %vm4000 = vmand %vm3992, %vm3996
      %vm4001 = vmand %vm3993, %vm3997
      %vm4002 = vmand %vm3994, %vm3998
      %vm4003 = vmand %vm3995, %vm3999
      %v4004 = vsel %vm4000, %v3925, 0.0
      %v4005 = vsel %vm4001, %v3926, 0.0
      %v4006 = vsel %vm4002, %v3927, 0.0
      %v4007 = vsel %vm4003, %v3928, 0.0
      %v4008 = vsel %vm4000, %v3929, 0.0
      %v4009 = vsel %vm4001, %v3930, 0.0
      %v4010 = vsel %vm4002, %v3931, 0.0
      %v4011 = vsel %vm4003, %v3932, 0.0
      %v4012 = vsel %vm4000, %v3933, 0.0
      %v4013 = vsel %vm4001, %v3934, 0.0
      %v4014 = vsel %vm4002, %v3935, 0.0
      %v4015 = vsel %vm4003, %v3936, 0.0
      %v4016 = vsel %vm4000, %v3937, 0.0
      %v4017 = vsel %vm4001, %v3938, 0.0
      %v4018 = vsel %vm4002, %v3939, 0.0
      %v4019 = vsel %vm4003, %v3940, 0.0
      %v4020 = vsel %vm4000, %v3941, 0.0
      %v4021 = vsel %vm4001, %v3942, 0.0
      %v4022 = vsel %vm4002, %v3943, 0.0
      %v4023 = vsel %vm4003, %v3944, 0.0
      %v4024 = vsel %vm4000, %v3945, 0.0
      %v4025 = vsel %vm4001, %v3946, 0.0
      %v4026 = vsel %vm4002, %v3947, 0.0
      %v4027 = vsel %vm4003, %v3948, 0.0
      %v4028 = vsel %vm4000, %v3949, 0.0
      %v4029 = vsel %vm4001, %v3950, 0.0
      %v4030 = vsel %vm4002, %v3951, 0.0
      %v4031 = vsel %vm4003, %v3952, 0.0
      %v4032 = vsel %vm4000, %v3953, 0.0
      %v4033 = vsel %vm4001, %v3954, 0.0
      %v4034 = vsel %vm4002, %v3955, 0.0
      %v4035 = vsel %vm4003, %v3956, 0.0
      %v4036 = vsel %vm4000, %v3957, 0.0
      %v4037 = vsel %vm4001, %v3958, 0.0
      %v4038 = vsel %vm4002, %v3959, 0.0
      %v4039 = vsel %vm4003, %v3960, 0.0
      %v4040 = vsel %vm4000, %v3961, 0.0
      %v4041 = vsel %vm4001, %v3962, 0.0
      %v4042 = vsel %vm4002, %v3963, 0.0
      %v4043 = vsel %vm4003, %v3964, 0.0
      %v4044 = vsel %vm4000, %v3965, 0.0
      %v4045 = vsel %vm4001, %v3966, 0.0
      %v4046 = vsel %vm4002, %v3967, 0.0
      %v4047 = vsel %vm4003, %v3968, 0.0
      %v4048 = vsel %vm4000, %v3969, 0.0
      %v4049 = vsel %vm4001, %v3970, 0.0
      %v4050 = vsel %vm4002, %v3971, 0.0
      %v4051 = vsel %vm4003, %v3972, 0.0
      %v4052 = vsel %vm4000, %v3973, 0.0
      %v4053 = vsel %vm4001, %v3974, 0.0
      %v4054 = vsel %vm4002, %v3975, 0.0
      %v4055 = vsel %vm4003, %v3976, 0.0
      %v4056 = vsel %vm4000, %v3977, 0.0
      %v4057 = vsel %vm4001, %v3978, 0.0
      %v4058 = vsel %vm4002, %v3979, 0.0
      %v4059 = vsel %vm4003, %v3980, 0.0
      %v4060 = vsel %vm4000, %v3981, 0.0
      %v4061 = vsel %vm4001, %v3982, 0.0
      %v4062 = vsel %vm4002, %v3983, 0.0
      %v4063 = vsel %vm4003, %v3984, 0.0
      %v4064 = vsel %vm4000, %v3985, 0.0
      %v4065 = vsel %vm4001, %v3986, 0.0
      %v4066 = vsel %vm4002, %v3987, 0.0
      %v4067 = vsel %vm4003, %v3988, 0.0
      %v4068 = vadd.f32 %v4004, %v4005
      %v4069 = vadd.f32 %v4068, %v4006
      %v4070 = vadd.f32 %v4069, %v4007
      %v4071 = vadd.f32 %v4070, %v4008
      %v4072 = vadd.f32 %v4071, %v4009
      %v4073 = vadd.f32 %v4072, %v4010
      %v4074 = vadd.f32 %v4073, %v4011
      %v4075 = vadd.f32 %v4074, %v4012
      %v4076 = vadd.f32 %v4075, %v4013
      %v4077 = vadd.f32 %v4076, %v4014
      %v4078 = vadd.f32 %v4077, %v4015
      %v4079 = vadd.f32 %v4078, %v4016
      %v4080 = vadd.f32 %v4079, %v4017
      %v4081 = vadd.f32 %v4080, %v4018
      %v4082 = vadd.f32 %v4081, %v4019
      %v4083 = vadd.f32 %v4082, %v4020
      %v4084 = vadd.f32 %v4083, %v4021
      %v4085 = vadd.f32 %v4084, %v4022
      %v4086 = vadd.f32 %v4085, %v4023
      %v4087 = vadd.f32 %v4086, %v4024
      %v4088 = vadd.f32 %v4087, %v4025
      %v4089 = vadd.f32 %v4088, %v4026
      %v4090 = vadd.f32 %v4089, %v4027
      %v4091 = vadd.f32 %v4090, %v4028
      %v4092 = vadd.f32 %v4091, %v4029
      %v4093 = vadd.f32 %v4092, %v4030
      %v4094 = vadd.f32 %v4093, %v4031
      %v4095 = vadd.f32 %v4094, %v4032
      %v4096 = vadd.f32 %v4095, %v4033
      %v4097 = vadd.f32 %v4096, %v4034
      %v4098 = vadd.f32 %v4097, %v4035
      %v4099 = vadd.f32 %v4098, %v4036
      %v4100 = vadd.f32 %v4099, %v4037
      %v4101 = vadd.f32 %v4100, %v4038
      %v4102 = vadd.f32 %v4101, %v4039
      %v4103 = vadd.f32 %v4102, %v4040
      %v4104 = vadd.f32 %v4103, %v4041
      %v4105 = vadd.f32 %v4104, %v4042
      %v4106 = vadd.f32 %v4105, %v4043
      %v4107 = vadd.f32 %v4106, %v4044
      %v4108 = vadd.f32 %v4107, %v4045
      %v4109 = vadd.f32 %v4108, %v4046
      %v4110 = vadd.f32 %v4109, %v4047
      %v4111 = vadd.f32 %v4110, %v4048
      %v4112 = vadd.f32 %v4111, %v4049
      %v4113 = vadd.f32 %v4112, %v4050
      %v4114 = vadd.f32 %v4113, %v4051
      %v4115 = vadd.f32 %v4114, %v4052
      %v4116 = vadd.f32 %v4115, %v4053
      %v4117 = vadd.f32 %v4116, %v4054
      %v4118 = vadd.f32 %v4117, %v4055
      %v4119 = vadd.f32 %v4118, %v4056
      %v4120 = vadd.f32 %v4119, %v4057
      %v4121 = vadd.f32 %v4120, %v4058
      %v4122 = vadd.f32 %v4121, %v4059
      %v4123 = vadd.f32 %v4122, %v4060
      %v4124 = vadd.f32 %v4123, %v4061
      %v4125 = vadd.f32 %v4124, %v4062
      %v4126 = vadd.f32 %v4125, %v4063
      %v4127 = vadd.f32 %v4126, %v4064
      %v4128 = vadd.f32 %v4127, %v4065
      %v4129 = vadd.f32 %v4128, %v4066
      %v4130 = vadd.f32 %v4129, %v4067
      %v4131 = vrot.slane %v4130, 4
      %v4132 = vadd.f32 %v4130, %v4131
      %v4133 = vrot.slane %v4132, 2
      %v4134 = vadd.f32 %v4132, %v4133
      %v4135 = vrot.slane %v4134, 1
      %v4136 = vadd.f32 %v4134, %v4135
      %v4137 = vmul.f32 %v4004, %v4004
      %v4138 = vmul.f32 %v4005, %v4005
      %v4139 = vmul.f32 %v4006, %v4006
      %v4140 = vmul.f32 %v4007, %v4007
      %v4141 = vmul.f32 %v4008, %v4008
      %v4142 = vmul.f32 %v4009, %v4009
      %v4143 = vmul.f32 %v4010, %v4010
      %v4144 = vmul.f32 %v4011, %v4011
      %v4145 = vmul.f32 %v4012, %v4012
      %v4146 = vmul.f32 %v4013, %v4013
      %v4147 = vmul.f32 %v4014, %v4014
      %v4148 = vmul.f32 %v4015, %v4015
      %v4149 = vmul.f32 %v4016, %v4016
      %v4150 = vmul.f32 %v4017, %v4017
      %v4151 = vmul.f32 %v4018, %v4018
      %v4152 = vmul.f32 %v4019, %v4019
      %v4153 = vmul.f32 %v4020, %v4020
      %v4154 = vmul.f32 %v4021, %v4021
      %v4155 = vmul.f32 %v4022, %v4022
      %v4156 = vmul.f32 %v4023, %v4023
      %v4157 = vmul.f32 %v4024, %v4024
      %v4158 = vmul.f32 %v4025, %v4025
      %v4159 = vmul.f32 %v4026, %v4026
      %v4160 = vmul.f32 %v4027, %v4027
      %v4161 = vmul.f32 %v4028, %v4028
      %v4162 = vmul.f32 %v4029, %v4029
      %v4163 = vmul.f32 %v4030, %v4030
      %v4164 = vmul.f32 %v4031, %v4031
      %v4165 = vmul.f32 %v4032, %v4032
      %v4166 = vmul.f32 %v4033, %v4033
      %v4167 = vmul.f32 %v4034, %v4034
      %v4168 = vmul.f32 %v4035, %v4035
      %v4169 = vmul.f32 %v4036, %v4036
      %v4170 = vmul.f32 %v4037, %v4037
      %v4171 = vmul.f32 %v4038, %v4038
      %v4172 = vmul.f32 %v4039, %v4039
      %v4173 = vmul.f32 %v4040, %v4040
      %v4174 = vmul.f32 %v4041, %v4041
      %v4175 = vmul.f32 %v4042, %v4042
      %v4176 = vmul.f32 %v4043, %v4043
      %v4177 = vmul.f32 %v4044, %v4044
      %v4178 = vmul.f32 %v4045, %v4045
      %v4179 = vmul.f32 %v4046, %v4046
      %v4180 = vmul.f32 %v4047, %v4047
      %v4181 = vmul.f32 %v4048, %v4048
      %v4182 = vmul.f32 %v4049, %v4049
      %v4183 = vmul.f32 %v4050, %v4050
      %v4184 = vmul.f32 %v4051, %v4051
      %v4185 = vmul.f32 %v4052, %v4052
      %v4186 = vmul.f32 %v4053, %v4053
      %v4187 = vmul.f32 %v4054, %v4054
      %v4188 = vmul.f32 %v4055, %v4055
      %v4189 = vmul.f32 %v4056, %v4056
      %v4190 = vmul.f32 %v4057, %v4057
      %v4191 = vmul.f32 %v4058, %v4058
      %v4192 = vmul.f32 %v4059, %v4059
      %v4193 = vmul.f32 %v4060, %v4060
      %v4194 = vmul.f32 %v4061, %v4061
      %v4195 = vmul.f32 %v4062, %v4062
      %v4196 = vmul.f32 %v4063, %v4063
      %v4197 = vmul.f32 %v4064, %v4064
      %v4198 = vmul.f32 %v4065, %v4065
      %v4199 = vmul.f32 %v4066, %v4066
      %v4200 = vmul.f32 %v4067, %v4067
      %v4201 = vadd.f32 %v4137, %v4138
      %v4202 = vadd.f32 %v4201, %v4139
      %v4203 = vadd.f32 %v4202, %v4140
      %v4204 = vadd.f32 %v4203, %v4141
      %v4205 = vadd.f32 %v4204, %v4142
      %v4206 = vadd.f32 %v4205, %v4143
      %v4207 = vadd.f32 %v4206, %v4144
      %v4208 = vadd.f32 %v4207, %v4145
      %v4209 = vadd.f32 %v4208, %v4146
      %v4210 = vadd.f32 %v4209, %v4147
      %v4211 = vadd.f32 %v4210, %v4148
      %v4212 = vadd.f32 %v4211, %v4149
      %v4213 = vadd.f32 %v4212, %v4150
      %v4214 = vadd.f32 %v4213, %v4151
      %v4215 = vadd.f32 %v4214, %v4152
      %v4216 = vadd.f32 %v4215, %v4153
      %v4217 = vadd.f32 %v4216, %v4154
      %v4218 = vadd.f32 %v4217, %v4155
      %v4219 = vadd.f32 %v4218, %v4156
      %v4220 = vadd.f32 %v4219, %v4157
      %v4221 = vadd.f32 %v4220, %v4158
      %v4222 = vadd.f32 %v4221, %v4159
      %v4223 = vadd.f32 %v4222, %v4160
      %v4224 = vadd.f32 %v4223, %v4161
      %v4225 = vadd.f32 %v4224, %v4162
      %v4226 = vadd.f32 %v4225, %v4163
      %v4227 = vadd.f32 %v4226, %v4164
      %v4228 = vadd.f32 %v4227, %v4165
      %v4229 = vadd.f32 %v4228, %v4166
      %v4230 = vadd.f32 %v4229, %v4167
      %v4231 = vadd.f32 %v4230, %v4168
      %v4232 = vadd.f32 %v4231, %v4169
      %v4233 = vadd.f32 %v4232, %v4170
      %v4234 = vadd.f32 %v4233, %v4171
      %v4235 = vadd.f32 %v4234, %v4172
      %v4236 = vadd.f32 %v4235, %v4173
      %v4237 = vadd.f32 %v4236, %v4174
      %v4238 = vadd.f32 %v4237, %v4175
      %v4239 = vadd.f32 %v4238, %v4176
      %v4240 = vadd.f32 %v4239, %v4177
      %v4241 = vadd.f32 %v4240, %v4178
      %v4242 = vadd.f32 %v4241, %v4179
      %v4243 = vadd.f32 %v4242, %v4180
      %v4244 = vadd.f32 %v4243, %v4181
      %v4245 = vadd.f32 %v4244, %v4182
      %v4246 = vadd.f32 %v4245, %v4183
      %v4247 = vadd.f32 %v4246, %v4184
      %v4248 = vadd.f32 %v4247, %v4185
      %v4249 = vadd.f32 %v4248, %v4186
      %v4250 = vadd.f32 %v4249, %v4187
      %v4251 = vadd.f32 %v4250, %v4188
      %v4252 = vadd.f32 %v4251, %v4189
      %v4253 = vadd.f32 %v4252, %v4190
      %v4254 = vadd.f32 %v4253, %v4191
      %v4255 = vadd.f32 %v4254, %v4192
      %v4256 = vadd.f32 %v4255, %v4193
      %v4257 = vadd.f32 %v4256, %v4194
      %v4258 = vadd.f32 %v4257, %v4195
      %v4259 = vadd.f32 %v4258, %v4196
      %v4260 = vadd.f32 %v4259, %v4197
      %v4261 = vadd.f32 %v4260, %v4198
      %v4262 = vadd.f32 %v4261, %v4199
      %v4263 = vadd.f32 %v4262, %v4200
      %v4264 = vrot.slane %v4263, 4
      %v4265 = vadd.f32 %v4263, %v4264
      %v4266 = vrot.slane %v4265, 2
      %v4267 = vadd.f32 %v4265, %v4266
      %v4268 = vrot.slane %v4267, 1
      %v4269 = vadd.f32 %v4267, %v4268
      %vm4270 = vcmask 1040384
      %v4271 = vsel %vm4270, %v4136, %v4269
      %4272 = vst [vmem:[%s181] sm:$0x3] %v4271
      %v4273 = vpack.c.bf16 %v3925, %v3925
      %v4274 = vpack.c.bf16 %v3926, %v3926
      %v4275 = vpack.c.bf16 %v3927, %v3927
      %v4276 = vpack.c.bf16 %v3928, %v3928
      %v4277 = vpack.c.bf16 %v3929, %v3929
      %v4278 = vpack.c.bf16 %v3930, %v3930
      %v4279 = vpack.c.bf16 %v3931, %v3931
      %v4280 = vpack.c.bf16 %v3932, %v3932
      %v4281 = vpack.c.bf16 %v3933, %v3933
      %v4282 = vpack.c.bf16 %v3934, %v3934
      %v4283 = vpack.c.bf16 %v3935, %v3935
      %v4284 = vpack.c.bf16 %v3936, %v3936
      %v4285 = vpack.c.bf16 %v3937, %v3937
      %v4286 = vpack.c.bf16 %v3938, %v3938
      %v4287 = vpack.c.bf16 %v3939, %v3939
      %v4288 = vpack.c.bf16 %v3940, %v3940
      %v4289 = vpack.c.bf16 %v3941, %v3941
      %v4290 = vpack.c.bf16 %v3942, %v3942
      %v4291 = vpack.c.bf16 %v3943, %v3943
      %v4292 = vpack.c.bf16 %v3944, %v3944
      %v4293 = vpack.c.bf16 %v3945, %v3945
      %v4294 = vpack.c.bf16 %v3946, %v3946
      %v4295 = vpack.c.bf16 %v3947, %v3947
      %v4296 = vpack.c.bf16 %v3948, %v3948
      %v4297 = vpack.c.bf16 %v3949, %v3949
      %v4298 = vpack.c.bf16 %v3950, %v3950
      %v4299 = vpack.c.bf16 %v3951, %v3951
      %v4300 = vpack.c.bf16 %v3952, %v3952
      %v4301 = vpack.c.bf16 %v3953, %v3953
      %v4302 = vpack.c.bf16 %v3954, %v3954
      %v4303 = vpack.c.bf16 %v3955, %v3955
      %v4304 = vpack.c.bf16 %v3956, %v3956
      %v4305 = vpack.c.bf16 %v3957, %v3957
      %v4306 = vpack.c.bf16 %v3958, %v3958
      %v4307 = vpack.c.bf16 %v3959, %v3959
      %v4308 = vpack.c.bf16 %v3960, %v3960
      %v4309 = vpack.c.bf16 %v3961, %v3961
      %v4310 = vpack.c.bf16 %v3962, %v3962
      %v4311 = vpack.c.bf16 %v3963, %v3963
      %v4312 = vpack.c.bf16 %v3964, %v3964
      %v4313 = vpack.c.bf16 %v3965, %v3965
      %v4314 = vpack.c.bf16 %v3966, %v3966
      %v4315 = vpack.c.bf16 %v3967, %v3967
      %v4316 = vpack.c.bf16 %v3968, %v3968
      %v4317 = vpack.c.bf16 %v3969, %v3969
      %v4318 = vpack.c.bf16 %v3970, %v3970
      %v4319 = vpack.c.bf16 %v3971, %v3971
      %v4320 = vpack.c.bf16 %v3972, %v3972
      %v4321 = vpack.c.bf16 %v3973, %v3973
      %v4322 = vpack.c.bf16 %v3974, %v3974
      %v4323 = vpack.c.bf16 %v3975, %v3975
      %v4324 = vpack.c.bf16 %v3976, %v3976
      %v4325 = vpack.c.bf16 %v3977, %v3977
      %v4326 = vpack.c.bf16 %v3978, %v3978
      %v4327 = vpack.c.bf16 %v3979, %v3979
      %v4328 = vpack.c.bf16 %v3980, %v3980
      %v4329 = vpack.c.bf16 %v3981, %v3981
      %v4330 = vpack.c.bf16 %v3982, %v3982
      %v4331 = vpack.c.bf16 %v3983, %v3983
      %v4332 = vpack.c.bf16 %v3984, %v3984
      %v4333 = vpack.c.bf16 %v3985, %v3985
      %v4334 = vpack.c.bf16 %v3986, %v3986
      %v4335 = vpack.c.bf16 %v3987, %v3987
      %v4336 = vpack.c.bf16 %v3988, %v3988
      %4337 = vst [vmem:[%s177] sm:$0xf] %v4273
      %4338 = vst [vmem:[%s177 + $0x4] sm:$0xf] %v4274
      %4339 = vst [vmem:[%s177 + $0x8] sm:$0xf] %v4275
      %4340 = vst [vmem:[%s177 + $0xc] sm:$0xf] %v4276
      %4341 = vst [vmem:[%s177 + $0x10] sm:$0xf] %v4277
      %4342 = vst [vmem:[%s177 + $0x14] sm:$0xf] %v4278
      %4343 = vst [vmem:[%s177 + $0x18] sm:$0xf] %v4279
      %4344 = vst [vmem:[%s177 + $0x1c] sm:$0xf] %v4280
      %4345 = vst [vmem:[%s177 + $0x20] sm:$0xf] %v4281
      %4346 = vst [vmem:[%s177 + $0x24] sm:$0xf] %v4282
      %4347 = vst [vmem:[%s177 + $0x28] sm:$0xf] %v4283
      %4348 = vst [vmem:[%s177 + $0x2c] sm:$0xf] %v4284
      %4349 = vst [vmem:[%s177 + $0x30] sm:$0xf] %v4285
      %4350 = vst [vmem:[%s177 + $0x34] sm:$0xf] %v4286
      %4351 = vst [vmem:[%s177 + $0x38] sm:$0xf] %v4287
      %4352 = vst [vmem:[%s177 + $0x3c] sm:$0xf] %v4288
      %4353 = vst [vmem:[%s177 + $0x40] sm:$0xf] %v4289
      %4354 = vst [vmem:[%s177 + $0x44] sm:$0xf] %v4290
      %4355 = vst [vmem:[%s177 + $0x48] sm:$0xf] %v4291
      %4356 = vst [vmem:[%s177 + $0x4c] sm:$0xf] %v4292
      %4357 = vst [vmem:[%s177 + $0x50] sm:$0xf] %v4293
      %4358 = vst [vmem:[%s177 + $0x54] sm:$0xf] %v4294
      %4359 = vst [vmem:[%s177 + $0x58] sm:$0xf] %v4295
      %4360 = vst [vmem:[%s177 + $0x5c] sm:$0xf] %v4296
      %4361 = vst [vmem:[%s177 + $0x60] sm:$0xf] %v4297
      %4362 = vst [vmem:[%s177 + $0x64] sm:$0xf] %v4298
      %4363 = vst [vmem:[%s177 + $0x68] sm:$0xf] %v4299
      %4364 = vst [vmem:[%s177 + $0x6c] sm:$0xf] %v4300
      %4365 = vst [vmem:[%s177 + $0x70] sm:$0xf] %v4301
      %4366 = vst [vmem:[%s177 + $0x74] sm:$0xf] %v4302
      %4367 = vst [vmem:[%s177 + $0x78] sm:$0xf] %v4303
      %4368 = vst [vmem:[%s177 + $0x7c] sm:$0xf] %v4304
      %4369 = vst [vmem:[%s177 + $0x80] sm:$0xf] %v4305
      %4370 = vst [vmem:[%s177 + $0x84] sm:$0xf] %v4306
      %4371 = vst [vmem:[%s177 + $0x88] sm:$0xf] %v4307
      %4372 = vst [vmem:[%s177 + $0x8c] sm:$0xf] %v4308
      %4373 = vst [vmem:[%s177 + $0x90] sm:$0xf] %v4309
      %4374 = vst [vmem:[%s177 + $0x94] sm:$0xf] %v4310
      %4375 = vst [vmem:[%s177 + $0x98] sm:$0xf] %v4311
      %4376 = vst [vmem:[%s177 + $0x9c] sm:$0xf] %v4312
      %4377 = vst [vmem:[%s177 + $0xa0] sm:$0xf] %v4313
      %4378 = vst [vmem:[%s177 + $0xa4] sm:$0xf] %v4314
      %4379 = vst [vmem:[%s177 + $0xa8] sm:$0xf] %v4315
      %4380 = vst [vmem:[%s177 + $0xac] sm:$0xf] %v4316
      %4381 = vst [vmem:[%s177 + $0xb0] sm:$0xf] %v4317
      %4382 = vst [vmem:[%s177 + $0xb4] sm:$0xf] %v4318
      %4383 = vst [vmem:[%s177 + $0xb8] sm:$0xf] %v4319
      %4384 = vst [vmem:[%s177 + $0xbc] sm:$0xf] %v4320
      %4385 = vst [vmem:[%s177 + $0xc0] sm:$0xf] %v4321
      %4386 = vst [vmem:[%s177 + $0xc4] sm:$0xf] %v4322
      %4387 = vst [vmem:[%s177 + $0xc8] sm:$0xf] %v4323
      %4388 = vst [vmem:[%s177 + $0xcc] sm:$0xf] %v4324
      %4389 = vst [vmem:[%s177 + $0xd0] sm:$0xf] %v4325
      %4390 = vst [vmem:[%s177 + $0xd4] sm:$0xf] %v4326
      %4391 = vst [vmem:[%s177 + $0xd8] sm:$0xf] %v4327
      %4392 = vst [vmem:[%s177 + $0xdc] sm:$0xf] %v4328
      %4393 = vst [vmem:[%s177 + $0xe0] sm:$0xf] %v4329
      %4394 = vst [vmem:[%s177 + $0xe4] sm:$0xf] %v4330
      %4395 = vst [vmem:[%s177 + $0xe8] sm:$0xf] %v4331
      %4396 = vst [vmem:[%s177 + $0xec] sm:$0xf] %v4332
      %4397 = vst [vmem:[%s177 + $0xf0] sm:$0xf] %v4333
      %4398 = vst [vmem:[%s177 + $0xf4] sm:$0xf] %v4334
      %4399 = vst [vmem:[%s177 + $0xf8] sm:$0xf] %v4335
      %4400 = vst [vmem:[%s177 + $0xfc] sm:$0xf] %v4336
      %p4401 = scmp.lt.s32.totalorder %s15, 1
      %s4402 = scalar_select %p4401, %s15, 1
      %s4403 = smul.addr %s4402, 64
      %s4404 = smul.addr %s4403, 4
      %s4405 = scalar_lea.vmem %s2, %s4404
      %p4406 = scmp.lt.s32.totalorder %s15, 1
      %s4407 = scalar_select %p4406, %s15, 1
      %s4408 = smul.addr %s4407, 2
      %s4409 = scalar_lea.vmem %s3, %s4408
      // Predicated region
      $region29: #{double_conv_forward.3} parent=27 // pred_check
        %p4410 = pneg %p80
      $region30: #{double_conv_forward.3} parent=27 // pred_check_branch
        %4412 = sbr.rel (%p4410) target = $region32
      $region31: #{double_conv_forward.3} parent=27 // pred_region
        _
      $region32: #{double_conv_forward.3} parent=27 // pred_fallthru
        _
      // Predicated region
      $region33: #{double_conv_forward.3} parent=27 // pred_check
        %p4413 = pneg %p106
      $region34: #{double_conv_forward.3} parent=27 // pred_check_branch
        %4415 = sbr.rel (%p4413) target = $region36
      $region35: #{double_conv_forward.3} parent=27 // pred_region
        _
      $region36: #{double_conv_forward.3} parent=27 // pred_fallthru
        _
    $region28: #{double_conv_forward.3} parent=5 // pred_fallthru
      _
    %p4416 = scmp.le.s32.totalorder 2, %s10
    // Predicated region
    $region37: #{double_conv_forward.3} parent=5 // pred_check
      %p4417 = pneg %p4416
    $region38: #{double_conv_forward.3} parent=5 // pred_check_branch
      %4419 = sbr.rel (%p4417) target = $region40
    $region39: #{double_conv_forward.3} parent=5 // pred_region
      %s4420 = ssub.s32 %s10, 2
      // Predicated region
      $region41: #{double_conv_forward.3} parent=39 // pred_check
        %p4421 = pneg %p86
      $region42: #{double_conv_forward.3} parent=39 // pred_check_branch
        %4423 = sbr.rel (%p4421) target = $region44
      $region43: #{double_conv_forward.3} parent=39 // pred_region
        %p4424 = scmp.lt.s32.totalorder %s16, 1
        %s4425 = scalar_select %p4424, %s16, 1
        %s4426 = smul.addr %s4425, 64
        %s4427 = smul.addr %s4426, 4
        %s4428 = scalar_lea.vmem %s2, %s4427
      $region44: #{double_conv_forward.3} parent=39 // pred_fallthru
        _
      // Predicated region
      $region45: #{double_conv_forward.3} parent=39 // pred_check
        %p4429 = pneg %p112
      $region46: #{double_conv_forward.3} parent=39 // pred_check_branch
        %4431 = sbr.rel (%p4429) target = $region48
      $region47: #{double_conv_forward.3} parent=39 // pred_region
        %p4432 = scmp.lt.s32.totalorder %s16, 1
        %s4433 = scalar_select %p4432, %s16, 1
        %s4434 = smul.addr %s4433, 2
        %s4435 = scalar_lea.vmem %s3, %s4434
      $region48: #{double_conv_forward.3} parent=39 // pred_fallthru
        _
    $region40: #{double_conv_forward.3} parent=5 // pred_fallthru
      _
  $region6: #{double_conv_forward.3} parent=0 // loop_footer
    %s14 = sadd.s32 1, %s10
  $region7: #{double_conv_forward.3} parent=0 // loop_footer_branch
    %9 = sbr.rel target = $region3
  $region8: #{double_conv_forward.3} parent=0 // loop_exit
    _

// kernel: double_conv_forward.4
$region0: #{double_conv_forward.4}
  #allocation0 [shape = 'u32[]', space=smem, size = 0x4, offset = 0x4, fixed_abs, tag = 'smem constant byte address 0x4 - core index']
  #allocation1 [shape = 'u32[72,128]{1,0:T(1,128)}', space=vmem, size = 0x9000, scoped, tag = 'internal scratch']
  #allocation2 [shape = 'f32[18,32,128]{2,1,0:T(8,128)}', space=vmem, size = 0x48000, scoped, tag = 'scratch operand']
  %s0 = inlined_call_operand.vmem [shape: bf16[2,16,32,128], index: 0, kind: input, shape index: {}]
  %s1 = inlined_call_operand.vmem [shape: f32[1,128], index: 1, kind: input, shape index: {}]
  %s2 = inlined_call_operand.vmem [shape: f32[1,128], index: 2, kind: input, shape index: {}]
  %s3 = inlined_call_operand.vmem [shape: bf16[9,128,128], index: 3, kind: input, shape index: {}]
  %s4 = inlined_call_operand.vmem [shape: bf16[2,16,32,128], index: 4, kind: output, shape index: {0}]
  %s5 = inlined_call_operand.vmem [shape: f32[2,2,128], index: 5, kind: output, shape index: {1}]
  %6 = xla_tuple %s4, %s5
  %s7 = sld [smem:[#allocation0]]
  $region57: #{double_conv_forward.4} parent=0
    _
  %s9 = ssub.s32 1, %s7
  %s10 = scalar_select 0, %s9, %s7
  loop: start=0, step=1, limit=4
  $region2: #{double_conv_forward.4} parent=0 // loop_pre_header
    _
  $region3: #{double_conv_forward.4} parent=0 // loop_header
    %s12 = sphi 0, %s16
    %p13 = scmp.ge.s32.totalorder %s12, 4
    %s22 = sphi 0, %s24
    %s25 = sphi 0, %s22
    %s26 = sphi 0, %s25
    %s42 = sphi 0, %s26
    %s46 = sphi 0, %s46
    %s48 = sphi 0, %s46
    %s49 = sphi 0, %s48
    %s63 = sphi 0, %s49
    %s67 = sphi 0, %s67
    %s69 = sphi 0, %s67
    %s70 = sphi 0, %s69
    %s84 = sphi 0, %s70
    %s88 = sphi 0, %s88
    %s90 = sphi 0, %s88
    %s91 = sphi 0, %s90
    %s105 = sphi 0, %s91
    %s111 = sphi 0, %s113
    %s114 = sphi 0, %s111
    %s115 = sphi 0, %s114
    %s131 = sphi 0, %s115
    %s137 = sphi 0, %s139
    %s140 = sphi 0, %s137
    %s141 = sphi 0, %s140
    %s157 = sphi 0, %s141
  $region4: #{double_conv_forward.4} parent=0 // loop_header_branch
    %15 = sbr.rel (%p13) target = $region8
  $region5: #{double_conv_forward.4} parent=0 // loop_body
    %s17 = ssub.s32 %s12, 1
    %s18 = ssub.s32 %s12, 2
    %s19 = sadd.s32 %s12, 1
    %s20 = ssub.s32 %s12, %s19
    %p21 = scmp.eq.s32.totalorder %s20, 0
    %s23 = sadd.s32 %s22, 1
    %s24 = scalar_select %p21, %s22, %s23
    %p27 = pneg %p21
    %p28 = scmp.eq.s32.totalorder %s12, 1
    %p29 = por %p27, %p28
    %p30 = scmp.ne.s32.totalorder %s22, %s25
    %p31 = scmp.eq.s32.totalorder %s12, 0
    %p32 = por %p30, %p31
    %p33 = scmp.ne.s32.totalorder %s22, %s25
    %p34 = scmp.eq.s32.totalorder %s17, 1
    %p35 = por %p33, %p34
    %p36 = scmp.ne.s32.totalorder %s25, %s26
    %p37 = scmp.eq.s32.totalorder %s17, 0
    %p38 = por %p36, %p37
    %p39 = scmp.ne.s32.totalorder %s25, %s26
    %p40 = scmp.eq.s32.totalorder %s18, 1
    %p41 = por %p39, %p40
    %p43 = scmp.ne.s32.totalorder %s26, %s42
    %p44 = scmp.eq.s32.totalorder %s18, 0
    %p45 = por %p43, %p44
    %s47 = sadd.s32 %s46, 1
    %p50 = scmp.eq.s32.totalorder %s12, 1
    %p51 = scmp.ne.s32.totalorder %s46, %s48
    %p52 = scmp.eq.s32.totalorder %s12, 0
    %p53 = por %p51, %p52
    %p54 = scmp.ne.s32.totalorder %s46, %s48
    %p55 = scmp.eq.s32.totalorder %s17, 1
    %p56 = por %p54, %p55
    %p57 = scmp.ne.s32.totalorder %s48, %s49
    %p58 = scmp.eq.s32.totalorder %s17, 0
    %p59 = por %p57, %p58
    %p60 = scmp.ne.s32.totalorder %s48, %s49
    %p61 = scmp.eq.s32.totalorder %s18, 1
    %p62 = por %p60, %p61
    %p64 = scmp.ne.s32.totalorder %s49, %s63
    %p65 = scmp.eq.s32.totalorder %s18, 0
    %p66 = por %p64, %p65
    %s68 = sadd.s32 %s67, 1
    %p71 = scmp.eq.s32.totalorder %s12, 1
    %p72 = scmp.ne.s32.totalorder %s67, %s69
    %p73 = scmp.eq.s32.totalorder %s12, 0
    %p74 = por %p72, %p73
    %p75 = scmp.ne.s32.totalorder %s67, %s69
    %p76 = scmp.eq.s32.totalorder %s17, 1
    %p77 = por %p75, %p76
    %p78 = scmp.ne.s32.totalorder %s69, %s70
    %p79 = scmp.eq.s32.totalorder %s17, 0
    %p80 = por %p78, %p79
    %p81 = scmp.ne.s32.totalorder %s69, %s70
    %p82 = scmp.eq.s32.totalorder %s18, 1
    %p83 = por %p81, %p82
    %p85 = scmp.ne.s32.totalorder %s70, %s84
    %p86 = scmp.eq.s32.totalorder %s18, 0
    %p87 = por %p85, %p86
    %s89 = sadd.s32 %s88, 1
    %p92 = scmp.eq.s32.totalorder %s12, 1
    %p93 = scmp.ne.s32.totalorder %s88, %s90
    %p94 = scmp.eq.s32.totalorder %s12, 0
    %p95 = por %p93, %p94
    %p96 = scmp.ne.s32.totalorder %s88, %s90
    %p97 = scmp.eq.s32.totalorder %s17, 1
    %p98 = por %p96, %p97
    %p99 = scmp.ne.s32.totalorder %s90, %s91
    %p100 = scmp.eq.s32.totalorder %s17, 0
    %p101 = por %p99, %p100
    %p102 = scmp.ne.s32.totalorder %s90, %s91
    %p103 = scmp.eq.s32.totalorder %s18, 1
    %p104 = por %p102, %p103
    %p106 = scmp.ne.s32.totalorder %s91, %s105
    %p107 = scmp.eq.s32.totalorder %s18, 0
    %p108 = por %p106, %p107
    %s109 = ssub.s32 %s12, %s19
    %p110 = scmp.eq.s32.totalorder %s109, 0
    %s112 = sadd.s32 %s111, 1
    %s113 = scalar_select %p110, %s111, %s112
    %p116 = pneg %p110
    %p117 = scmp.eq.s32.totalorder %s12, 1
    %p118 = por %p116, %p117
    %p119 = scmp.ne.s32.totalorder %s111, %s114
    %p120 = scmp.eq.s32.totalorder %s12, 0
    %p121 = por %p119, %p120
    %p122 = scmp.ne.s32.totalorder %s111, %s114
    %p123 = scmp.eq.s32.totalorder %s17, 1
    %p124 = por %p122, %p123
    %p125 = scmp.ne.s32.totalorder %s114, %s115
    %p126 = scmp.eq.s32.totalorder %s17, 0
    %p127 = por %p125, %p126
    %p128 = scmp.ne.s32.totalorder %s114, %s115
    %p129 = scmp.eq.s32.totalorder %s18, 1
    %p130 = por %p128, %p129
    %p132 = scmp.ne.s32.totalorder %s115, %s131
    %p133 = scmp.eq.s32.totalorder %s18, 0
    %p134 = por %p132, %p133
    %s135 = ssub.s32 %s12, %s19
    %p136 = scmp.eq.s32.totalorder %s135, 0
    %s138 = sadd.s32 %s137, 1
    %s139 = scalar_select %p136, %s137, %s138
    %p142 = pneg %p136
    %p143 = scmp.eq.s32.totalorder %s12, 1
    %p144 = por %p142, %p143
    %p145 = scmp.ne.s32.totalorder %s137, %s140
    %p146 = scmp.eq.s32.totalorder %s12, 0
    %p147 = por %p145, %p146
    %p148 = scmp.ne.s32.totalorder %s137, %s140
    %p149 = scmp.eq.s32.totalorder %s17, 1
    %p150 = por %p148, %p149
    %p151 = scmp.ne.s32.totalorder %s140, %s141
    %p152 = scmp.eq.s32.totalorder %s17, 0
    %p153 = por %p151, %p152
    %p154 = scmp.ne.s32.totalorder %s140, %s141
    %p155 = scmp.eq.s32.totalorder %s18, 1
    %p156 = por %p154, %p155
    %p158 = scmp.ne.s32.totalorder %s141, %s157
    %p159 = scmp.eq.s32.totalorder %s18, 0
    %p160 = por %p158, %p159
    %p161 = scmp.le.s32.totalorder 1, %s12
    %p162 = scmp.lt.s32.totalorder %s12, 3
    %p163 = pnand %p161, %p162
    %p164 = pneg %p163
    // Predicated region
    $region9: #{double_conv_forward.4} parent=5 // pred_check
      _
    $region10: #{double_conv_forward.4} parent=5 // pred_check_branch
      %166 = sbr.rel (%p163) target = $region12
    $region11: #{double_conv_forward.4} parent=5 // pred_region
      %s167 = ssub.s32 %s12, 1
      // Predicated region
      $region13: #{double_conv_forward.4} parent=11 // pred_check
        %p168 = pneg %p59
      $region14: #{double_conv_forward.4} parent=11 // pred_check_branch
        %170 = sbr.rel (%p168) target = $region16
      $region15: #{double_conv_forward.4} parent=11 // pred_region
        _
      $region16: #{double_conv_forward.4} parent=11 // pred_fallthru
        _
      // Predicated region
      $region17: #{double_conv_forward.4} parent=11 // pred_check
        %p171 = pneg %p80
      $region18: #{double_conv_forward.4} parent=11 // pred_check_branch
        %173 = sbr.rel (%p171) target = $region20
      $region19: #{double_conv_forward.4} parent=11 // pred_region
        _
      $region20: #{double_conv_forward.4} parent=11 // pred_fallthru
        _
      // Predicated region
      $region21: #{double_conv_forward.4} parent=11 // pred_check
        %p174 = pneg %p101
      $region22: #{double_conv_forward.4} parent=11 // pred_check_branch
        %176 = sbr.rel (%p174) target = $region24
      $region23: #{double_conv_forward.4} parent=11 // pred_region
        _
      $region24: #{double_conv_forward.4} parent=11 // pred_fallthru
        _
    $region12: #{double_conv_forward.4} parent=5 // pred_fallthru
      _
    %p177 = scmp.lt.s32.totalorder %s12, 2
    // Predicated region
    $region25: #{double_conv_forward.4} parent=5 // pred_check
      %p178 = pneg %p177
    $region26: #{double_conv_forward.4} parent=5 // pred_check_branch
      %180 = sbr.rel (%p178) target = $region28
    $region27: #{double_conv_forward.4} parent=5 // pred_region
      // Predicated region
      $region29: #{double_conv_forward.4} parent=27 // pred_check
        %p181 = pneg %p32
      $region30: #{double_conv_forward.4} parent=27 // pred_check_branch
        %183 = sbr.rel (%p181) target = $region32
      $region31: #{double_conv_forward.4} parent=27 // pred_region
        %p184 = scmp.lt.s32.totalorder %s12, 1
        %s185 = scalar_select %p184, %s12, 1
        %s186 = smul.addr %s185, 64
        %s187 = smul.addr %s186, 4
        %s188 = scalar_lea.vmem %s0, %s187
      $region32: #{double_conv_forward.4} parent=27 // pred_fallthru
        _
    $region28: #{double_conv_forward.4} parent=5 // pred_fallthru
      _
    %p189 = scmp.le.s32.totalorder 1, %s12
    %p190 = scmp.lt.s32.totalorder %s12, 3
    %p191 = pnand %p189, %p190
    %p192 = pneg %p191
    // Predicated region
    $region33: #{double_conv_forward.4} parent=5 // pred_check
      _
    $region34: #{double_conv_forward.4} parent=5 // pred_check_branch
      %194 = sbr.rel (%p191) target = $region36
    $region35: #{double_conv_forward.4} parent=5 // pred_region
      %s195 = ssub.s32 %s12, 1
      %p196 = scmp.lt.s32.totalorder %s17, 1
      %s197 = scalar_select %p196, %s17, 1
      %s198 = smul.addr %s197, 64
      %s199 = smul.addr %s198, 4
      %s200 = scalar_lea.vmem %s0, %s199
      %p201 = pneg %p38
      %p202 = pneg %p35
      %p203 = pneg %p59
      %p204 = pneg %p56
      %p205 = pneg %p80
      %p206 = pneg %p77
      %p207 = pneg %p101
      %p208 = pneg %p98
      %p209 = pneg %p127
      %p210 = pneg %p124
      %p211 = scmp.lt.s32.totalorder %s17, 1
      %s212 = scalar_select %p211, %s17, 1
      %s213 = smul.addr %s212, 64
      %s214 = smul.addr %s213, 4
      %s215 = scalar_lea.vmem %s4, %s214
      %p216 = pneg %p153
      %p217 = pneg %p150
      %p218 = scmp.lt.s32.totalorder %s17, 1
      %s219 = scalar_select %p218, %s17, 1
      %s220 = smul.addr %s219, 2
      %s221 = scalar_lea.vmem %s5, %s220
      %p222 = scmp.lt.s32.totalorder %s17, 1
      %s223 = scalar_select %p222, %s17, 1
      %s224 = smul.addr %s223, 64
      %s225 = smul.addr %s224, 4
      %s226 = scalar_lea.vmem %s0, %s225
      %p227 = scmp.lt.s32.totalorder %s17, 1
      %s228 = scalar_select %p227, %s17, 1
      %s229 = smul.addr %s228, 64
      %s230 = smul.addr %s229, 4
      %s231 = scalar_lea.vmem %s4, %s230
      %p232 = scmp.lt.s32.totalorder %s17, 1
      %s233 = scalar_select %p232, %s17, 1
      %s234 = smul.addr %s233, 2
      %s235 = scalar_lea.vmem %s5, %s234
      %v236 = vlaneseq
      %v237 = vshrl.u32 %v236, 7
      %v238 = vadd.s32 %v237, 8
      %v239 = vadd.s32 %v237, 16
      %v240 = vadd.s32 %v237, 24
      %vm241 = vcmp.ge.s32.totalorder %v237, 1
      %vm242 = vcmp.ge.s32.totalorder %v238, 1
      %vm243 = vcmp.ge.s32.totalorder %v239, 1
      %vm244 = vcmp.ge.s32.totalorder %v240, 1
      %vm245 = vcmp.le.s32.totalorder %v237, 16
      %vm246 = vcmp.le.s32.totalorder %v238, 16
      %vm247 = vcmp.le.s32.totalorder %v239, 16
      %vm248 = vcmp.le.s32.totalorder %v240, 16
      %vm249 = vmand %vm241, %vm245
      %vm250 = vmand %vm242, %vm246
      %vm251 = vmand %vm243, %vm247
      %vm252 = vmand %vm244, %vm248
      %v253 = vld [vmem:[%s226] sm:$0xf]
      %v254 = vld [vmem:[%s226 + $0x4] sm:$0xf]
      %v255 = vld [vmem:[%s226 + $0x8] sm:$0xf]
      %v256 = vld [vmem:[%s226 + $0xc] sm:$0xf]
      %v257 = vld [vmem:[%s226 + $0x10] sm:$0xf]
      %v258 = vld [vmem:[%s226 + $0x14] sm:$0xf]
      %v259 = vld [vmem:[%s226 + $0x18] sm:$0xf]
      %v260 = vld [vmem:[%s226 + $0x1c] sm:$0xf]
      %v261 = vld [vmem:[%s226 + $0x20] sm:$0xf]
      %v262 = vld [vmem:[%s226 + $0x24] sm:$0xf]
      %v263 = vld [vmem:[%s226 + $0x28] sm:$0xf]
      %v264 = vld [vmem:[%s226 + $0x2c] sm:$0xf]
      %v265 = vld [vmem:[%s226 + $0x30] sm:$0xf]
      %v266 = vld [vmem:[%s226 + $0x34] sm:$0xf]
      %v267 = vld [vmem:[%s226 + $0x38] sm:$0xf]
      %v268 = vld [vmem:[%s226 + $0x3c] sm:$0xf]
      %v269 = vld [vmem:[%s226 + $0x40] sm:$0xf]
      %v270 = vld [vmem:[%s226 + $0x44] sm:$0xf]
      %v271 = vld [vmem:[%s226 + $0x48] sm:$0xf]
      %v272 = vld [vmem:[%s226 + $0x4c] sm:$0xf]
      %v273 = vld [vmem:[%s226 + $0x50] sm:$0xf]
      %v274 = vld [vmem:[%s226 + $0x54] sm:$0xf]
      %v275 = vld [vmem:[%s226 + $0x58] sm:$0xf]
      %v276 = vld [vmem:[%s226 + $0x5c] sm:$0xf]
      %v277 = vld [vmem:[%s226 + $0x60] sm:$0xf]
      %v278 = vld [vmem:[%s226 + $0x64] sm:$0xf]
      %v279 = vld [vmem:[%s226 + $0x68] sm:$0xf]
      %v280 = vld [vmem:[%s226 + $0x6c] sm:$0xf]
      %v281 = vld [vmem:[%s226 + $0x70] sm:$0xf]
      %v282 = vld [vmem:[%s226 + $0x74] sm:$0xf]
      %v283 = vld [vmem:[%s226 + $0x78] sm:$0xf]
      %v284 = vld [vmem:[%s226 + $0x7c] sm:$0xf]
      %v285 = vld [vmem:[%s226 + $0x80] sm:$0xf]
      %v286 = vld [vmem:[%s226 + $0x84] sm:$0xf]
      %v287 = vld [vmem:[%s226 + $0x88] sm:$0xf]
      %v288 = vld [vmem:[%s226 + $0x8c] sm:$0xf]
      %v289 = vld [vmem:[%s226 + $0x90] sm:$0xf]
      %v290 = vld [vmem:[%s226 + $0x94] sm:$0xf]
      %v291 = vld [vmem:[%s226 + $0x98] sm:$0xf]
      %v292 = vld [vmem:[%s226 + $0x9c] sm:$0xf]
      %v293 = vld [vmem:[%s226 + $0xa0] sm:$0xf]
      %v294 = vld [vmem:[%s226 + $0xa4] sm:$0xf]
      %v295 = vld [vmem:[%s226 + $0xa8] sm:$0xf]
      %v296 = vld [vmem:[%s226 + $0xac] sm:$0xf]
      %v297 = vld [vmem:[%s226 + $0xb0] sm:$0xf]
      %v298 = vld [vmem:[%s226 + $0xb4] sm:$0xf]
      %v299 = vld [vmem:[%s226 + $0xb8] sm:$0xf]
      %v300 = vld [vmem:[%s226 + $0xbc] sm:$0xf]
      %v301 = vld [vmem:[%s226 + $0xc0] sm:$0xf]
      %v302 = vld [vmem:[%s226 + $0xc4] sm:$0xf]
      %v303 = vld [vmem:[%s226 + $0xc8] sm:$0xf]
      %v304 = vld [vmem:[%s226 + $0xcc] sm:$0xf]
      %v305 = vld [vmem:[%s226 + $0xd0] sm:$0xf]
      %v306 = vld [vmem:[%s226 + $0xd4] sm:$0xf]
      %v307 = vld [vmem:[%s226 + $0xd8] sm:$0xf]
      %v308 = vld [vmem:[%s226 + $0xdc] sm:$0xf]
      %v309 = vld [vmem:[%s226 + $0xe0] sm:$0xf]
      %v310 = vld [vmem:[%s226 + $0xe4] sm:$0xf]
      %v311 = vld [vmem:[%s226 + $0xe8] sm:$0xf]
      %v312 = vld [vmem:[%s226 + $0xec] sm:$0xf]
      %v313 = vld [vmem:[%s226 + $0xf0] sm:$0xf]
      %v314 = vld [vmem:[%s226 + $0xf4] sm:$0xf]
      %v315 = vld [vmem:[%s226 + $0xf8] sm:$0xf]
      %v316 = vld [vmem:[%s226 + $0xfc] sm:$0xf]
      %v317 = vunpack.c.l.bf16 %v253
      %v318 = vunpack.c.l.bf16 %v254
      %v319 = vunpack.c.l.bf16 %v255
      %v320 = vunpack.c.l.bf16 %v256
      %v321 = vunpack.c.l.bf16 %v257
      %v322 = vunpack.c.l.bf16 %v258
      %v323 = vunpack.c.l.bf16 %v259
      %v324 = vunpack.c.l.bf16 %v260
      %v325 = vunpack.c.l.bf16 %v261
      %v326 = vunpack.c.l.bf16 %v262
      %v327 = vunpack.c.l.bf16 %v263
      %v328 = vunpack.c.l.bf16 %v264
      %v329 = vunpack.c.l.bf16 %v265
      %v330 = vunpack.c.l.bf16 %v266
      %v331 = vunpack.c.l.bf16 %v267
      %v332 = vunpack.c.l.bf16 %v268
      %v333 = vunpack.c.l.bf16 %v269
      %v334 = vunpack.c.l.bf16 %v270
      %v335 = vunpack.c.l.bf16 %v271
      %v336 = vunpack.c.l.bf16 %v272
      %v337 = vunpack.c.l.bf16 %v273
      %v338 = vunpack.c.l.bf16 %v274
      %v339 = vunpack.c.l.bf16 %v275
      %v340 = vunpack.c.l.bf16 %v276
      %v341 = vunpack.c.l.bf16 %v277
      %v342 = vunpack.c.l.bf16 %v278
      %v343 = vunpack.c.l.bf16 %v279
      %v344 = vunpack.c.l.bf16 %v280
      %v345 = vunpack.c.l.bf16 %v281
      %v346 = vunpack.c.l.bf16 %v282
      %v347 = vunpack.c.l.bf16 %v283
      %v348 = vunpack.c.l.bf16 %v284
      %v349 = vunpack.c.l.bf16 %v285
      %v350 = vunpack.c.l.bf16 %v286
      %v351 = vunpack.c.l.bf16 %v287
      %v352 = vunpack.c.l.bf16 %v288
      %v353 = vunpack.c.l.bf16 %v289
      %v354 = vunpack.c.l.bf16 %v290
      %v355 = vunpack.c.l.bf16 %v291
      %v356 = vunpack.c.l.bf16 %v292
      %v357 = vunpack.c.l.bf16 %v293
      %v358 = vunpack.c.l.bf16 %v294
      %v359 = vunpack.c.l.bf16 %v295
      %v360 = vunpack.c.l.bf16 %v296
      %v361 = vunpack.c.l.bf16 %v297
      %v362 = vunpack.c.l.bf16 %v298
      %v363 = vunpack.c.l.bf16 %v299
      %v364 = vunpack.c.l.bf16 %v300
      %v365 = vunpack.c.l.bf16 %v301
      %v366 = vunpack.c.l.bf16 %v302
      %v367 = vunpack.c.l.bf16 %v303
      %v368 = vunpack.c.l.bf16 %v304
      %v369 = vunpack.c.l.bf16 %v305
      %v370 = vunpack.c.l.bf16 %v306
      %v371 = vunpack.c.l.bf16 %v307
      %v372 = vunpack.c.l.bf16 %v308
      %v373 = vunpack.c.l.bf16 %v309
      %v374 = vunpack.c.l.bf16 %v310
      %v375 = vunpack.c.l.bf16 %v311
      %v376 = vunpack.c.l.bf16 %v312
      %v377 = vunpack.c.l.bf16 %v313
      %v378 = vunpack.c.l.bf16 %v314
      %v379 = vunpack.c.l.bf16 %v315
      %v380 = vunpack.c.l.bf16 %v316
      %v381 = vld [vmem:[%s1] sm:$0x1]
      %v383 = vperm.slane %v381, 0
      %v385 = vmul.f32 %v317, %v383
      %v386 = vmul.f32 %v318, %v383
      %v387 = vmul.f32 %v319, %v383
      %v388 = vmul.f32 %v320, %v383
      %v389 = vmul.f32 %v321, %v383
      %v390 = vmul.f32 %v322, %v383
      %v391 = vmul.f32 %v323, %v383
      %v392 = vmul.f32 %v324, %v383
      %v393 = vmul.f32 %v325, %v383
      %v394 = vmul.f32 %v326, %v383
      %v395 = vmul.f32 %v327, %v383
      %v396 = vmul.f32 %v328, %v383
      %v397 = vmul.f32 %v329, %v383
      %v398 = vmul.f32 %v330, %v383
      %v399 = vmul.f32 %v331, %v383
      %v400 = vmul.f32 %v332, %v383
      %v401 = vmul.f32 %v333, %v383
      %v402 = vmul.f32 %v334, %v383
      %v403 = vmul.f32 %v335, %v383
      %v404 = vmul.f32 %v336, %v383
      %v405 = vmul.f32 %v337, %v383
      %v406 = vmul.f32 %v338, %v383
      %v407 = vmul.f32 %v339, %v383
      %v408 = vmul.f32 %v340, %v383
      %v409 = vmul.f32 %v341, %v383
      %v410 = vmul.f32 %v342, %v383
      %v411 = vmul.f32 %v343, %v383
      %v412 = vmul.f32 %v344, %v383
      %v413 = vmul.f32 %v345, %v383
      %v414 = vmul.f32 %v346, %v383
      %v415 = vmul.f32 %v347, %v383
      %v416 = vmul.f32 %v348, %v383
      %v417 = vmul.f32 %v349, %v383
      %v418 = vmul.f32 %v350, %v383
      %v419 = vmul.f32 %v351, %v383
      %v420 = vmul.f32 %v352, %v383
      %v421 = vmul.f32 %v353, %v383
      %v422 = vmul.f32 %v354, %v383
      %v423 = vmul.f32 %v355, %v383
      %v424 = vmul.f32 %v356, %v383
      %v425 = vmul.f32 %v357, %v383
      %v426 = vmul.f32 %v358, %v383
      %v427 = vmul.f32 %v359, %v383
      %v428 = vmul.f32 %v360, %v383
      %v429 = vmul.f32 %v361, %v383
      %v430 = vmul.f32 %v362, %v383
      %v431 = vmul.f32 %v363, %v383
      %v432 = vmul.f32 %v364, %v383
      %v433 = vmul.f32 %v365, %v383
      %v434 = vmul.f32 %v366, %v383
      %v435 = vmul.f32 %v367, %v383
      %v436 = vmul.f32 %v368, %v383
      %v437 = vmul.f32 %v369, %v383
      %v438 = vmul.f32 %v370, %v383
      %v439 = vmul.f32 %v371, %v383
      %v440 = vmul.f32 %v372, %v383
      %v441 = vmul.f32 %v373, %v383
      %v442 = vmul.f32 %v374, %v383
      %v443 = vmul.f32 %v375, %v383
      %v444 = vmul.f32 %v376, %v383
      %v445 = vmul.f32 %v377, %v383
      %v446 = vmul.f32 %v378, %v383
      %v447 = vmul.f32 %v379, %v383
      %v448 = vmul.f32 %v380, %v383
      %v449 = vld [vmem:[%s2] sm:$0x1]
      %v451 = vperm.slane %v449, 0
      %v453 = vadd.f32 %v385, %v451
      %v454 = vadd.f32 %v386, %v451
      %v455 = vadd.f32 %v387, %v451
      %v456 = vadd.f32 %v388, %v451
      %v457 = vadd.f32 %v389, %v451
      %v458 = vadd.f32 %v390, %v451
      %v459 = vadd.f32 %v391, %v451
      %v460 = vadd.f32 %v392, %v451
      %v461 = vadd.f32 %v393, %v451
      %v462 = vadd.f32 %v394, %v451
      %v463 = vadd.f32 %v395, %v451
      %v464 = vadd.f32 %v396, %v451
      %v465 = vadd.f32 %v397, %v451
      %v466 = vadd.f32 %v398, %v451
      %v467 = vadd.f32 %v399, %v451
      %v468 = vadd.f32 %v400, %v451
      %v469 = vadd.f32 %v401, %v451
      %v470 = vadd.f32 %v402, %v451
      %v471 = vadd.f32 %v403, %v451
      %v472 = vadd.f32 %v404, %v451
      %v473 = vadd.f32 %v405, %v451
      %v474 = vadd.f32 %v406, %v451
      %v475 = vadd.f32 %v407, %v451
      %v476 = vadd.f32 %v408, %v451
      %v477 = vadd.f32 %v409, %v451
      %v478 = vadd.f32 %v410, %v451
      %v479 = vadd.f32 %v411, %v451
      %v480 = vadd.f32 %v412, %v451
      %v481 = vadd.f32 %v413, %v451
      %v482 = vadd.f32 %v414, %v451
      %v483 = vadd.f32 %v415, %v451
      %v484 = vadd.f32 %v416, %v451
      %v485 = vadd.f32 %v417, %v451
      %v486 = vadd.f32 %v418, %v451
      %v487 = vadd.f32 %v419, %v451
      %v488 = vadd.f32 %v420, %v451
      %v489 = vadd.f32 %v421, %v451
      %v490 = vadd.f32 %v422, %v451
      %v491 = vadd.f32 %v423, %v451
      %v492 = vadd.f32 %v424, %v451
      %v493 = vadd.f32 %v425, %v451
      %v494 = vadd.f32 %v426, %v451
      %v495 = vadd.f32 %v427, %v451
      %v496 = vadd.f32 %v428, %v451
      %v497 = vadd.f32 %v429, %v451
      %v498 = vadd.f32 %v430, %v451
      %v499 = vadd.f32 %v431, %v451
      %v500 = vadd.f32 %v432, %v451
      %v501 = vadd.f32 %v433, %v451
      %v502 = vadd.f32 %v434, %v451
      %v503 = vadd.f32 %v435, %v451
      %v504 = vadd.f32 %v436, %v451
      %v505 = vadd.f32 %v437, %v451
      %v506 = vadd.f32 %v438, %v451
      %v507 = vadd.f32 %v439, %v451
      %v508 = vadd.f32 %v440, %v451
      %v509 = vadd.f32 %v441, %v451
      %v510 = vadd.f32 %v442, %v451
      %v511 = vadd.f32 %v443, %v451
      %v512 = vadd.f32 %v444, %v451
      %v513 = vadd.f32 %v445, %v451
      %v514 = vadd.f32 %v446, %v451
      %v515 = vadd.f32 %v447, %v451
      %v516 = vadd.f32 %v448, %v451
      %v517 = vmax.f32 %v453, 0.0
      %v518 = vmax.f32 %v454, 0.0
      %v519 = vmax.f32 %v455, 0.0
      %v520 = vmax.f32 %v456, 0.0
      %v521 = vmax.f32 %v457, 0.0
      %v522 = vmax.f32 %v458, 0.0
      %v523 = vmax.f32 %v459, 0.0
      %v524 = vmax.f32 %v460, 0.0
      %v525 = vmax.f32 %v461, 0.0
      %v526 = vmax.f32 %v462, 0.0
      %v527 = vmax.f32 %v463, 0.0
      %v528 = vmax.f32 %v464, 0.0
      %v529 = vmax.f32 %v465, 0.0
      %v530 = vmax.f32 %v466, 0.0
      %v531 = vmax.f32 %v467, 0.0
      %v532 = vmax.f32 %v468, 0.0
      %v533 = vmax.f32 %v469, 0.0
      %v534 = vmax.f32 %v470, 0.0
      %v535 = vmax.f32 %v471, 0.0
      %v536 = vmax.f32 %v472, 0.0
      %v537 = vmax.f32 %v473, 0.0
      %v538 = vmax.f32 %v474, 0.0
      %v539 = vmax.f32 %v475, 0.0
      %v540 = vmax.f32 %v476, 0.0
      %v541 = vmax.f32 %v477, 0.0
      %v542 = vmax.f32 %v478, 0.0
      %v543 = vmax.f32 %v479, 0.0
      %v544 = vmax.f32 %v480, 0.0
      %v545 = vmax.f32 %v481, 0.0
      %v546 = vmax.f32 %v482, 0.0
      %v547 = vmax.f32 %v483, 0.0
      %v548 = vmax.f32 %v484, 0.0
      %v549 = vmax.f32 %v485, 0.0
      %v550 = vmax.f32 %v486, 0.0
      %v551 = vmax.f32 %v487, 0.0
      %v552 = vmax.f32 %v488, 0.0
      %v553 = vmax.f32 %v489, 0.0
      %v554 = vmax.f32 %v490, 0.0
      %v555 = vmax.f32 %v491, 0.0
      %v556 = vmax.f32 %v492, 0.0
      %v557 = vmax.f32 %v493, 0.0
      %v558 = vmax.f32 %v494, 0.0
      %v559 = vmax.f32 %v495, 0.0
      %v560 = vmax.f32 %v496, 0.0
      %v561 = vmax.f32 %v497, 0.0
      %v562 = vmax.f32 %v498, 0.0
      %v563 = vmax.f32 %v499, 0.0
      %v564 = vmax.f32 %v500, 0.0
      %v565 = vmax.f32 %v501, 0.0
      %v566 = vmax.f32 %v502, 0.0
      %v567 = vmax.f32 %v503, 0.0
      %v568 = vmax.f32 %v504, 0.0
      %v569 = vmax.f32 %v505, 0.0
      %v570 = vmax.f32 %v506, 0.0
      %v571 = vmax.f32 %v507, 0.0
      %v572 = vmax.f32 %v508, 0.0
      %v573 = vmax.f32 %v509, 0.0
      %v574 = vmax.f32 %v510, 0.0
      %v575 = vmax.f32 %v511, 0.0
      %v576 = vmax.f32 %v512, 0.0
      %v577 = vmax.f32 %v513, 0.0
      %v578 = vmax.f32 %v514, 0.0
      %v579 = vmax.f32 %v515, 0.0
      %v580 = vmax.f32 %v516, 0.0
      %v581 = vsel %vm249, %v517, 0.0
      %v582 = vsel %vm250, %v518, 0.0
      %v583 = vsel %vm251, %v519, 0.0
      %v584 = vsel %vm252, %v520, 0.0
      %v585 = vsel %vm249, %v521, 0.0
      %v586 = vsel %vm250, %v522, 0.0
      %v587 = vsel %vm251, %v523, 0.0
      %v588 = vsel %vm252, %v524, 0.0
      %v589 = vsel %vm249, %v525, 0.0
      %v590 = vsel %vm250, %v526, 0.0
      %v591 = vsel %vm251, %v527, 0.0
      %v592 = vsel %vm252, %v528, 0.0
      %v593 = vsel %vm249, %v529, 0.0
      %v594 = vsel %vm250, %v530, 0.0
      %v595 = vsel %vm251, %v531, 0.0
      %v596 = vsel %vm252, %v532, 0.0
      %v597 = vsel %vm249, %v533, 0.0
      %v598 = vsel %vm250, %v534, 0.0
      %v599 = vsel %vm251, %v535, 0.0
      %v600 = vsel %vm252, %v536, 0.0
      %v601 = vsel %vm249, %v537, 0.0
      %v602 = vsel %vm250, %v538, 0.0
      %v603 = vsel %vm251, %v539, 0.0
      %v604 = vsel %vm252, %v540, 0.0
      %v605 = vsel %vm249, %v541, 0.0
      %v606 = vsel %vm250, %v542, 0.0
      %v607 = vsel %vm251, %v543, 0.0
      %v608 = vsel %vm252, %v544, 0.0
      %v609 = vsel %vm249, %v545, 0.0
      %v610 = vsel %vm250, %v546, 0.0
      %v611 = vsel %vm251, %v547, 0.0
      %v612 = vsel %vm252, %v548, 0.0
      %v613 = vsel %vm249, %v549, 0.0
      %v614 = vsel %vm250, %v550, 0.0
      %v615 = vsel %vm251, %v551, 0.0
      %v616 = vsel %vm252, %v552, 0.0
      %v617 = vsel %vm249, %v553, 0.0
      %v618 = vsel %vm250, %v554, 0.0
      %v619 = vsel %vm251, %v555, 0.0
      %v620 = vsel %vm252, %v556, 0.0
      %v621 = vsel %vm249, %v557, 0.0
      %v622 = vsel %vm250, %v558, 0.0
      %v623 = vsel %vm251, %v559, 0.0
      %v624 = vsel %vm252, %v560, 0.0
      %v625 = vsel %vm249, %v561, 0.0
      %v626 = vsel %vm250, %v562, 0.0
      %v627 = vsel %vm251, %v563, 0.0
      %v628 = vsel %vm252, %v564, 0.0
      %v629 = vsel %vm249, %v565, 0.0
      %v630 = vsel %vm250, %v566, 0.0
      %v631 = vsel %vm251, %v567, 0.0
      %v632 = vsel %vm252, %v568, 0.0
      %v633 = vsel %vm249, %v569, 0.0
      %v634 = vsel %vm250, %v570, 0.0
      %v635 = vsel %vm251, %v571, 0.0
      %v636 = vsel %vm252, %v572, 0.0
      %v637 = vsel %vm249, %v573, 0.0
      %v638 = vsel %vm250, %v574, 0.0
      %v639 = vsel %vm251, %v575, 0.0
      %v640 = vsel %vm252, %v576, 0.0
      %v641 = vsel %vm249, %v577, 0.0
      %v642 = vsel %vm250, %v578, 0.0
      %v643 = vsel %vm251, %v579, 0.0
      %v644 = vsel %vm252, %v580, 0.0
      %s645 = scalar_lea.vmem [#allocation2], 32
      %646 = vst [vmem:[%s645] sm:$0xff] %v581
      %647 = vst [vmem:[%s645 + $0x8] sm:$0xff] %v582
      %648 = vst [vmem:[%s645 + $0x10] sm:$0xff] %v583
      %649 = vst [vmem:[%s645 + $0x18] sm:$0xff] %v584
      %650 = vst [vmem:[%s645 + $0x20] sm:$0xff] %v585
      %651 = vst [vmem:[%s645 + $0x28] sm:$0xff] %v586
      %652 = vst [vmem:[%s645 + $0x30] sm:$0xff] %v587
      %653 = vst [vmem:[%s645 + $0x38] sm:$0xff] %v588
      %654 = vst [vmem:[%s645 + $0x40] sm:$0xff] %v589
      %655 = vst [vmem:[%s645 + $0x48] sm:$0xff] %v590
      %656 = vst [vmem:[%s645 + $0x50] sm:$0xff] %v591
      %657 = vst [vmem:[%s645 + $0x58] sm:$0xff] %v592
      %658 = vst [vmem:[%s645 + $0x60] sm:$0xff] %v593
      %659 = vst [vmem:[%s645 + $0x68] sm:$0xff] %v594
      %660 = vst [vmem:[%s645 + $0x70] sm:$0xff] %v595
      %661 = vst [vmem:[%s645 + $0x78] sm:$0xff] %v596
      %662 = vst [vmem:[%s645 + $0x80] sm:$0xff] %v597
      %663 = vst [vmem:[%s645 + $0x88] sm:$0xff] %v598
      %664 = vst [vmem:[%s645 + $0x90] sm:$0xff] %v599
      %665 = vst [vmem:[%s645 + $0x98] sm:$0xff] %v600
      %666 = vst [vmem:[%s645 + $0xa0] sm:$0xff] %v601
      %667 = vst [vmem:[%s645 + $0xa8] sm:$0xff] %v602
      %668 = vst [vmem:[%s645 + $0xb0] sm:$0xff] %v603
      %669 = vst [vmem:[%s645 + $0xb8] sm:$0xff] %v604
      %670 = vst [vmem:[%s645 + $0xc0] sm:$0xff] %v605
      %671 = vst [vmem:[%s645 + $0xc8] sm:$0xff] %v606
      %672 = vst [vmem:[%s645 + $0xd0] sm:$0xff] %v607
      %673 = vst [vmem:[%s645 + $0xd8] sm:$0xff] %v608
      %674 = vst [vmem:[%s645 + $0xe0] sm:$0xff] %v609
      %675 = vst [vmem:[%s645 + $0xe8] sm:$0xff] %v610
      %676 = vst [vmem:[%s645 + $0xf0] sm:$0xff] %v611
      %677 = vst [vmem:[%s645 + $0xf8] sm:$0xff] %v612
      %678 = vst [vmem:[%s645 + $0x100] sm:$0xff] %v613
      %679 = vst [vmem:[%s645 + $0x108] sm:$0xff] %v614
      %680 = vst [vmem:[%s645 + $0x110] sm:$0xff] %v615
      %681 = vst [vmem:[%s645 + $0x118] sm:$0xff] %v616
      %682 = vst [vmem:[%s645 + $0x120] sm:$0xff] %v617
      %683 = vst [vmem:[%s645 + $0x128] sm:$0xff] %v618
      %684 = vst [vmem:[%s645 + $0x130] sm:$0xff] %v619
      %685 = vst [vmem:[%s645 + $0x138] sm:$0xff] %v620
      %686 = vst [vmem:[%s645 + $0x140] sm:$0xff] %v621
      %687 = vst [vmem:[%s645 + $0x148] sm:$0xff] %v622
      %688 = vst [vmem:[%s645 + $0x150] sm:$0xff] %v623
      %689 = vst [vmem:[%s645 + $0x158] sm:$0xff] %v624
      %690 = vst [vmem:[%s645 + $0x160] sm:$0xff] %v625
      %691 = vst [vmem:[%s645 + $0x168] sm:$0xff] %v626
      %692 = vst [vmem:[%s645 + $0x170] sm:$0xff] %v627
      %693 = vst [vmem:[%s645 + $0x178] sm:$0xff] %v628
      %694 = vst [vmem:[%s645 + $0x180] sm:$0xff] %v629
      %695 = vst [vmem:[%s645 + $0x188] sm:$0xff] %v630
      %696 = vst [vmem:[%s645 + $0x190] sm:$0xff] %v631
      %697 = vst [vmem:[%s645 + $0x198] sm:$0xff] %v632
      %698 = vst [vmem:[%s645 + $0x1a0] sm:$0xff] %v633
      %699 = vst [vmem:[%s645 + $0x1a8] sm:$0xff] %v634
      %700 = vst [vmem:[%s645 + $0x1b0] sm:$0xff] %v635
      %701 = vst [vmem:[%s645 + $0x1b8] sm:$0xff] %v636
      %702 = vst [vmem:[%s645 + $0x1c0] sm:$0xff] %v637
      %703 = vst [vmem:[%s645 + $0x1c8] sm:$0xff] %v638
      %704 = vst [vmem:[%s645 + $0x1d0] sm:$0xff] %v639
      %705 = vst [vmem:[%s645 + $0x1d8] sm:$0xff] %v640
      %706 = vst [vmem:[%s645 + $0x1e0] sm:$0xff] %v641
      %707 = vst [vmem:[%s645 + $0x1e8] sm:$0xff] %v642
      %708 = vst [vmem:[%s645 + $0x1f0] sm:$0xff] %v643
      %709 = vst [vmem:[%s645 + $0x1f8] sm:$0xff] %v644
      %710 = vst [vmem:[#allocation2] sm:$0xff] 0.0
      %711 = vst [vmem:[#allocation2 + $0x8] sm:$0xff] 0.0
      %712 = vst [vmem:[#allocation2 + $0x10] sm:$0xff] 0.0
      %713 = vst [vmem:[#allocation2 + $0x18] sm:$0xff] 0.0
      %s714 = scalar_lea.vmem [#allocation2], 544
      %715 = vst [vmem:[%s714] sm:$0xff] 0.0
      %716 = vst [vmem:[%s714 + $0x8] sm:$0xff] 0.0
      %717 = vst [vmem:[%s714 + $0x10] sm:$0xff] 0.0
      %718 = vst [vmem:[%s714 + $0x18] sm:$0xff] 0.0
      %v719 = vld [vmem:[#allocation2] sm:$0xff]
      %v720 = vld [vmem:[#allocation2 + $0x8] sm:$0xff]
      %v721 = vld [vmem:[#allocation2 + $0x10] sm:$0xff]
      %v722 = vld [vmem:[#allocation2 + $0x18] sm:$0xff]
      %v723 = vld [vmem:[#allocation2 + $0x20] sm:$0xff]
      %v724 = vld [vmem:[#allocation2 + $0x28] sm:$0xff]
      %v725 = vld [vmem:[#allocation2 + $0x30] sm:$0xff]
      %v726 = vld [vmem:[#allocation2 + $0x38] sm:$0xff]
      %v727 = vld [vmem:[#allocation2 + $0x40] sm:$0xff]
      %v728 = vld [vmem:[#allocation2 + $0x48] sm:$0xff]
      %v729 = vld [vmem:[#allocation2 + $0x50] sm:$0xff]
      %v730 = vld [vmem:[#allocation2 + $0x58] sm:$0xff]
      %v731 = vld [vmem:[#allocation2 + $0x60] sm:$0xff]
      %v732 = vld [vmem:[#allocation2 + $0x68] sm:$0xff]
      %v733 = vld [vmem:[#allocation2 + $0x70] sm:$0xff]
      %v734 = vld [vmem:[#allocation2 + $0x78] sm:$0xff]
      %v735 = vld [vmem:[#allocation2 + $0x80] sm:$0xff]
      %v736 = vld [vmem:[#allocation2 + $0x88] sm:$0xff]
      %v737 = vld [vmem:[#allocation2 + $0x90] sm:$0xff]
      %v738 = vld [vmem:[#allocation2 + $0x98] sm:$0xff]
      %v739 = vld [vmem:[#allocation2 + $0xa0] sm:$0xff]
      %v740 = vld [vmem:[#allocation2 + $0xa8] sm:$0xff]
      %v741 = vld [vmem:[#allocation2 + $0xb0] sm:$0xff]
      %v742 = vld [vmem:[#allocation2 + $0xb8] sm:$0xff]
      %v743 = vld [vmem:[#allocation2 + $0xc0] sm:$0xff]
      %v744 = vld [vmem:[#allocation2 + $0xc8] sm:$0xff]
      %v745 = vld [vmem:[#allocation2 + $0xd0] sm:$0xff]
      %v746 = vld [vmem:[#allocation2 + $0xd8] sm:$0xff]
      %v747 = vld [vmem:[#allocation2 + $0xe0] sm:$0xff]
      %v748 = vld [vmem:[#allocation2 + $0xe8] sm:$0xff]
      %v749 = vld [vmem:[#allocation2 + $0xf0] sm:$0xff]
      %v750 = vld [vmem:[#allocation2 + $0xf8] sm:$0xff]
      %v751 = vld [vmem:[#allocation2 + $0x100] sm:$0xff]
      %v752 = vld [vmem:[#allocation2 + $0x108] sm:$0xff]
      %v753 = vld [vmem:[#allocation2 + $0x110] sm:$0xff]
      %v754 = vld [vmem:[#allocation2 + $0x118] sm:$0xff]
      %v755 = vld [vmem:[#allocation2 + $0x120] sm:$0xff]
      %v756 = vld [vmem:[#allocation2 + $0x128] sm:$0xff]
      %v757 = vld [vmem:[#allocation2 + $0x130] sm:$0xff]
      %v758 = vld [vmem:[#allocation2 + $0x138] sm:$0xff]
      %v759 = vld [vmem:[#allocation2 + $0x140] sm:$0xff]
      %v760 = vld [vmem:[#allocation2 + $0x148] sm:$0xff]
      %v761 = vld [vmem:[#allocation2 + $0x150] sm:$0xff]
      %v762 = vld [vmem:[#allocation2 + $0x158] sm:$0xff]
      %v763 = vld [vmem:[#allocation2 + $0x160] sm:$0xff]
      %v764 = vld [vmem:[#allocation2 + $0x168] sm:$0xff]
      %v765 = vld [vmem:[#allocation2 + $0x170] sm:$0xff]
      %v766 = vld [vmem:[#allocation2 + $0x178] sm:$0xff]
      %v767 = vld [vmem:[#allocation2 + $0x180] sm:$0xff]
      %v768 = vld [vmem:[#allocation2 + $0x188] sm:$0xff]
      %v769 = vld [vmem:[#allocation2 + $0x190] sm:$0xff]
      %v770 = vld [vmem:[#allocation2 + $0x198] sm:$0xff]
      %v771 = vld [vmem:[#allocation2 + $0x1a0] sm:$0xff]
      %v772 = vld [vmem:[#allocation2 + $0x1a8] sm:$0xff]
      %v773 = vld [vmem:[#allocation2 + $0x1b0] sm:$0xff]
      %v774 = vld [vmem:[#allocation2 + $0x1b8] sm:$0xff]
      %v775 = vld [vmem:[#allocation2 + $0x1c0] sm:$0xff]
      %v776 = vld [vmem:[#allocation2 + $0x1c8] sm:$0xff]
      %v777 = vld [vmem:[#allocation2 + $0x1d0] sm:$0xff]
      %v778 = vld [vmem:[#allocation2 + $0x1d8] sm:$0xff]
      %v779 = vld [vmem:[#allocation2 + $0x1e0] sm:$0xff]
      %v780 = vld [vmem:[#allocation2 + $0x1e8] sm:$0xff]
      %v781 = vld [vmem:[#allocation2 + $0x1f0] sm:$0xff]
      %v782 = vld [vmem:[#allocation2 + $0x1f8] sm:$0xff]
      %v783 = vrot.slane %v719, 7
      %v784 = vrot.slane %v723, 7
      %v785 = vrot.slane %v727, 7
      %v786 = vrot.slane %v731, 7
      %v787 = vrot.slane %v735, 7
      %v788 = vrot.slane %v739, 7
      %v789 = vrot.slane %v743, 7
      %v790 = vrot.slane %v747, 7
      %v791 = vrot.slane %v751, 7
      %v792 = vrot.slane %v755, 7
      %v793 = vrot.slane %v759, 7
      %v794 = vrot.slane %v763, 7
      %v795 = vrot.slane %v767, 7
      %v796 = vrot.slane %v771, 7
      %v797 = vrot.slane %v775, 7
      %v798 = vrot.slane %v779, 7
      %v799 = vrot.slane %v720, 7
      %v800 = vrot.slane %v724, 7
      %v801 = vrot.slane %v728, 7
      %v802 = vrot.slane %v732, 7
      %v803 = vrot.slane %v736, 7
      %v804 = vrot.slane %v740, 7
      %v805 = vrot.slane %v744, 7
      %v806 = vrot.slane %v748, 7
      %v807 = vrot.slane %v752, 7
      %v808 = vrot.slane %v756, 7
      %v809 = vrot.slane %v760, 7
      %v810 = vrot.slane %v764, 7
      %v811 = vrot.slane %v768, 7
      %v812 = vrot.slane %v772, 7
      %v813 = vrot.slane %v776, 7
      %v814 = vrot.slane %v780, 7
      %v815 = vrot.slane %v721, 7
      %v816 = vrot.slane %v725, 7
      %v817 = vrot.slane %v729, 7
      %v818 = vrot.slane %v733, 7
      %v819 = vrot.slane %v737, 7
      %v820 = vrot.slane %v741, 7
      %v821 = vrot.slane %v745, 7
      %v822 = vrot.slane %v749, 7
      %v823 = vrot.slane %v753, 7
      %v824 = vrot.slane %v757, 7
      %v825 = vrot.slane %v761, 7
      %v826 = vrot.slane %v765, 7
      %v827 = vrot.slane %v769, 7
      %v828 = vrot.slane %v773, 7
      %v829 = vrot.slane %v777, 7
      %v830 = vrot.slane %v781, 7
      %v831 = vrot.slane %v722, 7
      %v832 = vrot.slane %v726, 7
      %v833 = vrot.slane %v730, 7
      %v834 = vrot.slane %v734, 7
      %v835 = vrot.slane %v738, 7
      %v836 = vrot.slane %v742, 7
      %v837 = vrot.slane %v746, 7
      %v838 = vrot.slane %v750, 7
      %v839 = vrot.slane %v754, 7
      %v840 = vrot.slane %v758, 7
      %v841 = vrot.slane %v762, 7
      %v842 = vrot.slane %v766, 7
      %v843 = vrot.slane %v770, 7
      %v844 = vrot.slane %v774, 7
      %v845 = vrot.slane %v778, 7
      %v846 = vrot.slane %v782, 7
      %vm847 = vcmp.lt.s32.totalorder %v237, 1
      %v848 = vsel %vm847, %v815, %v831
      %v849 = vsel %vm847, %v816, %v832
      %v850 = vsel %vm847, %v817, %v833
      %v851 = vsel %vm847, %v818, %v834
      %v852 = vsel %vm847, %v819, %v835
      %v853 = vsel %vm847, %v820, %v836
      %v854 = vsel %vm847, %v821, %v837
      %v855 = vsel %vm847, %v822, %v838
      %v856 = vsel %vm847, %v823, %v839
      %v857 = vsel %vm847, %v824, %v840
      %v858 = vsel %vm847, %v825, %v841
      %v859 = vsel %vm847, %v826, %v842
      %v860 = vsel %vm847, %v827, %v843
      %v861 = vsel %vm847, %v828, %v844
      %v862 = vsel %vm847, %v829, %v845
      %v863 = vsel %vm847, %v830, %v846
      %v864 = vsel %vm847, %v799, %v815
      %v865 = vsel %vm847, %v800, %v816
      %v866 = vsel %vm847, %v801, %v817
      %v867 = vsel %vm847, %v802, %v818
      %v868 = vsel %vm847, %v803, %v819
      %v869 = vsel %vm847, %v804, %v820
      %v870 = vsel %vm847, %v805, %v821
      %v871 = vsel %vm847, %v806, %v822
      %v872 = vsel %vm847, %v807, %v823
      %v873 = vsel %vm847, %v808, %v824
      %v874 = vsel %vm847, %v809, %v825
      %v875 = vsel %vm847, %v810, %v826
      %v876 = vsel %vm847, %v811, %v827
      %v877 = vsel %vm847, %v812, %v828
      %v878 = vsel %vm847, %v813, %v829
      %v879 = vsel %vm847, %v814, %v830
      %v880 = vsel %vm847, %v783, %v799
      %v881 = vsel %vm847, %v784, %v800
      %v882 = vsel %vm847, %v785, %v801
      %v883 = vsel %vm847, %v786, %v802
      %v884 = vsel %vm847, %v787, %v803
      %v885 = vsel %vm847, %v788, %v804
      %v886 = vsel %vm847, %v789, %v805
      %v887 = vsel %vm847, %v790, %v806
      %v888 = vsel %vm847, %v791, %v807
      %v889 = vsel %vm847, %v792, %v808
      %v890 = vsel %vm847, %v793, %v809
      %v891 = vsel %vm847, %v794, %v810
      %v892 = vsel %vm847, %v795, %v811
      %v893 = vsel %vm847, %v796, %v812
      %v894 = vsel %vm847, %v797, %v813
      %v895 = vsel %vm847, %v798, %v814
      %v896 = vsel %vm847, %v831, %v783
      %v897 = vsel %vm847, %v832, %v784
      %v898 = vsel %vm847, %v833, %v785
      %v899 = vsel %vm847, %v834, %v786
      %v900 = vsel %vm847, %v835, %v787
      %v901 = vsel %vm847, %v836, %v788
      %v902 = vsel %vm847, %v837, %v789
      %v903 = vsel %vm847, %v838, %v790
      %v904 = vsel %vm847, %v839, %v791
      %v905 = vsel %vm847, %v840, %v792
      %v906 = vsel %vm847, %v841, %v793
      %v907 = vsel %vm847, %v842, %v794
      %v908 = vsel %vm847, %v843, %v795
      %v909 = vsel %vm847, %v844, %v796
      %v910 = vsel %vm847, %v845, %v797
      %v911 = vsel %vm847, %v846, %v798
      %v912 = vpack.c.bf16 %v880, %v896
      %v913 = vpack.c.bf16 %v848, %v864
      %v914 = vpack.c.bf16 %v881, %v897
      %v915 = vpack.c.bf16 %v849, %v865
      %v916 = vpack.c.bf16 %v882, %v898
      %v917 = vpack.c.bf16 %v850, %v866
      %v918 = vpack.c.bf16 %v883, %v899
      %v919 = vpack.c.bf16 %v851, %v867
      %v920 = vpack.c.bf16 %v884, %v900
      %v921 = vpack.c.bf16 %v852, %v868
      %v922 = vpack.c.bf16 %v885, %v901
      %v923 = vpack.c.bf16 %v853, %v869
      %v924 = vpack.c.bf16 %v886, %v902
      %v925 = vpack.c.bf16 %v854, %v870
      %v926 = vpack.c.bf16 %v887, %v903
      %v927 = vpack.c.bf16 %v855, %v871
      %v928 = vpack.c.bf16 %v888, %v904
      %v929 = vpack.c.bf16 %v856, %v872
      %v930 = vpack.c.bf16 %v889, %v905
      %v931 = vpack.c.bf16 %v857, %v873
      %v932 = vpack.c.bf16 %v890, %v906
      %v933 = vpack.c.bf16 %v858, %v874
      %v934 = vpack.c.bf16 %v891, %v907
      %v935 = vpack.c.bf16 %v859, %v875
      %v936 = vpack.c.bf16 %v892, %v908
      %v937 = vpack.c.bf16 %v860, %v876
      %v938 = vpack.c.bf16 %v893, %v909
      %v939 = vpack.c.bf16 %v861, %v877
      %v940 = vpack.c.bf16 %v894, %v910
      %v941 = vpack.c.bf16 %v862, %v878
      %v942 = vpack.c.bf16 %v895, %v911
      %v943 = vpack.c.bf16 %v863, %v879
      %v944 = vld [vmem:[%s3] sm:$0xf]
      %v945 = vld [vmem:[%s3 + $0x4] sm:$0xf]
      %v946 = vld [vmem:[%s3 + $0x8] sm:$0xf]
      %v947 = vld [vmem:[%s3 + $0xc] sm:$0xf]
      %v948 = vld [vmem:[%s3 + $0x10] sm:$0xf]
      %v949 = vld [vmem:[%s3 + $0x14] sm:$0xf]
      %v950 = vld [vmem:[%s3 + $0x18] sm:$0xf]
      %v951 = vld [vmem:[%s3 + $0x1c] sm:$0xf]
      %v952 = vld [vmem:[%s3 + $0x20] sm:$0xf]
      %v953 = vld [vmem:[%s3 + $0x24] sm:$0xf]
      %v954 = vld [vmem:[%s3 + $0x28] sm:$0xf]
      %v955 = vld [vmem:[%s3 + $0x2c] sm:$0xf]
      %v956 = vld [vmem:[%s3 + $0x30] sm:$0xf]
      %v957 = vld [vmem:[%s3 + $0x34] sm:$0xf]
      %v958 = vld [vmem:[%s3 + $0x38] sm:$0xf]
      %v959 = vld [vmem:[%s3 + $0x3c] sm:$0xf]
      %v960 = vpack.c.bf16 %v720, %v719
      %v961 = vpack.c.bf16 %v722, %v721
      %v962 = vpack.c.bf16 %v724, %v723
      %v963 = vpack.c.bf16 %v726, %v725
      %v964 = vpack.c.bf16 %v728, %v727
      %v965 = vpack.c.bf16 %v730, %v729
      %v966 = vpack.c.bf16 %v732, %v731
      %v967 = vpack.c.bf16 %v734, %v733
      %v968 = vpack.c.bf16 %v736, %v735
      %v969 = vpack.c.bf16 %v738, %v737
      %v970 = vpack.c.bf16 %v740, %v739
      %v971 = vpack.c.bf16 %v742, %v741
      %v972 = vpack.c.bf16 %v744, %v743
      %v973 = vpack.c.bf16 %v746, %v745
      %v974 = vpack.c.bf16 %v748, %v747
      %v975 = vpack.c.bf16 %v750, %v749
      %v976 = vpack.c.bf16 %v752, %v751
      %v977 = vpack.c.bf16 %v754, %v753
      %v978 = vpack.c.bf16 %v756, %v755
      %v979 = vpack.c.bf16 %v758, %v757
      %v980 = vpack.c.bf16 %v760, %v759
      %v981 = vpack.c.bf16 %v762, %v761
      %v982 = vpack.c.bf16 %v764, %v763
      %v983 = vpack.c.bf16 %v766, %v765
      %v984 = vpack.c.bf16 %v768, %v767
      %v985 = vpack.c.bf16 %v770, %v769
      %v986 = vpack.c.bf16 %v772, %v771
      %v987 = vpack.c.bf16 %v774, %v773
      %v988 = vpack.c.bf16 %v776, %v775
      %v989 = vpack.c.bf16 %v778, %v777
      %v990 = vpack.c.bf16 %v780, %v779
      %v991 = vpack.c.bf16 %v782, %v781
      %s992 = scalar_lea.vmem %s3, 64
      %v993 = vld [vmem:[%s992] sm:$0xf]
      %v994 = vld [vmem:[%s992 + $0x4] sm:$0xf]
      %v995 = vld [vmem:[%s992 + $0x8] sm:$0xf]
      %v996 = vld [vmem:[%s992 + $0xc] sm:$0xf]
      %v997 = vld [vmem:[%s992 + $0x10] sm:$0xf]
      %v998 = vld [vmem:[%s992 + $0x14] sm:$0xf]
      %v999 = vld [vmem:[%s992 + $0x18] sm:$0xf]
      %v1000 = vld [vmem:[%s992 + $0x1c] sm:$0xf]
      %v1001 = vld [vmem:[%s992 + $0x20] sm:$0xf]
      %v1002 = vld [vmem:[%s992 + $0x24] sm:$0xf]
      %v1003 = vld [vmem:[%s992 + $0x28] sm:$0xf]
      %v1004 = vld [vmem:[%s992 + $0x2c] sm:$0xf]
      %v1005 = vld [vmem:[%s992 + $0x30] sm:$0xf]
      %v1006 = vld [vmem:[%s992 + $0x34] sm:$0xf]
      %v1007 = vld [vmem:[%s992 + $0x38] sm:$0xf]
      %v1008 = vld [vmem:[%s992 + $0x3c] sm:$0xf]
      %v1025 = vunpack.c.l.b16 %v993
      %v1026 = vunpack.c.l.b16 %v994
      %v1027 = vunpack.c.l.b16 %v995
      %v1028 = vunpack.c.l.b16 %v996
      %v1029 = vunpack.c.l.b16 %v997
      %v1030 = vunpack.c.l.b16 %v998
      %v1031 = vunpack.c.l.b16 %v999
      %v1032 = vunpack.c.l.b16 %v1000
      %v1033 = vunpack.c.l.b16 %v1001
      %v1034 = vunpack.c.l.b16 %v1002
      %v1035 = vunpack.c.l.b16 %v1003
      %v1036 = vunpack.c.l.b16 %v1004
      %v1037 = vunpack.c.l.b16 %v1005
      %v1038 = vunpack.c.l.b16 %v1006
      %v1039 = vunpack.c.l.b16 %v1007
      %v1040 = vunpack.c.l.b16 %v1008
      %v1041 = vpack.c.b16 %v1026, %v1025
      %v1042 = vpack.c.b16 %v1028, %v1027
      %v1043 = vpack.c.b16 %v1030, %v1029
      %v1044 = vpack.c.b16 %v1032, %v1031
      %v1045 = vpack.c.b16 %v1034, %v1033
      %v1046 = vpack.c.b16 %v1036, %v1035
      %v1047 = vpack.c.b16 %v1038, %v1037
      %v1048 = vpack.c.b16 %v1040, %v1039
      %1057 = vmatpush.bf16.msra.mxu0 %v1048
      %1058 = vmatpush.bf16.msra.mxu0 %v1047
      %1059 = vmatpush.bf16.msra.mxu0 %v1046
      %1060 = vmatpush.bf16.msra.mxu0 %v1045
      %1061 = vmatpush.bf16.msra.mxu0 %v1044
      %1062 = vmatpush.bf16.msra.mxu0 %v1043
      %1063 = vmatpush.bf16.msra.mxu0 %v1042
      %1064 = vmatpush.bf16.msra.mxu0 %v1041
      %1065 = vmatmul.bf16.gmra.mxu0 %v960
      %v1066 = vpop.f32.mrf.mxu0
      %v1067 = vadd.f32 0.0, %v1066
      %v1068 = vpop.f32.mrf.mxu0
      %v1069 = vadd.f32 0.0, %v1068
      %1070 = vmatmul.bf16.gmra.mxu0 %v961
      %v1071 = vpop.f32.mrf.mxu0
      %v1072 = vadd.f32 0.0, %v1071
      %v1073 = vpop.f32.mrf.mxu0
      %v1074 = vadd.f32 0.0, %v1073
      %1075 = vmatmul.bf16.gmra.mxu0 %v962
      %v1076 = vpop.f32.mrf.mxu0
      %v1077 = vadd.f32 0.0, %v1076
      %v1078 = vpop.f32.mrf.mxu0
      %v1079 = vadd.f32 0.0, %v1078
      %1080 = vmatmul.bf16.gmra.mxu0 %v963
      %v1081 = vpop.f32.mrf.mxu0
      %v1082 = vadd.f32 0.0, %v1081
      %v1083 = vpop.f32.mrf.mxu0
      %v1084 = vadd.f32 0.0, %v1083
      %1085 = vmatmul.bf16.gmra.mxu0 %v964
      %v1086 = vpop.f32.mrf.mxu0
      %v1087 = vadd.f32 0.0, %v1086
      %v1088 = vpop.f32.mrf.mxu0
      %v1089 = vadd.f32 0.0, %v1088
      %1090 = vmatmul.bf16.gmra.mxu0 %v965
      %v1091 = vpop.f32.mrf.mxu0
      %v1092 = vadd.f32 0.0, %v1091
      %v1093 = vpop.f32.mrf.mxu0
      %v1094 = vadd.f32 0.0, %v1093
      %1095 = vmatmul.bf16.gmra.mxu0 %v966
      %v1096 = vpop.f32.mrf.mxu0
      %v1097 = vadd.f32 0.0, %v1096
      %v1098 = vpop.f32.mrf.mxu0
      %v1099 = vadd.f32 0.0, %v1098
      %1100 = vmatmul.bf16.gmra.mxu0 %v967
      %v1101 = vpop.f32.mrf.mxu0
      %v1102 = vadd.f32 0.0, %v1101
      %v1103 = vpop.f32.mrf.mxu0
      %v1104 = vadd.f32 0.0, %v1103
      %1105 = vmatmul.bf16.gmra.mxu0 %v968
      %v1106 = vpop.f32.mrf.mxu0
      %v1107 = vadd.f32 0.0, %v1106
      %v1108 = vpop.f32.mrf.mxu0
      %v1109 = vadd.f32 0.0, %v1108
      %1110 = vmatmul.bf16.gmra.mxu0 %v969
      %v1111 = vpop.f32.mrf.mxu0
      %v1112 = vadd.f32 0.0, %v1111
      %v1113 = vpop.f32.mrf.mxu0
      %v1114 = vadd.f32 0.0, %v1113
      %1115 = vmatmul.bf16.gmra.mxu0 %v970
      %v1116 = vpop.f32.mrf.mxu0
      %v1117 = vadd.f32 0.0, %v1116
      %v1118 = vpop.f32.mrf.mxu0
      %v1119 = vadd.f32 0.0, %v1118
      %1120 = vmatmul.bf16.gmra.mxu0 %v971
      %v1121 = vpop.f32.mrf.mxu0
      %v1122 = vadd.f32 0.0, %v1121
      %v1123 = vpop.f32.mrf.mxu0
      %v1124 = vadd.f32 0.0, %v1123
      %1125 = vmatmul.bf16.gmra.mxu0 %v972
      %v1126 = vpop.f32.mrf.mxu0
      %v1127 = vadd.f32 0.0, %v1126
      %v1128 = vpop.f32.mrf.mxu0
      %v1129 = vadd.f32 0.0, %v1128
      %1130 = vmatmul.bf16.gmra.mxu0 %v973
      %v1131 = vpop.f32.mrf.mxu0
      %v1132 = vadd.f32 0.0, %v1131
      %v1133 = vpop.f32.mrf.mxu0
      %v1134 = vadd.f32 0.0, %v1133
      %1135 = vmatmul.bf16.gmra.mxu0 %v974
      %v1136 = vpop.f32.mrf.mxu0
      %v1137 = vadd.f32 0.0, %v1136
      %v1138 = vpop.f32.mrf.mxu0
      %v1139 = vadd.f32 0.0, %v1138
      %1140 = vmatmul.bf16.gmra.mxu0 %v975
      %v1141 = vpop.f32.mrf.mxu0
      %v1142 = vadd.f32 0.0, %v1141
      %v1143 = vpop.f32.mrf.mxu0
      %v1144 = vadd.f32 0.0, %v1143
      %1145 = vmatmul.bf16.gmra.mxu0 %v976
      %v1146 = vpop.f32.mrf.mxu0
      %v1147 = vadd.f32 0.0, %v1146
      %v1148 = vpop.f32.mrf.mxu0
      %v1149 = vadd.f32 0.0, %v1148
      %1150 = vmatmul.bf16.gmra.mxu0 %v977
      %v1151 = vpop.f32.mrf.mxu0
      %v1152 = vadd.f32 0.0, %v1151
      %v1153 = vpop.f32.mrf.mxu0
      %v1154 = vadd.f32 0.0, %v1153
      %1155 = vmatmul.bf16.gmra.mxu0 %v978
      %v1156 = vpop.f32.mrf.mxu0
      %v1157 = vadd.f32 0.0, %v1156
      %v1158 = vpop.f32.mrf.mxu0
      %v1159 = vadd.f32 0.0, %v1158
      %1160 = vmatmul.bf16.gmra.mxu0 %v979
      %v1161 = vpop.f32.mrf.mxu0
      %v1162 = vadd.f32 0.0, %v1161
      %v1163 = vpop.f32.mrf.mxu0
      %v1164 = vadd.f32 0.0, %v1163
      %1165 = vmatmul.bf16.gmra.mxu0 %v980
      %v1166 = vpop.f32.mrf.mxu0
      %v1167 = vadd.f32 0.0, %v1166
      %v1168 = vpop.f32.mrf.mxu0
      %v1169 = vadd.f32 0.0, %v1168
      %1170 = vmatmul.bf16.gmra.mxu0 %v981
      %v1171 = vpop.f32.mrf.mxu0
      %v1172 = vadd.f32 0.0, %v1171
      %v1173 = vpop.f32.mrf.mxu0
      %v1174 = vadd.f32 0.0, %v1173
      %1175 = vmatmul.bf16.gmra.mxu0 %v982
      %v1176 = vpop.f32.mrf.mxu0
      %v1177 = vadd.f32 0.0, %v1176
      %v1178 = vpop.f32.mrf.mxu0
      %v1179 = vadd.f32 0.0, %v1178
      %1180 = vmatmul.bf16.gmra.mxu0 %v983
      %v1181 = vpop.f32.mrf.mxu0
      %v1182 = vadd.f32 0.0, %v1181
      %v1183 = vpop.f32.mrf.mxu0
      %v1184 = vadd.f32 0.0, %v1183
      %1185 = vmatmul.bf16.gmra.mxu0 %v984
      %v1186 = vpop.f32.mrf.mxu0
      %v1187 = vadd.f32 0.0, %v1186
      %v1188 = vpop.f32.mrf.mxu0
      %v1189 = vadd.f32 0.0, %v1188
      %1190 = vmatmul.bf16.gmra.mxu0 %v985
      %v1191 = vpop.f32.mrf.mxu0
      %v1192 = vadd.f32 0.0, %v1191
      %v1193 = vpop.f32.mrf.mxu0
      %v1194 = vadd.f32 0.0, %v1193
      %1195 = vmatmul.bf16.gmra.mxu0 %v986
      %v1196 = vpop.f32.mrf.mxu0
      %v1197 = vadd.f32 0.0, %v1196
      %v1198 = vpop.f32.mrf.mxu0
      %v1199 = vadd.f32 0.0, %v1198
      %1200 = vmatmul.bf16.gmra.mxu0 %v987
      %v1201 = vpop.f32.mrf.mxu0
      %v1202 = vadd.f32 0.0, %v1201
      %v1203 = vpop.f32.mrf.mxu0
      %v1204 = vadd.f32 0.0, %v1203
      %1205 = vmatmul.bf16.gmra.mxu0 %v988
      %v1206 = vpop.f32.mrf.mxu0
      %v1207 = vadd.f32 0.0, %v1206
      %v1208 = vpop.f32.mrf.mxu0
      %v1209 = vadd.f32 0.0, %v1208
      %1210 = vmatmul.bf16.gmra.mxu0 %v989
      %v1211 = vpop.f32.mrf.mxu0
      %v1212 = vadd.f32 0.0, %v1211
      %v1213 = vpop.f32.mrf.mxu0
      %v1214 = vadd.f32 0.0, %v1213
      %1215 = vmatmul.bf16.gmra.mxu0 %v990
      %v1216 = vpop.f32.mrf.mxu0
      %v1217 = vadd.f32 0.0, %v1216
      %v1218 = vpop.f32.mrf.mxu0
      %v1219 = vadd.f32 0.0, %v1218
      %1220 = vmatmul.bf16.gmra.mxu0 %v991
      %v1221 = vpop.f32.mrf.mxu0
      %v1222 = vadd.f32 0.0, %v1221
      %v1223 = vpop.f32.mrf.mxu0
      %v1224 = vadd.f32 0.0, %v1223
      %1225 = vdwg.mxu0
      %v1242 = vunpack.c.l.b16 %v944
      %v1243 = vunpack.c.l.b16 %v945
      %v1244 = vunpack.c.l.b16 %v946
      %v1245 = vunpack.c.l.b16 %v947
      %v1246 = vunpack.c.l.b16 %v948
      %v1247 = vunpack.c.l.b16 %v949
      %v1248 = vunpack.c.l.b16 %v950
      %v1249 = vunpack.c.l.b16 %v951
      %v1250 = vunpack.c.l.b16 %v952
      %v1251 = vunpack.c.l.b16 %v953
      %v1252 = vunpack.c.l.b16 %v954
      %v1253 = vunpack.c.l.b16 %v955
      %v1254 = vunpack.c.l.b16 %v956
      %v1255 = vunpack.c.l.b16 %v957
      %v1256 = vunpack.c.l.b16 %v958
      %v1257 = vunpack.c.l.b16 %v959
      %v1258 = vpack.c.b16 %v1243, %v1242
      %v1259 = vpack.c.b16 %v1245, %v1244
      %v1260 = vpack.c.b16 %v1247, %v1246
      %v1261 = vpack.c.b16 %v1249, %v1248
      %v1262 = vpack.c.b16 %v1251, %v1250
      %v1263 = vpack.c.b16 %v1253, %v1252
      %v1264 = vpack.c.b16 %v1255, %v1254
      %v1265 = vpack.c.b16 %v1257, %v1256
      %1274 = vmatpush.bf16.msra.mxu0 %v1265
      %1275 = vmatpush.bf16.msra.mxu0 %v1264
      %1276 = vmatpush.bf16.msra.mxu0 %v1263
      %1277 = vmatpush.bf16.msra.mxu0 %v1262
      %1278 = vmatpush.bf16.msra.mxu0 %v1261
      %1279 = vmatpush.bf16.msra.mxu0 %v1260
      %1280 = vmatpush.bf16.msra.mxu0 %v1259
      %1281 = vmatpush.bf16.msra.mxu0 %v1258
      %1282 = vmatmul.bf16.gmra.mxu0 %v912
      %v1283 = vpop.f32.mrf.mxu0
      %v1284 = vadd.f32 %v1067, %v1283
      %v1285 = vpop.f32.mrf.mxu0
      %v1286 = vadd.f32 %v1069, %v1285
      %1287 = vmatmul.bf16.gmra.mxu0 %v913
      %v1288 = vpop.f32.mrf.mxu0
      %v1289 = vadd.f32 %v1072, %v1288
      %v1290 = vpop.f32.mrf.mxu0
      %v1291 = vadd.f32 %v1074, %v1290
      %1292 = vmatmul.bf16.gmra.mxu0 %v914
      %v1293 = vpop.f32.mrf.mxu0
      %v1294 = vadd.f32 %v1077, %v1293
      %v1295 = vpop.f32.mrf.mxu0
      %v1296 = vadd.f32 %v1079, %v1295
      %1297 = vmatmul.bf16.gmra.mxu0 %v915
      %v1298 = vpop.f32.mrf.mxu0
      %v1299 = vadd.f32 %v1082, %v1298
      %v1300 = vpop.f32.mrf.mxu0
      %v1301 = vadd.f32 %v1084, %v1300
      %1302 = vmatmul.bf16.gmra.mxu0 %v916
      %v1303 = vpop.f32.mrf.mxu0
      %v1304 = vadd.f32 %v1087, %v1303
      %v1305 = vpop.f32.mrf.mxu0
      %v1306 = vadd.f32 %v1089, %v1305
      %1307 = vmatmul.bf16.gmra.mxu0 %v917
      %v1308 = vpop.f32.mrf.mxu0
      %v1309 = vadd.f32 %v1092, %v1308
      %v1310 = vpop.f32.mrf.mxu0
      %v1311 = vadd.f32 %v1094, %v1310
      %1312 = vmatmul.bf16.gmra.mxu0 %v918
      %v1313 = vpop.f32.mrf.mxu0
      %v1314 = vadd.f32 %v1097, %v1313
      %v1315 = vpop.f32.mrf.mxu0
      %v1316 = vadd.f32 %v1099, %v1315
      %1317 = vmatmul.bf16.gmra.mxu0 %v919
      %v1318 = vpop.f32.mrf.mxu0
      %v1319 = vadd.f32 %v1102, %v1318
      %v1320 = vpop.f32.mrf.mxu0
      %v1321 = vadd.f32 %v1104, %v1320
      %1322 = vmatmul.bf16.gmra.mxu0 %v920
      %v1323 = vpop.f32.mrf.mxu0
      %v1324 = vadd.f32 %v1107, %v1323
      %v1325 = vpop.f32.mrf.mxu0
      %v1326 = vadd.f32 %v1109, %v1325
      %1327 = vmatmul.bf16.gmra.mxu0 %v921
      %v1328 = vpop.f32.mrf.mxu0
      %v1329 = vadd.f32 %v1112, %v1328
      %v1330 = vpop.f32.mrf.mxu0
      %v1331 = vadd.f32 %v1114, %v1330
      %1332 = vmatmul.bf16.gmra.mxu0 %v922
      %v1333 = vpop.f32.mrf.mxu0
      %v1334 = vadd.f32 %v1117, %v1333
      %v1335 = vpop.f32.mrf.mxu0
      %v1336 = vadd.f32 %v1119, %v1335
      %1337 = vmatmul.bf16.gmra.mxu0 %v923
      %v1338 = vpop.f32.mrf.mxu0
      %v1339 = vadd.f32 %v1122, %v1338
      %v1340 = vpop.f32.mrf.mxu0
      %v1341 = vadd.f32 %v1124, %v1340
      %1342 = vmatmul.bf16.gmra.mxu0 %v924
      %v1343 = vpop.f32.mrf.mxu0
      %v1344 = vadd.f32 %v1127, %v1343
      %v1345 = vpop.f32.mrf.mxu0
      %v1346 = vadd.f32 %v1129, %v1345
      %1347 = vmatmul.bf16.gmra.mxu0 %v925
      %v1348 = vpop.f32.mrf.mxu0
      %v1349 = vadd.f32 %v1132, %v1348
      %v1350 = vpop.f32.mrf.mxu0
      %v1351 = vadd.f32 %v1134, %v1350
      %1352 = vmatmul.bf16.gmra.mxu0 %v926
      %v1353 = vpop.f32.mrf.mxu0
      %v1354 = vadd.f32 %v1137, %v1353
      %v1355 = vpop.f32.mrf.mxu0
      %v1356 = vadd.f32 %v1139, %v1355
      %1357 = vmatmul.bf16.gmra.mxu0 %v927
      %v1358 = vpop.f32.mrf.mxu0
      %v1359 = vadd.f32 %v1142, %v1358
      %v1360 = vpop.f32.mrf.mxu0
      %v1361 = vadd.f32 %v1144, %v1360
      %1362 = vmatmul.bf16.gmra.mxu0 %v928
      %v1363 = vpop.f32.mrf.mxu0
      %v1364 = vadd.f32 %v1147, %v1363
      %v1365 = vpop.f32.mrf.mxu0
      %v1366 = vadd.f32 %v1149, %v1365
      %1367 = vmatmul.bf16.gmra.mxu0 %v929
      %v1368 = vpop.f32.mrf.mxu0
      %v1369 = vadd.f32 %v1152, %v1368
      %v1370 = vpop.f32.mrf.mxu0
      %v1371 = vadd.f32 %v1154, %v1370
      %1372 = vmatmul.bf16.gmra.mxu0 %v930
      %v1373 = vpop.f32.mrf.mxu0
      %v1374 = vadd.f32 %v1157, %v1373
      %v1375 = vpop.f32.mrf.mxu0
      %v1376 = vadd.f32 %v1159, %v1375
      %1377 = vmatmul.bf16.gmra.mxu0 %v931
      %v1378 = vpop.f32.mrf.mxu0
      %v1379 = vadd.f32 %v1162, %v1378
      %v1380 = vpop.f32.mrf.mxu0
      %v1381 = vadd.f32 %v1164, %v1380
      %1382 = vmatmul.bf16.gmra.mxu0 %v932
      %v1383 = vpop.f32.mrf.mxu0
      %v1384 = vadd.f32 %v1167, %v1383
      %v1385 = vpop.f32.mrf.mxu0
      %v1386 = vadd.f32 %v1169, %v1385
      %1387 = vmatmul.bf16.gmra.mxu0 %v933
      %v1388 = vpop.f32.mrf.mxu0
      %v1389 = vadd.f32 %v1172, %v1388
      %v1390 = vpop.f32.mrf.mxu0
      %v1391 = vadd.f32 %v1174, %v1390
      %1392 = vmatmul.bf16.gmra.mxu0 %v934
      %v1393 = vpop.f32.mrf.mxu0
      %v1394 = vadd.f32 %v1177, %v1393
      %v1395 = vpop.f32.mrf.mxu0
      %v1396 = vadd.f32 %v1179, %v1395
      %1397 = vmatmul.bf16.gmra.mxu0 %v935
      %v1398 = vpop.f32.mrf.mxu0
      %v1399 = vadd.f32 %v1182, %v1398
      %v1400 = vpop.f32.mrf.mxu0
      %v1401 = vadd.f32 %v1184, %v1400
      %1402 = vmatmul.bf16.gmra.mxu0 %v936
      %v1403 = vpop.f32.mrf.mxu0
      %v1404 = vadd.f32 %v1187, %v1403
      %v1405 = vpop.f32.mrf.mxu0
      %v1406 = vadd.f32 %v1189, %v1405
      %1407 = vmatmul.bf16.gmra.mxu0 %v937
      %v1408 = vpop.f32.mrf.mxu0
      %v1409 = vadd.f32 %v1192, %v1408
      %v1410 = vpop.f32.mrf.mxu0
      %v1411 = vadd.f32 %v1194, %v1410
      %1412 = vmatmul.bf16.gmra.mxu0 %v938
      %v1413 = vpop.f32.mrf.mxu0
      %v1414 = vadd.f32 %v1197, %v1413
      %v1415 = vpop.f32.mrf.mxu0
      %v1416 = vadd.f32 %v1199, %v1415
      %1417 = vmatmul.bf16.gmra.mxu0 %v939
      %v1418 = vpop.f32.mrf.mxu0
      %v1419 = vadd.f32 %v1202, %v1418
      %v1420 = vpop.f32.mrf.mxu0
      %v1421 = vadd.f32 %v1204, %v1420
      %1422 = vmatmul.bf16.gmra.mxu0 %v940
      %v1423 = vpop.f32.mrf.mxu0
      %v1424 = vadd.f32 %v1207, %v1423
      %v1425 = vpop.f32.mrf.mxu0
      %v1426 = vadd.f32 %v1209, %v1425
      %1427 = vmatmul.bf16.gmra.mxu0 %v941
      %v1428 = vpop.f32.mrf.mxu0
      %v1429 = vadd.f32 %v1212, %v1428
      %v1430 = vpop.f32.mrf.mxu0
      %v1431 = vadd.f32 %v1214, %v1430
      %1432 = vmatmul.bf16.gmra.mxu0 %v942
      %v1433 = vpop.f32.mrf.mxu0
      %v1434 = vadd.f32 %v1217, %v1433
      %v1435 = vpop.f32.mrf.mxu0
      %v1436 = vadd.f32 %v1219, %v1435
      %1437 = vmatmul.bf16.gmra.mxu0 %v943
      %v1438 = vpop.f32.mrf.mxu0
      %v1439 = vadd.f32 %v1222, %v1438
      %v1440 = vpop.f32.mrf.mxu0
      %v1441 = vadd.f32 %v1224, %v1440
      %1442 = vdwg.mxu0
      %v1443 = vrot.slane %v719, 1
      %v1444 = vrot.slane %v723, 1
      %v1445 = vrot.slane %v727, 1
      %v1446 = vrot.slane %v731, 1
      %v1447 = vrot.slane %v735, 1
      %v1448 = vrot.slane %v739, 1
      %v1449 = vrot.slane %v743, 1
      %v1450 = vrot.slane %v747, 1
      %v1451 = vrot.slane %v751, 1
      %v1452 = vrot.slane %v755, 1
      %v1453 = vrot.slane %v759, 1
      %v1454 = vrot.slane %v763, 1
      %v1455 = vrot.slane %v767, 1
      %v1456 = vrot.slane %v771, 1
      %v1457 = vrot.slane %v775, 1
      %v1458 = vrot.slane %v779, 1
      %v1459 = vrot.slane %v720, 1
      %v1460 = vrot.slane %v724, 1
      %v1461 = vrot.slane %v728, 1
      %v1462 = vrot.slane %v732, 1
      %v1463 = vrot.slane %v736, 1
      %v1464 = vrot.slane %v740, 1
      %v1465 = vrot.slane %v744, 1
      %v1466 = vrot.slane %v748, 1
      %v1467 = vrot.slane %v752, 1
      %v1468 = vrot.slane %v756, 1
      %v1469 = vrot.slane %v760, 1
      %v1470 = vrot.slane %v764, 1
      %v1471 = vrot.slane %v768, 1
      %v1472 = vrot.slane %v772, 1
      %v1473 = vrot.slane %v776, 1
      %v1474 = vrot.slane %v780, 1
      %v1475 = vrot.slane %v721, 1
      %v1476 = vrot.slane %v725, 1
      %v1477 = vrot.slane %v729, 1
      %v1478 = vrot.slane %v733, 1
      %v1479 = vrot.slane %v737, 1
      %v1480 = vrot.slane %v741, 1
      %v1481 = vrot.slane %v745, 1
      %v1482 = vrot.slane %v749, 1
      %v1483 = vrot.slane %v753, 1
      %v1484 = vrot.slane %v757, 1
      %v1485 = vrot.slane %v761, 1
      %v1486 = vrot.slane %v765, 1
      %v1487 = vrot.slane %v769, 1
      %v1488 = vrot.slane %v773, 1
      %v1489 = vrot.slane %v777, 1
      %v1490 = vrot.slane %v781, 1
      %v1491 = vrot.slane %v722, 1
      %v1492 = vrot.slane %v726, 1
      %v1493 = vrot.slane %v730, 1
      %v1494 = vrot.slane %v734, 1
      %v1495 = vrot.slane %v738, 1
      %v1496 = vrot.slane %v742, 1
      %v1497 = vrot.slane %v746, 1
      %v1498 = vrot.slane %v750, 1
      %v1499 = vrot.slane %v754, 1
      %v1500 = vrot.slane %v758, 1
      %v1501 = vrot.slane %v762, 1
      %v1502 = vrot.slane %v766, 1
      %v1503 = vrot.slane %v770, 1
      %v1504 = vrot.slane %v774, 1
      %v1505 = vrot.slane %v778, 1
      %v1506 = vrot.slane %v782, 1
      %vm1507 = vcmp.lt.s32.totalorder %v237, 7
      %v1508 = vsel %vm1507, %v1475, %v1491
      %v1509 = vsel %vm1507, %v1476, %v1492
      %v1510 = vsel %vm1507, %v1477, %v1493
      %v1511 = vsel %vm1507, %v1478, %v1494
      %v1512 = vsel %vm1507, %v1479, %v1495
      %v1513 = vsel %vm1507, %v1480, %v1496
      %v1514 = vsel %vm1507, %v1481, %v1497
      %v1515 = vsel %vm1507, %v1482, %v1498
      %v1516 = vsel %vm1507, %v1483, %v1499
      %v1517 = vsel %vm1507, %v1484, %v1500
      %v1518 = vsel %vm1507, %v1485, %v1501
      %v1519 = vsel %vm1507, %v1486, %v1502
      %v1520 = vsel %vm1507, %v1487, %v1503
      %v1521 = vsel %vm1507, %v1488, %v1504
      %v1522 = vsel %vm1507, %v1489, %v1505
      %v1523 = vsel %vm1507, %v1490, %v1506
      %v1524 = vsel %vm1507, %v1459, %v1475
      %v1525 = vsel %vm1507, %v1460, %v1476
      %v1526 = vsel %vm1507, %v1461, %v1477
      %v1527 = vsel %vm1507, %v1462, %v1478
      %v1528 = vsel %vm1507, %v1463, %v1479
      %v1529 = vsel %vm1507, %v1464, %v1480
      %v1530 = vsel %vm1507, %v1465, %v1481
      %v1531 = vsel %vm1507, %v1466, %v1482
      %v1532 = vsel %vm1507, %v1467, %v1483
      %v1533 = vsel %vm1507, %v1468, %v1484
      %v1534 = vsel %vm1507, %v1469, %v1485
      %v1535 = vsel %vm1507, %v1470, %v1486
      %v1536 = vsel %vm1507, %v1471, %v1487
      %v1537 = vsel %vm1507, %v1472, %v1488
      %v1538 = vsel %vm1507, %v1473, %v1489
      %v1539 = vsel %vm1507, %v1474, %v1490
      %v1540 = vsel %vm1507, %v1443, %v1459
      %v1541 = vsel %vm1507, %v1444, %v1460
      %v1542 = vsel %vm1507, %v1445, %v1461
      %v1543 = vsel %vm1507, %v1446, %v1462
      %v1544 = vsel %vm1507, %v1447, %v1463
      %v1545 = vsel %vm1507, %v1448, %v1464
      %v1546 = vsel %vm1507, %v1449, %v1465
      %v1547 = vsel %vm1507, %v1450, %v1466
      %v1548 = vsel %vm1507, %v1451, %v1467
      %v1549 = vsel %vm1507, %v1452, %v1468
      %v1550 = vsel %vm1507, %v1453, %v1469
      %v1551 = vsel %vm1507, %v1454, %v1470
      %v1552 = vsel %vm1507, %v1455, %v1471
      %v1553 = vsel %vm1507, %v1456, %v1472
      %v1554 = vsel %vm1507, %v1457, %v1473
      %v1555 = vsel %vm1507, %v1458, %v1474
      %v1556 = vsel %vm1507, %v1491, %v1443
      %v1557 = vsel %vm1507, %v1492, %v1444
      %v1558 = vsel %vm1507, %v1493, %v1445
      %v1559 = vsel %vm1507, %v1494, %v1446
      %v1560 = vsel %vm1507, %v1495, %v1447
      %v1561 = vsel %vm1507, %v1496, %v1448
      %v1562 = vsel %vm1507, %v1497, %v1449
      %v1563 = vsel %vm1507, %v1498, %v1450
      %v1564 = vsel %vm1507, %v1499, %v1451
      %v1565 = vsel %vm1507, %v1500, %v1452
      %v1566 = vsel %vm1507, %v1501, %v1453
      %v1567 = vsel %vm1507, %v1502, %v1454
      %v1568 = vsel %vm1507, %v1503, %v1455
      %v1569 = vsel %vm1507, %v1504, %v1456
      %v1570 = vsel %vm1507, %v1505, %v1457
      %v1571 = vsel %vm1507, %v1506, %v1458
      %v1572 = vpack.c.bf16 %v1524, %v1540
      %v1573 = vpack.c.bf16 %v1556, %v1508
      %v1574 = vpack.c.bf16 %v1525, %v1541
      %v1575 = vpack.c.bf16 %v1557, %v1509
      %v1576 = vpack.c.bf16 %v1526, %v1542
      %v1577 = vpack.c.bf16 %v1558, %v1510
      %v1578 = vpack.c.bf16 %v1527, %v1543
      %v1579 = vpack.c.bf16 %v1559, %v1511
      %v1580 = vpack.c.bf16 %v1528, %v1544
      %v1581 = vpack.c.bf16 %v1560, %v1512
      %v1582 = vpack.c.bf16 %v1529, %v1545
      %v1583 = vpack.c.bf16 %v1561, %v1513
      %v1584 = vpack.c.bf16 %v1530, %v1546
      %v1585 = vpack.c.bf16 %v1562, %v1514
      %v1586 = vpack.c.bf16 %v1531, %v1547
      %v1587 = vpack.c.bf16 %v1563, %v1515
      %v1588 = vpack.c.bf16 %v1532, %v1548
      %v1589 = vpack.c.bf16 %v1564, %v1516
      %v1590 = vpack.c.bf16 %v1533, %v1549
      %v1591 = vpack.c.bf16 %v1565, %v1517
      %v1592 = vpack.c.bf16 %v1534, %v1550
      %v1593 = vpack.c.bf16 %v1566, %v1518
      %v1594 = vpack.c.bf16 %v1535, %v1551
      %v1595 = vpack.c.bf16 %v1567, %v1519
      %v1596 = vpack.c.bf16 %v1536, %v1552
      %v1597 = vpack.c.bf16 %v1568, %v1520
      %v1598 = vpack.c.bf16 %v1537, %v1553
      %v1599 = vpack.c.bf16 %v1569, %v1521
      %v1600 = vpack.c.bf16 %v1538, %v1554
      %v1601 = vpack.c.bf16 %v1570, %v1522
      %v1602 = vpack.c.bf16 %v1539, %v1555
      %v1603 = vpack.c.bf16 %v1571, %v1523
      %s1604 = scalar_lea.vmem %s3, 128
      %v1605 = vld [vmem:[%s1604] sm:$0xf]
      %v1606 = vld [vmem:[%s1604 + $0x4] sm:$0xf]
      %v1607 = vld [vmem:[%s1604 + $0x8] sm:$0xf]
      %v1608 = vld [vmem:[%s1604 + $0xc] sm:$0xf]
      %v1609 = vld [vmem:[%s1604 + $0x10] sm:$0xf]
      %v1610 = vld [vmem:[%s1604 + $0x14] sm:$0xf]
      %v1611 = vld [vmem:[%s1604 + $0x18] sm:$0xf]
      %v1612 = vld [vmem:[%s1604 + $0x1c] sm:$0xf]
      %v1613 = vld [vmem:[%s1604 + $0x20] sm:$0xf]
      %v1614 = vld [vmem:[%s1604 + $0x24] sm:$0xf]
      %v1615 = vld [vmem:[%s1604 + $0x28] sm:$0xf]
      %v1616 = vld [vmem:[%s1604 + $0x2c] sm:$0xf]
      %v1617 = vld [vmem:[%s1604 + $0x30] sm:$0xf]
      %v1618 = vld [vmem:[%s1604 + $0x34] sm:$0xf]
      %v1619 = vld [vmem:[%s1604 + $0x38] sm:$0xf]
      %v1620 = vld [vmem:[%s1604 + $0x3c] sm:$0xf]
      %v1637 = vunpack.c.l.b16 %v1605
      %v1638 = vunpack.c.l.b16 %v1606
      %v1639 = vunpack.c.l.b16 %v1607
      %v1640 = vunpack.c.l.b16 %v1608
      %v1641 = vunpack.c.l.b16 %v1609
      %v1642 = vunpack.c.l.b16 %v1610
      %v1643 = vunpack.c.l.b16 %v1611
      %v1644 = vunpack.c.l.b16 %v1612
      %v1645 = vunpack.c.l.b16 %v1613
      %v1646 = vunpack.c.l.b16 %v1614
      %v1647 = vunpack.c.l.b16 %v1615
      %v1648 = vunpack.c.l.b16 %v1616
      %v1649 = vunpack.c.l.b16 %v1617
      %v1650 = vunpack.c.l.b16 %v1618
      %v1651 = vunpack.c.l.b16 %v1619
      %v1652 = vunpack.c.l.b16 %v1620
      %v1653 = vpack.c.b16 %v1638, %v1637
      %v1654 = vpack.c.b16 %v1640, %v1639
      %v1655 = vpack.c.b16 %v1642, %v1641
      %v1656 = vpack.c.b16 %v1644, %v1643
      %v1657 = vpack.c.b16 %v1646, %v1645
      %v1658 = vpack.c.b16 %v1648, %v1647
      %v1659 = vpack.c.b16 %v1650, %v1649
      %v1660 = vpack.c.b16 %v1652, %v1651
      %1669 = vmatpush.bf16.msra.mxu0 %v1660
      %1670 = vmatpush.bf16.msra.mxu0 %v1659
      %1671 = vmatpush.bf16.msra.mxu0 %v1658
      %1672 = vmatpush.bf16.msra.mxu0 %v1657
      %1673 = vmatpush.bf16.msra.mxu0 %v1656
      %1674 = vmatpush.bf16.msra.mxu0 %v1655
      %1675 = vmatpush.bf16.msra.mxu0 %v1654
      %1676 = vmatpush.bf16.msra.mxu0 %v1653
      %1677 = vmatmul.bf16.gmra.mxu0 %v1572
      %v1678 = vpop.f32.mrf.mxu0
      %v1679 = vadd.f32 0.0, %v1678
      %v1680 = vpop.f32.mrf.mxu0
      %v1681 = vadd.f32 0.0, %v1680
      %1682 = vmatmul.bf16.gmra.mxu0 %v1573
      %v1683 = vpop.f32.mrf.mxu0
      %v1684 = vadd.f32 0.0, %v1683
      %v1685 = vpop.f32.mrf.mxu0
      %v1686 = vadd.f32 0.0, %v1685
      %1687 = vmatmul.bf16.gmra.mxu0 %v1574
      %v1688 = vpop.f32.mrf.mxu0
      %v1689 = vadd.f32 0.0, %v1688
      %v1690 = vpop.f32.mrf.mxu0
      %v1691 = vadd.f32 0.0, %v1690
      %1692 = vmatmul.bf16.gmra.mxu0 %v1575
      %v1693 = vpop.f32.mrf.mxu0
      %v1694 = vadd.f32 0.0, %v1693
      %v1695 = vpop.f32.mrf.mxu0
      %v1696 = vadd.f32 0.0, %v1695
      %1697 = vmatmul.bf16.gmra.mxu0 %v1576
      %v1698 = vpop.f32.mrf.mxu0
      %v1699 = vadd.f32 0.0, %v1698
      %v1700 = vpop.f32.mrf.mxu0
      %v1701 = vadd.f32 0.0, %v1700
      %1702 = vmatmul.bf16.gmra.mxu0 %v1577
      %v1703 = vpop.f32.mrf.mxu0
      %v1704 = vadd.f32 0.0, %v1703
      %v1705 = vpop.f32.mrf.mxu0
      %v1706 = vadd.f32 0.0, %v1705
      %1707 = vmatmul.bf16.gmra.mxu0 %v1578
      %v1708 = vpop.f32.mrf.mxu0
      %v1709 = vadd.f32 0.0, %v1708
      %v1710 = vpop.f32.mrf.mxu0
      %v1711 = vadd.f32 0.0, %v1710
      %1712 = vmatmul.bf16.gmra.mxu0 %v1579
      %v1713 = vpop.f32.mrf.mxu0
      %v1714 = vadd.f32 0.0, %v1713
      %v1715 = vpop.f32.mrf.mxu0
      %v1716 = vadd.f32 0.0, %v1715
      %1717 = vmatmul.bf16.gmra.mxu0 %v1580
      %v1718 = vpop.f32.mrf.mxu0
      %v1719 = vadd.f32 0.0, %v1718
      %v1720 = vpop.f32.mrf.mxu0
      %v1721 = vadd.f32 0.0, %v1720
      %1722 = vmatmul.bf16.gmra.mxu0 %v1581
      %v1723 = vpop.f32.mrf.mxu0
      %v1724 = vadd.f32 0.0, %v1723
      %v1725 = vpop.f32.mrf.mxu0
      %v1726 = vadd.f32 0.0, %v1725
      %1727 = vmatmul.bf16.gmra.mxu0 %v1582
      %v1728 = vpop.f32.mrf.mxu0
      %v1729 = vadd.f32 0.0, %v1728
      %v1730 = vpop.f32.mrf.mxu0
      %v1731 = vadd.f32 0.0, %v1730
      %1732 = vmatmul.bf16.gmra.mxu0 %v1583
      %v1733 = vpop.f32.mrf.mxu0
      %v1734 = vadd.f32 0.0, %v1733
      %v1735 = vpop.f32.mrf.mxu0
      %v1736 = vadd.f32 0.0, %v1735
      %1737 = vmatmul.bf16.gmra.mxu0 %v1584
      %v1738 = vpop.f32.mrf.mxu0
      %v1739 = vadd.f32 0.0, %v1738
      %v1740 = vpop.f32.mrf.mxu0
      %v1741 = vadd.f32 0.0, %v1740
      %1742 = vmatmul.bf16.gmra.mxu0 %v1585
      %v1743 = vpop.f32.mrf.mxu0
      %v1744 = vadd.f32 0.0, %v1743
      %v1745 = vpop.f32.mrf.mxu0
      %v1746 = vadd.f32 0.0, %v1745
      %1747 = vmatmul.bf16.gmra.mxu0 %v1586
      %v1748 = vpop.f32.mrf.mxu0
      %v1749 = vadd.f32 0.0, %v1748
      %v1750 = vpop.f32.mrf.mxu0
      %v1751 = vadd.f32 0.0, %v1750
      %1752 = vmatmul.bf16.gmra.mxu0 %v1587
      %v1753 = vpop.f32.mrf.mxu0
      %v1754 = vadd.f32 0.0, %v1753
      %v1755 = vpop.f32.mrf.mxu0
      %v1756 = vadd.f32 0.0, %v1755
      %1757 = vmatmul.bf16.gmra.mxu0 %v1588
      %v1758 = vpop.f32.mrf.mxu0
      %v1759 = vadd.f32 0.0, %v1758
      %v1760 = vpop.f32.mrf.mxu0
      %v1761 = vadd.f32 0.0, %v1760
      %1762 = vmatmul.bf16.gmra.mxu0 %v1589
      %v1763 = vpop.f32.mrf.mxu0
      %v1764 = vadd.f32 0.0, %v1763
      %v1765 = vpop.f32.mrf.mxu0
      %v1766 = vadd.f32 0.0, %v1765
      %1767 = vmatmul.bf16.gmra.mxu0 %v1590
      %v1768 = vpop.f32.mrf.mxu0
      %v1769 = vadd.f32 0.0, %v1768
      %v1770 = vpop.f32.mrf.mxu0
      %v1771 = vadd.f32 0.0, %v1770
      %1772 = vmatmul.bf16.gmra.mxu0 %v1591
      %v1773 = vpop.f32.mrf.mxu0
      %v1774 = vadd.f32 0.0, %v1773
      %v1775 = vpop.f32.mrf.mxu0
      %v1776 = vadd.f32 0.0, %v1775
      %1777 = vmatmul.bf16.gmra.mxu0 %v1592
      %v1778 = vpop.f32.mrf.mxu0
      %v1779 = vadd.f32 0.0, %v1778
      %v1780 = vpop.f32.mrf.mxu0
      %v1781 = vadd.f32 0.0, %v1780
      %1782 = vmatmul.bf16.gmra.mxu0 %v1593
      %v1783 = vpop.f32.mrf.mxu0
      %v1784 = vadd.f32 0.0, %v1783
      %v1785 = vpop.f32.mrf.mxu0
      %v1786 = vadd.f32 0.0, %v1785
      %1787 = vmatmul.bf16.gmra.mxu0 %v1594
      %v1788 = vpop.f32.mrf.mxu0
      %v1789 = vadd.f32 0.0, %v1788
      %v1790 = vpop.f32.mrf.mxu0
      %v1791 = vadd.f32 0.0, %v1790
      %1792 = vmatmul.bf16.gmra.mxu0 %v1595
      %v1793 = vpop.f32.mrf.mxu0
      %v1794 = vadd.f32 0.0, %v1793
      %v1795 = vpop.f32.mrf.mxu0
      %v1796 = vadd.f32 0.0, %v1795
      %1797 = vmatmul.bf16.gmra.mxu0 %v1596
      %v1798 = vpop.f32.mrf.mxu0
      %v1799 = vadd.f32 0.0, %v1798
      %v1800 = vpop.f32.mrf.mxu0
      %v1801 = vadd.f32 0.0, %v1800
      %1802 = vmatmul.bf16.gmra.mxu0 %v1597
      %v1803 = vpop.f32.mrf.mxu0
      %v1804 = vadd.f32 0.0, %v1803
      %v1805 = vpop.f32.mrf.mxu0
      %v1806 = vadd.f32 0.0, %v1805
      %1807 = vmatmul.bf16.gmra.mxu0 %v1598
      %v1808 = vpop.f32.mrf.mxu0
      %v1809 = vadd.f32 0.0, %v1808
      %v1810 = vpop.f32.mrf.mxu0
      %v1811 = vadd.f32 0.0, %v1810
      %1812 = vmatmul.bf16.gmra.mxu0 %v1599
      %v1813 = vpop.f32.mrf.mxu0
      %v1814 = vadd.f32 0.0, %v1813
      %v1815 = vpop.f32.mrf.mxu0
      %v1816 = vadd.f32 0.0, %v1815
      %1817 = vmatmul.bf16.gmra.mxu0 %v1600
      %v1818 = vpop.f32.mrf.mxu0
      %v1819 = vadd.f32 0.0, %v1818
      %v1820 = vpop.f32.mrf.mxu0
      %v1821 = vadd.f32 0.0, %v1820
      %1822 = vmatmul.bf16.gmra.mxu0 %v1601
      %v1823 = vpop.f32.mrf.mxu0
      %v1824 = vadd.f32 0.0, %v1823
      %v1825 = vpop.f32.mrf.mxu0
      %v1826 = vadd.f32 0.0, %v1825
      %1827 = vmatmul.bf16.gmra.mxu0 %v1602
      %v1828 = vpop.f32.mrf.mxu0
      %v1829 = vadd.f32 0.0, %v1828
      %v1830 = vpop.f32.mrf.mxu0
      %v1831 = vadd.f32 0.0, %v1830
      %1832 = vmatmul.bf16.gmra.mxu0 %v1603
      %v1833 = vpop.f32.mrf.mxu0
      %v1834 = vadd.f32 0.0, %v1833
      %v1835 = vpop.f32.mrf.mxu0
      %v1836 = vadd.f32 0.0, %v1835
      %1837 = vdwg.mxu0
      %v1838 = vadd.f32 %v1284, %v1679
      %v1839 = vadd.f32 %v1286, %v1681
      %v1840 = vadd.f32 %v1289, %v1684
      %v1841 = vadd.f32 %v1291, %v1686
      %v1842 = vadd.f32 %v1294, %v1689
      %v1843 = vadd.f32 %v1296, %v1691
      %v1844 = vadd.f32 %v1299, %v1694
      %v1845 = vadd.f32 %v1301, %v1696
      %v1846 = vadd.f32 %v1304, %v1699
      %v1847 = vadd.f32 %v1306, %v1701
      %v1848 = vadd.f32 %v1309, %v1704
      %v1849 = vadd.f32 %v1311, %v1706
      %v1850 = vadd.f32 %v1314, %v1709
      %v1851 = vadd.f32 %v1316, %v1711
      %v1852 = vadd.f32 %v1319, %v1714
      %v1853 = vadd.f32 %v1321, %v1716
      %v1854 = vadd.f32 %v1324, %v1719
      %v1855 = vadd.f32 %v1326, %v1721
      %v1856 = vadd.f32 %v1329, %v1724
      %v1857 = vadd.f32 %v1331, %v1726
      %v1858 = vadd.f32 %v1334, %v1729
      %v1859 = vadd.f32 %v1336, %v1731
      %v1860 = vadd.f32 %v1339, %v1734
      %v1861 = vadd.f32 %v1341, %v1736
      %v1862 = vadd.f32 %v1344, %v1739
      %v1863 = vadd.f32 %v1346, %v1741
      %v1864 = vadd.f32 %v1349, %v1744
      %v1865 = vadd.f32 %v1351, %v1746
      %v1866 = vadd.f32 %v1354, %v1749
      %v1867 = vadd.f32 %v1356, %v1751
      %v1868 = vadd.f32 %v1359, %v1754
      %v1869 = vadd.f32 %v1361, %v1756
      %v1870 = vadd.f32 %v1364, %v1759
      %v1871 = vadd.f32 %v1366, %v1761
      %v1872 = vadd.f32 %v1369, %v1764
      %v1873 = vadd.f32 %v1371, %v1766
      %v1874 = vadd.f32 %v1374, %v1769
      %v1875 = vadd.f32 %v1376, %v1771
      %v1876 = vadd.f32 %v1379, %v1774
      %v1877 = vadd.f32 %v1381, %v1776
      %v1878 = vadd.f32 %v1384, %v1779
      %v1879 = vadd.f32 %v1386, %v1781
      %v1880 = vadd.f32 %v1389, %v1784
      %v1881 = vadd.f32 %v1391, %v1786
      %v1882 = vadd.f32 %v1394, %v1789
      %v1883 = vadd.f32 %v1396, %v1791
      %v1884 = vadd.f32 %v1399, %v1794
      %v1885 = vadd.f32 %v1401, %v1796
      %v1886 = vadd.f32 %v1404, %v1799
      %v1887 = vadd.f32 %v1406, %v1801
      %v1888 = vadd.f32 %v1409, %v1804
      %v1889 = vadd.f32 %v1411, %v1806
      %v1890 = vadd.f32 %v1414, %v1809
      %v1891 = vadd.f32 %v1416, %v1811
      %v1892 = vadd.f32 %v1419, %v1814
      %v1893 = vadd.f32 %v1421, %v1816
      %v1894 = vadd.f32 %v1424, %v1819
      %v1895 = vadd.f32 %v1426, %v1821
      %v1896 = vadd.f32 %v1429, %v1824
      %v1897 = vadd.f32 %v1431, %v1826
      %v1898 = vadd.f32 %v1434, %v1829
      %v1899 = vadd.f32 %v1436, %v1831
      %v1900 = vadd.f32 %v1439, %v1834
      %v1901 = vadd.f32 %v1441, %v1836
      %v1902 = vld [vmem:[%s645] sm:$0xff]
      %v1903 = vld [vmem:[%s645 + $0x8] sm:$0xff]
      %v1904 = vld [vmem:[%s645 + $0x10] sm:$0xff]
      %v1905 = vld [vmem:[%s645 + $0x18] sm:$0xff]
      %v1906 = vld [vmem:[%s645 + $0x20] sm:$0xff]
      %v1907 = vld [vmem:[%s645 + $0x28] sm:$0xff]
      %v1908 = vld [vmem:[%s645 + $0x30] sm:$0xff]
      %v1909 = vld [vmem:[%s645 + $0x38] sm:$0xff]
      %v1910 = vld [vmem:[%s645 + $0x40] sm:$0xff]
      %v1911 = vld [vmem:[%s645 + $0x48] sm:$0xff]
      %v1912 = vld [vmem:[%s645 + $0x50] sm:$0xff]
      %v1913 = vld [vmem:[%s645 + $0x58] sm:$0xff]
      %v1914 = vld [vmem:[%s645 + $0x60] sm:$0xff]
      %v1915 = vld [vmem:[%s645 + $0x68] sm:$0xff]
      %v1916 = vld [vmem:[%s645 + $0x70] sm:$0xff]
      %v1917 = vld [vmem:[%s645 + $0x78] sm:$0xff]
      %v1918 = vld [vmem:[%s645 + $0x80] sm:$0xff]
      %v1919 = vld [vmem:[%s645 + $0x88] sm:$0xff]
      %v1920 = vld [vmem:[%s645 + $0x90] sm:$0xff]
      %v1921 = vld [vmem:[%s645 + $0x98] sm:$0xff]
      %v1922 = vld [vmem:[%s645 + $0xa0] sm:$0xff]
      %v1923 = vld [vmem:[%s645 + $0xa8] sm:$0xff]
      %v1924 = vld [vmem:[%s645 + $0xb0] sm:$0xff]
      %v1925 = vld [vmem:[%s645 + $0xb8] sm:$0xff]
      %v1926 = vld [vmem:[%s645 + $0xc0] sm:$0xff]
      %v1927 = vld [vmem:[%s645 + $0xc8] sm:$0xff]
      %v1928 = vld [vmem:[%s645 + $0xd0] sm:$0xff]
      %v1929 = vld [vmem:[%s645 + $0xd8] sm:$0xff]
      %v1930 = vld [vmem:[%s645 + $0xe0] sm:$0xff]
      %v1931 = vld [vmem:[%s645 + $0xe8] sm:$0xff]
      %v1932 = vld [vmem:[%s645 + $0xf0] sm:$0xff]
      %v1933 = vld [vmem:[%s645 + $0xf8] sm:$0xff]
      %v1934 = vld [vmem:[%s645 + $0x100] sm:$0xff]
      %v1935 = vld [vmem:[%s645 + $0x108] sm:$0xff]
      %v1936 = vld [vmem:[%s645 + $0x110] sm:$0xff]
      %v1937 = vld [vmem:[%s645 + $0x118] sm:$0xff]
      %v1938 = vld [vmem:[%s645 + $0x120] sm:$0xff]
      %v1939 = vld [vmem:[%s645 + $0x128] sm:$0xff]
      %v1940 = vld [vmem:[%s645 + $0x130] sm:$0xff]
      %v1941 = vld [vmem:[%s645 + $0x138] sm:$0xff]
      %v1942 = vld [vmem:[%s645 + $0x140] sm:$0xff]
      %v1943 = vld [vmem:[%s645 + $0x148] sm:$0xff]
      %v1944 = vld [vmem:[%s645 + $0x150] sm:$0xff]
      %v1945 = vld [vmem:[%s645 + $0x158] sm:$0xff]
      %v1946 = vld [vmem:[%s645 + $0x160] sm:$0xff]
      %v1947 = vld [vmem:[%s645 + $0x168] sm:$0xff]
      %v1948 = vld [vmem:[%s645 + $0x170] sm:$0xff]
      %v1949 = vld [vmem:[%s645 + $0x178] sm:$0xff]
      %v1950 = vld [vmem:[%s645 + $0x180] sm:$0xff]
      %v1951 = vld [vmem:[%s645 + $0x188] sm:$0xff]
      %v1952 = vld [vmem:[%s645 + $0x190] sm:$0xff]
      %v1953 = vld [vmem:[%s645 + $0x198] sm:$0xff]
      %v1954 = vld [vmem:[%s645 + $0x1a0] sm:$0xff]
      %v1955 = vld [vmem:[%s645 + $0x1a8] sm:$0xff]
      %v1956 = vld [vmem:[%s645 + $0x1b0] sm:$0xff]
      %v1957 = vld [vmem:[%s645 + $0x1b8] sm:$0xff]
      %v1958 = vld [vmem:[%s645 + $0x1c0] sm:$0xff]
      %v1959 = vld [vmem:[%s645 + $0x1c8] sm:$0xff]
      %v1960 = vld [vmem:[%s645 + $0x1d0] sm:$0xff]
      %v1961 = vld [vmem:[%s645 + $0x1d8] sm:$0xff]
      %v1962 = vld [vmem:[%s645 + $0x1e0] sm:$0xff]
      %v1963 = vld [vmem:[%s645 + $0x1e8] sm:$0xff]
      %v1964 = vld [vmem:[%s645 + $0x1f0] sm:$0xff]
      %v1965 = vld [vmem:[%s645 + $0x1f8] sm:$0xff]
      %v1966 = vrot.slane %v1902, 7
      %v1967 = vrot.slane %v1906, 7
      %v1968 = vrot.slane %v1910, 7
      %v1969 = vrot.slane %v1914, 7
      %v1970 = vrot.slane %v1918, 7
      %v1971 = vrot.slane %v1922, 7
      %v1972 = vrot.slane %v1926, 7
      %v1973 = vrot.slane %v1930, 7
      %v1974 = vrot.slane %v1934, 7
      %v1975 = vrot.slane %v1938, 7
      %v1976 = vrot.slane %v1942, 7
      %v1977 = vrot.slane %v1946, 7
      %v1978 = vrot.slane %v1950, 7
      %v1979 = vrot.slane %v1954, 7
      %v1980 = vrot.slane %v1958, 7
      %v1981 = vrot.slane %v1962, 7
      %v1982 = vrot.slane %v1903, 7
      %v1983 = vrot.slane %v1907, 7
      %v1984 = vrot.slane %v1911, 7
      %v1985 = vrot.slane %v1915, 7
      %v1986 = vrot.slane %v1919, 7
      %v1987 = vrot.slane %v1923, 7
      %v1988 = vrot.slane %v1927, 7
      %v1989 = vrot.slane %v1931, 7
      %v1990 = vrot.slane %v1935, 7
      %v1991 = vrot.slane %v1939, 7
      %v1992 = vrot.slane %v1943, 7
      %v1993 = vrot.slane %v1947, 7
      %v1994 = vrot.slane %v1951, 7
      %v1995 = vrot.slane %v1955, 7
      %v1996 = vrot.slane %v1959, 7
      %v1997 = vrot.slane %v1963, 7
      %v1998 = vrot.slane %v1904, 7
      %v1999 = vrot.slane %v1908, 7
      %v2000 = vrot.slane %v1912, 7
      %v2001 = vrot.slane %v1916, 7
      %v2002 = vrot.slane %v1920, 7
      %v2003 = vrot.slane %v1924, 7
      %v2004 = vrot.slane %v1928, 7
      %v2005 = vrot.slane %v1932, 7
      %v2006 = vrot.slane %v1936, 7
      %v2007 = vrot.slane %v1940, 7
      %v2008 = vrot.slane %v1944, 7
      %v2009 = vrot.slane %v1948, 7
      %v2010 = vrot.slane %v1952, 7
      %v2011 = vrot.slane %v1956, 7
      %v2012 = vrot.slane %v1960, 7
      %v2013 = vrot.slane %v1964, 7
      %v2014 = vrot.slane %v1905, 7
      %v2015 = vrot.slane %v1909, 7
      %v2016 = vrot.slane %v1913, 7
      %v2017 = vrot.slane %v1917, 7
      %v2018 = vrot.slane %v1921, 7
      %v2019 = vrot.slane %v1925, 7
      %v2020 = vrot.slane %v1929, 7
      %v2021 = vrot.slane %v1933, 7
      %v2022 = vrot.slane %v1937, 7
      %v2023 = vrot.slane %v1941, 7
      %v2024 = vrot.slane %v1945, 7
      %v2025 = vrot.slane %v1949, 7
      %v2026 = vrot.slane %v1953, 7
      %v2027 = vrot.slane %v1957, 7
      %v2028 = vrot.slane %v1961, 7
      %v2029 = vrot.slane %v1965, 7
      %v2030 = vsel %vm847, %v1998, %v2014
      %v2031 = vsel %vm847, %v1999, %v2015
      %v2032 = vsel %vm847, %v2000, %v2016
      %v2033 = vsel %vm847, %v2001, %v2017
      %v2034 = vsel %vm847, %v2002, %v2018
      %v2035 = vsel %vm847, %v2003, %v2019
      %v2036 = vsel %vm847, %v2004, %v2020
      %v2037 = vsel %vm847, %v2005, %v2021
      %v2038 = vsel %vm847, %v2006, %v2022
      %v2039 = vsel %vm847, %v2007, %v2023
      %v2040 = vsel %vm847, %v2008, %v2024
      %v2041 = vsel %vm847, %v2009, %v2025
      %v2042 = vsel %vm847, %v2010, %v2026
      %v2043 = vsel %vm847, %v2011, %v2027
      %v2044 = vsel %vm847, %v2012, %v2028
      %v2045 = vsel %vm847, %v2013, %v2029
      %v2046 = vsel %vm847, %v1982, %v1998
      %v2047 = vsel %vm847, %v1983, %v1999
      %v2048 = vsel %vm847, %v1984, %v2000
      %v2049 = vsel %vm847, %v1985, %v2001
      %v2050 = vsel %vm847, %v1986, %v2002
      %v2051 = vsel %vm847, %v1987, %v2003
      %v2052 = vsel %vm847, %v1988, %v2004
      %v2053 = vsel %vm847, %v1989, %v2005
      %v2054 = vsel %vm847, %v1990, %v2006
      %v2055 = vsel %vm847, %v1991, %v2007
      %v2056 = vsel %vm847, %v1992, %v2008
      %v2057 = vsel %vm847, %v1993, %v2009
      %v2058 = vsel %vm847, %v1994, %v2010
      %v2059 = vsel %vm847, %v1995, %v2011
      %v2060 = vsel %vm847, %v1996, %v2012
      %v2061 = vsel %vm847, %v1997, %v2013
      %v2062 = vsel %vm847, %v1966, %v1982
      %v2063 = vsel %vm847, %v1967, %v1983
      %v2064 = vsel %vm847, %v1968, %v1984
      %v2065 = vsel %vm847, %v1969, %v1985
      %v2066 = vsel %vm847, %v1970, %v1986
      %v2067 = vsel %vm847, %v1971, %v1987
      %v2068 = vsel %vm847, %v1972, %v1988
      %v2069 = vsel %vm847, %v1973, %v1989
      %v2070 = vsel %vm847, %v1974, %v1990
      %v2071 = vsel %vm847, %v1975, %v1991
      %v2072 = vsel %vm847, %v1976, %v1992
      %v2073 = vsel %vm847, %v1977, %v1993
      %v2074 = vsel %vm847, %v1978, %v1994
      %v2075 = vsel %vm847, %v1979, %v1995
      %v2076 = vsel %vm847, %v1980, %v1996
      %v2077 = vsel %vm847, %v1981, %v1997
      %v2078 = vsel %vm847, %v2014, %v1966
      %v2079 = vsel %vm847, %v2015, %v1967
      %v2080 = vsel %vm847, %v2016, %v1968
      %v2081 = vsel %vm847, %v2017, %v1969
      %v2082 = vsel %vm847, %v2018, %v1970
      %v2083 = vsel %vm847, %v2019, %v1971
      %v2084 = vsel %vm847, %v2020, %v1972
      %v2085 = vsel %vm847, %v2021, %v1973
      %v2086 = vsel %vm847, %v2022, %v1974
      %v2087 = vsel %vm847, %v2023, %v1975
      %v2088 = vsel %vm847, %v2024, %v1976
      %v2089 = vsel %vm847, %v2025, %v1977
      %v2090 = vsel %vm847, %v2026, %v1978
      %v2091 = vsel %vm847, %v2027, %v1979
      %v2092 = vsel %vm847, %v2028, %v1980
      %v2093 = vsel %vm847, %v2029, %v1981
      %v2094 = vpack.c.bf16 %v2062, %v2078
      %v2095 = vpack.c.bf16 %v2030, %v2046
      %v2096 = vpack.c.bf16 %v2063, %v2079
      %v2097 = vpack.c.bf16 %v2031, %v2047
      %v2098 = vpack.c.bf16 %v2064, %v2080
      %v2099 = vpack.c.bf16 %v2032, %v2048
      %v2100 = vpack.c.bf16 %v2065, %v2081
      %v2101 = vpack.c.bf16 %v2033, %v2049
      %v2102 = vpack.c.bf16 %v2066, %v2082
      %v2103 = vpack.c.bf16 %v2034, %v2050
      %v2104 = vpack.c.bf16 %v2067, %v2083
      %v2105 = vpack.c.bf16 %v2035, %v2051
      %v2106 = vpack.c.bf16 %v2068, %v2084
      %v2107 = vpack.c.bf16 %v2036, %v2052
      %v2108 = vpack.c.bf16 %v2069, %v2085
      %v2109 = vpack.c.bf16 %v2037, %v2053
      %v2110 = vpack.c.bf16 %v2070, %v2086
      %v2111 = vpack.c.bf16 %v2038, %v2054
      %v2112 = vpack.c.bf16 %v2071, %v2087
      %v2113 = vpack.c.bf16 %v2039, %v2055
      %v2114 = vpack.c.bf16 %v2072, %v2088
      %v2115 = vpack.c.bf16 %v2040, %v2056
      %v2116 = vpack.c.bf16 %v2073, %v2089
      %v2117 = vpack.c.bf16 %v2041, %v2057
      %v2118 = vpack.c.bf16 %v2074, %v2090
      %v2119 = vpack.c.bf16 %v2042, %v2058
      %v2120 = vpack.c.bf16 %v2075, %v2091
      %v2121 = vpack.c.bf16 %v2043, %v2059
      %v2122 = vpack.c.bf16 %v2076, %v2092
      %v2123 = vpack.c.bf16 %v2044, %v2060
      %v2124 = vpack.c.bf16 %v2077, %v2093
      %v2125 = vpack.c.bf16 %v2045, %v2061
      %s2126 = scalar_lea.vmem %s3, 192
      %v2127 = vld [vmem:[%s2126] sm:$0xf]
      %v2128 = vld [vmem:[%s2126 + $0x4] sm:$0xf]
      %v2129 = vld [vmem:[%s2126 + $0x8] sm:$0xf]
      %v2130 = vld [vmem:[%s2126 + $0xc] sm:$0xf]
      %v2131 = vld [vmem:[%s2126 + $0x10] sm:$0xf]
      %v2132 = vld [vmem:[%s2126 + $0x14] sm:$0xf]
      %v2133 = vld [vmem:[%s2126 + $0x18] sm:$0xf]
      %v2134 = vld [vmem:[%s2126 + $0x1c] sm:$0xf]
      %v2135 = vld [vmem:[%s2126 + $0x20] sm:$0xf]
      %v2136 = vld [vmem:[%s2126 + $0x24] sm:$0xf]
      %v2137 = vld [vmem:[%s2126 + $0x28] sm:$0xf]
      %v2138 = vld [vmem:[%s2126 + $0x2c] sm:$0xf]
      %v2139 = vld [vmem:[%s2126 + $0x30] sm:$0xf]
      %v2140 = vld [vmem:[%s2126 + $0x34] sm:$0xf]
      %v2141 = vld [vmem:[%s2126 + $0x38] sm:$0xf]
      %v2142 = vld [vmem:[%s2126 + $0x3c] sm:$0xf]
      %v2159 = vunpack.c.l.b16 %v2127
      %v2160 = vunpack.c.l.b16 %v2128
      %v2161 = vunpack.c.l.b16 %v2129
      %v2162 = vunpack.c.l.b16 %v2130
      %v2163 = vunpack.c.l.b16 %v2131
      %v2164 = vunpack.c.l.b16 %v2132
      %v2165 = vunpack.c.l.b16 %v2133
      %v2166 = vunpack.c.l.b16 %v2134
      %v2167 = vunpack.c.l.b16 %v2135
      %v2168 = vunpack.c.l.b16 %v2136
      %v2169 = vunpack.c.l.b16 %v2137
      %v2170 = vunpack.c.l.b16 %v2138
      %v2171 = vunpack.c.l.b16 %v2139
      %v2172 = vunpack.c.l.b16 %v2140
      %v2173 = vunpack.c.l.b16 %v2141
      %v2174 = vunpack.c.l.b16 %v2142
      %v2175 = vpack.c.b16 %v2160, %v2159
      %v2176 = vpack.c.b16 %v2162, %v2161
      %v2177 = vpack.c.b16 %v2164, %v2163
      %v2178 = vpack.c.b16 %v2166, %v2165
      %v2179 = vpack.c.b16 %v2168, %v2167
      %v2180 = vpack.c.b16 %v2170, %v2169
      %v2181 = vpack.c.b16 %v2172, %v2171
      %v2182 = vpack.c.b16 %v2174, %v2173
      %2191 = vmatpush.bf16.msra.mxu0 %v2182
      %2192 = vmatpush.bf16.msra.mxu0 %v2181
      %2193 = vmatpush.bf16.msra.mxu0 %v2180
      %2194 = vmatpush.bf16.msra.mxu0 %v2179
      %2195 = vmatpush.bf16.msra.mxu0 %v2178
      %2196 = vmatpush.bf16.msra.mxu0 %v2177
      %2197 = vmatpush.bf16.msra.mxu0 %v2176
      %2198 = vmatpush.bf16.msra.mxu0 %v2175
      %2199 = vmatmul.bf16.gmra.mxu0 %v2094
      %v2200 = vpop.f32.mrf.mxu0
      %v2201 = vadd.f32 0.0, %v2200
      %v2202 = vpop.f32.mrf.mxu0
      %v2203 = vadd.f32 0.0, %v2202
      %2204 = vmatmul.bf16.gmra.mxu0 %v2095
      %v2205 = vpop.f32.mrf.mxu0
      %v2206 = vadd.f32 0.0, %v2205
      %v2207 = vpop.f32.mrf.mxu0
      %v2208 = vadd.f32 0.0, %v2207
      %2209 = vmatmul.bf16.gmra.mxu0 %v2096
      %v2210 = vpop.f32.mrf.mxu0
      %v2211 = vadd.f32 0.0, %v2210
      %v2212 = vpop.f32.mrf.mxu0
      %v2213 = vadd.f32 0.0, %v2212
      %2214 = vmatmul.bf16.gmra.mxu0 %v2097
      %v2215 = vpop.f32.mrf.mxu0
      %v2216 = vadd.f32 0.0, %v2215
      %v2217 = vpop.f32.mrf.mxu0
      %v2218 = vadd.f32 0.0, %v2217
      %2219 = vmatmul.bf16.gmra.mxu0 %v2098
      %v2220 = vpop.f32.mrf.mxu0
      %v2221 = vadd.f32 0.0, %v2220
      %v2222 = vpop.f32.mrf.mxu0
      %v2223 = vadd.f32 0.0, %v2222
      %2224 = vmatmul.bf16.gmra.mxu0 %v2099
      %v2225 = vpop.f32.mrf.mxu0
      %v2226 = vadd.f32 0.0, %v2225
      %v2227 = vpop.f32.mrf.mxu0
      %v2228 = vadd.f32 0.0, %v2227
      %2229 = vmatmul.bf16.gmra.mxu0 %v2100
      %v2230 = vpop.f32.mrf.mxu0
      %v2231 = vadd.f32 0.0, %v2230
      %v2232 = vpop.f32.mrf.mxu0
      %v2233 = vadd.f32 0.0, %v2232
      %2234 = vmatmul.bf16.gmra.mxu0 %v2101
      %v2235 = vpop.f32.mrf.mxu0
      %v2236 = vadd.f32 0.0, %v2235
      %v2237 = vpop.f32.mrf.mxu0
      %v2238 = vadd.f32 0.0, %v2237
      %2239 = vmatmul.bf16.gmra.mxu0 %v2102
      %v2240 = vpop.f32.mrf.mxu0
      %v2241 = vadd.f32 0.0, %v2240
      %v2242 = vpop.f32.mrf.mxu0
      %v2243 = vadd.f32 0.0, %v2242
      %2244 = vmatmul.bf16.gmra.mxu0 %v2103
      %v2245 = vpop.f32.mrf.mxu0
      %v2246 = vadd.f32 0.0, %v2245
      %v2247 = vpop.f32.mrf.mxu0
      %v2248 = vadd.f32 0.0, %v2247
      %2249 = vmatmul.bf16.gmra.mxu0 %v2104
      %v2250 = vpop.f32.mrf.mxu0
      %v2251 = vadd.f32 0.0, %v2250
      %v2252 = vpop.f32.mrf.mxu0
      %v2253 = vadd.f32 0.0, %v2252
      %2254 = vmatmul.bf16.gmra.mxu0 %v2105
      %v2255 = vpop.f32.mrf.mxu0
      %v2256 = vadd.f32 0.0, %v2255
      %v2257 = vpop.f32.mrf.mxu0
      %v2258 = vadd.f32 0.0, %v2257
      %2259 = vmatmul.bf16.gmra.mxu0 %v2106
      %v2260 = vpop.f32.mrf.mxu0
      %v2261 = vadd.f32 0.0, %v2260
      %v2262 = vpop.f32.mrf.mxu0
      %v2263 = vadd.f32 0.0, %v2262
      %2264 = vmatmul.bf16.gmra.mxu0 %v2107
      %v2265 = vpop.f32.mrf.mxu0
      %v2266 = vadd.f32 0.0, %v2265
      %v2267 = vpop.f32.mrf.mxu0
      %v2268 = vadd.f32 0.0, %v2267
      %2269 = vmatmul.bf16.gmra.mxu0 %v2108
      %v2270 = vpop.f32.mrf.mxu0
      %v2271 = vadd.f32 0.0, %v2270
      %v2272 = vpop.f32.mrf.mxu0
      %v2273 = vadd.f32 0.0, %v2272
      %2274 = vmatmul.bf16.gmra.mxu0 %v2109
      %v2275 = vpop.f32.mrf.mxu0
      %v2276 = vadd.f32 0.0, %v2275
      %v2277 = vpop.f32.mrf.mxu0
      %v2278 = vadd.f32 0.0, %v2277
      %2279 = vmatmul.bf16.gmra.mxu0 %v2110
      %v2280 = vpop.f32.mrf.mxu0
      %v2281 = vadd.f32 0.0, %v2280
      %v2282 = vpop.f32.mrf.mxu0
      %v2283 = vadd.f32 0.0, %v2282
      %2284 = vmatmul.bf16.gmra.mxu0 %v2111
      %v2285 = vpop.f32.mrf.mxu0
      %v2286 = vadd.f32 0.0, %v2285
      %v2287 = vpop.f32.mrf.mxu0
      %v2288 = vadd.f32 0.0, %v2287
      %2289 = vmatmul.bf16.gmra.mxu0 %v2112
      %v2290 = vpop.f32.mrf.mxu0
      %v2291 = vadd.f32 0.0, %v2290
      %v2292 = vpop.f32.mrf.mxu0
      %v2293 = vadd.f32 0.0, %v2292
      %2294 = vmatmul.bf16.gmra.mxu0 %v2113
      %v2295 = vpop.f32.mrf.mxu0
      %v2296 = vadd.f32 0.0, %v2295
      %v2297 = vpop.f32.mrf.mxu0
      %v2298 = vadd.f32 0.0, %v2297
      %2299 = vmatmul.bf16.gmra.mxu0 %v2114
      %v2300 = vpop.f32.mrf.mxu0
      %v2301 = vadd.f32 0.0, %v2300
      %v2302 = vpop.f32.mrf.mxu0
      %v2303 = vadd.f32 0.0, %v2302
      %2304 = vmatmul.bf16.gmra.mxu0 %v2115
      %v2305 = vpop.f32.mrf.mxu0
      %v2306 = vadd.f32 0.0, %v2305
      %v2307 = vpop.f32.mrf.mxu0
      %v2308 = vadd.f32 0.0, %v2307
      %2309 = vmatmul.bf16.gmra.mxu0 %v2116
      %v2310 = vpop.f32.mrf.mxu0
      %v2311 = vadd.f32 0.0, %v2310
      %v2312 = vpop.f32.mrf.mxu0
      %v2313 = vadd.f32 0.0, %v2312
      %2314 = vmatmul.bf16.gmra.mxu0 %v2117
      %v2315 = vpop.f32.mrf.mxu0
      %v2316 = vadd.f32 0.0, %v2315
      %v2317 = vpop.f32.mrf.mxu0
      %v2318 = vadd.f32 0.0, %v2317
      %2319 = vmatmul.bf16.gmra.mxu0 %v2118
      %v2320 = vpop.f32.mrf.mxu0
      %v2321 = vadd.f32 0.0, %v2320
      %v2322 = vpop.f32.mrf.mxu0
      %v2323 = vadd.f32 0.0, %v2322
      %2324 = vmatmul.bf16.gmra.mxu0 %v2119
      %v2325 = vpop.f32.mrf.mxu0
      %v2326 = vadd.f32 0.0, %v2325
      %v2327 = vpop.f32.mrf.mxu0
      %v2328 = vadd.f32 0.0, %v2327
      %2329 = vmatmul.bf16.gmra.mxu0 %v2120
      %v2330 = vpop.f32.mrf.mxu0
      %v2331 = vadd.f32 0.0, %v2330
      %v2332 = vpop.f32.mrf.mxu0
      %v2333 = vadd.f32 0.0, %v2332
      %2334 = vmatmul.bf16.gmra.mxu0 %v2121
      %v2335 = vpop.f32.mrf.mxu0
      %v2336 = vadd.f32 0.0, %v2335
      %v2337 = vpop.f32.mrf.mxu0
      %v2338 = vadd.f32 0.0, %v2337
      %2339 = vmatmul.bf16.gmra.mxu0 %v2122
      %v2340 = vpop.f32.mrf.mxu0
      %v2341 = vadd.f32 0.0, %v2340
      %v2342 = vpop.f32.mrf.mxu0
      %v2343 = vadd.f32 0.0, %v2342
      %2344 = vmatmul.bf16.gmra.mxu0 %v2123
      %v2345 = vpop.f32.mrf.mxu0
      %v2346 = vadd.f32 0.0, %v2345
      %v2347 = vpop.f32.mrf.mxu0
      %v2348 = vadd.f32 0.0, %v2347
      %2349 = vmatmul.bf16.gmra.mxu0 %v2124
      %v2350 = vpop.f32.mrf.mxu0
      %v2351 = vadd.f32 0.0, %v2350
      %v2352 = vpop.f32.mrf.mxu0
      %v2353 = vadd.f32 0.0, %v2352
      %2354 = vmatmul.bf16.gmra.mxu0 %v2125
      %v2355 = vpop.f32.mrf.mxu0
      %v2356 = vadd.f32 0.0, %v2355
      %v2357 = vpop.f32.mrf.mxu0
      %v2358 = vadd.f32 0.0, %v2357
      %2359 = vdwg.mxu0
      %v2360 = vadd.f32 %v1838, %v2201
      %v2361 = vadd.f32 %v1839, %v2203
      %v2362 = vadd.f32 %v1840, %v2206
      %v2363 = vadd.f32 %v1841, %v2208
      %v2364 = vadd.f32 %v1842, %v2211
      %v2365 = vadd.f32 %v1843, %v2213
      %v2366 = vadd.f32 %v1844, %v2216
      %v2367 = vadd.f32 %v1845, %v2218
      %v2368 = vadd.f32 %v1846, %v2221
      %v2369 = vadd.f32 %v1847, %v2223
      %v2370 = vadd.f32 %v1848, %v2226
      %v2371 = vadd.f32 %v1849, %v2228
      %v2372 = vadd.f32 %v1850, %v2231
      %v2373 = vadd.f32 %v1851, %v2233
      %v2374 = vadd.f32 %v1852, %v2236
      %v2375 = vadd.f32 %v1853, %v2238
      %v2376 = vadd.f32 %v1854, %v2241
      %v2377 = vadd.f32 %v1855, %v2243
      %v2378 = vadd.f32 %v1856, %v2246
      %v2379 = vadd.f32 %v1857, %v2248
      %v2380 = vadd.f32 %v1858, %v2251
      %v2381 = vadd.f32 %v1859, %v2253
      %v2382 = vadd.f32 %v1860, %v2256
      %v2383 = vadd.f32 %v1861, %v2258
      %v2384 = vadd.f32 %v1862, %v2261
      %v2385 = vadd.f32 %v1863, %v2263
      %v2386 = vadd.f32 %v1864, %v2266
      %v2387 = vadd.f32 %v1865, %v2268
      %v2388 = vadd.f32 %v1866, %v2271
      %v2389 = vadd.f32 %v1867, %v2273
      %v2390 = vadd.f32 %v1868, %v2276
      %v2391 = vadd.f32 %v1869, %v2278
      %v2392 = vadd.f32 %v1870, %v2281
      %v2393 = vadd.f32 %v1871, %v2283
      %v2394 = vadd.f32 %v1872, %v2286
      %v2395 = vadd.f32 %v1873, %v2288
      %v2396 = vadd.f32 %v1874, %v2291
      %v2397 = vadd.f32 %v1875, %v2293
      %v2398 = vadd.f32 %v1876, %v2296
      %v2399 = vadd.f32 %v1877, %v2298
      %v2400 = vadd.f32 %v1878, %v2301
      %v2401 = vadd.f32 %v1879, %v2303
      %v2402 = vadd.f32 %v1880, %v2306
      %v2403 = vadd.f32 %v1881, %v2308
      %v2404 = vadd.f32 %v1882, %v2311
      %v2405 = vadd.f32 %v1883, %v2313
      %v2406 = vadd.f32 %v1884, %v2316
      %v2407 = vadd.f32 %v1885, %v2318
      %v2408 = vadd.f32 %v1886, %v2321
      %v2409 = vadd.f32 %v1887, %v2323
      %v2410 = vadd.f32 %v1888, %v2326
      %v2411 = vadd.f32 %v1889, %v2328
      %v2412 = vadd.f32 %v1890, %v2331
      %v2413 = vadd.f32 %v1891, %v2333
      %v2414 = vadd.f32 %v1892, %v2336
      %v2415 = vadd.f32 %v1893, %v2338
      %v2416 = vadd.f32 %v1894, %v2341
      %v2417 = vadd.f32 %v1895, %v2343
      %v2418 = vadd.f32 %v1896, %v2346
      %v2419 = vadd.f32 %v1897, %v2348
      %v2420 = vadd.f32 %v1898, %v2351
      %v2421 = vadd.f32 %v1899, %v2353
      %v2422 = vadd.f32 %v1900, %v2356
      %v2423 = vadd.f32 %v1901, %v2358
      %v2424 = vpack.c.bf16 %v1903, %v1902
      %v2425 = vpack.c.bf16 %v1905, %v1904
      %v2426 = vpack.c.bf16 %v1907, %v1906
      %v2427 = vpack.c.bf16 %v1909, %v1908
      %v2428 = vpack.c.bf16 %v1911, %v1910
      %v2429 = vpack.c.bf16 %v1913, %v1912
      %v2430 = vpack.c.bf16 %v1915, %v1914
      %v2431 = vpack.c.bf16 %v1917, %v1916
      %v2432 = vpack.c.bf16 %v1919, %v1918
      %v2433 = vpack.c.bf16 %v1921, %v1920
      %v2434 = vpack.c.bf16 %v1923, %v1922
      %v2435 = vpack.c.bf16 %v1925, %v1924
      %v2436 = vpack.c.bf16 %v1927, %v1926
      %v2437 = vpack.c.bf16 %v1929, %v1928
      %v2438 = vpack.c.bf16 %v1931, %v1930
      %v2439 = vpack.c.bf16 %v1933, %v1932
      %v2440 = vpack.c.bf16 %v1935, %v1934
      %v2441 = vpack.c.bf16 %v1937, %v1936
      %v2442 = vpack.c.bf16 %v1939, %v1938
      %v2443 = vpack.c.bf16 %v1941, %v1940
      %v2444 = vpack.c.bf16 %v1943, %v1942
      %v2445 = vpack.c.bf16 %v1945, %v1944
      %v2446 = vpack.c.bf16 %v1947, %v1946
      %v2447 = vpack.c.bf16 %v1949, %v1948
      %v2448 = vpack.c.bf16 %v1951, %v1950
      %v2449 = vpack.c.bf16 %v1953, %v1952
      %v2450 = vpack.c.bf16 %v1955, %v1954
      %v2451 = vpack.c.bf16 %v1957, %v1956
      %v2452 = vpack.c.bf16 %v1959, %v1958
      %v2453 = vpack.c.bf16 %v1961, %v1960
      %v2454 = vpack.c.bf16 %v1963, %v1962
      %v2455 = vpack.c.bf16 %v1965, %v1964
      %s2456 = scalar_lea.vmem %s3, 256
      %v2457 = vld [vmem:[%s2456] sm:$0xf]
      %v2458 = vld [vmem:[%s2456 + $0x4] sm:$0xf]
      %v2459 = vld [vmem:[%s2456 + $0x8] sm:$0xf]
      %v2460 = vld [vmem:[%s2456 + $0xc] sm:$0xf]
      %v2461 = vld [vmem:[%s2456 + $0x10] sm:$0xf]
      %v2462 = vld [vmem:[%s2456 + $0x14] sm:$0xf]
      %v2463 = vld [vmem:[%s2456 + $0x18] sm:$0xf]
      %v2464 = vld [vmem:[%s2456 + $0x1c] sm:$0xf]
      %v2465 = vld [vmem:[%s2456 + $0x20] sm:$0xf]
      %v2466 = vld [vmem:[%s2456 + $0x24] sm:$0xf]
      %v2467 = vld [vmem:[%s2456 + $0x28] sm:$0xf]
      %v2468 = vld [vmem:[%s2456 + $0x2c] sm:$0xf]
      %v2469 = vld [vmem:[%s2456 + $0x30] sm:$0xf]
      %v2470 = vld [vmem:[%s2456 + $0x34] sm:$0xf]
      %v2471 = vld [vmem:[%s2456 + $0x38] sm:$0xf]
      %v2472 = vld [vmem:[%s2456 + $0x3c] sm:$0xf]
      %v2489 = vunpack.c.l.b16 %v2457
      %v2490 = vunpack.c.l.b16 %v2458
      %v2491 = vunpack.c.l.b16 %v2459
      %v2492 = vunpack.c.l.b16 %v2460
      %v2493 = vunpack.c.l.b16 %v2461
      %v2494 = vunpack.c.l.b16 %v2462
      %v2495 = vunpack.c.l.b16 %v2463
      %v2496 = vunpack.c.l.b16 %v2464
      %v2497 = vunpack.c.l.b16 %v2465
      %v2498 = vunpack.c.l.b16 %v2466
      %v2499 = vunpack.c.l.b16 %v2467
      %v2500 = vunpack.c.l.b16 %v2468
      %v2501 = vunpack.c.l.b16 %v2469
      %v2502 = vunpack.c.l.b16 %v2470
      %v2503 = vunpack.c.l.b16 %v2471
      %v2504 = vunpack.c.l.b16 %v2472
      %v2505 = vpack.c.b16 %v2490, %v2489
      %v2506 = vpack.c.b16 %v2492, %v2491
      %v2507 = vpack.c.b16 %v2494, %v2493
      %v2508 = vpack.c.b16 %v2496, %v2495
      %v2509 = vpack.c.b16 %v2498, %v2497
      %v2510 = vpack.c.b16 %v2500, %v2499
      %v2511 = vpack.c.b16 %v2502, %v2501
      %v2512 = vpack.c.b16 %v2504, %v2503
      %2521 = vmatpush.bf16.msra.mxu0 %v2512
      %2522 = vmatpush.bf16.msra.mxu0 %v2511
      %2523 = vmatpush.bf16.msra.mxu0 %v2510
      %2524 = vmatpush.bf16.msra.mxu0 %v2509
      %2525 = vmatpush.bf16.msra.mxu0 %v2508
      %2526 = vmatpush.bf16.msra.mxu0 %v2507
      %2527 = vmatpush.bf16.msra.mxu0 %v2506
      %2528 = vmatpush.bf16.msra.mxu0 %v2505
      %2529 = vmatmul.bf16.gmra.mxu0 %v2424
      %v2530 = vpop.f32.mrf.mxu0
      %v2531 = vadd.f32 0.0, %v2530
      %v2532 = vpop.f32.mrf.mxu0
      %v2533 = vadd.f32 0.0, %v2532
      %2534 = vmatmul.bf16.gmra.mxu0 %v2425
      %v2535 = vpop.f32.mrf.mxu0
      %v2536 = vadd.f32 0.0, %v2535
      %v2537 = vpop.f32.mrf.mxu0
      %v2538 = vadd.f32 0.0, %v2537
      %2539 = vmatmul.bf16.gmra.mxu0 %v2426
      %v2540 = vpop.f32.mrf.mxu0
      %v2541 = vadd.f32 0.0, %v2540
      %v2542 = vpop.f32.mrf.mxu0
      %v2543 = vadd.f32 0.0, %v2542
      %2544 = vmatmul.bf16.gmra.mxu0 %v2427
      %v2545 = vpop.f32.mrf.mxu0
      %v2546 = vadd.f32 0.0, %v2545
      %v2547 = vpop.f32.mrf.mxu0
      %v2548 = vadd.f32 0.0, %v2547
      %2549 = vmatmul.bf16.gmra.mxu0 %v2428
      %v2550 = vpop.f32.mrf.mxu0
      %v2551 = vadd.f32 0.0, %v2550
      %v2552 = vpop.f32.mrf.mxu0
      %v2553 = vadd.f32 0.0, %v2552
      %2554 = vmatmul.bf16.gmra.mxu0 %v2429
      %v2555 = vpop.f32.mrf.mxu0
      %v2556 = vadd.f32 0.0, %v2555
      %v2557 = vpop.f32.mrf.mxu0
      %v2558 = vadd.f32 0.0, %v2557
      %2559 = vmatmul.bf16.gmra.mxu0 %v2430
      %v2560 = vpop.f32.mrf.mxu0
      %v2561 = vadd.f32 0.0, %v2560
      %v2562 = vpop.f32.mrf.mxu0
      %v2563 = vadd.f32 0.0, %v2562
      %2564 = vmatmul.bf16.gmra.mxu0 %v2431
      %v2565 = vpop.f32.mrf.mxu0
      %v2566 = vadd.f32 0.0, %v2565
      %v2567 = vpop.f32.mrf.mxu0
      %v2568 = vadd.f32 0.0, %v2567
      %2569 = vmatmul.bf16.gmra.mxu0 %v2432
      %v2570 = vpop.f32.mrf.mxu0
      %v2571 = vadd.f32 0.0, %v2570
      %v2572 = vpop.f32.mrf.mxu0
      %v2573 = vadd.f32 0.0, %v2572
      %2574 = vmatmul.bf16.gmra.mxu0 %v2433
      %v2575 = vpop.f32.mrf.mxu0
      %v2576 = vadd.f32 0.0, %v2575
      %v2577 = vpop.f32.mrf.mxu0
      %v2578 = vadd.f32 0.0, %v2577
      %2579 = vmatmul.bf16.gmra.mxu0 %v2434
      %v2580 = vpop.f32.mrf.mxu0
      %v2581 = vadd.f32 0.0, %v2580
      %v2582 = vpop.f32.mrf.mxu0
      %v2583 = vadd.f32 0.0, %v2582
      %2584 = vmatmul.bf16.gmra.mxu0 %v2435
      %v2585 = vpop.f32.mrf.mxu0
      %v2586 = vadd.f32 0.0, %v2585
      %v2587 = vpop.f32.mrf.mxu0
      %v2588 = vadd.f32 0.0, %v2587
      %2589 = vmatmul.bf16.gmra.mxu0 %v2436
      %v2590 = vpop.f32.mrf.mxu0
      %v2591 = vadd.f32 0.0, %v2590
      %v2592 = vpop.f32.mrf.mxu0
      %v2593 = vadd.f32 0.0, %v2592
      %2594 = vmatmul.bf16.gmra.mxu0 %v2437
      %v2595 = vpop.f32.mrf.mxu0
      %v2596 = vadd.f32 0.0, %v2595
      %v2597 = vpop.f32.mrf.mxu0
      %v2598 = vadd.f32 0.0, %v2597
      %2599 = vmatmul.bf16.gmra.mxu0 %v2438
      %v2600 = vpop.f32.mrf.mxu0
      %v2601 = vadd.f32 0.0, %v2600
      %v2602 = vpop.f32.mrf.mxu0
      %v2603 = vadd.f32 0.0, %v2602
      %2604 = vmatmul.bf16.gmra.mxu0 %v2439
      %v2605 = vpop.f32.mrf.mxu0
      %v2606 = vadd.f32 0.0, %v2605
      %v2607 = vpop.f32.mrf.mxu0
      %v2608 = vadd.f32 0.0, %v2607
      %2609 = vmatmul.bf16.gmra.mxu0 %v2440
      %v2610 = vpop.f32.mrf.mxu0
      %v2611 = vadd.f32 0.0, %v2610
      %v2612 = vpop.f32.mrf.mxu0
      %v2613 = vadd.f32 0.0, %v2612
      %2614 = vmatmul.bf16.gmra.mxu0 %v2441
      %v2615 = vpop.f32.mrf.mxu0
      %v2616 = vadd.f32 0.0, %v2615
      %v2617 = vpop.f32.mrf.mxu0
      %v2618 = vadd.f32 0.0, %v2617
      %2619 = vmatmul.bf16.gmra.mxu0 %v2442
      %v2620 = vpop.f32.mrf.mxu0
      %v2621 = vadd.f32 0.0, %v2620
      %v2622 = vpop.f32.mrf.mxu0
      %v2623 = vadd.f32 0.0, %v2622
      %2624 = vmatmul.bf16.gmra.mxu0 %v2443
      %v2625 = vpop.f32.mrf.mxu0
      %v2626 = vadd.f32 0.0, %v2625
      %v2627 = vpop.f32.mrf.mxu0
      %v2628 = vadd.f32 0.0, %v2627
      %2629 = vmatmul.bf16.gmra.mxu0 %v2444
      %v2630 = vpop.f32.mrf.mxu0
      %v2631 = vadd.f32 0.0, %v2630
      %v2632 = vpop.f32.mrf.mxu0
      %v2633 = vadd.f32 0.0, %v2632
      %2634 = vmatmul.bf16.gmra.mxu0 %v2445
      %v2635 = vpop.f32.mrf.mxu0
      %v2636 = vadd.f32 0.0, %v2635
      %v2637 = vpop.f32.mrf.mxu0
      %v2638 = vadd.f32 0.0, %v2637
      %2639 = vmatmul.bf16.gmra.mxu0 %v2446
      %v2640 = vpop.f32.mrf.mxu0
      %v2641 = vadd.f32 0.0, %v2640
      %v2642 = vpop.f32.mrf.mxu0
      %v2643 = vadd.f32 0.0, %v2642
      %2644 = vmatmul.bf16.gmra.mxu0 %v2447
      %v2645 = vpop.f32.mrf.mxu0
      %v2646 = vadd.f32 0.0, %v2645
      %v2647 = vpop.f32.mrf.mxu0
      %v2648 = vadd.f32 0.0, %v2647
      %2649 = vmatmul.bf16.gmra.mxu0 %v2448
      %v2650 = vpop.f32.mrf.mxu0
      %v2651 = vadd.f32 0.0, %v2650
      %v2652 = vpop.f32.mrf.mxu0
      %v2653 = vadd.f32 0.0, %v2652
      %2654 = vmatmul.bf16.gmra.mxu0 %v2449
      %v2655 = vpop.f32.mrf.mxu0
      %v2656 = vadd.f32 0.0, %v2655
      %v2657 = vpop.f32.mrf.mxu0
      %v2658 = vadd.f32 0.0, %v2657
      %2659 = vmatmul.bf16.gmra.mxu0 %v2450
      %v2660 = vpop.f32.mrf.mxu0
      %v2661 = vadd.f32 0.0, %v2660
      %v2662 = vpop.f32.mrf.mxu0
      %v2663 = vadd.f32 0.0, %v2662
      %2664 = vmatmul.bf16.gmra.mxu0 %v2451
      %v2665 = vpop.f32.mrf.mxu0
      %v2666 = vadd.f32 0.0, %v2665
      %v2667 = vpop.f32.mrf.mxu0
      %v2668 = vadd.f32 0.0, %v2667
      %2669 = vmatmul.bf16.gmra.mxu0 %v2452
      %v2670 = vpop.f32.mrf.mxu0
      %v2671 = vadd.f32 0.0, %v2670
      %v2672 = vpop.f32.mrf.mxu0
      %v2673 = vadd.f32 0.0, %v2672
      %2674 = vmatmul.bf16.gmra.mxu0 %v2453
      %v2675 = vpop.f32.mrf.mxu0
      %v2676 = vadd.f32 0.0, %v2675
      %v2677 = vpop.f32.mrf.mxu0
      %v2678 = vadd.f32 0.0, %v2677
      %2679 = vmatmul.bf16.gmra.mxu0 %v2454
      %v2680 = vpop.f32.mrf.mxu0
      %v2681 = vadd.f32 0.0, %v2680
      %v2682 = vpop.f32.mrf.mxu0
      %v2683 = vadd.f32 0.0, %v2682
      %2684 = vmatmul.bf16.gmra.mxu0 %v2455
      %v2685 = vpop.f32.mrf.mxu0
      %v2686 = vadd.f32 0.0, %v2685
      %v2687 = vpop.f32.mrf.mxu0
      %v2688 = vadd.f32 0.0, %v2687
      %2689 = vdwg.mxu0
      %v2690 = vadd.f32 %v2360, %v2531
      %v2691 = vadd.f32 %v2361, %v2533
      %v2692 = vadd.f32 %v2362, %v2536
      %v2693 = vadd.f32 %v2363, %v2538
      %v2694 = vadd.f32 %v2364, %v2541
      %v2695 = vadd.f32 %v2365, %v2543
      %v2696 = vadd.f32 %v2366, %v2546
      %v2697 = vadd.f32 %v2367, %v2548
      %v2698 = vadd.f32 %v2368, %v2551
      %v2699 = vadd.f32 %v2369, %v2553
      %v2700 = vadd.f32 %v2370, %v2556
      %v2701 = vadd.f32 %v2371, %v2558
      %v2702 = vadd.f32 %v2372, %v2561
      %v2703 = vadd.f32 %v2373, %v2563
      %v2704 = vadd.f32 %v2374, %v2566
      %v2705 = vadd.f32 %v2375, %v2568
      %v2706 = vadd.f32 %v2376, %v2571
      %v2707 = vadd.f32 %v2377, %v2573
      %v2708 = vadd.f32 %v2378, %v2576
      %v2709 = vadd.f32 %v2379, %v2578
      %v2710 = vadd.f32 %v2380, %v2581
      %v2711 = vadd.f32 %v2381, %v2583
      %v2712 = vadd.f32 %v2382, %v2586
      %v2713 = vadd.f32 %v2383, %v2588
      %v2714 = vadd.f32 %v2384, %v2591
      %v2715 = vadd.f32 %v2385, %v2593
      %v2716 = vadd.f32 %v2386, %v2596
      %v2717 = vadd.f32 %v2387, %v2598
      %v2718 = vadd.f32 %v2388, %v2601
      %v2719 = vadd.f32 %v2389, %v2603
      %v2720 = vadd.f32 %v2390, %v2606
      %v2721 = vadd.f32 %v2391, %v2608
      %v2722 = vadd.f32 %v2392, %v2611
      %v2723 = vadd.f32 %v2393, %v2613
      %v2724 = vadd.f32 %v2394, %v2616
      %v2725 = vadd.f32 %v2395, %v2618
      %v2726 = vadd.f32 %v2396, %v2621
      %v2727 = vadd.f32 %v2397, %v2623
      %v2728 = vadd.f32 %v2398, %v2626
      %v2729 = vadd.f32 %v2399, %v2628
      %v2730 = vadd.f32 %v2400, %v2631
      %v2731 = vadd.f32 %v2401, %v2633
      %v2732 = vadd.f32 %v2402, %v2636
      %v2733 = vadd.f32 %v2403, %v2638
      %v2734 = vadd.f32 %v2404, %v2641
      %v2735 = vadd.f32 %v2405, %v2643
      %v2736 = vadd.f32 %v2406, %v2646
      %v2737 = vadd.f32 %v2407, %v2648
      %v2738 = vadd.f32 %v2408, %v2651
      %v2739 = vadd.f32 %v2409, %v2653
      %v2740 = vadd.f32 %v2410, %v2656
      %v2741 = vadd.f32 %v2411, %v2658
      %v2742 = vadd.f32 %v2412, %v2661
      %v2743 = vadd.f32 %v2413, %v2663
      %v2744 = vadd.f32 %v2414, %v2666
      %v2745 = vadd.f32 %v2415, %v2668
      %v2746 = vadd.f32 %v2416, %v2671
      %v2747 = vadd.f32 %v2417, %v2673
      %v2748 = vadd.f32 %v2418, %v2676
      %v2749 = vadd.f32 %v2419, %v2678
      %v2750 = vadd.f32 %v2420, %v2681
      %v2751 = vadd.f32 %v2421, %v2683
      %v2752 = vadd.f32 %v2422, %v2686
      %v2753 = vadd.f32 %v2423, %v2688
      %v2754 = vrot.slane %v1902, 1
      %v2755 = vrot.slane %v1906, 1
      %v2756 = vrot.slane %v1910, 1
      %v2757 = vrot.slane %v1914, 1
      %v2758 = vrot.slane %v1918, 1
      %v2759 = vrot.slane %v1922, 1
      %v2760 = vrot.slane %v1926, 1
      %v2761 = vrot.slane %v1930, 1
      %v2762 = vrot.slane %v1934, 1
      %v2763 = vrot.slane %v1938, 1
      %v2764 = vrot.slane %v1942, 1
      %v2765 = vrot.slane %v1946, 1
      %v2766 = vrot.slane %v1950, 1
      %v2767 = vrot.slane %v1954, 1
      %v2768 = vrot.slane %v1958, 1
      %v2769 = vrot.slane %v1962, 1
      %v2770 = vrot.slane %v1903, 1
      %v2771 = vrot.slane %v1907, 1
      %v2772 = vrot.slane %v1911, 1
      %v2773 = vrot.slane %v1915, 1
      %v2774 = vrot.slane %v1919, 1
      %v2775 = vrot.slane %v1923, 1
      %v2776 = vrot.slane %v1927, 1
      %v2777 = vrot.slane %v1931, 1
      %v2778 = vrot.slane %v1935, 1
      %v2779 = vrot.slane %v1939, 1
      %v2780 = vrot.slane %v1943, 1
      %v2781 = vrot.slane %v1947, 1
      %v2782 = vrot.slane %v1951, 1
      %v2783 = vrot.slane %v1955, 1
      %v2784 = vrot.slane %v1959, 1
      %v2785 = vrot.slane %v1963, 1
      %v2786 = vrot.slane %v1904, 1
      %v2787 = vrot.slane %v1908, 1
      %v2788 = vrot.slane %v1912, 1
      %v2789 = vrot.slane %v1916, 1
      %v2790 = vrot.slane %v1920, 1
      %v2791 = vrot.slane %v1924, 1
      %v2792 = vrot.slane %v1928, 1
      %v2793 = vrot.slane %v1932, 1
      %v2794 = vrot.slane %v1936, 1
      %v2795 = vrot.slane %v1940, 1
      %v2796 = vrot.slane %v1944, 1
      %v2797 = vrot.slane %v1948, 1
      %v2798 = vrot.slane %v1952, 1
      %v2799 = vrot.slane %v1956, 1
      %v2800 = vrot.slane %v1960, 1
      %v2801 = vrot.slane %v1964, 1
      %v2802 = vrot.slane %v1905, 1
      %v2803 = vrot.slane %v1909, 1
      %v2804 = vrot.slane %v1913, 1
      %v2805 = vrot.slane %v1917, 1
      %v2806 = vrot.slane %v1921, 1
      %v2807 = vrot.slane %v1925, 1
      %v2808 = vrot.slane %v1929, 1
      %v2809 = vrot.slane %v1933, 1
      %v2810 = vrot.slane %v1937, 1
      %v2811 = vrot.slane %v1941, 1
      %v2812 = vrot.slane %v1945, 1
      %v2813 = vrot.slane %v1949, 1
      %v2814 = vrot.slane %v1953, 1
      %v2815 = vrot.slane %v1957, 1
      %v2816 = vrot.slane %v1961, 1
      %v2817 = vrot.slane %v1965, 1
      %v2818 = vsel %vm1507, %v2786, %v2802
      %v2819 = vsel %vm1507, %v2787, %v2803
      %v2820 = vsel %vm1507, %v2788, %v2804
      %v2821 = vsel %vm1507, %v2789, %v2805
      %v2822 = vsel %vm1507, %v2790, %v2806
      %v2823 = vsel %vm1507, %v2791, %v2807
      %v2824 = vsel %vm1507, %v2792, %v2808
      %v2825 = vsel %vm1507, %v2793, %v2809
      %v2826 = vsel %vm1507, %v2794, %v2810
      %v2827 = vsel %vm1507, %v2795, %v2811
      %v2828 = vsel %vm1507, %v2796, %v2812
      %v2829 = vsel %vm1507, %v2797, %v2813
      %v2830 = vsel %vm1507, %v2798, %v2814
      %v2831 = vsel %vm1507, %v2799, %v2815
      %v2832 = vsel %vm1507, %v2800, %v2816
      %v2833 = vsel %vm1507, %v2801, %v2817
      %v2834 = vsel %vm1507, %v2770, %v2786
      %v2835 = vsel %vm1507, %v2771, %v2787
      %v2836 = vsel %vm1507, %v2772, %v2788
      %v2837 = vsel %vm1507, %v2773, %v2789
      %v2838 = vsel %vm1507, %v2774, %v2790
      %v2839 = vsel %vm1507, %v2775, %v2791
      %v2840 = vsel %vm1507, %v2776, %v2792
      %v2841 = vsel %vm1507, %v2777, %v2793
      %v2842 = vsel %vm1507, %v2778, %v2794
      %v2843 = vsel %vm1507, %v2779, %v2795
      %v2844 = vsel %vm1507, %v2780, %v2796
      %v2845 = vsel %vm1507, %v2781, %v2797
      %v2846 = vsel %vm1507, %v2782, %v2798
      %v2847 = vsel %vm1507, %v2783, %v2799
      %v2848 = vsel %vm1507, %v2784, %v2800
      %v2849 = vsel %vm1507, %v2785, %v2801
      %v2850 = vsel %vm1507, %v2754, %v2770
      %v2851 = vsel %vm1507, %v2755, %v2771
      %v2852 = vsel %vm1507, %v2756, %v2772
      %v2853 = vsel %vm1507, %v2757, %v2773
      %v2854 = vsel %vm1507, %v2758, %v2774
      %v2855 = vsel %vm1507, %v2759, %v2775
      %v2856 = vsel %vm1507, %v2760, %v2776
      %v2857 = vsel %vm1507, %v2761, %v2777
      %v2858 = vsel %vm1507, %v2762, %v2778
      %v2859 = vsel %vm1507, %v2763, %v2779
      %v2860 = vsel %vm1507, %v2764, %v2780
      %v2861 = vsel %vm1507, %v2765, %v2781
      %v2862 = vsel %vm1507, %v2766, %v2782
      %v2863 = vsel %vm1507, %v2767, %v2783
      %v2864 = vsel %vm1507, %v2768, %v2784
      %v2865 = vsel %vm1507, %v2769, %v2785
      %v2866 = vsel %vm1507, %v2802, %v2754
      %v2867 = vsel %vm1507, %v2803, %v2755
      %v2868 = vsel %vm1507, %v2804, %v2756
      %v2869 = vsel %vm1507, %v2805, %v2757
      %v2870 = vsel %vm1507, %v2806, %v2758
      %v2871 = vsel %vm1507, %v2807, %v2759
      %v2872 = vsel %vm1507, %v2808, %v2760
      %v2873 = vsel %vm1507, %v2809, %v2761
      %v2874 = vsel %vm1507, %v2810, %v2762
      %v2875 = vsel %vm1507, %v2811, %v2763
      %v2876 = vsel %vm1507, %v2812, %v2764
      %v2877 = vsel %vm1507, %v2813, %v2765
      %v2878 = vsel %vm1507, %v2814, %v2766
      %v2879 = vsel %vm1507, %v2815, %v2767
      %v2880 = vsel %vm1507, %v2816, %v2768
      %v2881 = vsel %vm1507, %v2817, %v2769
      %v2882 = vpack.c.bf16 %v2834, %v2850
      %v2883 = vpack.c.bf16 %v2866, %v2818
      %v2884 = vpack.c.bf16 %v2835, %v2851
      %v2885 = vpack.c.bf16 %v2867, %v2819
      %v2886 = vpack.c.bf16 %v2836, %v2852
      %v2887 = vpack.c.bf16 %v2868, %v2820
      %v2888 = vpack.c.bf16 %v2837, %v2853
      %v2889 = vpack.c.bf16 %v2869, %v2821
      %v2890 = vpack.c.bf16 %v2838, %v2854
      %v2891 = vpack.c.bf16 %v2870, %v2822
      %v2892 = vpack.c.bf16 %v2839, %v2855
      %v2893 = vpack.c.bf16 %v2871, %v2823
      %v2894 = vpack.c.bf16 %v2840, %v2856
      %v2895 = vpack.c.bf16 %v2872, %v2824
      %v2896 = vpack.c.bf16 %v2841, %v2857
      %v2897 = vpack.c.bf16 %v2873, %v2825
      %v2898 = vpack.c.bf16 %v2842, %v2858
      %v2899 = vpack.c.bf16 %v2874, %v2826
      %v2900 = vpack.c.bf16 %v2843, %v2859
      %v2901 = vpack.c.bf16 %v2875, %v2827
      %v2902 = vpack.c.bf16 %v2844, %v2860
      %v2903 = vpack.c.bf16 %v2876, %v2828
      %v2904 = vpack.c.bf16 %v2845, %v2861
      %v2905 = vpack.c.bf16 %v2877, %v2829
      %v2906 = vpack.c.bf16 %v2846, %v2862
      %v2907 = vpack.c.bf16 %v2878, %v2830
      %v2908 = vpack.c.bf16 %v2847, %v2863
      %v2909 = vpack.c.bf16 %v2879, %v2831
      %v2910 = vpack.c.bf16 %v2848, %v2864
      %v2911 = vpack.c.bf16 %v2880, %v2832
      %v2912 = vpack.c.bf16 %v2849, %v2865
      %v2913 = vpack.c.bf16 %v2881, %v2833
      %s2914 = scalar_lea.vmem %s3, 320
      %v2915 = vld [vmem:[%s2914] sm:$0xf]
      %v2916 = vld [vmem:[%s2914 + $0x4] sm:$0xf]
      %v2917 = vld [vmem:[%s2914 + $0x8] sm:$0xf]
      %v2918 = vld [vmem:[%s2914 + $0xc] sm:$0xf]
      %v2919 = vld [vmem:[%s2914 + $0x10] sm:$0xf]
      %v2920 = vld [vmem:[%s2914 + $0x14] sm:$0xf]
      %v2921 = vld [vmem:[%s2914 + $0x18] sm:$0xf]
      %v2922 = vld [vmem:[%s2914 + $0x1c] sm:$0xf]
      %v2923 = vld [vmem:[%s2914 + $0x20] sm:$0xf]
      %v2924 = vld [vmem:[%s2914 + $0x24] sm:$0xf]
      %v2925 = vld [vmem:[%s2914 + $0x28] sm:$0xf]
      %v2926 = vld [vmem:[%s2914 + $0x2c] sm:$0xf]
      %v2927 = vld [vmem:[%s2914 + $0x30] sm:$0xf]
      %v2928 = vld [vmem:[%s2914 + $0x34] sm:$0xf]
      %v2929 = vld [vmem:[%s2914 + $0x38] sm:$0xf]
      %v2930 = vld [vmem:[%s2914 + $0x3c] sm:$0xf]
      %v2947 = vunpack.c.l.b16 %v2915
      %v2948 = vunpack.c.l.b16 %v2916
      %v2949 = vunpack.c.l.b16 %v2917
      %v2950 = vunpack.c.l.b16 %v2918
      %v2951 = vunpack.c.l.b16 %v2919
      %v2952 = vunpack.c.l.b16 %v2920
      %v2953 = vunpack.c.l.b16 %v2921
      %v2954 = vunpack.c.l.b16 %v2922
      %v2955 = vunpack.c.l.b16 %v2923
      %v2956 = vunpack.c.l.b16 %v2924
      %v2957 = vunpack.c.l.b16 %v2925
      %v2958 = vunpack.c.l.b16 %v2926
      %v2959 = vunpack.c.l.b16 %v2927
      %v2960 = vunpack.c.l.b16 %v2928
      %v2961 = vunpack.c.l.b16 %v2929
      %v2962 = vunpack.c.l.b16 %v2930
      %v2963 = vpack.c.b16 %v2948, %v2947
      %v2964 = vpack.c.b16 %v2950, %v2949
      %v2965 = vpack.c.b16 %v2952, %v2951
      %v2966 = vpack.c.b16 %v2954, %v2953
      %v2967 = vpack.c.b16 %v2956, %v2955
      %v2968 = vpack.c.b16 %v2958, %v2957
      %v2969 = vpack.c.b16 %v2960, %v2959
      %v2970 = vpack.c.b16 %v2962, %v2961
      %2979 = vmatpush.bf16.msra.mxu0 %v2970
      %2980 = vmatpush.bf16.msra.mxu0 %v2969
      %2981 = vmatpush.bf16.msra.mxu0 %v2968
      %2982 = vmatpush.bf16.msra.mxu0 %v2967
      %2983 = vmatpush.bf16.msra.mxu0 %v2966
      %2984 = vmatpush.bf16.msra.mxu0 %v2965
      %2985 = vmatpush.bf16.msra.mxu0 %v2964
      %2986 = vmatpush.bf16.msra.mxu0 %v2963
      %2987 = vmatmul.bf16.gmra.mxu0 %v2882
      %v2988 = vpop.f32.mrf.mxu0
      %v2989 = vadd.f32 0.0, %v2988
      %v2990 = vpop.f32.mrf.mxu0
      %v2991 = vadd.f32 0.0, %v2990
      %2992 = vmatmul.bf16.gmra.mxu0 %v2883
      %v2993 = vpop.f32.mrf.mxu0
      %v2994 = vadd.f32 0.0, %v2993
      %v2995 = vpop.f32.mrf.mxu0
      %v2996 = vadd.f32 0.0, %v2995
      %2997 = vmatmul.bf16.gmra.mxu0 %v2884
      %v2998 = vpop.f32.mrf.mxu0
      %v2999 = vadd.f32 0.0, %v2998
      %v3000 = vpop.f32.mrf.mxu0
      %v3001 = vadd.f32 0.0, %v3000
      %3002 = vmatmul.bf16.gmra.mxu0 %v2885
      %v3003 = vpop.f32.mrf.mxu0
      %v3004 = vadd.f32 0.0, %v3003
      %v3005 = vpop.f32.mrf.mxu0
      %v3006 = vadd.f32 0.0, %v3005
      %3007 = vmatmul.bf16.gmra.mxu0 %v2886
      %v3008 = vpop.f32.mrf.mxu0
      %v3009 = vadd.f32 0.0, %v3008
      %v3010 = vpop.f32.mrf.mxu0
      %v3011 = vadd.f32 0.0, %v3010
      %3012 = vmatmul.bf16.gmra.mxu0 %v2887
      %v3013 = vpop.f32.mrf.mxu0
      %v3014 = vadd.f32 0.0, %v3013
      %v3015 = vpop.f32.mrf.mxu0
      %v3016 = vadd.f32 0.0, %v3015
      %3017 = vmatmul.bf16.gmra.mxu0 %v2888
      %v3018 = vpop.f32.mrf.mxu0
      %v3019 = vadd.f32 0.0, %v3018
      %v3020 = vpop.f32.mrf.mxu0
      %v3021 = vadd.f32 0.0, %v3020
      %3022 = vmatmul.bf16.gmra.mxu0 %v2889
      %v3023 = vpop.f32.mrf.mxu0
      %v3024 = vadd.f32 0.0, %v3023
      %v3025 = vpop.f32.mrf.mxu0
      %v3026 = vadd.f32 0.0, %v3025
      %3027 = vmatmul.bf16.gmra.mxu0 %v2890
      %v3028 = vpop.f32.mrf.mxu0
      %v3029 = vadd.f32 0.0, %v3028
      %v3030 = vpop.f32.mrf.mxu0
      %v3031 = vadd.f32 0.0, %v3030
      %3032 = vmatmul.bf16.gmra.mxu0 %v2891
      %v3033 = vpop.f32.mrf.mxu0
      %v3034 = vadd.f32 0.0, %v3033
      %v3035 = vpop.f32.mrf.mxu0
      %v3036 = vadd.f32 0.0, %v3035
      %3037 = vmatmul.bf16.gmra.mxu0 %v2892
      %v3038 = vpop.f32.mrf.mxu0
      %v3039 = vadd.f32 0.0, %v3038
      %v3040 = vpop.f32.mrf.mxu0
      %v3041 = vadd.f32 0.0, %v3040
      %3042 = vmatmul.bf16.gmra.mxu0 %v2893
      %v3043 = vpop.f32.mrf.mxu0
      %v3044 = vadd.f32 0.0, %v3043
      %v3045 = vpop.f32.mrf.mxu0
      %v3046 = vadd.f32 0.0, %v3045
      %3047 = vmatmul.bf16.gmra.mxu0 %v2894
      %v3048 = vpop.f32.mrf.mxu0
      %v3049 = vadd.f32 0.0, %v3048
      %v3050 = vpop.f32.mrf.mxu0
      %v3051 = vadd.f32 0.0, %v3050
      %3052 = vmatmul.bf16.gmra.mxu0 %v2895
      %v3053 = vpop.f32.mrf.mxu0
      %v3054 = vadd.f32 0.0, %v3053
      %v3055 = vpop.f32.mrf.mxu0
      %v3056 = vadd.f32 0.0, %v3055
      %3057 = vmatmul.bf16.gmra.mxu0 %v2896
      %v3058 = vpop.f32.mrf.mxu0
      %v3059 = vadd.f32 0.0, %v3058
      %v3060 = vpop.f32.mrf.mxu0
      %v3061 = vadd.f32 0.0, %v3060
      %3062 = vmatmul.bf16.gmra.mxu0 %v2897
      %v3063 = vpop.f32.mrf.mxu0
      %v3064 = vadd.f32 0.0, %v3063
      %v3065 = vpop.f32.mrf.mxu0
      %v3066 = vadd.f32 0.0, %v3065
      %3067 = vmatmul.bf16.gmra.mxu0 %v2898
      %v3068 = vpop.f32.mrf.mxu0
      %v3069 = vadd.f32 0.0, %v3068
      %v3070 = vpop.f32.mrf.mxu0
      %v3071 = vadd.f32 0.0, %v3070
      %3072 = vmatmul.bf16.gmra.mxu0 %v2899
      %v3073 = vpop.f32.mrf.mxu0
      %v3074 = vadd.f32 0.0, %v3073
      %v3075 = vpop.f32.mrf.mxu0
      %v3076 = vadd.f32 0.0, %v3075
      %3077 = vmatmul.bf16.gmra.mxu0 %v2900
      %v3078 = vpop.f32.mrf.mxu0
      %v3079 = vadd.f32 0.0, %v3078
      %v3080 = vpop.f32.mrf.mxu0
      %v3081 = vadd.f32 0.0, %v3080
      %3082 = vmatmul.bf16.gmra.mxu0 %v2901
      %v3083 = vpop.f32.mrf.mxu0
      %v3084 = vadd.f32 0.0, %v3083
      %v3085 = vpop.f32.mrf.mxu0
      %v3086 = vadd.f32 0.0, %v3085
      %3087 = vmatmul.bf16.gmra.mxu0 %v2902
      %v3088 = vpop.f32.mrf.mxu0
      %v3089 = vadd.f32 0.0, %v3088
      %v3090 = vpop.f32.mrf.mxu0
      %v3091 = vadd.f32 0.0, %v3090
      %3092 = vmatmul.bf16.gmra.mxu0 %v2903
      %v3093 = vpop.f32.mrf.mxu0
      %v3094 = vadd.f32 0.0, %v3093
      %v3095 = vpop.f32.mrf.mxu0
      %v3096 = vadd.f32 0.0, %v3095
      %3097 = vmatmul.bf16.gmra.mxu0 %v2904
      %v3098 = vpop.f32.mrf.mxu0
      %v3099 = vadd.f32 0.0, %v3098
      %v3100 = vpop.f32.mrf.mxu0
      %v3101 = vadd.f32 0.0, %v3100
      %3102 = vmatmul.bf16.gmra.mxu0 %v2905
      %v3103 = vpop.f32.mrf.mxu0
      %v3104 = vadd.f32 0.0, %v3103
      %v3105 = vpop.f32.mrf.mxu0
      %v3106 = vadd.f32 0.0, %v3105
      %3107 = vmatmul.bf16.gmra.mxu0 %v2906
      %v3108 = vpop.f32.mrf.mxu0
      %v3109 = vadd.f32 0.0, %v3108
      %v3110 = vpop.f32.mrf.mxu0
      %v3111 = vadd.f32 0.0, %v3110
      %3112 = vmatmul.bf16.gmra.mxu0 %v2907
      %v3113 = vpop.f32.mrf.mxu0
      %v3114 = vadd.f32 0.0, %v3113
      %v3115 = vpop.f32.mrf.mxu0
      %v3116 = vadd.f32 0.0, %v3115
      %3117 = vmatmul.bf16.gmra.mxu0 %v2908
      %v3118 = vpop.f32.mrf.mxu0
      %v3119 = vadd.f32 0.0, %v3118
      %v3120 = vpop.f32.mrf.mxu0
      %v3121 = vadd.f32 0.0, %v3120
      %3122 = vmatmul.bf16.gmra.mxu0 %v2909
      %v3123 = vpop.f32.mrf.mxu0
      %v3124 = vadd.f32 0.0, %v3123
      %v3125 = vpop.f32.mrf.mxu0
      %v3126 = vadd.f32 0.0, %v3125
      %3127 = vmatmul.bf16.gmra.mxu0 %v2910
      %v3128 = vpop.f32.mrf.mxu0
      %v3129 = vadd.f32 0.0, %v3128
      %v3130 = vpop.f32.mrf.mxu0
      %v3131 = vadd.f32 0.0, %v3130
      %3132 = vmatmul.bf16.gmra.mxu0 %v2911
      %v3133 = vpop.f32.mrf.mxu0
      %v3134 = vadd.f32 0.0, %v3133
      %v3135 = vpop.f32.mrf.mxu0
      %v3136 = vadd.f32 0.0, %v3135
      %3137 = vmatmul.bf16.gmra.mxu0 %v2912
      %v3138 = vpop.f32.mrf.mxu0
      %v3139 = vadd.f32 0.0, %v3138
      %v3140 = vpop.f32.mrf.mxu0
      %v3141 = vadd.f32 0.0, %v3140
      %3142 = vmatmul.bf16.gmra.mxu0 %v2913
      %v3143 = vpop.f32.mrf.mxu0
      %v3144 = vadd.f32 0.0, %v3143
      %v3145 = vpop.f32.mrf.mxu0
      %v3146 = vadd.f32 0.0, %v3145
      %3147 = vdwg.mxu0
      %v3148 = vadd.f32 %v2690, %v2989
      %v3149 = vadd.f32 %v2691, %v2991
      %v3150 = vadd.f32 %v2692, %v2994
      %v3151 = vadd.f32 %v2693, %v2996
      %v3152 = vadd.f32 %v2694, %v2999
      %v3153 = vadd.f32 %v2695, %v3001
      %v3154 = vadd.f32 %v2696, %v3004
      %v3155 = vadd.f32 %v2697, %v3006
      %v3156 = vadd.f32 %v2698, %v3009
      %v3157 = vadd.f32 %v2699, %v3011
      %v3158 = vadd.f32 %v2700, %v3014
      %v3159 = vadd.f32 %v2701, %v3016
      %v3160 = vadd.f32 %v2702, %v3019
      %v3161 = vadd.f32 %v2703, %v3021
      %v3162 = vadd.f32 %v2704, %v3024
      %v3163 = vadd.f32 %v2705, %v3026
      %v3164 = vadd.f32 %v2706, %v3029
      %v3165 = vadd.f32 %v2707, %v3031
      %v3166 = vadd.f32 %v2708, %v3034
      %v3167 = vadd.f32 %v2709, %v3036
      %v3168 = vadd.f32 %v2710, %v3039
      %v3169 = vadd.f32 %v2711, %v3041
      %v3170 = vadd.f32 %v2712, %v3044
      %v3171 = vadd.f32 %v2713, %v3046
      %v3172 = vadd.f32 %v2714, %v3049
      %v3173 = vadd.f32 %v2715, %v3051
      %v3174 = vadd.f32 %v2716, %v3054
      %v3175 = vadd.f32 %v2717, %v3056
      %v3176 = vadd.f32 %v2718, %v3059
      %v3177 = vadd.f32 %v2719, %v3061
      %v3178 = vadd.f32 %v2720, %v3064
      %v3179 = vadd.f32 %v2721, %v3066
      %v3180 = vadd.f32 %v2722, %v3069
      %v3181 = vadd.f32 %v2723, %v3071
      %v3182 = vadd.f32 %v2724, %v3074
      %v3183 = vadd.f32 %v2725, %v3076
      %v3184 = vadd.f32 %v2726, %v3079
      %v3185 = vadd.f32 %v2727, %v3081
      %v3186 = vadd.f32 %v2728, %v3084
      %v3187 = vadd.f32 %v2729, %v3086
      %v3188 = vadd.f32 %v2730, %v3089
      %v3189 = vadd.f32 %v2731, %v3091
      %v3190 = vadd.f32 %v2732, %v3094
      %v3191 = vadd.f32 %v2733, %v3096
      %v3192 = vadd.f32 %v2734, %v3099
      %v3193 = vadd.f32 %v2735, %v3101
      %v3194 = vadd.f32 %v2736, %v3104
      %v3195 = vadd.f32 %v2737, %v3106
      %v3196 = vadd.f32 %v2738, %v3109
      %v3197 = vadd.f32 %v2739, %v3111
      %v3198 = vadd.f32 %v2740, %v3114
      %v3199 = vadd.f32 %v2741, %v3116
      %v3200 = vadd.f32 %v2742, %v3119
      %v3201 = vadd.f32 %v2743, %v3121
      %v3202 = vadd.f32 %v2744, %v3124
      %v3203 = vadd.f32 %v2745, %v3126
      %v3204 = vadd.f32 %v2746, %v3129
      %v3205 = vadd.f32 %v2747, %v3131
      %v3206 = vadd.f32 %v2748, %v3134
      %v3207 = vadd.f32 %v2749, %v3136
      %v3208 = vadd.f32 %v2750, %v3139
      %v3209 = vadd.f32 %v2751, %v3141
      %v3210 = vadd.f32 %v2752, %v3144
      %v3211 = vadd.f32 %v2753, %v3146
      %s3212 = scalar_lea.vmem [#allocation2], 64
      %v3213 = vld [vmem:[%s3212] sm:$0xff]
      %v3214 = vld [vmem:[%s3212 + $0x8] sm:$0xff]
      %v3215 = vld [vmem:[%s3212 + $0x10] sm:$0xff]
      %v3216 = vld [vmem:[%s3212 + $0x18] sm:$0xff]
      %v3217 = vld [vmem:[%s3212 + $0x20] sm:$0xff]
      %v3218 = vld [vmem:[%s3212 + $0x28] sm:$0xff]
      %v3219 = vld [vmem:[%s3212 + $0x30] sm:$0xff]
      %v3220 = vld [vmem:[%s3212 + $0x38] sm:$0xff]
      %v3221 = vld [vmem:[%s3212 + $0x40] sm:$0xff]
      %v3222 = vld [vmem:[%s3212 + $0x48] sm:$0xff]
      %v3223 = vld [vmem:[%s3212 + $0x50] sm:$0xff]
      %v3224 = vld [vmem:[%s3212 + $0x58] sm:$0xff]
      %v3225 = vld [vmem:[%s3212 + $0x60] sm:$0xff]
      %v3226 = vld [vmem:[%s3212 + $0x68] sm:$0xff]
      %v3227 = vld [vmem:[%s3212 + $0x70] sm:$0xff]
      %v3228 = vld [vmem:[%s3212 + $0x78] sm:$0xff]
      %v3229 = vld [vmem:[%s3212 + $0x80] sm:$0xff]
      %v3230 = vld [vmem:[%s3212 + $0x88] sm:$0xff]
      %v3231 = vld [vmem:[%s3212 + $0x90] sm:$0xff]
      %v3232 = vld [vmem:[%s3212 + $0x98] sm:$0xff]
      %v3233 = vld [vmem:[%s3212 + $0xa0] sm:$0xff]
      %v3234 = vld [vmem:[%s3212 + $0xa8] sm:$0xff]
      %v3235 = vld [vmem:[%s3212 + $0xb0] sm:$0xff]
      %v3236 = vld [vmem:[%s3212 + $0xb8] sm:$0xff]
      %v3237 = vld [vmem:[%s3212 + $0xc0] sm:$0xff]
      %v3238 = vld [vmem:[%s3212 + $0xc8] sm:$0xff]
      %v3239 = vld [vmem:[%s3212 + $0xd0] sm:$0xff]
      %v3240 = vld [vmem:[%s3212 + $0xd8] sm:$0xff]
      %v3241 = vld [vmem:[%s3212 + $0xe0] sm:$0xff]
      %v3242 = vld [vmem:[%s3212 + $0xe8] sm:$0xff]
      %v3243 = vld [vmem:[%s3212 + $0xf0] sm:$0xff]
      %v3244 = vld [vmem:[%s3212 + $0xf8] sm:$0xff]
      %v3245 = vld [vmem:[%s3212 + $0x100] sm:$0xff]
      %v3246 = vld [vmem:[%s3212 + $0x108] sm:$0xff]
      %v3247 = vld [vmem:[%s3212 + $0x110] sm:$0xff]
      %v3248 = vld [vmem:[%s3212 + $0x118] sm:$0xff]
      %v3249 = vld [vmem:[%s3212 + $0x120] sm:$0xff]
      %v3250 = vld [vmem:[%s3212 + $0x128] sm:$0xff]
      %v3251 = vld [vmem:[%s3212 + $0x130] sm:$0xff]
      %v3252 = vld [vmem:[%s3212 + $0x138] sm:$0xff]
      %v3253 = vld [vmem:[%s3212 + $0x140] sm:$0xff]
      %v3254 = vld [vmem:[%s3212 + $0x148] sm:$0xff]
      %v3255 = vld [vmem:[%s3212 + $0x150] sm:$0xff]
      %v3256 = vld [vmem:[%s3212 + $0x158] sm:$0xff]
      %v3257 = vld [vmem:[%s3212 + $0x160] sm:$0xff]
      %v3258 = vld [vmem:[%s3212 + $0x168] sm:$0xff]
      %v3259 = vld [vmem:[%s3212 + $0x170] sm:$0xff]
      %v3260 = vld [vmem:[%s3212 + $0x178] sm:$0xff]
      %v3261 = vld [vmem:[%s3212 + $0x180] sm:$0xff]
      %v3262 = vld [vmem:[%s3212 + $0x188] sm:$0xff]
      %v3263 = vld [vmem:[%s3212 + $0x190] sm:$0xff]
      %v3264 = vld [vmem:[%s3212 + $0x198] sm:$0xff]
      %v3265 = vld [vmem:[%s3212 + $0x1a0] sm:$0xff]
      %v3266 = vld [vmem:[%s3212 + $0x1a8] sm:$0xff]
      %v3267 = vld [vmem:[%s3212 + $0x1b0] sm:$0xff]
      %v3268 = vld [vmem:[%s3212 + $0x1b8] sm:$0xff]
      %v3269 = vld [vmem:[%s3212 + $0x1c0] sm:$0xff]
      %v3270 = vld [vmem:[%s3212 + $0x1c8] sm:$0xff]
      %v3271 = vld [vmem:[%s3212 + $0x1d0] sm:$0xff]
      %v3272 = vld [vmem:[%s3212 + $0x1d8] sm:$0xff]
      %v3273 = vld [vmem:[%s3212 + $0x1e0] sm:$0xff]
      %v3274 = vld [vmem:[%s3212 + $0x1e8] sm:$0xff]
      %v3275 = vld [vmem:[%s3212 + $0x1f0] sm:$0xff]
      %v3276 = vld [vmem:[%s3212 + $0x1f8] sm:$0xff]
      %v3277 = vrot.slane %v3213, 7
      %v3278 = vrot.slane %v3217, 7
      %v3279 = vrot.slane %v3221, 7
      %v3280 = vrot.slane %v3225, 7
      %v3281 = vrot.slane %v3229, 7
      %v3282 = vrot.slane %v3233, 7
      %v3283 = vrot.slane %v3237, 7
      %v3284 = vrot.slane %v3241, 7
      %v3285 = vrot.slane %v3245, 7
      %v3286 = vrot.slane %v3249, 7
      %v3287 = vrot.slane %v3253, 7
      %v3288 = vrot.slane %v3257, 7
      %v3289 = vrot.slane %v3261, 7
      %v3290 = vrot.slane %v3265, 7
      %v3291 = vrot.slane %v3269, 7
      %v3292 = vrot.slane %v3273, 7
      %v3293 = vrot.slane %v3214, 7
      %v3294 = vrot.slane %v3218, 7
      %v3295 = vrot.slane %v3222, 7
      %v3296 = vrot.slane %v3226, 7
      %v3297 = vrot.slane %v3230, 7
      %v3298 = vrot.slane %v3234, 7
      %v3299 = vrot.slane %v3238, 7
      %v3300 = vrot.slane %v3242, 7
      %v3301 = vrot.slane %v3246, 7
      %v3302 = vrot.slane %v3250, 7
      %v3303 = vrot.slane %v3254, 7
      %v3304 = vrot.slane %v3258, 7
      %v3305 = vrot.slane %v3262, 7
      %v3306 = vrot.slane %v3266, 7
      %v3307 = vrot.slane %v3270, 7
      %v3308 = vrot.slane %v3274, 7
      %v3309 = vrot.slane %v3215, 7
      %v3310 = vrot.slane %v3219, 7
      %v3311 = vrot.slane %v3223, 7
      %v3312 = vrot.slane %v3227, 7
      %v3313 = vrot.slane %v3231, 7
      %v3314 = vrot.slane %v3235, 7
      %v3315 = vrot.slane %v3239, 7
      %v3316 = vrot.slane %v3243, 7
      %v3317 = vrot.slane %v3247, 7
      %v3318 = vrot.slane %v3251, 7
      %v3319 = vrot.slane %v3255, 7
      %v3320 = vrot.slane %v3259, 7
      %v3321 = vrot.slane %v3263, 7
      %v3322 = vrot.slane %v3267, 7
      %v3323 = vrot.slane %v3271, 7
      %v3324 = vrot.slane %v3275, 7
      %v3325 = vrot.slane %v3216, 7
      %v3326 = vrot.slane %v3220, 7
      %v3327 = vrot.slane %v3224, 7
      %v3328 = vrot.slane %v3228, 7
      %v3329 = vrot.slane %v3232, 7
      %v3330 = vrot.slane %v3236, 7
      %v3331 = vrot.slane %v3240, 7
      %v3332 = vrot.slane %v3244, 7
      %v3333 = vrot.slane %v3248, 7
      %v3334 = vrot.slane %v3252, 7
      %v3335 = vrot.slane %v3256, 7
      %v3336 = vrot.slane %v3260, 7
      %v3337 = vrot.slane %v3264, 7
      %v3338 = vrot.slane %v3268, 7
      %v3339 = vrot.slane %v3272, 7
      %v3340 = vrot.slane %v3276, 7
      %v3341 = vsel %vm847, %v3309, %v3325
      %v3342 = vsel %vm847, %v3310, %v3326
      %v3343 = vsel %vm847, %v3311, %v3327
      %v3344 = vsel %vm847, %v3312, %v3328
      %v3345 = vsel %vm847, %v3313, %v3329
      %v3346 = vsel %vm847, %v3314, %v3330
      %v3347 = vsel %vm847, %v3315, %v3331
      %v3348 = vsel %vm847, %v3316, %v3332
      %v3349 = vsel %vm847, %v3317, %v3333
      %v3350 = vsel %vm847, %v3318, %v3334
      %v3351 = vsel %vm847, %v3319, %v3335
      %v3352 = vsel %vm847, %v3320, %v3336
      %v3353 = vsel %vm847, %v3321, %v3337
      %v3354 = vsel %vm847, %v3322, %v3338
      %v3355 = vsel %vm847, %v3323, %v3339
      %v3356 = vsel %vm847, %v3324, %v3340
      %v3357 = vsel %vm847, %v3293, %v3309
      %v3358 = vsel %vm847, %v3294, %v3310
      %v3359 = vsel %vm847, %v3295, %v3311
      %v3360 = vsel %vm847, %v3296, %v3312
      %v3361 = vsel %vm847, %v3297, %v3313
      %v3362 = vsel %vm847, %v3298, %v3314
      %v3363 = vsel %vm847, %v3299, %v3315
      %v3364 = vsel %vm847, %v3300, %v3316
      %v3365 = vsel %vm847, %v3301, %v3317
      %v3366 = vsel %vm847, %v3302, %v3318
      %v3367 = vsel %vm847, %v3303, %v3319
      %v3368 = vsel %vm847, %v3304, %v3320
      %v3369 = vsel %vm847, %v3305, %v3321
      %v3370 = vsel %vm847, %v3306, %v3322
      %v3371 = vsel %vm847, %v3307, %v3323
      %v3372 = vsel %vm847, %v3308, %v3324
      %v3373 = vsel %vm847, %v3277, %v3293
      %v3374 = vsel %vm847, %v3278, %v3294
      %v3375 = vsel %vm847, %v3279, %v3295
      %v3376 = vsel %vm847, %v3280, %v3296
      %v3377 = vsel %vm847, %v3281, %v3297
      %v3378 = vsel %vm847, %v3282, %v3298
      %v3379 = vsel %vm847, %v3283, %v3299
      %v3380 = vsel %vm847, %v3284, %v3300
      %v3381 = vsel %vm847, %v3285, %v3301
      %v3382 = vsel %vm847, %v3286, %v3302
      %v3383 = vsel %vm847, %v3287, %v3303
      %v3384 = vsel %vm847, %v3288, %v3304
      %v3385 = vsel %vm847, %v3289, %v3305
      %v3386 = vsel %vm847, %v3290, %v3306
      %v3387 = vsel %vm847, %v3291, %v3307
      %v3388 = vsel %vm847, %v3292, %v3308
      %v3389 = vsel %vm847, %v3325, %v3277
      %v3390 = vsel %vm847, %v3326, %v3278
      %v3391 = vsel %vm847, %v3327, %v3279
      %v3392 = vsel %vm847, %v3328, %v3280
      %v3393 = vsel %vm847, %v3329, %v3281
      %v3394 = vsel %vm847, %v3330, %v3282
      %v3395 = vsel %vm847, %v3331, %v3283
      %v3396 = vsel %vm847, %v3332, %v3284
      %v3397 = vsel %vm847, %v3333, %v3285
      %v3398 = vsel %vm847, %v3334, %v3286
      %v3399 = vsel %vm847, %v3335, %v3287
      %v3400 = vsel %vm847, %v3336, %v3288
      %v3401 = vsel %vm847, %v3337, %v3289
      %v3402 = vsel %vm847, %v3338, %v3290
      %v3403 = vsel %vm847, %v3339, %v3291
      %v3404 = vsel %vm847, %v3340, %v3292
      %v3405 = vpack.c.bf16 %v3373, %v3389
      %v3406 = vpack.c.bf16 %v3341, %v3357
      %v3407 = vpack.c.bf16 %v3374, %v3390
      %v3408 = vpack.c.bf16 %v3342, %v3358
      %v3409 = vpack.c.bf16 %v3375, %v3391
      %v3410 = vpack.c.bf16 %v3343, %v3359
      %v3411 = vpack.c.bf16 %v3376, %v3392
      %v3412 = vpack.c.bf16 %v3344, %v3360
      %v3413 = vpack.c.bf16 %v3377, %v3393
      %v3414 = vpack.c.bf16 %v3345, %v3361
      %v3415 = vpack.c.bf16 %v3378, %v3394
      %v3416 = vpack.c.bf16 %v3346, %v3362
      %v3417 = vpack.c.bf16 %v3379, %v3395
      %v3418 = vpack.c.bf16 %v3347, %v3363
      %v3419 = vpack.c.bf16 %v3380, %v3396
      %v3420 = vpack.c.bf16 %v3348, %v3364
      %v3421 = vpack.c.bf16 %v3381, %v3397
      %v3422 = vpack.c.bf16 %v3349, %v3365
      %v3423 = vpack.c.bf16 %v3382, %v3398
      %v3424 = vpack.c.bf16 %v3350, %v3366
      %v3425 = vpack.c.bf16 %v3383, %v3399
      %v3426 = vpack.c.bf16 %v3351, %v3367
      %v3427 = vpack.c.bf16 %v3384, %v3400
      %v3428 = vpack.c.bf16 %v3352, %v3368
      %v3429 = vpack.c.bf16 %v3385, %v3401
      %v3430 = vpack.c.bf16 %v3353, %v3369
      %v3431 = vpack.c.bf16 %v3386, %v3402
      %v3432 = vpack.c.bf16 %v3354, %v3370
      %v3433 = vpack.c.bf16 %v3387, %v3403
      %v3434 = vpack.c.bf16 %v3355, %v3371
      %v3435 = vpack.c.bf16 %v3388, %v3404
      %v3436 = vpack.c.bf16 %v3356, %v3372
      %s3437 = scalar_lea.vmem %s3, 384
      %v3438 = vld [vmem:[%s3437] sm:$0xf]
      %v3439 = vld [vmem:[%s3437 + $0x4] sm:$0xf]
      %v3440 = vld [vmem:[%s3437 + $0x8] sm:$0xf]
      %v3441 = vld [vmem:[%s3437 + $0xc] sm:$0xf]
      %v3442 = vld [vmem:[%s3437 + $0x10] sm:$0xf]
      %v3443 = vld [vmem:[%s3437 + $0x14] sm:$0xf]
      %v3444 = vld [vmem:[%s3437 + $0x18] sm:$0xf]
      %v3445 = vld [vmem:[%s3437 + $0x1c] sm:$0xf]
      %v3446 = vld [vmem:[%s3437 + $0x20] sm:$0xf]
      %v3447 = vld [vmem:[%s3437 + $0x24] sm:$0xf]
      %v3448 = vld [vmem:[%s3437 + $0x28] sm:$0xf]
      %v3449 = vld [vmem:[%s3437 + $0x2c] sm:$0xf]
      %v3450 = vld [vmem:[%s3437 + $0x30] sm:$0xf]
      %v3451 = vld [vmem:[%s3437 + $0x34] sm:$0xf]
      %v3452 = vld [vmem:[%s3437 + $0x38] sm:$0xf]
      %v3453 = vld [vmem:[%s3437 + $0x3c] sm:$0xf]
      %v3470 = vunpack.c.l.b16 %v3438
      %v3471 = vunpack.c.l.b16 %v3439
      %v3472 = vunpack.c.l.b16 %v3440
      %v3473 = vunpack.c.l.b16 %v3441
      %v3474 = vunpack.c.l.b16 %v3442
      %v3475 = vunpack.c.l.b16 %v3443
      %v3476 = vunpack.c.l.b16 %v3444
      %v3477 = vunpack.c.l.b16 %v3445
      %v3478 = vunpack.c.l.b16 %v3446
      %v3479 = vunpack.c.l.b16 %v3447
      %v3480 = vunpack.c.l.b16 %v3448
      %v3481 = vunpack.c.l.b16 %v3449
      %v3482 = vunpack.c.l.b16 %v3450
      %v3483 = vunpack.c.l.b16 %v3451
      %v3484 = vunpack.c.l.b16 %v3452
      %v3485 = vunpack.c.l.b16 %v3453
      %v3486 = vpack.c.b16 %v3471, %v3470
      %v3487 = vpack.c.b16 %v3473, %v3472
      %v3488 = vpack.c.b16 %v3475, %v3474
      %v3489 = vpack.c.b16 %v3477, %v3476
      %v3490 = vpack.c.b16 %v3479, %v3478
      %v3491 = vpack.c.b16 %v3481, %v3480
      %v3492 = vpack.c.b16 %v3483, %v3482
      %v3493 = vpack.c.b16 %v3485, %v3484
      %3502 = vmatpush.bf16.msra.mxu0 %v3493
      %3503 = vmatpush.bf16.msra.mxu0 %v3492
      %3504 = vmatpush.bf16.msra.mxu0 %v3491
      %3505 = vmatpush.bf16.msra.mxu0 %v3490
      %3506 = vmatpush.bf16.msra.mxu0 %v3489
      %3507 = vmatpush.bf16.msra.mxu0 %v3488
      %3508 = vmatpush.bf16.msra.mxu0 %v3487
      %3509 = vmatpush.bf16.msra.mxu0 %v3486
      %3510 = vmatmul.bf16.gmra.mxu0 %v3405
      %v3511 = vpop.f32.mrf.mxu0
      %v3512 = vadd.f32 0.0, %v3511
      %v3513 = vpop.f32.mrf.mxu0
      %v3514 = vadd.f32 0.0, %v3513
      %3515 = vmatmul.bf16.gmra.mxu0 %v3406
      %v3516 = vpop.f32.mrf.mxu0
      %v3517 = vadd.f32 0.0, %v3516
      %v3518 = vpop.f32.mrf.mxu0
      %v3519 = vadd.f32 0.0, %v3518
      %3520 = vmatmul.bf16.gmra.mxu0 %v3407
      %v3521 = vpop.f32.mrf.mxu0
      %v3522 = vadd.f32 0.0, %v3521
      %v3523 = vpop.f32.mrf.mxu0
      %v3524 = vadd.f32 0.0, %v3523
      %3525 = vmatmul.bf16.gmra.mxu0 %v3408
      %v3526 = vpop.f32.mrf.mxu0
      %v3527 = vadd.f32 0.0, %v3526
      %v3528 = vpop.f32.mrf.mxu0
      %v3529 = vadd.f32 0.0, %v3528
      %3530 = vmatmul.bf16.gmra.mxu0 %v3409
      %v3531 = vpop.f32.mrf.mxu0
      %v3532 = vadd.f32 0.0, %v3531
      %v3533 = vpop.f32.mrf.mxu0
      %v3534 = vadd.f32 0.0, %v3533
      %3535 = vmatmul.bf16.gmra.mxu0 %v3410
      %v3536 = vpop.f32.mrf.mxu0
      %v3537 = vadd.f32 0.0, %v3536
      %v3538 = vpop.f32.mrf.mxu0
      %v3539 = vadd.f32 0.0, %v3538
      %3540 = vmatmul.bf16.gmra.mxu0 %v3411
      %v3541 = vpop.f32.mrf.mxu0
      %v3542 = vadd.f32 0.0, %v3541
      %v3543 = vpop.f32.mrf.mxu0
      %v3544 = vadd.f32 0.0, %v3543
      %3545 = vmatmul.bf16.gmra.mxu0 %v3412
      %v3546 = vpop.f32.mrf.mxu0
      %v3547 = vadd.f32 0.0, %v3546
      %v3548 = vpop.f32.mrf.mxu0
      %v3549 = vadd.f32 0.0, %v3548
      %3550 = vmatmul.bf16.gmra.mxu0 %v3413
      %v3551 = vpop.f32.mrf.mxu0
      %v3552 = vadd.f32 0.0, %v3551
      %v3553 = vpop.f32.mrf.mxu0
      %v3554 = vadd.f32 0.0, %v3553
      %3555 = vmatmul.bf16.gmra.mxu0 %v3414
      %v3556 = vpop.f32.mrf.mxu0
      %v3557 = vadd.f32 0.0, %v3556
      %v3558 = vpop.f32.mrf.mxu0
      %v3559 = vadd.f32 0.0, %v3558
      %3560 = vmatmul.bf16.gmra.mxu0 %v3415
      %v3561 = vpop.f32.mrf.mxu0
      %v3562 = vadd.f32 0.0, %v3561
      %v3563 = vpop.f32.mrf.mxu0
      %v3564 = vadd.f32 0.0, %v3563
      %3565 = vmatmul.bf16.gmra.mxu0 %v3416
      %v3566 = vpop.f32.mrf.mxu0
      %v3567 = vadd.f32 0.0, %v3566
      %v3568 = vpop.f32.mrf.mxu0
      %v3569 = vadd.f32 0.0, %v3568
      %3570 = vmatmul.bf16.gmra.mxu0 %v3417
      %v3571 = vpop.f32.mrf.mxu0
      %v3572 = vadd.f32 0.0, %v3571
      %v3573 = vpop.f32.mrf.mxu0
      %v3574 = vadd.f32 0.0, %v3573
      %3575 = vmatmul.bf16.gmra.mxu0 %v3418
      %v3576 = vpop.f32.mrf.mxu0
      %v3577 = vadd.f32 0.0, %v3576
      %v3578 = vpop.f32.mrf.mxu0
      %v3579 = vadd.f32 0.0, %v3578
      %3580 = vmatmul.bf16.gmra.mxu0 %v3419
      %v3581 = vpop.f32.mrf.mxu0
      %v3582 = vadd.f32 0.0, %v3581
      %v3583 = vpop.f32.mrf.mxu0
      %v3584 = vadd.f32 0.0, %v3583
      %3585 = vmatmul.bf16.gmra.mxu0 %v3420
      %v3586 = vpop.f32.mrf.mxu0
      %v3587 = vadd.f32 0.0, %v3586
      %v3588 = vpop.f32.mrf.mxu0
      %v3589 = vadd.f32 0.0, %v3588
      %3590 = vmatmul.bf16.gmra.mxu0 %v3421
      %v3591 = vpop.f32.mrf.mxu0
      %v3592 = vadd.f32 0.0, %v3591
      %v3593 = vpop.f32.mrf.mxu0
      %v3594 = vadd.f32 0.0, %v3593
      %3595 = vmatmul.bf16.gmra.mxu0 %v3422
      %v3596 = vpop.f32.mrf.mxu0
      %v3597 = vadd.f32 0.0, %v3596
      %v3598 = vpop.f32.mrf.mxu0
      %v3599 = vadd.f32 0.0, %v3598
      %3600 = vmatmul.bf16.gmra.mxu0 %v3423
      %v3601 = vpop.f32.mrf.mxu0
      %v3602 = vadd.f32 0.0, %v3601
      %v3603 = vpop.f32.mrf.mxu0
      %v3604 = vadd.f32 0.0, %v3603
      %3605 = vmatmul.bf16.gmra.mxu0 %v3424
      %v3606 = vpop.f32.mrf.mxu0
      %v3607 = vadd.f32 0.0, %v3606
      %v3608 = vpop.f32.mrf.mxu0
      %v3609 = vadd.f32 0.0, %v3608
      %3610 = vmatmul.bf16.gmra.mxu0 %v3425
      %v3611 = vpop.f32.mrf.mxu0
      %v3612 = vadd.f32 0.0, %v3611
      %v3613 = vpop.f32.mrf.mxu0
      %v3614 = vadd.f32 0.0, %v3613
      %3615 = vmatmul.bf16.gmra.mxu0 %v3426
      %v3616 = vpop.f32.mrf.mxu0
      %v3617 = vadd.f32 0.0, %v3616
      %v3618 = vpop.f32.mrf.mxu0
      %v3619 = vadd.f32 0.0, %v3618
      %3620 = vmatmul.bf16.gmra.mxu0 %v3427
      %v3621 = vpop.f32.mrf.mxu0
      %v3622 = vadd.f32 0.0, %v3621
      %v3623 = vpop.f32.mrf.mxu0
      %v3624 = vadd.f32 0.0, %v3623
      %3625 = vmatmul.bf16.gmra.mxu0 %v3428
      %v3626 = vpop.f32.mrf.mxu0
      %v3627 = vadd.f32 0.0, %v3626
      %v3628 = vpop.f32.mrf.mxu0
      %v3629 = vadd.f32 0.0, %v3628
      %3630 = vmatmul.bf16.gmra.mxu0 %v3429
      %v3631 = vpop.f32.mrf.mxu0
      %v3632 = vadd.f32 0.0, %v3631
      %v3633 = vpop.f32.mrf.mxu0
      %v3634 = vadd.f32 0.0, %v3633
      %3635 = vmatmul.bf16.gmra.mxu0 %v3430
      %v3636 = vpop.f32.mrf.mxu0
      %v3637 = vadd.f32 0.0, %v3636
      %v3638 = vpop.f32.mrf.mxu0
      %v3639 = vadd.f32 0.0, %v3638
      %3640 = vmatmul.bf16.gmra.mxu0 %v3431
      %v3641 = vpop.f32.mrf.mxu0
      %v3642 = vadd.f32 0.0, %v3641
      %v3643 = vpop.f32.mrf.mxu0
      %v3644 = vadd.f32 0.0, %v3643
      %3645 = vmatmul.bf16.gmra.mxu0 %v3432
      %v3646 = vpop.f32.mrf.mxu0
      %v3647 = vadd.f32 0.0, %v3646
      %v3648 = vpop.f32.mrf.mxu0
      %v3649 = vadd.f32 0.0, %v3648
      %3650 = vmatmul.bf16.gmra.mxu0 %v3433
      %v3651 = vpop.f32.mrf.mxu0
      %v3652 = vadd.f32 0.0, %v3651
      %v3653 = vpop.f32.mrf.mxu0
      %v3654 = vadd.f32 0.0, %v3653
      %3655 = vmatmul.bf16.gmra.mxu0 %v3434
      %v3656 = vpop.f32.mrf.mxu0
      %v3657 = vadd.f32 0.0, %v3656
      %v3658 = vpop.f32.mrf.mxu0
      %v3659 = vadd.f32 0.0, %v3658
      %3660 = vmatmul.bf16.gmra.mxu0 %v3435
      %v3661 = vpop.f32.mrf.mxu0
      %v3662 = vadd.f32 0.0, %v3661
      %v3663 = vpop.f32.mrf.mxu0
      %v3664 = vadd.f32 0.0, %v3663
      %3665 = vmatmul.bf16.gmra.mxu0 %v3436
      %v3666 = vpop.f32.mrf.mxu0
      %v3667 = vadd.f32 0.0, %v3666
      %v3668 = vpop.f32.mrf.mxu0
      %v3669 = vadd.f32 0.0, %v3668
      %3670 = vdwg.mxu0
      %v3671 = vadd.f32 %v3148, %v3512
      %v3672 = vadd.f32 %v3149, %v3514
      %v3673 = vadd.f32 %v3150, %v3517
      %v3674 = vadd.f32 %v3151, %v3519
      %v3675 = vadd.f32 %v3152, %v3522
      %v3676 = vadd.f32 %v3153, %v3524
      %v3677 = vadd.f32 %v3154, %v3527
      %v3678 = vadd.f32 %v3155, %v3529
      %v3679 = vadd.f32 %v3156, %v3532
      %v3680 = vadd.f32 %v3157, %v3534
      %v3681 = vadd.f32 %v3158, %v3537
      %v3682 = vadd.f32 %v3159, %v3539
      %v3683 = vadd.f32 %v3160, %v3542
      %v3684 = vadd.f32 %v3161, %v3544
      %v3685 = vadd.f32 %v3162, %v3547
      %v3686 = vadd.f32 %v3163, %v3549
      %v3687 = vadd.f32 %v3164, %v3552
      %v3688 = vadd.f32 %v3165, %v3554
      %v3689 = vadd.f32 %v3166, %v3557
      %v3690 = vadd.f32 %v3167, %v3559
      %v3691 = vadd.f32 %v3168, %v3562
      %v3692 = vadd.f32 %v3169, %v3564
      %v3693 = vadd.f32 %v3170, %v3567
      %v3694 = vadd.f32 %v3171, %v3569
      %v3695 = vadd.f32 %v3172, %v3572
      %v3696 = vadd.f32 %v3173, %v3574
      %v3697 = vadd.f32 %v3174, %v3577
      %v3698 = vadd.f32 %v3175, %v3579
      %v3699 = vadd.f32 %v3176, %v3582
      %v3700 = vadd.f32 %v3177, %v3584
      %v3701 = vadd.f32 %v3178, %v3587
      %v3702 = vadd.f32 %v3179, %v3589
      %v3703 = vadd.f32 %v3180, %v3592
      %v3704 = vadd.f32 %v3181, %v3594
      %v3705 = vadd.f32 %v3182, %v3597
      %v3706 = vadd.f32 %v3183, %v3599
      %v3707 = vadd.f32 %v3184, %v3602
      %v3708 = vadd.f32 %v3185, %v3604
      %v3709 = vadd.f32 %v3186, %v3607
      %v3710 = vadd.f32 %v3187, %v3609
      %v3711 = vadd.f32 %v3188, %v3612
      %v3712 = vadd.f32 %v3189, %v3614
      %v3713 = vadd.f32 %v3190, %v3617
      %v3714 = vadd.f32 %v3191, %v3619
      %v3715 = vadd.f32 %v3192, %v3622
      %v3716 = vadd.f32 %v3193, %v3624
      %v3717 = vadd.f32 %v3194, %v3627
      %v3718 = vadd.f32 %v3195, %v3629
      %v3719 = vadd.f32 %v3196, %v3632
      %v3720 = vadd.f32 %v3197, %v3634
      %v3721 = vadd.f32 %v3198, %v3637
      %v3722 = vadd.f32 %v3199, %v3639
      %v3723 = vadd.f32 %v3200, %v3642
      %v3724 = vadd.f32 %v3201, %v3644
      %v3725 = vadd.f32 %v3202, %v3647
      %v3726 = vadd.f32 %v3203, %v3649
      %v3727 = vadd.f32 %v3204, %v3652
      %v3728 = vadd.f32 %v3205, %v3654
      %v3729 = vadd.f32 %v3206, %v3657
      %v3730 = vadd.f32 %v3207, %v3659
      %v3731 = vadd.f32 %v3208, %v3662
      %v3732 = vadd.f32 %v3209, %v3664
      %v3733 = vadd.f32 %v3210, %v3667
      %v3734 = vadd.f32 %v3211, %v3669
      %v3735 = vpack.c.bf16 %v3214, %v3213
      %v3736 = vpack.c.bf16 %v3216, %v3215
      %v3737 = vpack.c.bf16 %v3218, %v3217
      %v3738 = vpack.c.bf16 %v3220, %v3219
      %v3739 = vpack.c.bf16 %v3222, %v3221
      %v3740 = vpack.c.bf16 %v3224, %v3223
      %v3741 = vpack.c.bf16 %v3226, %v3225
      %v3742 = vpack.c.bf16 %v3228, %v3227
      %v3743 = vpack.c.bf16 %v3230, %v3229
      %v3744 = vpack.c.bf16 %v3232, %v3231
      %v3745 = vpack.c.bf16 %v3234, %v3233
      %v3746 = vpack.c.bf16 %v3236, %v3235
      %v3747 = vpack.c.bf16 %v3238, %v3237
      %v3748 = vpack.c.bf16 %v3240, %v3239
      %v3749 = vpack.c.bf16 %v3242, %v3241
      %v3750 = vpack.c.bf16 %v3244, %v3243
      %v3751 = vpack.c.bf16 %v3246, %v3245
      %v3752 = vpack.c.bf16 %v3248, %v3247
      %v3753 = vpack.c.bf16 %v3250, %v3249
      %v3754 = vpack.c.bf16 %v3252, %v3251
      %v3755 = vpack.c.bf16 %v3254, %v3253
      %v3756 = vpack.c.bf16 %v3256, %v3255
      %v3757 = vpack.c.bf16 %v3258, %v3257
      %v3758 = vpack.c.bf16 %v3260, %v3259
      %v3759 = vpack.c.bf16 %v3262, %v3261
      %v3760 = vpack.c.bf16 %v3264, %v3263
      %v3761 = vpack.c.bf16 %v3266, %v3265
      %v3762 = vpack.c.bf16 %v3268, %v3267
      %v3763 = vpack.c.bf16 %v3270, %v3269
      %v3764 = vpack.c.bf16 %v3272, %v3271
      %v3765 = vpack.c.bf16 %v3274, %v3273
      %v3766 = vpack.c.bf16 %v3276, %v3275
      %s3767 = scalar_lea.vmem %s3, 448
      %v3768 = vld [vmem:[%s3767] sm:$0xf]
      %v3769 = vld [vmem:[%s3767 + $0x4] sm:$0xf]
      %v3770 = vld [vmem:[%s3767 + $0x8] sm:$0xf]
      %v3771 = vld [vmem:[%s3767 + $0xc] sm:$0xf]
      %v3772 = vld [vmem:[%s3767 + $0x10] sm:$0xf]
      %v3773 = vld [vmem:[%s3767 + $0x14] sm:$0xf]
      %v3774 = vld [vmem:[%s3767 + $0x18] sm:$0xf]
      %v3775 = vld [vmem:[%s3767 + $0x1c] sm:$0xf]
      %v3776 = vld [vmem:[%s3767 + $0x20] sm:$0xf]
      %v3777 = vld [vmem:[%s3767 + $0x24] sm:$0xf]
      %v3778 = vld [vmem:[%s3767 + $0x28] sm:$0xf]
      %v3779 = vld [vmem:[%s3767 + $0x2c] sm:$0xf]
      %v3780 = vld [vmem:[%s3767 + $0x30] sm:$0xf]
      %v3781 = vld [vmem:[%s3767 + $0x34] sm:$0xf]
      %v3782 = vld [vmem:[%s3767 + $0x38] sm:$0xf]
      %v3783 = vld [vmem:[%s3767 + $0x3c] sm:$0xf]
      %v3800 = vunpack.c.l.b16 %v3768
      %v3801 = vunpack.c.l.b16 %v3769
      %v3802 = vunpack.c.l.b16 %v3770
      %v3803 = vunpack.c.l.b16 %v3771
      %v3804 = vunpack.c.l.b16 %v3772
      %v3805 = vunpack.c.l.b16 %v3773
      %v3806 = vunpack.c.l.b16 %v3774
      %v3807 = vunpack.c.l.b16 %v3775
      %v3808 = vunpack.c.l.b16 %v3776
      %v3809 = vunpack.c.l.b16 %v3777
      %v3810 = vunpack.c.l.b16 %v3778
      %v3811 = vunpack.c.l.b16 %v3779
      %v3812 = vunpack.c.l.b16 %v3780
      %v3813 = vunpack.c.l.b16 %v3781
      %v3814 = vunpack.c.l.b16 %v3782
      %v3815 = vunpack.c.l.b16 %v3783
      %v3816 = vpack.c.b16 %v3801, %v3800
      %v3817 = vpack.c.b16 %v3803, %v3802
      %v3818 = vpack.c.b16 %v3805, %v3804
      %v3819 = vpack.c.b16 %v3807, %v3806
      %v3820 = vpack.c.b16 %v3809, %v3808
      %v3821 = vpack.c.b16 %v3811, %v3810
      %v3822 = vpack.c.b16 %v3813, %v3812
      %v3823 = vpack.c.b16 %v3815, %v3814
      %3832 = vmatpush.bf16.msra.mxu0 %v3823
      %3833 = vmatpush.bf16.msra.mxu0 %v3822
      %3834 = vmatpush.bf16.msra.mxu0 %v3821
      %3835 = vmatpush.bf16.msra.mxu0 %v3820
      %3836 = vmatpush.bf16.msra.mxu0 %v3819
      %3837 = vmatpush.bf16.msra.mxu0 %v3818
      %3838 = vmatpush.bf16.msra.mxu0 %v3817
      %3839 = vmatpush.bf16.msra.mxu0 %v3816
      %3840 = vmatmul.bf16.gmra.mxu0 %v3735
      %v3841 = vpop.f32.mrf.mxu0
      %v3842 = vadd.f32 0.0, %v3841
      %v3843 = vpop.f32.mrf.mxu0
      %v3844 = vadd.f32 0.0, %v3843
      %3845 = vmatmul.bf16.gmra.mxu0 %v3736
      %v3846 = vpop.f32.mrf.mxu0
      %v3847 = vadd.f32 0.0, %v3846
      %v3848 = vpop.f32.mrf.mxu0
      %v3849 = vadd.f32 0.0, %v3848
      %3850 = vmatmul.bf16.gmra.mxu0 %v3737
      %v3851 = vpop.f32.mrf.mxu0
      %v3852 = vadd.f32 0.0, %v3851
      %v3853 = vpop.f32.mrf.mxu0
      %v3854 = vadd.f32 0.0, %v3853
      %3855 = vmatmul.bf16.gmra.mxu0 %v3738
      %v3856 = vpop.f32.mrf.mxu0
      %v3857 = vadd.f32 0.0, %v3856
      %v3858 = vpop.f32.mrf.mxu0
      %v3859 = vadd.f32 0.0, %v3858
      %3860 = vmatmul.bf16.gmra.mxu0 %v3739
      %v3861 = vpop.f32.mrf.mxu0
      %v3862 = vadd.f32 0.0, %v3861
      %v3863 = vpop.f32.mrf.mxu0
      %v3864 = vadd.f32 0.0, %v3863
      %3865 = vmatmul.bf16.gmra.mxu0 %v3740
      %v3866 = vpop.f32.mrf.mxu0
      %v3867 = vadd.f32 0.0, %v3866
      %v3868 = vpop.f32.mrf.mxu0
      %v3869 = vadd.f32 0.0, %v3868
      %3870 = vmatmul.bf16.gmra.mxu0 %v3741
      %v3871 = vpop.f32.mrf.mxu0
      %v3872 = vadd.f32 0.0, %v3871
      %v3873 = vpop.f32.mrf.mxu0
      %v3874 = vadd.f32 0.0, %v3873
      %3875 = vmatmul.bf16.gmra.mxu0 %v3742
      %v3876 = vpop.f32.mrf.mxu0
      %v3877 = vadd.f32 0.0, %v3876
      %v3878 = vpop.f32.mrf.mxu0
      %v3879 = vadd.f32 0.0, %v3878
      %3880 = vmatmul.bf16.gmra.mxu0 %v3743
      %v3881 = vpop.f32.mrf.mxu0
      %v3882 = vadd.f32 0.0, %v3881
      %v3883 = vpop.f32.mrf.mxu0
      %v3884 = vadd.f32 0.0, %v3883
      %3885 = vmatmul.bf16.gmra.mxu0 %v3744
      %v3886 = vpop.f32.mrf.mxu0
      %v3887 = vadd.f32 0.0, %v3886
      %v3888 = vpop.f32.mrf.mxu0
      %v3889 = vadd.f32 0.0, %v3888
      %3890 = vmatmul.bf16.gmra.mxu0 %v3745
      %v3891 = vpop.f32.mrf.mxu0
      %v3892 = vadd.f32 0.0, %v3891
      %v3893 = vpop.f32.mrf.mxu0
      %v3894 = vadd.f32 0.0, %v3893
      %3895 = vmatmul.bf16.gmra.mxu0 %v3746
      %v3896 = vpop.f32.mrf.mxu0
      %v3897 = vadd.f32 0.0, %v3896
      %v3898 = vpop.f32.mrf.mxu0
      %v3899 = vadd.f32 0.0, %v3898
      %3900 = vmatmul.bf16.gmra.mxu0 %v3747
      %v3901 = vpop.f32.mrf.mxu0
      %v3902 = vadd.f32 0.0, %v3901
      %v3903 = vpop.f32.mrf.mxu0
      %v3904 = vadd.f32 0.0, %v3903
      %3905 = vmatmul.bf16.gmra.mxu0 %v3748
      %v3906 = vpop.f32.mrf.mxu0
      %v3907 = vadd.f32 0.0, %v3906
      %v3908 = vpop.f32.mrf.mxu0
      %v3909 = vadd.f32 0.0, %v3908
      %3910 = vmatmul.bf16.gmra.mxu0 %v3749
      %v3911 = vpop.f32.mrf.mxu0
      %v3912 = vadd.f32 0.0, %v3911
      %v3913 = vpop.f32.mrf.mxu0
      %v3914 = vadd.f32 0.0, %v3913
      %3915 = vmatmul.bf16.gmra.mxu0 %v3750
      %v3916 = vpop.f32.mrf.mxu0
      %v3917 = vadd.f32 0.0, %v3916
      %v3918 = vpop.f32.mrf.mxu0
      %v3919 = vadd.f32 0.0, %v3918
      %3920 = vmatmul.bf16.gmra.mxu0 %v3751
      %v3921 = vpop.f32.mrf.mxu0
      %v3922 = vadd.f32 0.0, %v3921
      %v3923 = vpop.f32.mrf.mxu0
      %v3924 = vadd.f32 0.0, %v3923
      %3925 = vmatmul.bf16.gmra.mxu0 %v3752
      %v3926 = vpop.f32.mrf.mxu0
      %v3927 = vadd.f32 0.0, %v3926
      %v3928 = vpop.f32.mrf.mxu0
      %v3929 = vadd.f32 0.0, %v3928
      %3930 = vmatmul.bf16.gmra.mxu0 %v3753
      %v3931 = vpop.f32.mrf.mxu0
      %v3932 = vadd.f32 0.0, %v3931
      %v3933 = vpop.f32.mrf.mxu0
      %v3934 = vadd.f32 0.0, %v3933
      %3935 = vmatmul.bf16.gmra.mxu0 %v3754
      %v3936 = vpop.f32.mrf.mxu0
      %v3937 = vadd.f32 0.0, %v3936
      %v3938 = vpop.f32.mrf.mxu0
      %v3939 = vadd.f32 0.0, %v3938
      %3940 = vmatmul.bf16.gmra.mxu0 %v3755
      %v3941 = vpop.f32.mrf.mxu0
      %v3942 = vadd.f32 0.0, %v3941
      %v3943 = vpop.f32.mrf.mxu0
      %v3944 = vadd.f32 0.0, %v3943
      %3945 = vmatmul.bf16.gmra.mxu0 %v3756
      %v3946 = vpop.f32.mrf.mxu0
      %v3947 = vadd.f32 0.0, %v3946
      %v3948 = vpop.f32.mrf.mxu0
      %v3949 = vadd.f32 0.0, %v3948
      %3950 = vmatmul.bf16.gmra.mxu0 %v3757
      %v3951 = vpop.f32.mrf.mxu0
      %v3952 = vadd.f32 0.0, %v3951
      %v3953 = vpop.f32.mrf.mxu0
      %v3954 = vadd.f32 0.0, %v3953
      %3955 = vmatmul.bf16.gmra.mxu0 %v3758
      %v3956 = vpop.f32.mrf.mxu0
      %v3957 = vadd.f32 0.0, %v3956
      %v3958 = vpop.f32.mrf.mxu0
      %v3959 = vadd.f32 0.0, %v3958
      %3960 = vmatmul.bf16.gmra.mxu0 %v3759
      %v3961 = vpop.f32.mrf.mxu0
      %v3962 = vadd.f32 0.0, %v3961
      %v3963 = vpop.f32.mrf.mxu0
      %v3964 = vadd.f32 0.0, %v3963
      %3965 = vmatmul.bf16.gmra.mxu0 %v3760
      %v3966 = vpop.f32.mrf.mxu0
      %v3967 = vadd.f32 0.0, %v3966
      %v3968 = vpop.f32.mrf.mxu0
      %v3969 = vadd.f32 0.0, %v3968
      %3970 = vmatmul.bf16.gmra.mxu0 %v3761
      %v3971 = vpop.f32.mrf.mxu0
      %v3972 = vadd.f32 0.0, %v3971
      %v3973 = vpop.f32.mrf.mxu0
      %v3974 = vadd.f32 0.0, %v3973
      %3975 = vmatmul.bf16.gmra.mxu0 %v3762
      %v3976 = vpop.f32.mrf.mxu0
      %v3977 = vadd.f32 0.0, %v3976
      %v3978 = vpop.f32.mrf.mxu0
      %v3979 = vadd.f32 0.0, %v3978
      %3980 = vmatmul.bf16.gmra.mxu0 %v3763
      %v3981 = vpop.f32.mrf.mxu0
      %v3982 = vadd.f32 0.0, %v3981
      %v3983 = vpop.f32.mrf.mxu0
      %v3984 = vadd.f32 0.0, %v3983
      %3985 = vmatmul.bf16.gmra.mxu0 %v3764
      %v3986 = vpop.f32.mrf.mxu0
      %v3987 = vadd.f32 0.0, %v3986
      %v3988 = vpop.f32.mrf.mxu0
      %v3989 = vadd.f32 0.0, %v3988
      %3990 = vmatmul.bf16.gmra.mxu0 %v3765
      %v3991 = vpop.f32.mrf.mxu0
      %v3992 = vadd.f32 0.0, %v3991
      %v3993 = vpop.f32.mrf.mxu0
      %v3994 = vadd.f32 0.0, %v3993
      %3995 = vmatmul.bf16.gmra.mxu0 %v3766
      %v3996 = vpop.f32.mrf.mxu0
      %v3997 = vadd.f32 0.0, %v3996
      %v3998 = vpop.f32.mrf.mxu0
      %v3999 = vadd.f32 0.0, %v3998
      %4000 = vdwg.mxu0
      %v4001 = vadd.f32 %v3671, %v3842
      %v4002 = vadd.f32 %v3672, %v3844
      %v4003 = vadd.f32 %v3673, %v3847
      %v4004 = vadd.f32 %v3674, %v3849
      %v4005 = vadd.f32 %v3675, %v3852
      %v4006 = vadd.f32 %v3676, %v3854
      %v4007 = vadd.f32 %v3677, %v3857
      %v4008 = vadd.f32 %v3678, %v3859
      %v4009 = vadd.f32 %v3679, %v3862
      %v4010 = vadd.f32 %v3680, %v3864
      %v4011 = vadd.f32 %v3681, %v3867
      %v4012 = vadd.f32 %v3682, %v3869
      %v4013 = vadd.f32 %v3683, %v3872
      %v4014 = vadd.f32 %v3684, %v3874
      %v4015 = vadd.f32 %v3685, %v3877
      %v4016 = vadd.f32 %v3686, %v3879
      %v4017 = vadd.f32 %v3687, %v3882
      %v4018 = vadd.f32 %v3688, %v3884
      %v4019 = vadd.f32 %v3689, %v3887
      %v4020 = vadd.f32 %v3690, %v3889
      %v4021 = vadd.f32 %v3691, %v3892
      %v4022 = vadd.f32 %v3692, %v3894
      %v4023 = vadd.f32 %v3693, %v3897
      %v4024 = vadd.f32 %v3694, %v3899
      %v4025 = vadd.f32 %v3695, %v3902
      %v4026 = vadd.f32 %v3696, %v3904
      %v4027 = vadd.f32 %v3697, %v3907
      %v4028 = vadd.f32 %v3698, %v3909
      %v4029 = vadd.f32 %v3699, %v3912
      %v4030 = vadd.f32 %v3700, %v3914
      %v4031 = vadd.f32 %v3701, %v3917
      %v4032 = vadd.f32 %v3702, %v3919
      %v4033 = vadd.f32 %v3703, %v3922
      %v4034 = vadd.f32 %v3704, %v3924
      %v4035 = vadd.f32 %v3705, %v3927
      %v4036 = vadd.f32 %v3706, %v3929
      %v4037 = vadd.f32 %v3707, %v3932
      %v4038 = vadd.f32 %v3708, %v3934
      %v4039 = vadd.f32 %v3709, %v3937
      %v4040 = vadd.f32 %v3710, %v3939
      %v4041 = vadd.f32 %v3711, %v3942
      %v4042 = vadd.f32 %v3712, %v3944
      %v4043 = vadd.f32 %v3713, %v3947
      %v4044 = vadd.f32 %v3714, %v3949
      %v4045 = vadd.f32 %v3715, %v3952
      %v4046 = vadd.f32 %v3716, %v3954
      %v4047 = vadd.f32 %v3717, %v3957
      %v4048 = vadd.f32 %v3718, %v3959
      %v4049 = vadd.f32 %v3719, %v3962
      %v4050 = vadd.f32 %v3720, %v3964
      %v4051 = vadd.f32 %v3721, %v3967
      %v4052 = vadd.f32 %v3722, %v3969
      %v4053 = vadd.f32 %v3723, %v3972
      %v4054 = vadd.f32 %v3724, %v3974
      %v4055 = vadd.f32 %v3725, %v3977
      %v4056 = vadd.f32 %v3726, %v3979
      %v4057 = vadd.f32 %v3727, %v3982
      %v4058 = vadd.f32 %v3728, %v3984
      %v4059 = vadd.f32 %v3729, %v3987
      %v4060 = vadd.f32 %v3730, %v3989
      %v4061 = vadd.f32 %v3731, %v3992
      %v4062 = vadd.f32 %v3732, %v3994
      %v4063 = vadd.f32 %v3733, %v3997
      %v4064 = vadd.f32 %v3734, %v3999
      %v4065 = vrot.slane %v3213, 1
      %v4066 = vrot.slane %v3217, 1
      %v4067 = vrot.slane %v3221, 1
      %v4068 = vrot.slane %v3225, 1
      %v4069 = vrot.slane %v3229, 1
      %v4070 = vrot.slane %v3233, 1
      %v4071 = vrot.slane %v3237, 1
      %v4072 = vrot.slane %v3241, 1
      %v4073 = vrot.slane %v3245, 1
      %v4074 = vrot.slane %v3249, 1
      %v4075 = vrot.slane %v3253, 1
      %v4076 = vrot.slane %v3257, 1
      %v4077 = vrot.slane %v3261, 1
      %v4078 = vrot.slane %v3265, 1
      %v4079 = vrot.slane %v3269, 1
      %v4080 = vrot.slane %v3273, 1
      %v4081 = vrot.slane %v3214, 1
      %v4082 = vrot.slane %v3218, 1
      %v4083 = vrot.slane %v3222, 1
      %v4084 = vrot.slane %v3226, 1
      %v4085 = vrot.slane %v3230, 1
      %v4086 = vrot.slane %v3234, 1
      %v4087 = vrot.slane %v3238, 1
      %v4088 = vrot.slane %v3242, 1
      %v4089 = vrot.slane %v3246, 1
      %v4090 = vrot.slane %v3250, 1
      %v4091 = vrot.slane %v3254, 1
      %v4092 = vrot.slane %v3258, 1
      %v4093 = vrot.slane %v3262, 1
      %v4094 = vrot.slane %v3266, 1
      %v4095 = vrot.slane %v3270, 1
      %v4096 = vrot.slane %v3274, 1
      %v4097 = vrot.slane %v3215, 1
      %v4098 = vrot.slane %v3219, 1
      %v4099 = vrot.slane %v3223, 1
      %v4100 = vrot.slane %v3227, 1
      %v4101 = vrot.slane %v3231, 1
      %v4102 = vrot.slane %v3235, 1
      %v4103 = vrot.slane %v3239, 1
      %v4104 = vrot.slane %v3243, 1
      %v4105 = vrot.slane %v3247, 1
      %v4106 = vrot.slane %v3251, 1
      %v4107 = vrot.slane %v3255, 1
      %v4108 = vrot.slane %v3259, 1
      %v4109 = vrot.slane %v3263, 1
      %v4110 = vrot.slane %v3267, 1
      %v4111 = vrot.slane %v3271, 1
      %v4112 = vrot.slane %v3275, 1
      %v4113 = vrot.slane %v3216, 1
      %v4114 = vrot.slane %v3220, 1
      %v4115 = vrot.slane %v3224, 1
      %v4116 = vrot.slane %v3228, 1
      %v4117 = vrot.slane %v3232, 1
      %v4118 = vrot.slane %v3236, 1
      %v4119 = vrot.slane %v3240, 1
      %v4120 = vrot.slane %v3244, 1
      %v4121 = vrot.slane %v3248, 1
      %v4122 = vrot.slane %v3252, 1
      %v4123 = vrot.slane %v3256, 1
      %v4124 = vrot.slane %v3260, 1
      %v4125 = vrot.slane %v3264, 1
      %v4126 = vrot.slane %v3268, 1
      %v4127 = vrot.slane %v3272, 1
      %v4128 = vrot.slane %v3276, 1
      %v4129 = vsel %vm1507, %v4097, %v4113
      %v4130 = vsel %vm1507, %v4098, %v4114
      %v4131 = vsel %vm1507, %v4099, %v4115
      %v4132 = vsel %vm1507, %v4100, %v4116
      %v4133 = vsel %vm1507, %v4101, %v4117
      %v4134 = vsel %vm1507, %v4102, %v4118
      %v4135 = vsel %vm1507, %v4103, %v4119
      %v4136 = vsel %vm1507, %v4104, %v4120
      %v4137 = vsel %vm1507, %v4105, %v4121
      %v4138 = vsel %vm1507, %v4106, %v4122
      %v4139 = vsel %vm1507, %v4107, %v4123
      %v4140 = vsel %vm1507, %v4108, %v4124
      %v4141 = vsel %vm1507, %v4109, %v4125
      %v4142 = vsel %vm1507, %v4110, %v4126
      %v4143 = vsel %vm1507, %v4111, %v4127
      %v4144 = vsel %vm1507, %v4112, %v4128
      %v4145 = vsel %vm1507, %v4081, %v4097
      %v4146 = vsel %vm1507, %v4082, %v4098
      %v4147 = vsel %vm1507, %v4083, %v4099
      %v4148 = vsel %vm1507, %v4084, %v4100
      %v4149 = vsel %vm1507, %v4085, %v4101
      %v4150 = vsel %vm1507, %v4086, %v4102
      %v4151 = vsel %vm1507, %v4087, %v4103
      %v4152 = vsel %vm1507, %v4088, %v4104
      %v4153 = vsel %vm1507, %v4089, %v4105
      %v4154 = vsel %vm1507, %v4090, %v4106
      %v4155 = vsel %vm1507, %v4091, %v4107
      %v4156 = vsel %vm1507, %v4092, %v4108
      %v4157 = vsel %vm1507, %v4093, %v4109
      %v4158 = vsel %vm1507, %v4094, %v4110
      %v4159 = vsel %vm1507, %v4095, %v4111
      %v4160 = vsel %vm1507, %v4096, %v4112
      %v4161 = vsel %vm1507, %v4065, %v4081
      %v4162 = vsel %vm1507, %v4066, %v4082
      %v4163 = vsel %vm1507, %v4067, %v4083
      %v4164 = vsel %vm1507, %v4068, %v4084
      %v4165 = vsel %vm1507, %v4069, %v4085
      %v4166 = vsel %vm1507, %v4070, %v4086
      %v4167 = vsel %vm1507, %v4071, %v4087
      %v4168 = vsel %vm1507, %v4072, %v4088
      %v4169 = vsel %vm1507, %v4073, %v4089
      %v4170 = vsel %vm1507, %v4074, %v4090
      %v4171 = vsel %vm1507, %v4075, %v4091
      %v4172 = vsel %vm1507, %v4076, %v4092
      %v4173 = vsel %vm1507, %v4077, %v4093
      %v4174 = vsel %vm1507, %v4078, %v4094
      %v4175 = vsel %vm1507, %v4079, %v4095
      %v4176 = vsel %vm1507, %v4080, %v4096
      %v4177 = vsel %vm1507, %v4113, %v4065
      %v4178 = vsel %vm1507, %v4114, %v4066
      %v4179 = vsel %vm1507, %v4115, %v4067
      %v4180 = vsel %vm1507, %v4116, %v4068
      %v4181 = vsel %vm1507, %v4117, %v4069
      %v4182 = vsel %vm1507, %v4118, %v4070
      %v4183 = vsel %vm1507, %v4119, %v4071
      %v4184 = vsel %vm1507, %v4120, %v4072
      %v4185 = vsel %vm1507, %v4121, %v4073
      %v4186 = vsel %vm1507, %v4122, %v4074
      %v4187 = vsel %vm1507, %v4123, %v4075
      %v4188 = vsel %vm1507, %v4124, %v4076
      %v4189 = vsel %vm1507, %v4125, %v4077
      %v4190 = vsel %vm1507, %v4126, %v4078
      %v4191 = vsel %vm1507, %v4127, %v4079
      %v4192 = vsel %vm1507, %v4128, %v4080
      %v4193 = vpack.c.bf16 %v4145, %v4161
      %v4194 = vpack.c.bf16 %v4177, %v4129
      %v4195 = vpack.c.bf16 %v4146, %v4162
      %v4196 = vpack.c.bf16 %v4178, %v4130
      %v4197 = vpack.c.bf16 %v4147, %v4163
      %v4198 = vpack.c.bf16 %v4179, %v4131
      %v4199 = vpack.c.bf16 %v4148, %v4164
      %v4200 = vpack.c.bf16 %v4180, %v4132
      %v4201 = vpack.c.bf16 %v4149, %v4165
      %v4202 = vpack.c.bf16 %v4181, %v4133
      %v4203 = vpack.c.bf16 %v4150, %v4166
      %v4204 = vpack.c.bf16 %v4182, %v4134
      %v4205 = vpack.c.bf16 %v4151, %v4167
      %v4206 = vpack.c.bf16 %v4183, %v4135
      %v4207 = vpack.c.bf16 %v4152, %v4168
      %v4208 = vpack.c.bf16 %v4184, %v4136
      %v4209 = vpack.c.bf16 %v4153, %v4169
      %v4210 = vpack.c.bf16 %v4185, %v4137
      %v4211 = vpack.c.bf16 %v4154, %v4170
      %v4212 = vpack.c.bf16 %v4186, %v4138
      %v4213 = vpack.c.bf16 %v4155, %v4171
      %v4214 = vpack.c.bf16 %v4187, %v4139
      %v4215 = vpack.c.bf16 %v4156, %v4172
      %v4216 = vpack.c.bf16 %v4188, %v4140
      %v4217 = vpack.c.bf16 %v4157, %v4173
      %v4218 = vpack.c.bf16 %v4189, %v4141
      %v4219 = vpack.c.bf16 %v4158, %v4174
      %v4220 = vpack.c.bf16 %v4190, %v4142
      %v4221 = vpack.c.bf16 %v4159, %v4175
      %v4222 = vpack.c.bf16 %v4191, %v4143
      %v4223 = vpack.c.bf16 %v4160, %v4176
      %v4224 = vpack.c.bf16 %v4192, %v4144
      %s4225 = scalar_lea.vmem %s3, 512
      %v4226 = vld [vmem:[%s4225] sm:$0xf]
      %v4227 = vld [vmem:[%s4225 + $0x4] sm:$0xf]
      %v4228 = vld [vmem:[%s4225 + $0x8] sm:$0xf]
      %v4229 = vld [vmem:[%s4225 + $0xc] sm:$0xf]
      %v4230 = vld [vmem:[%s4225 + $0x10] sm:$0xf]
      %v4231 = vld [vmem:[%s4225 + $0x14] sm:$0xf]
      %v4232 = vld [vmem:[%s4225 + $0x18] sm:$0xf]
      %v4233 = vld [vmem:[%s4225 + $0x1c] sm:$0xf]
      %v4234 = vld [vmem:[%s4225 + $0x20] sm:$0xf]
      %v4235 = vld [vmem:[%s4225 + $0x24] sm:$0xf]
      %v4236 = vld [vmem:[%s4225 + $0x28] sm:$0xf]
      %v4237 = vld [vmem:[%s4225 + $0x2c] sm:$0xf]
      %v4238 = vld [vmem:[%s4225 + $0x30] sm:$0xf]
      %v4239 = vld [vmem:[%s4225 + $0x34] sm:$0xf]
      %v4240 = vld [vmem:[%s4225 + $0x38] sm:$0xf]
      %v4241 = vld [vmem:[%s4225 + $0x3c] sm:$0xf]
      %v4258 = vunpack.c.l.b16 %v4226
      %v4259 = vunpack.c.l.b16 %v4227
      %v4260 = vunpack.c.l.b16 %v4228
      %v4261 = vunpack.c.l.b16 %v4229
      %v4262 = vunpack.c.l.b16 %v4230
      %v4263 = vunpack.c.l.b16 %v4231
      %v4264 = vunpack.c.l.b16 %v4232
      %v4265 = vunpack.c.l.b16 %v4233
      %v4266 = vunpack.c.l.b16 %v4234
      %v4267 = vunpack.c.l.b16 %v4235
      %v4268 = vunpack.c.l.b16 %v4236
      %v4269 = vunpack.c.l.b16 %v4237
      %v4270 = vunpack.c.l.b16 %v4238
      %v4271 = vunpack.c.l.b16 %v4239
      %v4272 = vunpack.c.l.b16 %v4240
      %v4273 = vunpack.c.l.b16 %v4241
      %v4274 = vpack.c.b16 %v4259, %v4258
      %v4275 = vpack.c.b16 %v4261, %v4260
      %v4276 = vpack.c.b16 %v4263, %v4262
      %v4277 = vpack.c.b16 %v4265, %v4264
      %v4278 = vpack.c.b16 %v4267, %v4266
      %v4279 = vpack.c.b16 %v4269, %v4268
      %v4280 = vpack.c.b16 %v4271, %v4270
      %v4281 = vpack.c.b16 %v4273, %v4272
      %4290 = vmatpush.bf16.msra.mxu0 %v4281
      %4291 = vmatpush.bf16.msra.mxu0 %v4280
      %4292 = vmatpush.bf16.msra.mxu0 %v4279
      %4293 = vmatpush.bf16.msra.mxu0 %v4278
      %4294 = vmatpush.bf16.msra.mxu0 %v4277
      %4295 = vmatpush.bf16.msra.mxu0 %v4276
      %4296 = vmatpush.bf16.msra.mxu0 %v4275
      %4297 = vmatpush.bf16.msra.mxu0 %v4274
      %4298 = vmatmul.bf16.gmra.mxu0 %v4193
      %v4299 = vpop.f32.mrf.mxu0
      %v4300 = vadd.f32 0.0, %v4299
      %v4301 = vpop.f32.mrf.mxu0
      %v4302 = vadd.f32 0.0, %v4301
      %4303 = vmatmul.bf16.gmra.mxu0 %v4194
      %v4304 = vpop.f32.mrf.mxu0
      %v4305 = vadd.f32 0.0, %v4304
      %v4306 = vpop.f32.mrf.mxu0
      %v4307 = vadd.f32 0.0, %v4306
      %4308 = vmatmul.bf16.gmra.mxu0 %v4195
      %v4309 = vpop.f32.mrf.mxu0
      %v4310 = vadd.f32 0.0, %v4309
      %v4311 = vpop.f32.mrf.mxu0
      %v4312 = vadd.f32 0.0, %v4311
      %4313 = vmatmul.bf16.gmra.mxu0 %v4196
      %v4314 = vpop.f32.mrf.mxu0
      %v4315 = vadd.f32 0.0, %v4314
      %v4316 = vpop.f32.mrf.mxu0
      %v4317 = vadd.f32 0.0, %v4316
      %4318 = vmatmul.bf16.gmra.mxu0 %v4197
      %v4319 = vpop.f32.mrf.mxu0
      %v4320 = vadd.f32 0.0, %v4319
      %v4321 = vpop.f32.mrf.mxu0
      %v4322 = vadd.f32 0.0, %v4321
      %4323 = vmatmul.bf16.gmra.mxu0 %v4198
      %v4324 = vpop.f32.mrf.mxu0
      %v4325 = vadd.f32 0.0, %v4324
      %v4326 = vpop.f32.mrf.mxu0
      %v4327 = vadd.f32 0.0, %v4326
      %4328 = vmatmul.bf16.gmra.mxu0 %v4199
      %v4329 = vpop.f32.mrf.mxu0
      %v4330 = vadd.f32 0.0, %v4329
      %v4331 = vpop.f32.mrf.mxu0
      %v4332 = vadd.f32 0.0, %v4331
      %4333 = vmatmul.bf16.gmra.mxu0 %v4200
      %v4334 = vpop.f32.mrf.mxu0
      %v4335 = vadd.f32 0.0, %v4334
      %v4336 = vpop.f32.mrf.mxu0
      %v4337 = vadd.f32 0.0, %v4336
      %4338 = vmatmul.bf16.gmra.mxu0 %v4201
      %v4339 = vpop.f32.mrf.mxu0
      %v4340 = vadd.f32 0.0, %v4339
      %v4341 = vpop.f32.mrf.mxu0
      %v4342 = vadd.f32 0.0, %v4341
      %4343 = vmatmul.bf16.gmra.mxu0 %v4202
      %v4344 = vpop.f32.mrf.mxu0
      %v4345 = vadd.f32 0.0, %v4344
      %v4346 = vpop.f32.mrf.mxu0
      %v4347 = vadd.f32 0.0, %v4346
      %4348 = vmatmul.bf16.gmra.mxu0 %v4203
      %v4349 = vpop.f32.mrf.mxu0
      %v4350 = vadd.f32 0.0, %v4349
      %v4351 = vpop.f32.mrf.mxu0
      %v4352 = vadd.f32 0.0, %v4351
      %4353 = vmatmul.bf16.gmra.mxu0 %v4204
      %v4354 = vpop.f32.mrf.mxu0
      %v4355 = vadd.f32 0.0, %v4354
      %v4356 = vpop.f32.mrf.mxu0
      %v4357 = vadd.f32 0.0, %v4356
      %4358 = vmatmul.bf16.gmra.mxu0 %v4205
      %v4359 = vpop.f32.mrf.mxu0
      %v4360 = vadd.f32 0.0, %v4359
      %v4361 = vpop.f32.mrf.mxu0
      %v4362 = vadd.f32 0.0, %v4361
      %4363 = vmatmul.bf16.gmra.mxu0 %v4206
      %v4364 = vpop.f32.mrf.mxu0
      %v4365 = vadd.f32 0.0, %v4364
      %v4366 = vpop.f32.mrf.mxu0
      %v4367 = vadd.f32 0.0, %v4366
      %4368 = vmatmul.bf16.gmra.mxu0 %v4207
      %v4369 = vpop.f32.mrf.mxu0
      %v4370 = vadd.f32 0.0, %v4369
      %v4371 = vpop.f32.mrf.mxu0
      %v4372 = vadd.f32 0.0, %v4371
      %4373 = vmatmul.bf16.gmra.mxu0 %v4208
      %v4374 = vpop.f32.mrf.mxu0
      %v4375 = vadd.f32 0.0, %v4374
      %v4376 = vpop.f32.mrf.mxu0
      %v4377 = vadd.f32 0.0, %v4376
      %4378 = vmatmul.bf16.gmra.mxu0 %v4209
      %v4379 = vpop.f32.mrf.mxu0
      %v4380 = vadd.f32 0.0, %v4379
      %v4381 = vpop.f32.mrf.mxu0
      %v4382 = vadd.f32 0.0, %v4381
      %4383 = vmatmul.bf16.gmra.mxu0 %v4210
      %v4384 = vpop.f32.mrf.mxu0
      %v4385 = vadd.f32 0.0, %v4384
      %v4386 = vpop.f32.mrf.mxu0
      %v4387 = vadd.f32 0.0, %v4386
      %4388 = vmatmul.bf16.gmra.mxu0 %v4211
      %v4389 = vpop.f32.mrf.mxu0
      %v4390 = vadd.f32 0.0, %v4389
      %v4391 = vpop.f32.mrf.mxu0
      %v4392 = vadd.f32 0.0, %v4391
      %4393 = vmatmul.bf16.gmra.mxu0 %v4212
      %v4394 = vpop.f32.mrf.mxu0
      %v4395 = vadd.f32 0.0, %v4394
      %v4396 = vpop.f32.mrf.mxu0
      %v4397 = vadd.f32 0.0, %v4396
      %4398 = vmatmul.bf16.gmra.mxu0 %v4213
      %v4399 = vpop.f32.mrf.mxu0
      %v4400 = vadd.f32 0.0, %v4399
      %v4401 = vpop.f32.mrf.mxu0
      %v4402 = vadd.f32 0.0, %v4401
      %4403 = vmatmul.bf16.gmra.mxu0 %v4214
      %v4404 = vpop.f32.mrf.mxu0
      %v4405 = vadd.f32 0.0, %v4404
      %v4406 = vpop.f32.mrf.mxu0
      %v4407 = vadd.f32 0.0, %v4406
      %4408 = vmatmul.bf16.gmra.mxu0 %v4215
      %v4409 = vpop.f32.mrf.mxu0
      %v4410 = vadd.f32 0.0, %v4409
      %v4411 = vpop.f32.mrf.mxu0
      %v4412 = vadd.f32 0.0, %v4411
      %4413 = vmatmul.bf16.gmra.mxu0 %v4216
      %v4414 = vpop.f32.mrf.mxu0
      %v4415 = vadd.f32 0.0, %v4414
      %v4416 = vpop.f32.mrf.mxu0
      %v4417 = vadd.f32 0.0, %v4416
      %4418 = vmatmul.bf16.gmra.mxu0 %v4217
      %v4419 = vpop.f32.mrf.mxu0
      %v4420 = vadd.f32 0.0, %v4419
      %v4421 = vpop.f32.mrf.mxu0
      %v4422 = vadd.f32 0.0, %v4421
      %4423 = vmatmul.bf16.gmra.mxu0 %v4218
      %v4424 = vpop.f32.mrf.mxu0
      %v4425 = vadd.f32 0.0, %v4424
      %v4426 = vpop.f32.mrf.mxu0
      %v4427 = vadd.f32 0.0, %v4426
      %4428 = vmatmul.bf16.gmra.mxu0 %v4219
      %v4429 = vpop.f32.mrf.mxu0
      %v4430 = vadd.f32 0.0, %v4429
      %v4431 = vpop.f32.mrf.mxu0
      %v4432 = vadd.f32 0.0, %v4431
      %4433 = vmatmul.bf16.gmra.mxu0 %v4220
      %v4434 = vpop.f32.mrf.mxu0
      %v4435 = vadd.f32 0.0, %v4434
      %v4436 = vpop.f32.mrf.mxu0
      %v4437 = vadd.f32 0.0, %v4436
      %4438 = vmatmul.bf16.gmra.mxu0 %v4221
      %v4439 = vpop.f32.mrf.mxu0
      %v4440 = vadd.f32 0.0, %v4439
      %v4441 = vpop.f32.mrf.mxu0
      %v4442 = vadd.f32 0.0, %v4441
      %4443 = vmatmul.bf16.gmra.mxu0 %v4222
      %v4444 = vpop.f32.mrf.mxu0
      %v4445 = vadd.f32 0.0, %v4444
      %v4446 = vpop.f32.mrf.mxu0
      %v4447 = vadd.f32 0.0, %v4446
      %4448 = vmatmul.bf16.gmra.mxu0 %v4223
      %v4449 = vpop.f32.mrf.mxu0
      %v4450 = vadd.f32 0.0, %v4449
      %v4451 = vpop.f32.mrf.mxu0
      %v4452 = vadd.f32 0.0, %v4451
      %4453 = vmatmul.bf16.gmra.mxu0 %v4224
      %v4454 = vpop.f32.mrf.mxu0
      %v4455 = vadd.f32 0.0, %v4454
      %v4456 = vpop.f32.mrf.mxu0
      %v4457 = vadd.f32 0.0, %v4456
      %4458 = vdwg.mxu0
      %v4459 = vadd.f32 %v4001, %v4300
      %v4460 = vadd.f32 %v4002, %v4302
      %v4461 = vadd.f32 %v4003, %v4305
      %v4462 = vadd.f32 %v4004, %v4307
      %v4463 = vadd.f32 %v4005, %v4310
      %v4464 = vadd.f32 %v4006, %v4312
      %v4465 = vadd.f32 %v4007, %v4315
      %v4466 = vadd.f32 %v4008, %v4317
      %v4467 = vadd.f32 %v4009, %v4320
      %v4468 = vadd.f32 %v4010, %v4322
      %v4469 = vadd.f32 %v4011, %v4325
      %v4470 = vadd.f32 %v4012, %v4327
      %v4471 = vadd.f32 %v4013, %v4330
      %v4472 = vadd.f32 %v4014, %v4332
      %v4473 = vadd.f32 %v4015, %v4335
      %v4474 = vadd.f32 %v4016, %v4337
      %v4475 = vadd.f32 %v4017, %v4340
      %v4476 = vadd.f32 %v4018, %v4342
      %v4477 = vadd.f32 %v4019, %v4345
      %v4478 = vadd.f32 %v4020, %v4347
      %v4479 = vadd.f32 %v4021, %v4350
      %v4480 = vadd.f32 %v4022, %v4352
      %v4481 = vadd.f32 %v4023, %v4355
      %v4482 = vadd.f32 %v4024, %v4357
      %v4483 = vadd.f32 %v4025, %v4360
      %v4484 = vadd.f32 %v4026, %v4362
      %v4485 = vadd.f32 %v4027, %v4365
      %v4486 = vadd.f32 %v4028, %v4367
      %v4487 = vadd.f32 %v4029, %v4370
      %v4488 = vadd.f32 %v4030, %v4372
      %v4489 = vadd.f32 %v4031, %v4375
      %v4490 = vadd.f32 %v4032, %v4377
      %v4491 = vadd.f32 %v4033, %v4380
      %v4492 = vadd.f32 %v4034, %v4382
      %v4493 = vadd.f32 %v4035, %v4385
      %v4494 = vadd.f32 %v4036, %v4387
      %v4495 = vadd.f32 %v4037, %v4390
      %v4496 = vadd.f32 %v4038, %v4392
      %v4497 = vadd.f32 %v4039, %v4395
      %v4498 = vadd.f32 %v4040, %v4397
      %v4499 = vadd.f32 %v4041, %v4400
      %v4500 = vadd.f32 %v4042, %v4402
      %v4501 = vadd.f32 %v4043, %v4405
      %v4502 = vadd.f32 %v4044, %v4407
      %v4503 = vadd.f32 %v4045, %v4410
      %v4504 = vadd.f32 %v4046, %v4412
      %v4505 = vadd.f32 %v4047, %v4415
      %v4506 = vadd.f32 %v4048, %v4417
      %v4507 = vadd.f32 %v4049, %v4420
      %v4508 = vadd.f32 %v4050, %v4422
      %v4509 = vadd.f32 %v4051, %v4425
      %v4510 = vadd.f32 %v4052, %v4427
      %v4511 = vadd.f32 %v4053, %v4430
      %v4512 = vadd.f32 %v4054, %v4432
      %v4513 = vadd.f32 %v4055, %v4435
      %v4514 = vadd.f32 %v4056, %v4437
      %v4515 = vadd.f32 %v4057, %v4440
      %v4516 = vadd.f32 %v4058, %v4442
      %v4517 = vadd.f32 %v4059, %v4445
      %v4518 = vadd.f32 %v4060, %v4447
      %v4519 = vadd.f32 %v4061, %v4450
      %v4520 = vadd.f32 %v4062, %v4452
      %v4521 = vadd.f32 %v4063, %v4455
      %v4522 = vadd.f32 %v4064, %v4457
      %v4523 = vsel %vm249, %v4459, 0.0
      %v4524 = vsel %vm250, %v4460, 0.0
      %v4525 = vsel %vm251, %v4461, 0.0
      %v4526 = vsel %vm252, %v4462, 0.0
      %v4527 = vsel %vm249, %v4463, 0.0
      %v4528 = vsel %vm250, %v4464, 0.0
      %v4529 = vsel %vm251, %v4465, 0.0
      %v4530 = vsel %vm252, %v4466, 0.0
      %v4531 = vsel %vm249, %v4467, 0.0
      %v4532 = vsel %vm250, %v4468, 0.0
      %v4533 = vsel %vm251, %v4469, 0.0
      %v4534 = vsel %vm252, %v4470, 0.0
      %v4535 = vsel %vm249, %v4471, 0.0
      %v4536 = vsel %vm250, %v4472, 0.0
      %v4537 = vsel %vm251, %v4473, 0.0
      %v4538 = vsel %vm252, %v4474, 0.0
      %v4539 = vsel %vm249, %v4475, 0.0
      %v4540 = vsel %vm250, %v4476, 0.0
      %v4541 = vsel %vm251, %v4477, 0.0
      %v4542 = vsel %vm252, %v4478, 0.0
      %v4543 = vsel %vm249, %v4479, 0.0
      %v4544 = vsel %vm250, %v4480, 0.0
      %v4545 = vsel %vm251, %v4481, 0.0
      %v4546 = vsel %vm252, %v4482, 0.0
      %v4547 = vsel %vm249, %v4483, 0.0
      %v4548 = vsel %vm250, %v4484, 0.0
      %v4549 = vsel %vm251, %v4485, 0.0
      %v4550 = vsel %vm252, %v4486, 0.0
      %v4551 = vsel %vm249, %v4487, 0.0
      %v4552 = vsel %vm250, %v4488, 0.0
      %v4553 = vsel %vm251, %v4489, 0.0
      %v4554 = vsel %vm252, %v4490, 0.0
      %v4555 = vsel %vm249, %v4491, 0.0
      %v4556 = vsel %vm250, %v4492, 0.0
      %v4557 = vsel %vm251, %v4493, 0.0
      %v4558 = vsel %vm252, %v4494, 0.0
      %v4559 = vsel %vm249, %v4495, 0.0
      %v4560 = vsel %vm250, %v4496, 0.0
      %v4561 = vsel %vm251, %v4497, 0.0
      %v4562 = vsel %vm252, %v4498, 0.0
      %v4563 = vsel %vm249, %v4499, 0.0
      %v4564 = vsel %vm250, %v4500, 0.0
      %v4565 = vsel %vm251, %v4501, 0.0
      %v4566 = vsel %vm252, %v4502, 0.0
      %v4567 = vsel %vm249, %v4503, 0.0
      %v4568 = vsel %vm250, %v4504, 0.0
      %v4569 = vsel %vm251, %v4505, 0.0
      %v4570 = vsel %vm252, %v4506, 0.0
      %v4571 = vsel %vm249, %v4507, 0.0
      %v4572 = vsel %vm250, %v4508, 0.0
      %v4573 = vsel %vm251, %v4509, 0.0
      %v4574 = vsel %vm252, %v4510, 0.0
      %v4575 = vsel %vm249, %v4511, 0.0
      %v4576 = vsel %vm250, %v4512, 0.0
      %v4577 = vsel %vm251, %v4513, 0.0
      %v4578 = vsel %vm252, %v4514, 0.0
      %v4579 = vsel %vm249, %v4515, 0.0
      %v4580 = vsel %vm250, %v4516, 0.0
      %v4581 = vsel %vm251, %v4517, 0.0
      %v4582 = vsel %vm252, %v4518, 0.0
      %v4583 = vsel %vm249, %v4519, 0.0
      %v4584 = vsel %vm250, %v4520, 0.0
      %v4585 = vsel %vm251, %v4521, 0.0
      %v4586 = vsel %vm252, %v4522, 0.0
      %v4587 = vadd.f32 %v4523, %v4524
      %v4588 = vadd.f32 %v4587, %v4525
      %v4589 = vadd.f32 %v4588, %v4526
      %v4590 = vadd.f32 %v4589, %v4527
      %v4591 = vadd.f32 %v4590, %v4528
      %v4592 = vadd.f32 %v4591, %v4529
      %v4593 = vadd.f32 %v4592, %v4530
      %v4594 = vadd.f32 %v4593, %v4531
      %v4595 = vadd.f32 %v4594, %v4532
      %v4596 = vadd.f32 %v4595, %v4533
      %v4597 = vadd.f32 %v4596, %v4534
      %v4598 = vadd.f32 %v4597, %v4535
      %v4599 = vadd.f32 %v4598, %v4536
      %v4600 = vadd.f32 %v4599, %v4537
      %v4601 = vadd.f32 %v4600, %v4538
      %v4602 = vadd.f32 %v4601, %v4539
      %v4603 = vadd.f32 %v4602, %v4540
      %v4604 = vadd.f32 %v4603, %v4541
      %v4605 = vadd.f32 %v4604, %v4542
      %v4606 = vadd.f32 %v4605, %v4543
      %v4607 = vadd.f32 %v4606, %v4544
      %v4608 = vadd.f32 %v4607, %v4545
      %v4609 = vadd.f32 %v4608, %v4546
      %v4610 = vadd.f32 %v4609, %v4547
      %v4611 = vadd.f32 %v4610, %v4548
      %v4612 = vadd.f32 %v4611, %v4549
      %v4613 = vadd.f32 %v4612, %v4550
      %v4614 = vadd.f32 %v4613, %v4551
      %v4615 = vadd.f32 %v4614, %v4552
      %v4616 = vadd.f32 %v4615, %v4553
      %v4617 = vadd.f32 %v4616, %v4554
      %v4618 = vadd.f32 %v4617, %v4555
      %v4619 = vadd.f32 %v4618, %v4556
      %v4620 = vadd.f32 %v4619, %v4557
      %v4621 = vadd.f32 %v4620, %v4558
      %v4622 = vadd.f32 %v4621, %v4559
      %v4623 = vadd.f32 %v4622, %v4560
      %v4624 = vadd.f32 %v4623, %v4561
      %v4625 = vadd.f32 %v4624, %v4562
      %v4626 = vadd.f32 %v4625, %v4563
      %v4627 = vadd.f32 %v4626, %v4564
      %v4628 = vadd.f32 %v4627, %v4565
      %v4629 = vadd.f32 %v4628, %v4566
      %v4630 = vadd.f32 %v4629, %v4567
      %v4631 = vadd.f32 %v4630, %v4568
      %v4632 = vadd.f32 %v4631, %v4569
      %v4633 = vadd.f32 %v4632, %v4570
      %v4634 = vadd.f32 %v4633, %v4571
      %v4635 = vadd.f32 %v4634, %v4572
      %v4636 = vadd.f32 %v4635, %v4573
      %v4637 = vadd.f32 %v4636, %v4574
      %v4638 = vadd.f32 %v4637, %v4575
      %v4639 = vadd.f32 %v4638, %v4576
      %v4640 = vadd.f32 %v4639, %v4577
      %v4641 = vadd.f32 %v4640, %v4578
      %v4642 = vadd.f32 %v4641, %v4579
      %v4643 = vadd.f32 %v4642, %v4580
      %v4644 = vadd.f32 %v4643, %v4581
      %v4645 = vadd.f32 %v4644, %v4582
      %v4646 = vadd.f32 %v4645, %v4583
      %v4647 = vadd.f32 %v4646, %v4584
      %v4648 = vadd.f32 %v4647, %v4585
      %v4649 = vadd.f32 %v4648, %v4586
      %v4650 = vrot.slane %v4649, 4
      %v4651 = vadd.f32 %v4649, %v4650
      %v4652 = vrot.slane %v4651, 2
      %v4653 = vadd.f32 %v4651, %v4652
      %v4654 = vrot.slane %v4653, 1
      %v4655 = vadd.f32 %v4653, %v4654
      %v4656 = vmul.f32 %v4523, %v4523
      %v4657 = vmul.f32 %v4524, %v4524
      %v4658 = vmul.f32 %v4525, %v4525
      %v4659 = vmul.f32 %v4526, %v4526
      %v4660 = vmul.f32 %v4527, %v4527
      %v4661 = vmul.f32 %v4528, %v4528
      %v4662 = vmul.f32 %v4529, %v4529
      %v4663 = vmul.f32 %v4530, %v4530
      %v4664 = vmul.f32 %v4531, %v4531
      %v4665 = vmul.f32 %v4532, %v4532
      %v4666 = vmul.f32 %v4533, %v4533
      %v4667 = vmul.f32 %v4534, %v4534
      %v4668 = vmul.f32 %v4535, %v4535
      %v4669 = vmul.f32 %v4536, %v4536
      %v4670 = vmul.f32 %v4537, %v4537
      %v4671 = vmul.f32 %v4538, %v4538
      %v4672 = vmul.f32 %v4539, %v4539
      %v4673 = vmul.f32 %v4540, %v4540
      %v4674 = vmul.f32 %v4541, %v4541
      %v4675 = vmul.f32 %v4542, %v4542
      %v4676 = vmul.f32 %v4543, %v4543
      %v4677 = vmul.f32 %v4544, %v4544
      %v4678 = vmul.f32 %v4545, %v4545
      %v4679 = vmul.f32 %v4546, %v4546
      %v4680 = vmul.f32 %v4547, %v4547
      %v4681 = vmul.f32 %v4548, %v4548
      %v4682 = vmul.f32 %v4549, %v4549
      %v4683 = vmul.f32 %v4550, %v4550
      %v4684 = vmul.f32 %v4551, %v4551
      %v4685 = vmul.f32 %v4552, %v4552
      %v4686 = vmul.f32 %v4553, %v4553
      %v4687 = vmul.f32 %v4554, %v4554
      %v4688 = vmul.f32 %v4555, %v4555
      %v4689 = vmul.f32 %v4556, %v4556
      %v4690 = vmul.f32 %v4557, %v4557
      %v4691 = vmul.f32 %v4558, %v4558
      %v4692 = vmul.f32 %v4559, %v4559
      %v4693 = vmul.f32 %v4560, %v4560
      %v4694 = vmul.f32 %v4561, %v4561
      %v4695 = vmul.f32 %v4562, %v4562
      %v4696 = vmul.f32 %v4563, %v4563
      %v4697 = vmul.f32 %v4564, %v4564
      %v4698 = vmul.f32 %v4565, %v4565
      %v4699 = vmul.f32 %v4566, %v4566
      %v4700 = vmul.f32 %v4567, %v4567
      %v4701 = vmul.f32 %v4568, %v4568
      %v4702 = vmul.f32 %v4569, %v4569
      %v4703 = vmul.f32 %v4570, %v4570
      %v4704 = vmul.f32 %v4571, %v4571
      %v4705 = vmul.f32 %v4572, %v4572
      %v4706 = vmul.f32 %v4573, %v4573
      %v4707 = vmul.f32 %v4574, %v4574
      %v4708 = vmul.f32 %v4575, %v4575
      %v4709 = vmul.f32 %v4576, %v4576
      %v4710 = vmul.f32 %v4577, %v4577
      %v4711 = vmul.f32 %v4578, %v4578
      %v4712 = vmul.f32 %v4579, %v4579
      %v4713 = vmul.f32 %v4580, %v4580
      %v4714 = vmul.f32 %v4581, %v4581
      %v4715 = vmul.f32 %v4582, %v4582
      %v4716 = vmul.f32 %v4583, %v4583
      %v4717 = vmul.f32 %v4584, %v4584
      %v4718 = vmul.f32 %v4585, %v4585
      %v4719 = vmul.f32 %v4586, %v4586
      %v4720 = vadd.f32 %v4656, %v4657
      %v4721 = vadd.f32 %v4720, %v4658
      %v4722 = vadd.f32 %v4721, %v4659
      %v4723 = vadd.f32 %v4722, %v4660
      %v4724 = vadd.f32 %v4723, %v4661
      %v4725 = vadd.f32 %v4724, %v4662
      %v4726 = vadd.f32 %v4725, %v4663
      %v4727 = vadd.f32 %v4726, %v4664
      %v4728 = vadd.f32 %v4727, %v4665
      %v4729 = vadd.f32 %v4728, %v4666
      %v4730 = vadd.f32 %v4729, %v4667
      %v4731 = vadd.f32 %v4730, %v4668
      %v4732 = vadd.f32 %v4731, %v4669
      %v4733 = vadd.f32 %v4732, %v4670
      %v4734 = vadd.f32 %v4733, %v4671
      %v4735 = vadd.f32 %v4734, %v4672
      %v4736 = vadd.f32 %v4735, %v4673
      %v4737 = vadd.f32 %v4736, %v4674
      %v4738 = vadd.f32 %v4737, %v4675
      %v4739 = vadd.f32 %v4738, %v4676
      %v4740 = vadd.f32 %v4739, %v4677
      %v4741 = vadd.f32 %v4740, %v4678
      %v4742 = vadd.f32 %v4741, %v4679
      %v4743 = vadd.f32 %v4742, %v4680
      %v4744 = vadd.f32 %v4743, %v4681
      %v4745 = vadd.f32 %v4744, %v4682
      %v4746 = vadd.f32 %v4745, %v4683
      %v4747 = vadd.f32 %v4746, %v4684
      %v4748 = vadd.f32 %v4747, %v4685
      %v4749 = vadd.f32 %v4748, %v4686
      %v4750 = vadd.f32 %v4749, %v4687
      %v4751 = vadd.f32 %v4750, %v4688
      %v4752 = vadd.f32 %v4751, %v4689
      %v4753 = vadd.f32 %v4752, %v4690
      %v4754 = vadd.f32 %v4753, %v4691
      %v4755 = vadd.f32 %v4754, %v4692
      %v4756 = vadd.f32 %v4755, %v4693
      %v4757 = vadd.f32 %v4756, %v4694
      %v4758 = vadd.f32 %v4757, %v4695
      %v4759 = vadd.f32 %v4758, %v4696
      %v4760 = vadd.f32 %v4759, %v4697
      %v4761 = vadd.f32 %v4760, %v4698
      %v4762 = vadd.f32 %v4761, %v4699
      %v4763 = vadd.f32 %v4762, %v4700
      %v4764 = vadd.f32 %v4763, %v4701
      %v4765 = vadd.f32 %v4764, %v4702
      %v4766 = vadd.f32 %v4765, %v4703
      %v4767 = vadd.f32 %v4766, %v4704
      %v4768 = vadd.f32 %v4767, %v4705
      %v4769 = vadd.f32 %v4768, %v4706
      %v4770 = vadd.f32 %v4769, %v4707
      %v4771 = vadd.f32 %v4770, %v4708
      %v4772 = vadd.f32 %v4771, %v4709
      %v4773 = vadd.f32 %v4772, %v4710
      %v4774 = vadd.f32 %v4773, %v4711
      %v4775 = vadd.f32 %v4774, %v4712
      %v4776 = vadd.f32 %v4775, %v4713
      %v4777 = vadd.f32 %v4776, %v4714
      %v4778 = vadd.f32 %v4777, %v4715
      %v4779 = vadd.f32 %v4778, %v4716
      %v4780 = vadd.f32 %v4779, %v4717
      %v4781 = vadd.f32 %v4780, %v4718
      %v4782 = vadd.f32 %v4781, %v4719
      %v4783 = vrot.slane %v4782, 4
      %v4784 = vadd.f32 %v4782, %v4783
      %v4785 = vrot.slane %v4784, 2
      %v4786 = vadd.f32 %v4784, %v4785
      %v4787 = vrot.slane %v4786, 1
      %v4788 = vadd.f32 %v4786, %v4787
      %vm4789 = vcmask 1040384
      %v4790 = vsel %vm4789, %v4655, %v4788
      %4791 = vst [vmem:[%s235] sm:$0x3] %v4790
      %v4792 = vpack.c.bf16 %v4459, %v4459
      %v4793 = vpack.c.bf16 %v4460, %v4460
      %v4794 = vpack.c.bf16 %v4461, %v4461
      %v4795 = vpack.c.bf16 %v4462, %v4462
      %v4796 = vpack.c.bf16 %v4463, %v4463
      %v4797 = vpack.c.bf16 %v4464, %v4464
      %v4798 = vpack.c.bf16 %v4465, %v4465
      %v4799 = vpack.c.bf16 %v4466, %v4466
      %v4800 = vpack.c.bf16 %v4467, %v4467
      %v4801 = vpack.c.bf16 %v4468, %v4468
      %v4802 = vpack.c.bf16 %v4469, %v4469
      %v4803 = vpack.c.bf16 %v4470, %v4470
      %v4804 = vpack.c.bf16 %v4471, %v4471
      %v4805 = vpack.c.bf16 %v4472, %v4472
      %v4806 = vpack.c.bf16 %v4473, %v4473
      %v4807 = vpack.c.bf16 %v4474, %v4474
      %v4808 = vpack.c.bf16 %v4475, %v4475
      %v4809 = vpack.c.bf16 %v4476, %v4476
      %v4810 = vpack.c.bf16 %v4477, %v4477
      %v4811 = vpack.c.bf16 %v4478, %v4478
      %v4812 = vpack.c.bf16 %v4479, %v4479
      %v4813 = vpack.c.bf16 %v4480, %v4480
      %v4814 = vpack.c.bf16 %v4481, %v4481
      %v4815 = vpack.c.bf16 %v4482, %v4482
      %v4816 = vpack.c.bf16 %v4483, %v4483
      %v4817 = vpack.c.bf16 %v4484, %v4484
      %v4818 = vpack.c.bf16 %v4485, %v4485
      %v4819 = vpack.c.bf16 %v4486, %v4486
      %v4820 = vpack.c.bf16 %v4487, %v4487
      %v4821 = vpack.c.bf16 %v4488, %v4488
      %v4822 = vpack.c.bf16 %v4489, %v4489
      %v4823 = vpack.c.bf16 %v4490, %v4490
      %v4824 = vpack.c.bf16 %v4491, %v4491
      %v4825 = vpack.c.bf16 %v4492, %v4492
      %v4826 = vpack.c.bf16 %v4493, %v4493
      %v4827 = vpack.c.bf16 %v4494, %v4494
      %v4828 = vpack.c.bf16 %v4495, %v4495
      %v4829 = vpack.c.bf16 %v4496, %v4496
      %v4830 = vpack.c.bf16 %v4497, %v4497
      %v4831 = vpack.c.bf16 %v4498, %v4498
      %v4832 = vpack.c.bf16 %v4499, %v4499
      %v4833 = vpack.c.bf16 %v4500, %v4500
      %v4834 = vpack.c.bf16 %v4501, %v4501
      %v4835 = vpack.c.bf16 %v4502, %v4502
      %v4836 = vpack.c.bf16 %v4503, %v4503
      %v4837 = vpack.c.bf16 %v4504, %v4504
      %v4838 = vpack.c.bf16 %v4505, %v4505
      %v4839 = vpack.c.bf16 %v4506, %v4506
      %v4840 = vpack.c.bf16 %v4507, %v4507
      %v4841 = vpack.c.bf16 %v4508, %v4508
      %v4842 = vpack.c.bf16 %v4509, %v4509
      %v4843 = vpack.c.bf16 %v4510, %v4510
      %v4844 = vpack.c.bf16 %v4511, %v4511
      %v4845 = vpack.c.bf16 %v4512, %v4512
      %v4846 = vpack.c.bf16 %v4513, %v4513
      %v4847 = vpack.c.bf16 %v4514, %v4514
      %v4848 = vpack.c.bf16 %v4515, %v4515
      %v4849 = vpack.c.bf16 %v4516, %v4516
      %v4850 = vpack.c.bf16 %v4517, %v4517
      %v4851 = vpack.c.bf16 %v4518, %v4518
      %v4852 = vpack.c.bf16 %v4519, %v4519
      %v4853 = vpack.c.bf16 %v4520, %v4520
      %v4854 = vpack.c.bf16 %v4521, %v4521
      %v4855 = vpack.c.bf16 %v4522, %v4522
      %4856 = vst [vmem:[%s231] sm:$0xf] %v4792
      %4857 = vst [vmem:[%s231 + $0x4] sm:$0xf] %v4793
      %4858 = vst [vmem:[%s231 + $0x8] sm:$0xf] %v4794
      %4859 = vst [vmem:[%s231 + $0xc] sm:$0xf] %v4795
      %4860 = vst [vmem:[%s231 + $0x10] sm:$0xf] %v4796
      %4861 = vst [vmem:[%s231 + $0x14] sm:$0xf] %v4797
      %4862 = vst [vmem:[%s231 + $0x18] sm:$0xf] %v4798
      %4863 = vst [vmem:[%s231 + $0x1c] sm:$0xf] %v4799
      %4864 = vst [vmem:[%s231 + $0x20] sm:$0xf] %v4800
      %4865 = vst [vmem:[%s231 + $0x24] sm:$0xf] %v4801
      %4866 = vst [vmem:[%s231 + $0x28] sm:$0xf] %v4802
      %4867 = vst [vmem:[%s231 + $0x2c] sm:$0xf] %v4803
      %4868 = vst [vmem:[%s231 + $0x30] sm:$0xf] %v4804
      %4869 = vst [vmem:[%s231 + $0x34] sm:$0xf] %v4805
      %4870 = vst [vmem:[%s231 + $0x38] sm:$0xf] %v4806
      %4871 = vst [vmem:[%s231 + $0x3c] sm:$0xf] %v4807
      %4872 = vst [vmem:[%s231 + $0x40] sm:$0xf] %v4808
      %4873 = vst [vmem:[%s231 + $0x44] sm:$0xf] %v4809
      %4874 = vst [vmem:[%s231 + $0x48] sm:$0xf] %v4810
      %4875 = vst [vmem:[%s231 + $0x4c] sm:$0xf] %v4811
      %4876 = vst [vmem:[%s231 + $0x50] sm:$0xf] %v4812
      %4877 = vst [vmem:[%s231 + $0x54] sm:$0xf] %v4813
      %4878 = vst [vmem:[%s231 + $0x58] sm:$0xf] %v4814
      %4879 = vst [vmem:[%s231 + $0x5c] sm:$0xf] %v4815
      %4880 = vst [vmem:[%s231 + $0x60] sm:$0xf] %v4816
      %4881 = vst [vmem:[%s231 + $0x64] sm:$0xf] %v4817
      %4882 = vst [vmem:[%s231 + $0x68] sm:$0xf] %v4818
      %4883 = vst [vmem:[%s231 + $0x6c] sm:$0xf] %v4819
      %4884 = vst [vmem:[%s231 + $0x70] sm:$0xf] %v4820
      %4885 = vst [vmem:[%s231 + $0x74] sm:$0xf] %v4821
      %4886 = vst [vmem:[%s231 + $0x78] sm:$0xf] %v4822
      %4887 = vst [vmem:[%s231 + $0x7c] sm:$0xf] %v4823
      %4888 = vst [vmem:[%s231 + $0x80] sm:$0xf] %v4824
      %4889 = vst [vmem:[%s231 + $0x84] sm:$0xf] %v4825
      %4890 = vst [vmem:[%s231 + $0x88] sm:$0xf] %v4826
      %4891 = vst [vmem:[%s231 + $0x8c] sm:$0xf] %v4827
      %4892 = vst [vmem:[%s231 + $0x90] sm:$0xf] %v4828
      %4893 = vst [vmem:[%s231 + $0x94] sm:$0xf] %v4829
      %4894 = vst [vmem:[%s231 + $0x98] sm:$0xf] %v4830
      %4895 = vst [vmem:[%s231 + $0x9c] sm:$0xf] %v4831
      %4896 = vst [vmem:[%s231 + $0xa0] sm:$0xf] %v4832
      %4897 = vst [vmem:[%s231 + $0xa4] sm:$0xf] %v4833
      %4898 = vst [vmem:[%s231 + $0xa8] sm:$0xf] %v4834
      %4899 = vst [vmem:[%s231 + $0xac] sm:$0xf] %v4835
      %4900 = vst [vmem:[%s231 + $0xb0] sm:$0xf] %v4836
      %4901 = vst [vmem:[%s231 + $0xb4] sm:$0xf] %v4837
      %4902 = vst [vmem:[%s231 + $0xb8] sm:$0xf] %v4838
      %4903 = vst [vmem:[%s231 + $0xbc] sm:$0xf] %v4839
      %4904 = vst [vmem:[%s231 + $0xc0] sm:$0xf] %v4840
      %4905 = vst [vmem:[%s231 + $0xc4] sm:$0xf] %v4841
      %4906 = vst [vmem:[%s231 + $0xc8] sm:$0xf] %v4842
      %4907 = vst [vmem:[%s231 + $0xcc] sm:$0xf] %v4843
      %4908 = vst [vmem:[%s231 + $0xd0] sm:$0xf] %v4844
      %4909 = vst [vmem:[%s231 + $0xd4] sm:$0xf] %v4845
      %4910 = vst [vmem:[%s231 + $0xd8] sm:$0xf] %v4846
      %4911 = vst [vmem:[%s231 + $0xdc] sm:$0xf] %v4847
      %4912 = vst [vmem:[%s231 + $0xe0] sm:$0xf] %v4848
      %4913 = vst [vmem:[%s231 + $0xe4] sm:$0xf] %v4849
      %4914 = vst [vmem:[%s231 + $0xe8] sm:$0xf] %v4850
      %4915 = vst [vmem:[%s231 + $0xec] sm:$0xf] %v4851
      %4916 = vst [vmem:[%s231 + $0xf0] sm:$0xf] %v4852
      %4917 = vst [vmem:[%s231 + $0xf4] sm:$0xf] %v4853
      %4918 = vst [vmem:[%s231 + $0xf8] sm:$0xf] %v4854
      %4919 = vst [vmem:[%s231 + $0xfc] sm:$0xf] %v4855
      %p4920 = scmp.lt.s32.totalorder %s17, 1
      %s4921 = scalar_select %p4920, %s17, 1
      %s4922 = smul.addr %s4921, 64
      %s4923 = smul.addr %s4922, 4
      %s4924 = scalar_lea.vmem %s4, %s4923
      %p4925 = scmp.lt.s32.totalorder %s17, 1
      %s4926 = scalar_select %p4925, %s17, 1
      %s4927 = smul.addr %s4926, 2
      %s4928 = scalar_lea.vmem %s5, %s4927
      // Predicated region
      $region37: #{double_conv_forward.4} parent=35 // pred_check
        %p4929 = pneg %p124
      $region38: #{double_conv_forward.4} parent=35 // pred_check_branch
        %4931 = sbr.rel (%p4929) target = $region40
      $region39: #{double_conv_forward.4} parent=35 // pred_region
        _
      $region40: #{double_conv_forward.4} parent=35 // pred_fallthru
        _
      // Predicated region
      $region41: #{double_conv_forward.4} parent=35 // pred_check
        %p4932 = pneg %p150
      $region42: #{double_conv_forward.4} parent=35 // pred_check_branch
        %4934 = sbr.rel (%p4932) target = $region44
      $region43: #{double_conv_forward.4} parent=35 // pred_region
        _
      $region44: #{double_conv_forward.4} parent=35 // pred_fallthru
        _
    $region36: #{double_conv_forward.4} parent=5 // pred_fallthru
      _
    %p4935 = scmp.le.s32.totalorder 2, %s12
    // Predicated region
    $region45: #{double_conv_forward.4} parent=5 // pred_check
      %p4936 = pneg %p4935
    $region46: #{double_conv_forward.4} parent=5 // pred_check_branch
      %4938 = sbr.rel (%p4936) target = $region48
    $region47: #{double_conv_forward.4} parent=5 // pred_region
      %s4939 = ssub.s32 %s12, 2
      // Predicated region
      $region49: #{double_conv_forward.4} parent=47 // pred_check
        %p4940 = pneg %p130
      $region50: #{double_conv_forward.4} parent=47 // pred_check_branch
        %4942 = sbr.rel (%p4940) target = $region52
      $region51: #{double_conv_forward.4} parent=47 // pred_region
        %p4943 = scmp.lt.s32.totalorder %s18, 1
        %s4944 = scalar_select %p4943, %s18, 1
        %s4945 = smul.addr %s4944, 64
        %s4946 = smul.addr %s4945, 4
        %s4947 = scalar_lea.vmem %s4, %s4946
      $region52: #{double_conv_forward.4} parent=47 // pred_fallthru
        _
      // Predicated region
      $region53: #{double_conv_forward.4} parent=47 // pred_check
        %p4948 = pneg %p156
      $region54: #{double_conv_forward.4} parent=47 // pred_check_branch
        %4950 = sbr.rel (%p4948) target = $region56
      $region55: #{double_conv_forward.4} parent=47 // pred_region
        %p4951 = scmp.lt.s32.totalorder %s18, 1
        %s4952 = scalar_select %p4951, %s18, 1
        %s4953 = smul.addr %s4952, 2
        %s4954 = scalar_lea.vmem %s5, %s4953
      $region56: #{double_conv_forward.4} parent=47 // pred_fallthru
        _
    $region48: #{double_conv_forward.4} parent=5 // pred_fallthru
      _
  $region6: #{double_conv_forward.4} parent=0 // loop_footer
    %s16 = sadd.s32 1, %s12
  $region7: #{double_conv_forward.4} parent=0 // loop_footer_branch
    %11 = sbr.rel target = $region3
  $region8: #{double_conv_forward.4} parent=0 // loop_exit
    _

</llo_original>
